<compile_context>
chip_gen: v7x
topology: tpu7x:2x2x1
jax: 0.10.0
libtpu: 0.0.40
codegen_flags: <defaults>
</compile_context>

<pallas_src>
import math

import numpy as np
import jax
import jax.numpy as jnp
from jax.experimental import pallas as pl
from jax.experimental.pallas import tpu as pltpu


# --------------------------- upsample (US2) operators ----------------------- #

def _lerp_matrix_1d(size_in: int, size_out: int) -> np.ndarray:
    """align_corners=True linear-interp matrix, shape (size_out, size_in), f32."""
    m = np.zeros((size_out, size_in), np.float32)
    if size_in == 1:
        m[:, 0] = 1.0
        return m
    scale = (size_in - 1) / (size_out - 1)
    for o in range(size_out):
        pos = o * scale
        lo = int(math.floor(pos))
        hi = min(lo + 1, size_in - 1)
        f = np.float32(pos - lo)
        m[o, lo] += np.float32(1.0) - f
        m[o, hi] += f
    return m


def _us2_matrix(h: int, w: int) -> np.ndarray:
    """Per-sample 2x bilinear upsample as (4*h*w, h*w) on row-major (i*w + j)."""
    return np.kron(_lerp_matrix_1d(h, 2 * h), _lerp_matrix_1d(w, 2 * w)).astype(np.float32)


def _us2_operator(h: int, w: int, n_batch: int) -> jnp.ndarray:
    """US2 matrix for the fused kernel.

    Per-sample (q, p) form when the coarse pixel count p = h*w is sublane
    aligned (the kernel then slices z per sample, aligned static slices).
    Otherwise (only the tiny 2x2 level) a block-diagonal kron(I_N, U) so the
    kernel does a single dot and never slices at unaligned sublane offsets.
    """
    u = _us2_matrix(h, w)
    if (h * w) % 8 != 0:
        u = np.kron(np.eye(n_batch, dtype=np.float32), u)
    return jnp.asarray(u)


# ------------------------------ fused kernel -------------------------------- #

def _build_decoder_kernel(n_batch: int):
    f32 = jnp.float32
    bf16 = jnp.bfloat16

    def mm(a, b):
        return jnp.dot(a, b, preferred_element_type=f32)

    def relu(v):
        return jnp.maximum(v, 0.0)

    def upsample(z_f32, u_ref):
        # z: (rows, C) f32 coarse product;  u: (q, p) f32 lerp matrix.
        # Returns US2(z) at fine resolution, f32 (no bf16 rounding of the
        # pre-activation partial sum).
        q, p = u_ref.shape
        rows = z_f32.shape[0]
        u = u_ref[...]
        if p == rows:                       # block-diagonal operator (all samples)
            return mm(u, z_f32)
        parts = [mm(u, z_f32[s * p:(s + 1) * p, :]) for s in range(n_batch)]
        return jnp.concatenate(parts, axis=0)

    def kernel(x5_ref, x4_ref, x3_ref, x2_ref, x1_ref,
               wd5_ref, bd5_ref, wd4_ref, bd4_ref,
               wd3_ref, bd3_ref, wd2_ref, bd2_ref,
               wc4a_ref, wc4b_ref, bc4_ref,
               wc3a_ref, wc3b_ref, bc3_ref,
               wc2a_ref, wc2b_ref, bc2_ref,
               wc1a_ref, wc1b_ref, bc1_ref,
               u4_ref, u3_ref, u2_ref, u1_ref,
               o_ref):
        # ---- level 5 (coarse): z5 = d5(F5) @ Wc4b, kept in f32 ----
        x5 = x5_ref[...].astype(bf16)
        h5 = relu(mm(x5, wd5_ref[...]) + bd5_ref[...]).astype(bf16)
        z5 = mm(h5, wc4b_ref[...])                    # (N*h5*w5, 128) f32
        u4 = upsample(z5, u4_ref)                     # == US2(d5(F5)) @ Wc4b, f32

        # ---- level 4: P4 = relu(d4(F4) @ Wc4a + US2(d5(F5)) @ Wc4b + bc4) ----
        x4 = x4_ref[...].astype(bf16)
        h4 = relu(mm(x4, wd4_ref[...]) + bd4_ref[...]).astype(bf16)
        p4 = relu(mm(h4, wc4a_ref[...]) + u4 + bc4_ref[...]).astype(bf16)
        z4 = mm(p4, wc3b_ref[...])
        u3 = upsample(z4, u3_ref)

        # ---- level 3 ----
        x3 = x3_ref[...].astype(bf16)
        h3 = relu(mm(x3, wd3_ref[...]) + bd3_ref[...]).astype(bf16)
        p3 = relu(mm(h3, wc3a_ref[...]) + u3 + bc3_ref[...]).astype(bf16)
        z3 = mm(p3, wc2b_ref[...])
        u2 = upsample(z3, u2_ref)

        # ---- level 2 ----
        x2 = x2_ref[...].astype(bf16)
        h2 = relu(mm(x2, wd2_ref[...]) + bd2_ref[...]).astype(bf16)
        p2 = relu(mm(h2, wc2a_ref[...]) + u2 + bc2_ref[...]).astype(bf16)
        z2 = mm(p2, wc1b_ref[...])                    # (N*256, 64) f32
        u1 = upsample(z2, u1_ref)                     # (N*1024, 64) f32

        # ---- level 1: S = relu(F1 @ Wc1a + US2(P2 @ Wc1b) + bc1) ----
        x1 = x1_ref[...].astype(bf16)
        s = relu(mm(x1, wc1a_ref[...]) + u1 + bc1_ref[...])
        o_ref[...] = s.astype(o_ref.dtype)

    return kernel


# ------------------------------- JAX wrapper -------------------------------- #

def decoder0_forward(params, F1, F2, F3, F4, F5):
    n, h1, w1, _ = F1.shape
    cout = params["c1_wa"].shape[1]
    m_out = n * h1 * w1

    def flat(x):
        return x.reshape(-1, x.shape[-1])          # keep f32; cast in-kernel

    x1, x2, x3, x4, x5 = flat(F1), flat(F2), flat(F3), flat(F4), flat(F5)

    # US2 operators (trace-time constants, depend only on spatial sizes).
    u4m = _us2_operator(F5.shape[1], F5.shape[2], n)
    u3m = _us2_operator(F4.shape[1], F4.shape[2], n)
    u2m = _us2_operator(F3.shape[1], F3.shape[2], n)
    u1m = _us2_operator(F2.shape[1], F2.shape[2], n)

    args = (x5, x4, x3, x2, x1,
            params["d5_w"], params["d5_b"], params["d4_w"], params["d4_b"],
            params["d3_w"], params["d3_b"], params["d2_w"], params["d2_b"],
            params["c4_wa"], params["c4_wb"], params["c4_b"],
            params["c3_wa"], params["c3_wb"], params["c3_b"],
            params["c2_wa"], params["c2_wb"], params["c2_b"],
            params["c1_wa"], params["c1_wb"], params["c1_b"],
            u4m, u3m, u2m, u1m)

    def full_spec(a):
        assert a.ndim == 2, a.shape
        return pl.BlockSpec(a.shape, lambda i: (0, 0))

    out = pl.pallas_call(
        _build_decoder_kernel(n),
        out_shape=jax.ShapeDtypeStruct((m_out, cout), jnp.float32),
        grid_spec=pltpu.PrefetchScalarGridSpec(
            num_scalar_prefetch=0,
            grid=(1,),
            in_specs=[full_spec(a) for a in args],
            out_specs=pl.BlockSpec((m_out, cout), lambda i: (0, 0)),
        ),
        compiler_params=pltpu.CompilerParams(
            dimension_semantics=("arbitrary",),
            vmem_limit_bytes=48 * 1024 * 1024,   # ~12 MiB used; safe on v5e/v6e/v7x
        ),
    )(*args)
    return out.reshape(n, h1, w1, cout)


# --------------------------------- params ----------------------------------- #

def make_convbnrelu_params(key, cin, cout, eps=1e-5):
    """Deterministic synthetic Conv2d(1x1, bias=False) + BN params, BN folded."""
    k1, k2, k3, k4, k5 = jax.random.split(key, 5)
    w = jax.random.normal(k1, (cin, cout), jnp.float32) * (1.0 / math.sqrt(cin))
    gamma = jax.random.uniform(k2, (cout,), jnp.float32, minval=0.5, maxval=1.5)
    beta = jax.random.normal(k3, (cout,), jnp.float32) * 0.1
    run_mean = jax.random.normal(k4, (cout,), jnp.float32) * 0.1
    run_var = jax.random.uniform(k5, (cout,), jnp.float32, minval=0.5, maxval=1.5)
    scale = gamma / jnp.sqrt(run_var + eps)
    w_eff = w * scale[None, :]
    b_eff = (beta - run_mean * scale)[None, :]
    return w_eff, b_eff


def init_decoder0_params(key):
    shapes = {
        "d5": (2048, 128), "d4": (1024, 128), "d3": (512, 128), "d2": (256, 128),
        "c4": (256, 128), "c3": (256, 128), "c2": (256, 128), "c1": (192, 64),
    }
    raw = {}
    keys = jax.random.split(key, len(shapes))
    for k, (name, (cin, cout)) in zip(keys, shapes.items()):
        raw[name] = make_convbnrelu_params(k, cin, cout)

    def w16(w):
        return w.astype(jnp.bfloat16)

    p = {}
    for name in ("d5", "d4", "d3", "d2"):
        w, b = raw[name]
        p[name + "_w"] = w16(w)
        p[name + "_b"] = b                 # f32 (1, cout)
    # concat order is cat([fine, US2(coarse)]) => Wa = W[:fine_ch], Wb = W[fine_ch:]
    for name, fine_ch in (("c4", 128), ("c3", 128), ("c2", 128), ("c1", 64)):
        w, b = raw[name]
        p[name + "_wa"] = w16(w[:fine_ch])
        p[name + "_wb"] = w16(w[fine_ch:])
        p[name + "_b"] = b
    return p


# ------------------------- pure-JAX f32 reference --------------------------- #

def _us2_ref(x):
    """NHWC f32 bilinear 2x upsample, align_corners=True."""
    n, h, w, c = x.shape
    mh = jnp.asarray(_lerp_matrix_1d(h, 2 * h))
    mw = jnp.asarray(_lerp_matrix_1d(w, 2 * w))
    x = jnp.einsum("oh,nhwc->nowc", mh, x)
    x = jnp.einsum("ow,nhwc->nhoc", mw, x)
    return x


def decoder0_reference(params, F1, F2, F3, F4, F5):
    """Concat-then-conv reference (same folded weights, f32 math)."""
    f32 = jnp.float32

    def cbr(x, w, b):
        y = jnp.einsum("nhwc,cd->nhwd", x.astype(f32), w.astype(f32)) + b.reshape(-1)
        return jnp.maximum(y, 0.0)

    d5 = cbr(F5, params["d5_w"], params["d5_b"])
    d4 = cbr(F4, params["d4_w"], params["d4_b"])
    d3 = cbr(F3, params["d3_w"], params["d3_b"])
    d2 = cbr(F2, params["d2_w"], params["d2_b"])

    def cat_w(name):
        return jnp.concatenate(
            [params[name + "_wa"].astype(f32), params[name + "_wb"].astype(f32)], axis=0)

    p4 = cbr(jnp.concatenate([d4, _us2_ref(d5)], axis=-1), cat_w("c4"), params["c4_b"])
    p3 = cbr(jnp.concatenate([d3, _us2_ref(p4)], axis=-1), cat_w("c3"), params["c3_b"])
    p2 = cbr(jnp.concatenate([d2, _us2_ref(p3)], axis=-1), cat_w("c2"), params["c2_b"])
    s = cbr(jnp.concatenate([F1.astype(f32), _us2_ref(p2)], axis=-1),
            cat_w("c1"), params["c1_b"])
    return s


# ----------------------------------- main ------------------------------------ #

if __name__ == "__main__":
    key = jax.random.PRNGKey(0)
    kp, k1, k2, k3, k4, k5 = jax.random.split(key, 6)

    params = init_decoder0_params(kp)

    # Small feature-pyramid shapes (NHWC), channels matching the module:
    # F5: 2048 @ 2x2, F4: 1024 @ 4x4, F3: 512 @ 8x8, F2: 256 @ 16x16, F1: 64 @ 32x32.
    N = 2
    F5 = jax.random.normal(k5, (N, 2, 2, 2048), jnp.float32)
    F4 = jax.random.normal(k4, (N, 4, 4, 1024), jnp.float32)
    F3 = jax.random.normal(k3, (N, 8, 8, 512), jnp.float32)
    F2 = jax.random.normal(k2, (N, 16, 16, 256), jnp.float32)
    F1 = jax.random.normal(k1, (N, 32, 32, 64), jnp.float32)

    fwd = jax.jit(decoder0_forward)
    S = fwd(params, F1, F2, F3, F4, F5)
    jax.block_until_ready(S)

    assert S.shape == (N, 32, 32, 64), S.shape
    assert S.dtype == jnp.float32
    assert bool(jnp.all(jnp.isfinite(S)))

    # Correctness vs. a pure-JAX f32 concat-then-conv reference (bf16 MXU inputs
    # inside the kernel => loose normalized tolerance).
    S_ref = jax.jit(decoder0_reference)(params, F1, F2, F3, F4, F5)
    jax.block_until_ready(S_ref)
    err = float(jnp.max(jnp.abs(S - S_ref)) / (jnp.max(jnp.abs(S_ref)) + 1e-6))
    assert err < 0.1, f"mismatch vs reference: normalized max err {err}"

    print("KERNEL_OK")
</pallas_src>

<mosaic_0001>
module attributes {stable_mosaic.version = 11 : i64} {
  func.func @kernel(%arg0: i32, %arg1: memref<8x2048xf32, #tpu.memory_space<vmem>>, %arg2: memref<32x1024xf32, #tpu.memory_space<vmem>>, %arg3: memref<128x512xf32, #tpu.memory_space<vmem>>, %arg4: memref<512x256xf32, #tpu.memory_space<vmem>>, %arg5: memref<2048x64xf32, #tpu.memory_space<vmem>>, %arg6: memref<2048x128xbf16, #tpu.memory_space<vmem>>, %arg7: memref<1x128xf32, #tpu.memory_space<vmem>>, %arg8: memref<1024x128xbf16, #tpu.memory_space<vmem>>, %arg9: memref<1x128xf32, #tpu.memory_space<vmem>>, %arg10: memref<512x128xbf16, #tpu.memory_space<vmem>>, %arg11: memref<1x128xf32, #tpu.memory_space<vmem>>, %arg12: memref<256x128xbf16, #tpu.memory_space<vmem>>, %arg13: memref<1x128xf32, #tpu.memory_space<vmem>>, %arg14: memref<128x128xbf16, #tpu.memory_space<vmem>>, %arg15: memref<128x128xbf16, #tpu.memory_space<vmem>>, %arg16: memref<1x128xf32, #tpu.memory_space<vmem>>, %arg17: memref<128x128xbf16, #tpu.memory_space<vmem>>, %arg18: memref<128x128xbf16, #tpu.memory_space<vmem>>, %arg19: memref<1x128xf32, #tpu.memory_space<vmem>>, %arg20: memref<128x128xbf16, #tpu.memory_space<vmem>>, %arg21: memref<128x128xbf16, #tpu.memory_space<vmem>>, %arg22: memref<1x128xf32, #tpu.memory_space<vmem>>, %arg23: memref<64x64xbf16, #tpu.memory_space<vmem>>, %arg24: memref<128x64xbf16, #tpu.memory_space<vmem>>, %arg25: memref<1x64xf32, #tpu.memory_space<vmem>>, %arg26: memref<32x8xf32, #tpu.memory_space<vmem>>, %arg27: memref<64x16xf32, #tpu.memory_space<vmem>>, %arg28: memref<256x64xf32, #tpu.memory_space<vmem>>, %arg29: memref<1024x256xf32, #tpu.memory_space<vmem>>, %arg30: memref<2048x64xf32, #tpu.memory_space<vmem>>) attributes {dimension_semantics = [#tpu.dimension_semantics<arbitrary>], iteration_bounds = array<i64: 1>, scalar_prefetch = 0 : i64, scratch_operands = 0 : i64, tpu.core_type = #tpu.core_type<tc>, window_params = [{pipeline_mode = #tpu.pipeline_mode<synchronous>, transform_indices = @transform_0, window_bounds = array<i64: 8, 2048>}, {pipeline_mode = #tpu.pipeline_mode<synchronous>, transform_indices = @transform_1, window_bounds = array<i64: 32, 1024>}, {pipeline_mode = #tpu.pipeline_mode<synchronous>, transform_indices = @transform_2, window_bounds = array<i64: 128, 512>}, {pipeline_mode = #tpu.pipeline_mode<synchronous>, transform_indices = @transform_3, window_bounds = array<i64: 512, 256>}, {pipeline_mode = #tpu.pipeline_mode<synchronous>, transform_indices = @transform_4, window_bounds = array<i64: 2048, 64>}, {pipeline_mode = #tpu.pipeline_mode<synchronous>, transform_indices = @transform_5, window_bounds = array<i64: 2048, 128>}, {pipeline_mode = #tpu.pipeline_mode<synchronous>, transform_indices = @transform_6, window_bounds = array<i64: 1, 128>}, {pipeline_mode = #tpu.pipeline_mode<synchronous>, transform_indices = @transform_7, window_bounds = array<i64: 1024, 128>}, {pipeline_mode = #tpu.pipeline_mode<synchronous>, transform_indices = @transform_8, window_bounds = array<i64: 1, 128>}, {pipeline_mode = #tpu.pipeline_mode<synchronous>, transform_indices = @transform_9, window_bounds = array<i64: 512, 128>}, {pipeline_mode = #tpu.pipeline_mode<synchronous>, transform_indices = @transform_10, window_bounds = array<i64: 1, 128>}, {pipeline_mode = #tpu.pipeline_mode<synchronous>, transform_indices = @transform_11, window_bounds = array<i64: 256, 128>}, {pipeline_mode = #tpu.pipeline_mode<synchronous>, transform_indices = @transform_12, window_bounds = array<i64: 1, 128>}, {pipeline_mode = #tpu.pipeline_mode<synchronous>, transform_indices = @transform_13, window_bounds = array<i64: 128, 128>}, {pipeline_mode = #tpu.pipeline_mode<synchronous>, transform_indices = @transform_14, window_bounds = array<i64: 128, 128>}, {pipeline_mode = #tpu.pipeline_mode<synchronous>, transform_indices = @transform_15, window_bounds = array<i64: 1, 128>}, {pipeline_mode = #tpu.pipeline_mode<synchronous>, transform_indices = @transform_16, window_bounds = array<i64: 128, 128>}, {pipeline_mode = #tpu.pipeline_mode<synchronous>, transform_indices = @transform_17, window_bounds = array<i64: 128, 128>}, {pipeline_mode = #tpu.pipeline_mode<synchronous>, transform_indices = @transform_18, window_bounds = array<i64: 1, 128>}, {pipeline_mode = #tpu.pipeline_mode<synchronous>, transform_indices = @transform_19, window_bounds = array<i64: 128, 128>}, {pipeline_mode = #tpu.pipeline_mode<synchronous>, transform_indices = @transform_20, window_bounds = array<i64: 128, 128>}, {pipeline_mode = #tpu.pipeline_mode<synchronous>, transform_indices = @transform_21, window_bounds = array<i64: 1, 128>}, {pipeline_mode = #tpu.pipeline_mode<synchronous>, transform_indices = @transform_22, window_bounds = array<i64: 64, 64>}, {pipeline_mode = #tpu.pipeline_mode<synchronous>, transform_indices = @transform_23, window_bounds = array<i64: 128, 64>}, {pipeline_mode = #tpu.pipeline_mode<synchronous>, transform_indices = @transform_24, window_bounds = array<i64: 1, 64>}, {pipeline_mode = #tpu.pipeline_mode<synchronous>, transform_indices = @transform_25, window_bounds = array<i64: 32, 8>}, {pipeline_mode = #tpu.pipeline_mode<synchronous>, transform_indices = @transform_26, window_bounds = array<i64: 64, 16>}, {pipeline_mode = #tpu.pipeline_mode<synchronous>, transform_indices = @transform_27, window_bounds = array<i64: 256, 64>}, {pipeline_mode = #tpu.pipeline_mode<synchronous>, transform_indices = @transform_28, window_bounds = array<i64: 1024, 256>}, {pipeline_mode = #tpu.pipeline_mode<synchronous>, transform_indices = @transform_29, window_bounds = array<i64: 2048, 64>}]} {
    %c0 = arith.constant 0 : index
    %c0_0 = arith.constant 0 : index
    %0 = vector.load %arg1[%c0, %c0_0] : memref<8x2048xf32, #tpu.memory_space<vmem>>, vector<8x2048xf32>
    %1 = arith.truncf %0 : vector<8x2048xf32> to vector<8x2048xbf16>
    %c0_1 = arith.constant 0 : index
    %c0_2 = arith.constant 0 : index
    %2 = vector.load %arg6[%c0_1, %c0_2] : memref<2048x128xbf16, #tpu.memory_space<vmem>>, vector<2048x128xbf16>
    %cst = arith.constant dense<0.000000e+00> : vector<8x128xf32>
    %3 = tpu.matmul %1, %2, %cst {dimension_numbers = #tpu.dot_dimension_numbers<[1], [0], [0], [1], [0, 0, 1, 1], [], []>} : vector<8x2048xbf16>, vector<2048x128xbf16>, vector<8x128xf32> -> vector<8x128xf32>
    %c0_3 = arith.constant 0 : index
    %c0_4 = arith.constant 0 : index
    %4 = vector.load %arg7[%c0_3, %c0_4] : memref<1x128xf32, #tpu.memory_space<vmem>>, vector<1x128xf32>
    %5 = vector.broadcast %4 : vector<1x128xf32> to vector<8x128xf32>
    %6 = arith.addf %3, %5 : vector<8x128xf32>
    %cst_5 = arith.constant 0.000000e+00 : f32
    %7 = vector.broadcast %cst_5 : f32 to vector<8x128xf32>
    %8 = arith.maximumf %6, %7 : vector<8x128xf32>
    %9 = arith.truncf %8 : vector<8x128xf32> to vector<8x128xbf16>
    %c0_6 = arith.constant 0 : index
    %c0_7 = arith.constant 0 : index
    %10 = vector.load %arg15[%c0_6, %c0_7] : memref<128x128xbf16, #tpu.memory_space<vmem>>, vector<128x128xbf16>
    %cst_8 = arith.constant dense<0.000000e+00> : vector<8x128xf32>
    %11 = tpu.matmul %9, %10, %cst_8 {dimension_numbers = #tpu.dot_dimension_numbers<[1], [0], [0], [1], [0, 0, 1, 1], [], []>} : vector<8x128xbf16>, vector<128x128xbf16>, vector<8x128xf32> -> vector<8x128xf32>
    %c0_9 = arith.constant 0 : index
    %c0_10 = arith.constant 0 : index
    %12 = vector.load %arg26[%c0_9, %c0_10] : memref<32x8xf32, #tpu.memory_space<vmem>>, vector<32x8xf32>
    %cst_11 = arith.constant dense<0.000000e+00> : vector<32x128xf32>
    %13 = tpu.matmul %12, %11, %cst_11 {dimension_numbers = #tpu.dot_dimension_numbers<[1], [0], [0], [1], [0, 0, 1, 1], [], []>} : vector<32x8xf32>, vector<8x128xf32>, vector<32x128xf32> -> vector<32x128xf32>
    %c0_12 = arith.constant 0 : index
    %c0_13 = arith.constant 0 : index
    %14 = vector.load %arg2[%c0_12, %c0_13] : memref<32x1024xf32, #tpu.memory_space<vmem>>, vector<32x1024xf32>
    %15 = arith.truncf %14 : vector<32x1024xf32> to vector<32x1024xbf16>
    %c0_14 = arith.constant 0 : index
    %c0_15 = arith.constant 0 : index
    %16 = vector.load %arg8[%c0_14, %c0_15] : memref<1024x128xbf16, #tpu.memory_space<vmem>>, vector<1024x128xbf16>
    %cst_16 = arith.constant dense<0.000000e+00> : vector<32x128xf32>
    %17 = tpu.matmul %15, %16, %cst_16 {dimension_numbers = #tpu.dot_dimension_numbers<[1], [0], [0], [1], [0, 0, 1, 1], [], []>} : vector<32x1024xbf16>, vector<1024x128xbf16>, vector<32x128xf32> -> vector<32x128xf32>
    %c0_17 = arith.constant 0 : index
    %c0_18 = arith.constant 0 : index
    %18 = vector.load %arg9[%c0_17, %c0_18] : memref<1x128xf32, #tpu.memory_space<vmem>>, vector<1x128xf32>
    %19 = vector.broadcast %18 : vector<1x128xf32> to vector<32x128xf32>
    %20 = arith.addf %17, %19 : vector<32x128xf32>
    %cst_19 = arith.constant 0.000000e+00 : f32
    %21 = vector.broadcast %cst_19 : f32 to vector<32x128xf32>
    %22 = arith.maximumf %20, %21 : vector<32x128xf32>
    %23 = arith.truncf %22 : vector<32x128xf32> to vector<32x128xbf16>
    %c0_20 = arith.constant 0 : index
    %c0_21 = arith.constant 0 : index
    %24 = vector.load %arg14[%c0_20, %c0_21] : memref<128x128xbf16, #tpu.memory_space<vmem>>, vector<128x128xbf16>
    %cst_22 = arith.constant dense<0.000000e+00> : vector<32x128xf32>
    %25 = tpu.matmul %23, %24, %cst_22 {dimension_numbers = #tpu.dot_dimension_numbers<[1], [0], [0], [1], [0, 0, 1, 1], [], []>} : vector<32x128xbf16>, vector<128x128xbf16>, vector<32x128xf32> -> vector<32x128xf32>
    %26 = arith.addf %25, %13 : vector<32x128xf32>
    %c0_23 = arith.constant 0 : index
    %c0_24 = arith.constant 0 : index
    %27 = vector.load %arg16[%c0_23, %c0_24] : memref<1x128xf32, #tpu.memory_space<vmem>>, vector<1x128xf32>
    %28 = vector.broadcast %27 : vector<1x128xf32> to vector<32x128xf32>
    %29 = arith.addf %26, %28 : vector<32x128xf32>
    %cst_25 = arith.constant 0.000000e+00 : f32
    %30 = vector.broadcast %cst_25 : f32 to vector<32x128xf32>
    %31 = arith.maximumf %29, %30 : vector<32x128xf32>
    %32 = arith.truncf %31 : vector<32x128xf32> to vector<32x128xbf16>
    %c0_26 = arith.constant 0 : index
    %c0_27 = arith.constant 0 : index
    %33 = vector.load %arg18[%c0_26, %c0_27] : memref<128x128xbf16, #tpu.memory_space<vmem>>, vector<128x128xbf16>
    %cst_28 = arith.constant dense<0.000000e+00> : vector<32x128xf32>
    %34 = tpu.matmul %32, %33, %cst_28 {dimension_numbers = #tpu.dot_dimension_numbers<[1], [0], [0], [1], [0, 0, 1, 1], [], []>} : vector<32x128xbf16>, vector<128x128xbf16>, vector<32x128xf32> -> vector<32x128xf32>
    %c0_29 = arith.constant 0 : index
    %c0_30 = arith.constant 0 : index
    %35 = vector.load %arg27[%c0_29, %c0_30] : memref<64x16xf32, #tpu.memory_space<vmem>>, vector<64x16xf32>
    %36 = vector.extract_strided_slice %34 {offsets = [0, 0], sizes = [16, 128], strides = [1, 1]} : vector<32x128xf32> to vector<16x128xf32>
    %cst_31 = arith.constant dense<0.000000e+00> : vector<64x128xf32>
    %37 = tpu.matmul %35, %36, %cst_31 {dimension_numbers = #tpu.dot_dimension_numbers<[1], [0], [0], [1], [0, 0, 1, 1], [], []>} : vector<64x16xf32>, vector<16x128xf32>, vector<64x128xf32> -> vector<64x128xf32>
    %38 = vector.extract_strided_slice %34 {offsets = [16, 0], sizes = [16, 128], strides = [1, 1]} : vector<32x128xf32> to vector<16x128xf32>
    %cst_32 = arith.constant dense<0.000000e+00> : vector<64x128xf32>
    %39 = tpu.matmul %35, %38, %cst_32 {dimension_numbers = #tpu.dot_dimension_numbers<[1], [0], [0], [1], [0, 0, 1, 1], [], []>} : vector<64x16xf32>, vector<16x128xf32>, vector<64x128xf32> -> vector<64x128xf32>
    %40 = tpu.concatenate %37, %39 in 0 : vector<64x128xf32>, vector<64x128xf32> -> vector<128x128xf32>
    %c0_33 = arith.constant 0 : index
    %c0_34 = arith.constant 0 : index
    %41 = vector.load %arg3[%c0_33, %c0_34] : memref<128x512xf32, #tpu.memory_space<vmem>>, vector<128x512xf32>
    %42 = arith.truncf %41 : vector<128x512xf32> to vector<128x512xbf16>
    %c0_35 = arith.constant 0 : index
    %c0_36 = arith.constant 0 : index
    %43 = vector.load %arg10[%c0_35, %c0_36] : memref<512x128xbf16, #tpu.memory_space<vmem>>, vector<512x128xbf16>
    %cst_37 = arith.constant dense<0.000000e+00> : vector<128x128xf32>
    %44 = tpu.matmul %42, %43, %cst_37 {dimension_numbers = #tpu.dot_dimension_numbers<[1], [0], [0], [1], [0, 0, 1, 1], [], []>} : vector<128x512xbf16>, vector<512x128xbf16>, vector<128x128xf32> -> vector<128x128xf32>
    %c0_38 = arith.constant 0 : index
    %c0_39 = arith.constant 0 : index
    %45 = vector.load %arg11[%c0_38, %c0_39] : memref<1x128xf32, #tpu.memory_space<vmem>>, vector<1x128xf32>
    %46 = vector.broadcast %45 : vector<1x128xf32> to vector<128x128xf32>
    %47 = arith.addf %44, %46 : vector<128x128xf32>
    %cst_40 = arith.constant 0.000000e+00 : f32
    %48 = vector.broadcast %cst_40 : f32 to vector<128x128xf32>
    %49 = arith.maximumf %47, %48 : vector<128x128xf32>
    %50 = arith.truncf %49 : vector<128x128xf32> to vector<128x128xbf16>
    %c0_41 = arith.constant 0 : index
    %c0_42 = arith.constant 0 : index
    %51 = vector.load %arg17[%c0_41, %c0_42] : memref<128x128xbf16, #tpu.memory_space<vmem>>, vector<128x128xbf16>
    %cst_43 = arith.constant dense<0.000000e+00> : vector<128x128xf32>
    %52 = tpu.matmul %50, %51, %cst_43 {dimension_numbers = #tpu.dot_dimension_numbers<[1], [0], [0], [1], [0, 0, 1, 1], [], []>} : vector<128x128xbf16>, vector<128x128xbf16>, vector<128x128xf32> -> vector<128x128xf32>
    %53 = arith.addf %52, %40 : vector<128x128xf32>
    %c0_44 = arith.constant 0 : index
    %c0_45 = arith.constant 0 : index
    %54 = vector.load %arg19[%c0_44, %c0_45] : memref<1x128xf32, #tpu.memory_space<vmem>>, vector<1x128xf32>
    %55 = vector.broadcast %54 : vector<1x128xf32> to vector<128x128xf32>
    %56 = arith.addf %53, %55 : vector<128x128xf32>
    %cst_46 = arith.constant 0.000000e+00 : f32
    %57 = vector.broadcast %cst_46 : f32 to vector<128x128xf32>
    %58 = arith.maximumf %56, %57 : vector<128x128xf32>
    %59 = arith.truncf %58 : vector<128x128xf32> to vector<128x128xbf16>
    %c0_47 = arith.constant 0 : index
    %c0_48 = arith.constant 0 : index
    %60 = vector.load %arg21[%c0_47, %c0_48] : memref<128x128xbf16, #tpu.memory_space<vmem>>, vector<128x128xbf16>
    %cst_49 = arith.constant dense<0.000000e+00> : vector<128x128xf32>
    %61 = tpu.matmul %59, %60, %cst_49 {dimension_numbers = #tpu.dot_dimension_numbers<[1], [0], [0], [1], [0, 0, 1, 1], [], []>} : vector<128x128xbf16>, vector<128x128xbf16>, vector<128x128xf32> -> vector<128x128xf32>
    %c0_50 = arith.constant 0 : index
    %c0_51 = arith.constant 0 : index
    %62 = vector.load %arg28[%c0_50, %c0_51] : memref<256x64xf32, #tpu.memory_space<vmem>>, vector<256x64xf32>
    %63 = vector.extract_strided_slice %61 {offsets = [0, 0], sizes = [64, 128], strides = [1, 1]} : vector<128x128xf32> to vector<64x128xf32>
    %cst_52 = arith.constant dense<0.000000e+00> : vector<256x128xf32>
    %64 = tpu.matmul %62, %63, %cst_52 {dimension_numbers = #tpu.dot_dimension_numbers<[1], [0], [0], [1], [0, 0, 1, 1], [], []>} : vector<256x64xf32>, vector<64x128xf32>, vector<256x128xf32> -> vector<256x128xf32>
    %65 = vector.extract_strided_slice %61 {offsets = [64, 0], sizes = [64, 128], strides = [1, 1]} : vector<128x128xf32> to vector<64x128xf32>
    %cst_53 = arith.constant dense<0.000000e+00> : vector<256x128xf32>
    %66 = tpu.matmul %62, %65, %cst_53 {dimension_numbers = #tpu.dot_dimension_numbers<[1], [0], [0], [1], [0, 0, 1, 1], [], []>} : vector<256x64xf32>, vector<64x128xf32>, vector<256x128xf32> -> vector<256x128xf32>
    %67 = tpu.concatenate %64, %66 in 0 : vector<256x128xf32>, vector<256x128xf32> -> vector<512x128xf32>
    %c0_54 = arith.constant 0 : index
    %c0_55 = arith.constant 0 : index
    %68 = vector.load %arg4[%c0_54, %c0_55] : memref<512x256xf32, #tpu.memory_space<vmem>>, vector<512x256xf32>
    %69 = arith.truncf %68 : vector<512x256xf32> to vector<512x256xbf16>
    %c0_56 = arith.constant 0 : index
    %c0_57 = arith.constant 0 : index
    %70 = vector.load %arg12[%c0_56, %c0_57] : memref<256x128xbf16, #tpu.memory_space<vmem>>, vector<256x128xbf16>
    %cst_58 = arith.constant dense<0.000000e+00> : vector<512x128xf32>
    %71 = tpu.matmul %69, %70, %cst_58 {dimension_numbers = #tpu.dot_dimension_numbers<[1], [0], [0], [1], [0, 0, 1, 1], [], []>} : vector<512x256xbf16>, vector<256x128xbf16>, vector<512x128xf32> -> vector<512x128xf32>
    %c0_59 = arith.constant 0 : index
    %c0_60 = arith.constant 0 : index
    %72 = vector.load %arg13[%c0_59, %c0_60] : memref<1x128xf32, #tpu.memory_space<vmem>>, vector<1x128xf32>
    %73 = vector.broadcast %72 : vector<1x128xf32> to vector<512x128xf32>
    %74 = arith.addf %71, %73 : vector<512x128xf32>
    %cst_61 = arith.constant 0.000000e+00 : f32
    %75 = vector.broadcast %cst_61 : f32 to vector<512x128xf32>
    %76 = arith.maximumf %74, %75 : vector<512x128xf32>
    %77 = arith.truncf %76 : vector<512x128xf32> to vector<512x128xbf16>
    %c0_62 = arith.constant 0 : index
    %c0_63 = arith.constant 0 : index
    %78 = vector.load %arg20[%c0_62, %c0_63] : memref<128x128xbf16, #tpu.memory_space<vmem>>, vector<128x128xbf16>
    %cst_64 = arith.constant dense<0.000000e+00> : vector<512x128xf32>
    %79 = tpu.matmul %77, %78, %cst_64 {dimension_numbers = #tpu.dot_dimension_numbers<[1], [0], [0], [1], [0, 0, 1, 1], [], []>} : vector<512x128xbf16>, vector<128x128xbf16>, vector<512x128xf32> -> vector<512x128xf32>
    %80 = arith.addf %79, %67 : vector<512x128xf32>
    %c0_65 = arith.constant 0 : index
    %c0_66 = arith.constant 0 : index
    %81 = vector.load %arg22[%c0_65, %c0_66] : memref<1x128xf32, #tpu.memory_space<vmem>>, vector<1x128xf32>
    %82 = vector.broadcast %81 : vector<1x128xf32> to vector<512x128xf32>
    %83 = arith.addf %80, %82 : vector<512x128xf32>
    %cst_67 = arith.constant 0.000000e+00 : f32
    %84 = vector.broadcast %cst_67 : f32 to vector<512x128xf32>
    %85 = arith.maximumf %83, %84 : vector<512x128xf32>
    %86 = arith.truncf %85 : vector<512x128xf32> to vector<512x128xbf16>
    %c0_68 = arith.constant 0 : index
    %c0_69 = arith.constant 0 : index
    %87 = vector.load %arg24[%c0_68, %c0_69] : memref<128x64xbf16, #tpu.memory_space<vmem>>, vector<128x64xbf16>
    %cst_70 = arith.constant dense<0.000000e+00> : vector<512x64xf32>
    %88 = tpu.matmul %86, %87, %cst_70 {dimension_numbers = #tpu.dot_dimension_numbers<[1], [0], [0], [1], [0, 0, 1, 1], [], []>} : vector<512x128xbf16>, vector<128x64xbf16>, vector<512x64xf32> -> vector<512x64xf32>
    %c0_71 = arith.constant 0 : index
    %c0_72 = arith.constant 0 : index
    %89 = vector.load %arg29[%c0_71, %c0_72] : memref<1024x256xf32, #tpu.memory_space<vmem>>, vector<1024x256xf32>
    %90 = vector.extract_strided_slice %88 {offsets = [0, 0], sizes = [256, 64], strides = [1, 1]} : vector<512x64xf32> to vector<256x64xf32>
    %cst_73 = arith.constant dense<0.000000e+00> : vector<1024x64xf32>
    %91 = tpu.matmul %89, %90, %cst_73 {dimension_numbers = #tpu.dot_dimension_numbers<[1], [0], [0], [1], [0, 0, 1, 1], [], []>} : vector<1024x256xf32>, vector<256x64xf32>, vector<1024x64xf32> -> vector<1024x64xf32>
    %92 = vector.extract_strided_slice %88 {offsets = [256, 0], sizes = [256, 64], strides = [1, 1]} : vector<512x64xf32> to vector<256x64xf32>
    %cst_74 = arith.constant dense<0.000000e+00> : vector<1024x64xf32>
    %93 = tpu.matmul %89, %92, %cst_74 {dimension_numbers = #tpu.dot_dimension_numbers<[1], [0], [0], [1], [0, 0, 1, 1], [], []>} : vector<1024x256xf32>, vector<256x64xf32>, vector<1024x64xf32> -> vector<1024x64xf32>
    %94 = tpu.concatenate %91, %93 in 0 : vector<1024x64xf32>, vector<1024x64xf32> -> vector<2048x64xf32>
    %c0_75 = arith.constant 0 : index
    %c0_76 = arith.constant 0 : index
    %95 = vector.load %arg5[%c0_75, %c0_76] : memref<2048x64xf32, #tpu.memory_space<vmem>>, vector<2048x64xf32>
    %96 = arith.truncf %95 : vector<2048x64xf32> to vector<2048x64xbf16>
    %c0_77 = arith.constant 0 : index
    %c0_78 = arith.constant 0 : index
    %97 = vector.load %arg23[%c0_77, %c0_78] : memref<64x64xbf16, #tpu.memory_space<vmem>>, vector<64x64xbf16>
    %cst_79 = arith.constant dense<0.000000e+00> : vector<2048x64xf32>
    %98 = tpu.matmul %96, %97, %cst_79 {dimension_numbers = #tpu.dot_dimension_numbers<[1], [0], [0], [1], [0, 0, 1, 1], [], []>} : vector<2048x64xbf16>, vector<64x64xbf16>, vector<2048x64xf32> -> vector<2048x64xf32>
    %99 = arith.addf %98, %94 : vector<2048x64xf32>
    %c0_80 = arith.constant 0 : index
    %c0_81 = arith.constant 0 : index
    %100 = vector.load %arg25[%c0_80, %c0_81] : memref<1x64xf32, #tpu.memory_space<vmem>>, vector<1x64xf32>
    %101 = vector.broadcast %100 : vector<1x64xf32> to vector<2048x64xf32>
    %102 = arith.addf %99, %101 : vector<2048x64xf32>
    %cst_82 = arith.constant 0.000000e+00 : f32
    %103 = vector.broadcast %cst_82 : f32 to vector<2048x64xf32>
    %104 = arith.maximumf %102, %103 : vector<2048x64xf32>
    %c0_83 = arith.constant 0 : index
    %c0_84 = arith.constant 0 : index
    %105 = vector.load %arg30[%c0_83, %c0_84] : memref<2048x64xf32, #tpu.memory_space<vmem>>, vector<2048x64xf32>
    tpu.vector_store %arg30[%c0_83, %c0_84], %104 {strides = array<i32>} : memref<2048x64xf32, #tpu.memory_space<vmem>>, vector<2048x64xf32>,
    return
  }
  func.func @transform_0(%arg0: i32) -> (i32, i32) {
    %c0_i32 = arith.constant 0 : i32
    %c0_i32_0 = arith.constant 0 : i32
    %c0_i32_1 = arith.constant 0 : i32
    return %c0_i32, %c0_i32_0 : i32, i32
  }
  func.func @transform_1(%arg0: i32) -> (i32, i32) {
    %c0_i32 = arith.constant 0 : i32
    %c0_i32_0 = arith.constant 0 : i32
    %c0_i32_1 = arith.constant 0 : i32
    return %c0_i32, %c0_i32_0 : i32, i32
  }
  func.func @transform_2(%arg0: i32) -> (i32, i32) {
    %c0_i32 = arith.constant 0 : i32
    %c0_i32_0 = arith.constant 0 : i32
    %c0_i32_1 = arith.constant 0 : i32
    return %c0_i32, %c0_i32_0 : i32, i32
  }
  func.func @transform_3(%arg0: i32) -> (i32, i32) {
    %c0_i32 = arith.constant 0 : i32
    %c0_i32_0 = arith.constant 0 : i32
    %c0_i32_1 = arith.constant 0 : i32
    return %c0_i32, %c0_i32_0 : i32, i32
  }
  func.func @transform_4(%arg0: i32) -> (i32, i32) {
    %c0_i32 = arith.constant 0 : i32
    %c0_i32_0 = arith.constant 0 : i32
    %c0_i32_1 = arith.constant 0 : i32
    return %c0_i32, %c0_i32_0 : i32, i32
  }
  func.func @transform_5(%arg0: i32) -> (i32, i32) {
    %c0_i32 = arith.constant 0 : i32
    %c0_i32_0 = arith.constant 0 : i32
    %c0_i32_1 = arith.constant 0 : i32
    return %c0_i32, %c0_i32_0 : i32, i32
  }
  func.func @transform_6(%arg0: i32) -> (i32, i32) {
    %c0_i32 = arith.constant 0 : i32
    %c0_i32_0 = arith.constant 0 : i32
    %c0_i32_1 = arith.constant 0 : i32
    return %c0_i32, %c0_i32_0 : i32, i32
  }
  func.func @transform_7(%arg0: i32) -> (i32, i32) {
    %c0_i32 = arith.constant 0 : i32
    %c0_i32_0 = arith.constant 0 : i32
    %c0_i32_1 = arith.constant 0 : i32
    return %c0_i32, %c0_i32_0 : i32, i32
  }
  func.func @transform_8(%arg0: i32) -> (i32, i32) {
    %c0_i32 = arith.constant 0 : i32
    %c0_i32_0 = arith.constant 0 : i32
    %c0_i32_1 = arith.constant 0 : i32
    return %c0_i32, %c0_i32_0 : i32, i32
  }
  func.func @transform_9(%arg0: i32) -> (i32, i32) {
    %c0_i32 = arith.constant 0 : i32
    %c0_i32_0 = arith.constant 0 : i32
    %c0_i32_1 = arith.constant 0 : i32
    return %c0_i32, %c0_i32_0 : i32, i32
  }
  func.func @transform_10(%arg0: i32) -> (i32, i32) {
    %c0_i32 = arith.constant 0 : i32
    %c0_i32_0 = arith.constant 0 : i32
    %c0_i32_1 = arith.constant 0 : i32
    return %c0_i32, %c0_i32_0 : i32, i32
  }
  func.func @transform_11(%arg0: i32) -> (i32, i32) {
    %c0_i32 = arith.constant 0 : i32
    %c0_i32_0 = arith.constant 0 : i32
    %c0_i32_1 = arith.constant 0 : i32
    return %c0_i32, %c0_i32_0 : i32, i32
  }
  func.func @transform_12(%arg0: i32) -> (i32, i32) {
    %c0_i32 = arith.constant 0 : i32
    %c0_i32_0 = arith.constant 0 : i32
    %c0_i32_1 = arith.constant 0 : i32
    return %c0_i32, %c0_i32_0 : i32, i32
  }
  func.func @transform_13(%arg0: i32) -> (i32, i32) {
    %c0_i32 = arith.constant 0 : i32
    %c0_i32_0 = arith.constant 0 : i32
    %c0_i32_1 = arith.constant 0 : i32
    return %c0_i32, %c0_i32_0 : i32, i32
  }
  func.func @transform_14(%arg0: i32) -> (i32, i32) {
    %c0_i32 = arith.constant 0 : i32
    %c0_i32_0 = arith.constant 0 : i32
    %c0_i32_1 = arith.constant 0 : i32
    return %c0_i32, %c0_i32_0 : i32, i32
  }
  func.func @transform_15(%arg0: i32) -> (i32, i32) {
    %c0_i32 = arith.constant 0 : i32
    %c0_i32_0 = arith.constant 0 : i32
    %c0_i32_1 = arith.constant 0 : i32
    return %c0_i32, %c0_i32_0 : i32, i32
  }
  func.func @transform_16(%arg0: i32) -> (i32, i32) {
    %c0_i32 = arith.constant 0 : i32
    %c0_i32_0 = arith.constant 0 : i32
    %c0_i32_1 = arith.constant 0 : i32
    return %c0_i32, %c0_i32_0 : i32, i32
  }
  func.func @transform_17(%arg0: i32) -> (i32, i32) {
    %c0_i32 = arith.constant 0 : i32
    %c0_i32_0 = arith.constant 0 : i32
    %c0_i32_1 = arith.constant 0 : i32
    return %c0_i32, %c0_i32_0 : i32, i32
  }
  func.func @transform_18(%arg0: i32) -> (i32, i32) {
    %c0_i32 = arith.constant 0 : i32
    %c0_i32_0 = arith.constant 0 : i32
    %c0_i32_1 = arith.constant 0 : i32
    return %c0_i32, %c0_i32_0 : i32, i32
  }
  func.func @transform_19(%arg0: i32) -> (i32, i32) {
    %c0_i32 = arith.constant 0 : i32
    %c0_i32_0 = arith.constant 0 : i32
    %c0_i32_1 = arith.constant 0 : i32
    return %c0_i32, %c0_i32_0 : i32, i32
  }
  func.func @transform_20(%arg0: i32) -> (i32, i32) {
    %c0_i32 = arith.constant 0 : i32
    %c0_i32_0 = arith.constant 0 : i32
    %c0_i32_1 = arith.constant 0 : i32
    return %c0_i32, %c0_i32_0 : i32, i32
  }
  func.func @transform_21(%arg0: i32) -> (i32, i32) {
    %c0_i32 = arith.constant 0 : i32
    %c0_i32_0 = arith.constant 0 : i32
    %c0_i32_1 = arith.constant 0 : i32
    return %c0_i32, %c0_i32_0 : i32, i32
  }
  func.func @transform_22(%arg0: i32) -> (i32, i32) {
    %c0_i32 = arith.constant 0 : i32
    %c0_i32_0 = arith.constant 0 : i32
    %c0_i32_1 = arith.constant 0 : i32
    return %c0_i32, %c0_i32_0 : i32, i32
  }
  func.func @transform_23(%arg0: i32) -> (i32, i32) {
    %c0_i32 = arith.constant 0 : i32
    %c0_i32_0 = arith.constant 0 : i32
    %c0_i32_1 = arith.constant 0 : i32
    return %c0_i32, %c0_i32_0 : i32, i32
  }
  func.func @transform_24(%arg0: i32) -> (i32, i32) {
    %c0_i32 = arith.constant 0 : i32
    %c0_i32_0 = arith.constant 0 : i32
    %c0_i32_1 = arith.constant 0 : i32
    return %c0_i32, %c0_i32_0 : i32, i32
  }
  func.func @transform_25(%arg0: i32) -> (i32, i32) {
    %c0_i32 = arith.constant 0 : i32
    %c0_i32_0 = arith.constant 0 : i32
    %c0_i32_1 = arith.constant 0 : i32
    return %c0_i32, %c0_i32_0 : i32, i32
  }
  func.func @transform_26(%arg0: i32) -> (i32, i32) {
    %c0_i32 = arith.constant 0 : i32
    %c0_i32_0 = arith.constant 0 : i32
    %c0_i32_1 = arith.constant 0 : i32
    return %c0_i32, %c0_i32_0 : i32, i32
  }
  func.func @transform_27(%arg0: i32) -> (i32, i32) {
    %c0_i32 = arith.constant 0 : i32
    %c0_i32_0 = arith.constant 0 : i32
    %c0_i32_1 = arith.constant 0 : i32
    return %c0_i32, %c0_i32_0 : i32, i32
  }
  func.func @transform_28(%arg0: i32) -> (i32, i32) {
    %c0_i32 = arith.constant 0 : i32
    %c0_i32_0 = arith.constant 0 : i32
    %c0_i32_1 = arith.constant 0 : i32
    return %c0_i32, %c0_i32_0 : i32, i32
  }
  func.func @transform_29(%arg0: i32) -> (i32, i32) {
    %c0_i32 = arith.constant 0 : i32
    %c0_i32_0 = arith.constant 0 : i32
    %c0_i32_1 = arith.constant 0 : i32
    return %c0_i32, %c0_i32_0 : i32, i32
  }
}

</mosaic_0001>

<llo_original>
// kernel: decoder0_forward.1
$region0: #{decoder0_forward.1}
  #allocation0 [shape = 'u32[]', space=smem, size = 0x4, offset = 0x4, fixed_abs, tag = 'smem constant byte address 0x4 - core index']
  #allocation1 [shape = 'u32[144,128]{1,0:T(1,128)}', space=vmem, size = 0x12000, scoped, tag = 'internal scratch']
  %s0 = inlined_call_operand.smem [shape: u32[30], index: -1, kind: input, shape index: {}]
  %s1 = sld [smem:[%s0]]
  %s2 = scalar_lea.smem %s0, 1
  %s3 = sld [smem:[%s2]]
  %s4 = scalar_lea.smem %s0, 2
  %s5 = sld [smem:[%s4]]
  %s6 = scalar_lea.smem %s0, 3
  %s7 = sld [smem:[%s6]]
  %s8 = scalar_lea.smem %s0, 4
  %s9 = sld [smem:[%s8]]
  %s10 = scalar_lea.smem %s0, 5
  %s11 = sld [smem:[%s10]]
  %s12 = scalar_lea.smem %s0, 6
  %s13 = sld [smem:[%s12]]
  %s14 = scalar_lea.smem %s0, 7
  %s15 = sld [smem:[%s14]]
  %s16 = scalar_lea.smem %s0, 8
  %s17 = sld [smem:[%s16]]
  %s18 = scalar_lea.smem %s0, 9
  %s19 = sld [smem:[%s18]]
  %s20 = scalar_lea.smem %s0, 10
  %s21 = sld [smem:[%s20]]
  %s22 = scalar_lea.smem %s0, 11
  %s23 = sld [smem:[%s22]]
  %s24 = scalar_lea.smem %s0, 12
  %s25 = sld [smem:[%s24]]
  %s26 = scalar_lea.smem %s0, 13
  %s27 = sld [smem:[%s26]]
  %s28 = scalar_lea.smem %s0, 14
  %s29 = sld [smem:[%s28]]
  %s30 = scalar_lea.smem %s0, 15
  %s31 = sld [smem:[%s30]]
  %s32 = scalar_lea.smem %s0, 16
  %s33 = sld [smem:[%s32]]
  %s34 = scalar_lea.smem %s0, 17
  %s35 = sld [smem:[%s34]]
  %s36 = scalar_lea.smem %s0, 18
  %s37 = sld [smem:[%s36]]
  %s38 = scalar_lea.smem %s0, 19
  %s39 = sld [smem:[%s38]]
  %s40 = scalar_lea.smem %s0, 20
  %s41 = sld [smem:[%s40]]
  %s42 = scalar_lea.smem %s0, 21
  %s43 = sld [smem:[%s42]]
  %s44 = scalar_lea.smem %s0, 22
  %s45 = sld [smem:[%s44]]
  %s46 = scalar_lea.smem %s0, 23
  %s47 = sld [smem:[%s46]]
  %s48 = scalar_lea.smem %s0, 24
  %s49 = sld [smem:[%s48]]
  %s50 = scalar_lea.smem %s0, 25
  %s51 = sld [smem:[%s50]]
  %s52 = scalar_lea.smem %s0, 26
  %s53 = sld [smem:[%s52]]
  %s54 = scalar_lea.smem %s0, 27
  %s55 = sld [smem:[%s54]]
  %s56 = scalar_lea.smem %s0, 28
  %s57 = sld [smem:[%s56]]
  %s58 = scalar_lea.smem %s0, 29
  %s59 = sld [smem:[%s58]]
  %s60 = sld [smem:[#allocation0]]
  $region190: #{decoder0_forward.1} parent=0
    _
  %s62 = ssub.s32 1, %s60
  %s63 = scalar_select 0, %s62, %s60
  $region1: #{decoder0_forward.1} parent=0
    #allocation2 [shape = 'u8[524288]{0}', space=vmem, size = 0x80000, scoped, tag = 'input window, operand 3, single buffered']
    #allocation3 [shape = 's32[1]{0}', space=sflag, size = 0x4, scoped, tag = 'scoped memory for decoder0_forward.1']
    #allocation4 [shape = 's32[1]{0}', space=sflag, size = 0x4, scoped, tag = 'scoped memory for decoder0_forward.1']
    #allocation5 [shape = 'u8[1048576]{0}', space=vmem, size = 0x100000, scoped, tag = 'input window, operand 4, single buffered']
    #allocation6 [shape = 's32[1]{0}', space=sflag, size = 0x4, scoped, tag = 'scoped memory for decoder0_forward.1']
    #allocation7 [shape = 'u8[524288]{0}', space=vmem, size = 0x80000, scoped, tag = 'input window, operand 5, single buffered']
    #allocation8 [shape = 'u8[262144]{0}', space=vmem, size = 0x40000, scoped, tag = 'input window, operand 7, single buffered']
    #allocation9 [shape = 's32[1]{0}', space=sflag, size = 0x4, scoped, tag = 'scoped memory for decoder0_forward.1']
    #allocation10 [shape = 'u8[32768]{0}', space=vmem, size = 0x8000, scoped, tag = 'input window, operand 13, single buffered']
    #allocation11 [shape = 'u8[32768]{0}', space=vmem, size = 0x8000, scoped, tag = 'input window, operand 14, single buffered']
    #allocation12 [shape = 's32[1]{0}', space=sflag, size = 0x4, scoped, tag = 'scoped memory for decoder0_forward.1']
    #allocation13 [shape = 'u8[32768]{0}', space=vmem, size = 0x8000, scoped, tag = 'input window, operand 16, single buffered']
    #allocation14 [shape = 'u8[32768]{0}', space=vmem, size = 0x8000, scoped, tag = 'input window, operand 17, single buffered']
    #allocation15 [shape = 's32[1]{0}', space=sflag, size = 0x4, scoped, tag = 'scoped memory for decoder0_forward.1']
    #allocation16 [shape = 'u8[32768]{0}', space=vmem, size = 0x8000, scoped, tag = 'input window, operand 19, single buffered']
    #allocation17 [shape = 'u8[32768]{0}', space=vmem, size = 0x8000, scoped, tag = 'input window, operand 20, single buffered']
    #allocation18 [shape = 's32[1]{0}', space=sflag, size = 0x4, scoped, tag = 'scoped memory for decoder0_forward.1']
    #allocation19 [shape = 'u8[512]{0}', space=vmem, size = 0x400, scoped, tag = 'input window, operand 21, single buffered']
    #allocation20 [shape = 'u8[16384]{0}', space=vmem, size = 0x4000, scoped, tag = 'input window, operand 22, single buffered']
    #allocation21 [shape = 's32[1]{0}', space=sflag, size = 0x4, scoped, tag = 'scoped memory for decoder0_forward.1']
    #allocation22 [shape = 'u8[512]{0}', space=vmem, size = 0x400, scoped, tag = 'input window, operand 24, single buffered']
    #allocation23 [shape = 'u8[16384]{0}', space=vmem, size = 0x4000, scoped, tag = 'input window, operand 25, single buffered']
    #allocation24 [shape = 's32[1]{0}', space=sflag, size = 0x4, scoped, tag = 'scoped memory for decoder0_forward.1']
    #allocation25 [shape = 'u8[131072]{0}', space=vmem, size = 0x20000, scoped, tag = 'input window, operand 27, single buffered']
    #allocation26 [shape = 'u8[1048576]{0}', space=vmem, size = 0x100000, scoped, tag = 'input window, operand 28, single buffered']
    #allocation27 [shape = 's32[1]{0}', space=sflag, size = 0x4, scoped, tag = 'scoped memory for decoder0_forward.1']
    #allocation28 [shape = 'u8[1048576]{0}', space=vmem, size = 0x100000, scoped, tag = 'output window, operand 0, single buffered']
    %64 = vsyncpa [#allocation3], 0
    %65 = vsyncpa [#allocation6], 0
    %66 = vsyncpa [#allocation9], 0
    %67 = vsyncpa [#allocation12], 0
    %68 = vsyncpa [#allocation15], 0
    %69 = vsyncpa [#allocation18], 0
    %70 = vsyncpa [#allocation21], 0
    %71 = vsyncpa [#allocation24], 0
    %72 = vsyncpa [#allocation27], 0
    %73 = vsyncpa [#allocation4], 0
    // Predicated region
    $region2: #{decoder0_forward.1} parent=1 // pred_check
      _
    $region3: #{decoder0_forward.1} parent=1 // pred_check_branch
      %75 = sbr.rel (0) target = $region5
    $region4: #{decoder0_forward.1} parent=1 // pred_region
      _
    $region5: #{decoder0_forward.1} parent=1 // pred_fallthru
      _
    // Predicated region
    $region6: #{decoder0_forward.1} parent=1 // pred_check
      _
    $region7: #{decoder0_forward.1} parent=1 // pred_check_branch
      %77 = sbr.rel (0) target = $region9
    $region8: #{decoder0_forward.1} parent=1 // pred_region
      _
    $region9: #{decoder0_forward.1} parent=1 // pred_fallthru
      _
    // Predicated region
    $region10: #{decoder0_forward.1} parent=1 // pred_check
      _
    $region11: #{decoder0_forward.1} parent=1 // pred_check_branch
      %79 = sbr.rel (0) target = $region13
    $region12: #{decoder0_forward.1} parent=1 // pred_region
      _
    $region13: #{decoder0_forward.1} parent=1 // pred_fallthru
      _
    // Predicated region
    $region14: #{decoder0_forward.1} parent=1 // pred_check
      _
    $region15: #{decoder0_forward.1} parent=1 // pred_check_branch
      %81 = sbr.rel (0) target = $region17
    $region16: #{decoder0_forward.1} parent=1 // pred_region
      %s83 = ssub.s32 16384, 16384
      %84 = vsyncadd [#allocation3], %s83
      %s85 = sshll.u32 [#allocation2], 4
      %s86 = int_to_ptr.vmem [resolvable:$true] %s85
      %91 = dma.hbm_to_vmem [thread:$0]  %s7, 16384, %s86, [#allocation3], 256, 256, 16
    $region17: #{decoder0_forward.1} parent=1 // pred_fallthru
      _
    // Predicated region
    $region18: #{decoder0_forward.1} parent=1 // pred_check
      _
    $region19: #{decoder0_forward.1} parent=1 // pred_check_branch
      %93 = sbr.rel (0) target = $region21
    $region20: #{decoder0_forward.1} parent=1 // pred_region
      %s95 = ssub.s32 32768, 32768
      %96 = vsyncadd [#allocation6], %s95
      %s97 = sshll.u32 [#allocation5], 4
      %s98 = int_to_ptr.vmem [resolvable:$true] %s97
      %103 = dma.hbm_to_vmem [thread:$0]  %s9, 32768, %s98, [#allocation6], 128, 128, 8
    $region21: #{decoder0_forward.1} parent=1 // pred_fallthru
      _
    // Predicated region
    $region22: #{decoder0_forward.1} parent=1 // pred_check
      _
    $region23: #{decoder0_forward.1} parent=1 // pred_check_branch
      %105 = sbr.rel (0) target = $region25
    $region24: #{decoder0_forward.1} parent=1 // pred_region
      %s107 = ssub.s32 16384, 16384
      %108 = vsyncadd [#allocation6], %s107
      %s109 = sshll.u32 [#allocation7], 4
      %s110 = int_to_ptr.vmem [resolvable:$true] %s109
      %115 = dma.hbm_to_vmem [thread:$0]  %s11, 16384, %s110, [#allocation6], 64, 64, 4
    $region25: #{decoder0_forward.1} parent=1 // pred_fallthru
      _
    // Predicated region
    $region26: #{decoder0_forward.1} parent=1 // pred_check
      _
    $region27: #{decoder0_forward.1} parent=1 // pred_check_branch
      %117 = sbr.rel (0) target = $region29
    $region28: #{decoder0_forward.1} parent=1 // pred_region
      _
    $region29: #{decoder0_forward.1} parent=1 // pred_fallthru
      _
    // Predicated region
    $region30: #{decoder0_forward.1} parent=1 // pred_check
      _
    $region31: #{decoder0_forward.1} parent=1 // pred_check_branch
      %119 = sbr.rel (0) target = $region33
    $region32: #{decoder0_forward.1} parent=1 // pred_region
      %s121 = ssub.s32 8192, 8192
      %122 = vsyncadd [#allocation9], %s121
      %s123 = sshll.u32 [#allocation8], 4
      %s124 = int_to_ptr.vmem [resolvable:$true] %s123
      %129 = dma.hbm_to_vmem [thread:$0]  %s15, 8192, %s124, [#allocation9], 64, 64, 4
    $region33: #{decoder0_forward.1} parent=1 // pred_fallthru
      _
    // Predicated region
    $region34: #{decoder0_forward.1} parent=1 // pred_check
      _
    $region35: #{decoder0_forward.1} parent=1 // pred_check_branch
      %131 = sbr.rel (0) target = $region37
    $region36: #{decoder0_forward.1} parent=1 // pred_region
      _
    $region37: #{decoder0_forward.1} parent=1 // pred_fallthru
      _
    // Predicated region
    $region38: #{decoder0_forward.1} parent=1 // pred_check
      _
    $region39: #{decoder0_forward.1} parent=1 // pred_check_branch
      %133 = sbr.rel (0) target = $region41
    $region40: #{decoder0_forward.1} parent=1 // pred_region
      _
    $region41: #{decoder0_forward.1} parent=1 // pred_fallthru
      _
    // Predicated region
    $region42: #{decoder0_forward.1} parent=1 // pred_check
      _
    $region43: #{decoder0_forward.1} parent=1 // pred_check_branch
      %135 = sbr.rel (0) target = $region45
    $region44: #{decoder0_forward.1} parent=1 // pred_region
      _
    $region45: #{decoder0_forward.1} parent=1 // pred_fallthru
      _
    // Predicated region
    $region46: #{decoder0_forward.1} parent=1 // pred_check
      _
    $region47: #{decoder0_forward.1} parent=1 // pred_check_branch
      %137 = sbr.rel (0) target = $region49
    $region48: #{decoder0_forward.1} parent=1 // pred_region
      _
    $region49: #{decoder0_forward.1} parent=1 // pred_fallthru
      _
    // Predicated region
    $region50: #{decoder0_forward.1} parent=1 // pred_check
      _
    $region51: #{decoder0_forward.1} parent=1 // pred_check_branch
      %139 = sbr.rel (0) target = $region53
    $region52: #{decoder0_forward.1} parent=1 // pred_region
      _
    $region53: #{decoder0_forward.1} parent=1 // pred_fallthru
      _
    // Predicated region
    $region54: #{decoder0_forward.1} parent=1 // pred_check
      _
    $region55: #{decoder0_forward.1} parent=1 // pred_check_branch
      %141 = sbr.rel (0) target = $region57
    $region56: #{decoder0_forward.1} parent=1 // pred_region
      %s143 = ssub.s32 1024, 1024
      %144 = vsyncadd [#allocation9], %s143
      %s145 = sshll.u32 [#allocation10], 4
      %s146 = int_to_ptr.vmem [resolvable:$true] %s145
      %151 = dma.hbm_to_vmem [thread:$0]  %s27, 1024, %s146, [#allocation9], 64, 64, 4
    $region57: #{decoder0_forward.1} parent=1 // pred_fallthru
      _
    // Predicated region
    $region58: #{decoder0_forward.1} parent=1 // pred_check
      _
    $region59: #{decoder0_forward.1} parent=1 // pred_check_branch
      %153 = sbr.rel (0) target = $region61
    $region60: #{decoder0_forward.1} parent=1 // pred_region
      %s155 = ssub.s32 1024, 1024
      %156 = vsyncadd [#allocation12], %s155
      %s157 = sshll.u32 [#allocation11], 4
      %s158 = int_to_ptr.vmem [resolvable:$true] %s157
      %163 = dma.hbm_to_vmem [thread:$0]  %s29, 1024, %s158, [#allocation12], 64, 64, 4
    $region61: #{decoder0_forward.1} parent=1 // pred_fallthru
      _
    // Predicated region
    $region62: #{decoder0_forward.1} parent=1 // pred_check
      _
    $region63: #{decoder0_forward.1} parent=1 // pred_check_branch
      %165 = sbr.rel (0) target = $region65
    $region64: #{decoder0_forward.1} parent=1 // pred_region
      _
    $region65: #{decoder0_forward.1} parent=1 // pred_fallthru
      _
    // Predicated region
    $region66: #{decoder0_forward.1} parent=1 // pred_check
      _
    $region67: #{decoder0_forward.1} parent=1 // pred_check_branch
      %167 = sbr.rel (0) target = $region69
    $region68: #{decoder0_forward.1} parent=1 // pred_region
      %s169 = ssub.s32 1024, 1024
      %170 = vsyncadd [#allocation12], %s169
      %s171 = sshll.u32 [#allocation13], 4
      %s172 = int_to_ptr.vmem [resolvable:$true] %s171
      %177 = dma.hbm_to_vmem [thread:$0]  %s33, 1024, %s172, [#allocation12], 64, 64, 4
    $region69: #{decoder0_forward.1} parent=1 // pred_fallthru
      _
    // Predicated region
    $region70: #{decoder0_forward.1} parent=1 // pred_check
      _
    $region71: #{decoder0_forward.1} parent=1 // pred_check_branch
      %179 = sbr.rel (0) target = $region73
    $region72: #{decoder0_forward.1} parent=1 // pred_region
      %s181 = ssub.s32 1024, 1024
      %182 = vsyncadd [#allocation15], %s181
      %s183 = sshll.u32 [#allocation14], 4
      %s184 = int_to_ptr.vmem [resolvable:$true] %s183
      %189 = dma.hbm_to_vmem [thread:$0]  %s35, 1024, %s184, [#allocation15], 64, 64, 4
    $region73: #{decoder0_forward.1} parent=1 // pred_fallthru
      _
    // Predicated region
    $region74: #{decoder0_forward.1} parent=1 // pred_check
      _
    $region75: #{decoder0_forward.1} parent=1 // pred_check_branch
      %191 = sbr.rel (0) target = $region77
    $region76: #{decoder0_forward.1} parent=1 // pred_region
      _
    $region77: #{decoder0_forward.1} parent=1 // pred_fallthru
      _
    // Predicated region
    $region78: #{decoder0_forward.1} parent=1 // pred_check
      _
    $region79: #{decoder0_forward.1} parent=1 // pred_check_branch
      %193 = sbr.rel (0) target = $region81
    $region80: #{decoder0_forward.1} parent=1 // pred_region
      %s195 = ssub.s32 1024, 1024
      %196 = vsyncadd [#allocation15], %s195
      %s197 = sshll.u32 [#allocation16], 4
      %s198 = int_to_ptr.vmem [resolvable:$true] %s197
      %203 = dma.hbm_to_vmem [thread:$0]  %s39, 1024, %s198, [#allocation15], 64, 64, 4
    $region81: #{decoder0_forward.1} parent=1 // pred_fallthru
      _
    // Predicated region
    $region82: #{decoder0_forward.1} parent=1 // pred_check
      _
    $region83: #{decoder0_forward.1} parent=1 // pred_check_branch
      %205 = sbr.rel (0) target = $region85
    $region84: #{decoder0_forward.1} parent=1 // pred_region
      %s207 = ssub.s32 1024, 1024
      %208 = vsyncadd [#allocation18], %s207
      %s209 = sshll.u32 [#allocation17], 4
      %s210 = int_to_ptr.vmem [resolvable:$true] %s209
      %215 = dma.hbm_to_vmem [thread:$0]  %s41, 1024, %s210, [#allocation18], 64, 64, 4
    $region85: #{decoder0_forward.1} parent=1 // pred_fallthru
      _
    // Predicated region
    $region86: #{decoder0_forward.1} parent=1 // pred_check
      _
    $region87: #{decoder0_forward.1} parent=1 // pred_check_branch
      %217 = sbr.rel (0) target = $region89
    $region88: #{decoder0_forward.1} parent=1 // pred_region
      %s219 = ssub.s32 16, 16
      %220 = vsyncadd [#allocation18], %s219
      %s222 = sshll.u32 [#allocation19], 4
      %s223 = int_to_ptr.vmem [resolvable:$true] %s222
      %225 = dma.hbm_to_vmem [thread:$0]  %s43, 16, %s223, [#allocation18]
    $region89: #{decoder0_forward.1} parent=1 // pred_fallthru
      _
    // Predicated region
    $region90: #{decoder0_forward.1} parent=1 // pred_check
      _
    $region91: #{decoder0_forward.1} parent=1 // pred_check_branch
      %227 = sbr.rel (0) target = $region93
    $region92: #{decoder0_forward.1} parent=1 // pred_region
      %s229 = ssub.s32 512, 512
      %230 = vsyncadd [#allocation21], %s229
      %s231 = sshll.u32 [#allocation20], 4
      %s232 = int_to_ptr.vmem [resolvable:$true] %s231
      %237 = dma.hbm_to_vmem [thread:$0]  %s45, 512, %s232, [#allocation21], 64, 64, 4
    $region93: #{decoder0_forward.1} parent=1 // pred_fallthru
      _
    // Predicated region
    $region94: #{decoder0_forward.1} parent=1 // pred_check
      _
    $region95: #{decoder0_forward.1} parent=1 // pred_check_branch
      %239 = sbr.rel (0) target = $region97
    $region96: #{decoder0_forward.1} parent=1 // pred_region
      _
    $region97: #{decoder0_forward.1} parent=1 // pred_fallthru
      _
    // Predicated region
    $region98: #{decoder0_forward.1} parent=1 // pred_check
      _
    $region99: #{decoder0_forward.1} parent=1 // pred_check_branch
      %241 = sbr.rel (0) target = $region101
    $region100: #{decoder0_forward.1} parent=1 // pred_region
      %s243 = ssub.s32 16, 16
      %244 = vsyncadd [#allocation21], %s243
      %s246 = sshll.u32 [#allocation22], 4
      %s247 = int_to_ptr.vmem [resolvable:$true] %s246
      %249 = dma.hbm_to_vmem [thread:$0]  %s49, 16, %s247, [#allocation21]
    $region101: #{decoder0_forward.1} parent=1 // pred_fallthru
      _
    // Predicated region
    $region102: #{decoder0_forward.1} parent=1 // pred_check
      _
    $region103: #{decoder0_forward.1} parent=1 // pred_check_branch
      %251 = sbr.rel (0) target = $region105
    $region104: #{decoder0_forward.1} parent=1 // pred_region
      %s253 = ssub.s32 512, 512
      %254 = vsyncadd [#allocation24], %s253
      %s255 = sshll.u32 [#allocation23], 4
      %s256 = int_to_ptr.vmem [resolvable:$true] %s255
      %261 = dma.hbm_to_vmem [thread:$0]  %s51, 512, %s256, [#allocation24], 128, 128, 8
    $region105: #{decoder0_forward.1} parent=1 // pred_fallthru
      _
    // Predicated region
    $region106: #{decoder0_forward.1} parent=1 // pred_check
      _
    $region107: #{decoder0_forward.1} parent=1 // pred_check_branch
      %263 = sbr.rel (0) target = $region109
    $region108: #{decoder0_forward.1} parent=1 // pred_region
      _
    $region109: #{decoder0_forward.1} parent=1 // pred_fallthru
      _
    // Predicated region
    $region110: #{decoder0_forward.1} parent=1 // pred_check
      _
    $region111: #{decoder0_forward.1} parent=1 // pred_check_branch
      %265 = sbr.rel (0) target = $region113
    $region112: #{decoder0_forward.1} parent=1 // pred_region
      %s267 = ssub.s32 4096, 4096
      %268 = vsyncadd [#allocation24], %s267
      %s269 = sshll.u32 [#allocation25], 4
      %s270 = int_to_ptr.vmem [resolvable:$true] %s269
      %275 = dma.hbm_to_vmem [thread:$0]  %s55, 4096, %s270, [#allocation24], 128, 128, 8
    $region113: #{decoder0_forward.1} parent=1 // pred_fallthru
      _
    // Predicated region
    $region114: #{decoder0_forward.1} parent=1 // pred_check
      _
    $region115: #{decoder0_forward.1} parent=1 // pred_check_branch
      %277 = sbr.rel (0) target = $region117
    $region116: #{decoder0_forward.1} parent=1 // pred_region
      %s279 = ssub.s32 32768, 32768
      %280 = vsyncadd [#allocation27], %s279
      %s281 = sshll.u32 [#allocation26], 4
      %s282 = int_to_ptr.vmem [resolvable:$true] %s281
      %287 = dma.hbm_to_vmem [thread:$0]  %s57, 32768, %s282, [#allocation27], 256, 256, 16
    $region117: #{decoder0_forward.1} parent=1 // pred_fallthru
      _
    // Predicated region
    $region118: #{decoder0_forward.1} parent=1 // pred_check
      _
    $region119: #{decoder0_forward.1} parent=1 // pred_check_branch
      %289 = sbr.rel (0) target = $region121
    $region120: #{decoder0_forward.1} parent=1 // pred_region
      %290 = dma.done [#allocation3], 16384
    $region121: #{decoder0_forward.1} parent=1 // pred_fallthru
      _
    // Predicated region
    $region122: #{decoder0_forward.1} parent=1 // pred_check
      _
    $region123: #{decoder0_forward.1} parent=1 // pred_check_branch
      %292 = sbr.rel (0) target = $region125
    $region124: #{decoder0_forward.1} parent=1 // pred_region
      %293 = dma.done [#allocation6], 32768
    $region125: #{decoder0_forward.1} parent=1 // pred_fallthru
      _
    // Predicated region
    $region126: #{decoder0_forward.1} parent=1 // pred_check
      _
    $region127: #{decoder0_forward.1} parent=1 // pred_check_branch
      %295 = sbr.rel (0) target = $region129
    $region128: #{decoder0_forward.1} parent=1 // pred_region
      %296 = dma.done [#allocation6], 16384
    $region129: #{decoder0_forward.1} parent=1 // pred_fallthru
      _
    // Predicated region
    $region130: #{decoder0_forward.1} parent=1 // pred_check
      _
    $region131: #{decoder0_forward.1} parent=1 // pred_check_branch
      %298 = sbr.rel (0) target = $region133
    $region132: #{decoder0_forward.1} parent=1 // pred_region
      %299 = dma.done [#allocation9], 8192
    $region133: #{decoder0_forward.1} parent=1 // pred_fallthru
      _
    // Predicated region
    $region134: #{decoder0_forward.1} parent=1 // pred_check
      _
    $region135: #{decoder0_forward.1} parent=1 // pred_check_branch
      %301 = sbr.rel (0) target = $region137
    $region136: #{decoder0_forward.1} parent=1 // pred_region
      %302 = dma.done [#allocation9], 1024
    $region137: #{decoder0_forward.1} parent=1 // pred_fallthru
      _
    // Predicated region
    $region138: #{decoder0_forward.1} parent=1 // pred_check
      _
    $region139: #{decoder0_forward.1} parent=1 // pred_check_branch
      %304 = sbr.rel (0) target = $region141
    $region140: #{decoder0_forward.1} parent=1 // pred_region
      %305 = dma.done [#allocation12], 1024
    $region141: #{decoder0_forward.1} parent=1 // pred_fallthru
      _
    // Predicated region
    $region142: #{decoder0_forward.1} parent=1 // pred_check
      _
    $region143: #{decoder0_forward.1} parent=1 // pred_check_branch
      %307 = sbr.rel (0) target = $region145
    $region144: #{decoder0_forward.1} parent=1 // pred_region
      %308 = dma.done [#allocation12], 1024
    $region145: #{decoder0_forward.1} parent=1 // pred_fallthru
      _
    // Predicated region
    $region146: #{decoder0_forward.1} parent=1 // pred_check
      _
    $region147: #{decoder0_forward.1} parent=1 // pred_check_branch
      %310 = sbr.rel (0) target = $region149
    $region148: #{decoder0_forward.1} parent=1 // pred_region
      %311 = dma.done [#allocation15], 1024
    $region149: #{decoder0_forward.1} parent=1 // pred_fallthru
      _
    // Predicated region
    $region150: #{decoder0_forward.1} parent=1 // pred_check
      _
    $region151: #{decoder0_forward.1} parent=1 // pred_check_branch
      %313 = sbr.rel (0) target = $region153
    $region152: #{decoder0_forward.1} parent=1 // pred_region
      %314 = dma.done [#allocation15], 1024
    $region153: #{decoder0_forward.1} parent=1 // pred_fallthru
      _
    // Predicated region
    $region154: #{decoder0_forward.1} parent=1 // pred_check
      _
    $region155: #{decoder0_forward.1} parent=1 // pred_check_branch
      %316 = sbr.rel (0) target = $region157
    $region156: #{decoder0_forward.1} parent=1 // pred_region
      %317 = dma.done [#allocation18], 1024
    $region157: #{decoder0_forward.1} parent=1 // pred_fallthru
      _
    // Predicated region
    $region158: #{decoder0_forward.1} parent=1 // pred_check
      _
    $region159: #{decoder0_forward.1} parent=1 // pred_check_branch
      %319 = sbr.rel (0) target = $region161
    $region160: #{decoder0_forward.1} parent=1 // pred_region
      %320 = dma.done [#allocation18], 16
    $region161: #{decoder0_forward.1} parent=1 // pred_fallthru
      _
    // Predicated region
    $region162: #{decoder0_forward.1} parent=1 // pred_check
      _
    $region163: #{decoder0_forward.1} parent=1 // pred_check_branch
      %322 = sbr.rel (0) target = $region165
    $region164: #{decoder0_forward.1} parent=1 // pred_region
      %323 = dma.done [#allocation21], 512
    $region165: #{decoder0_forward.1} parent=1 // pred_fallthru
      _
    // Predicated region
    $region166: #{decoder0_forward.1} parent=1 // pred_check
      _
    $region167: #{decoder0_forward.1} parent=1 // pred_check_branch
      %325 = sbr.rel (0) target = $region169
    $region168: #{decoder0_forward.1} parent=1 // pred_region
      %326 = dma.done [#allocation21], 16
    $region169: #{decoder0_forward.1} parent=1 // pred_fallthru
      _
    // Predicated region
    $region170: #{decoder0_forward.1} parent=1 // pred_check
      _
    $region171: #{decoder0_forward.1} parent=1 // pred_check_branch
      %328 = sbr.rel (0) target = $region173
    $region172: #{decoder0_forward.1} parent=1 // pred_region
      %329 = dma.done [#allocation24], 512
    $region173: #{decoder0_forward.1} parent=1 // pred_fallthru
      _
    // Predicated region
    $region174: #{decoder0_forward.1} parent=1 // pred_check
      _
    $region175: #{decoder0_forward.1} parent=1 // pred_check_branch
      %331 = sbr.rel (0) target = $region177
    $region176: #{decoder0_forward.1} parent=1 // pred_region
      %332 = dma.done [#allocation24], 4096
    $region177: #{decoder0_forward.1} parent=1 // pred_fallthru
      _
    // Predicated region
    $region178: #{decoder0_forward.1} parent=1 // pred_check
      _
    $region179: #{decoder0_forward.1} parent=1 // pred_check_branch
      %334 = sbr.rel (0) target = $region181
    $region180: #{decoder0_forward.1} parent=1 // pred_region
      %335 = dma.done [#allocation27], 32768
    $region181: #{decoder0_forward.1} parent=1 // pred_fallthru
      _
    %v337 = vld [vmem:[%s1] sm:$0xff]
    %v338 = vld [vmem:[%s1 + $0x8] sm:$0xff]
    %v339 = vld [vmem:[%s1 + $0x10] sm:$0xff]
    %v340 = vld [vmem:[%s1 + $0x18] sm:$0xff]
    %v341 = vld [vmem:[%s1 + $0x20] sm:$0xff]
    %v342 = vld [vmem:[%s1 + $0x28] sm:$0xff]
    %v343 = vld [vmem:[%s1 + $0x30] sm:$0xff]
    %v344 = vld [vmem:[%s1 + $0x38] sm:$0xff]
    %v345 = vld [vmem:[%s1 + $0x40] sm:$0xff]
    %v346 = vld [vmem:[%s1 + $0x48] sm:$0xff]
    %v347 = vld [vmem:[%s1 + $0x50] sm:$0xff]
    %v348 = vld [vmem:[%s1 + $0x58] sm:$0xff]
    %v349 = vld [vmem:[%s1 + $0x60] sm:$0xff]
    %v350 = vld [vmem:[%s1 + $0x68] sm:$0xff]
    %v351 = vld [vmem:[%s1 + $0x70] sm:$0xff]
    %v352 = vld [vmem:[%s1 + $0x78] sm:$0xff]
    %v353 = vpack.c.bf16 %v337, %v337
    %v354 = vpack.c.bf16 %v338, %v338
    %v355 = vpack.c.bf16 %v339, %v339
    %v356 = vpack.c.bf16 %v340, %v340
    %v357 = vpack.c.bf16 %v341, %v341
    %v358 = vpack.c.bf16 %v342, %v342
    %v359 = vpack.c.bf16 %v343, %v343
    %v360 = vpack.c.bf16 %v344, %v344
    %v361 = vpack.c.bf16 %v345, %v345
    %v362 = vpack.c.bf16 %v346, %v346
    %v363 = vpack.c.bf16 %v347, %v347
    %v364 = vpack.c.bf16 %v348, %v348
    %v365 = vpack.c.bf16 %v349, %v349
    %v366 = vpack.c.bf16 %v350, %v350
    %v367 = vpack.c.bf16 %v351, %v351
    %v368 = vpack.c.bf16 %v352, %v352
    %v369 = vld [vmem:[#allocation7] sm:$0xf]
    %v370 = vld [vmem:[#allocation7 + $0x4] sm:$0xf]
    %v371 = vld [vmem:[#allocation7 + $0x8] sm:$0xf]
    %v372 = vld [vmem:[#allocation7 + $0xc] sm:$0xf]
    %v373 = vld [vmem:[#allocation7 + $0x10] sm:$0xf]
    %v374 = vld [vmem:[#allocation7 + $0x14] sm:$0xf]
    %v375 = vld [vmem:[#allocation7 + $0x18] sm:$0xf]
    %v376 = vld [vmem:[#allocation7 + $0x1c] sm:$0xf]
    %v377 = vld [vmem:[#allocation7 + $0x20] sm:$0xf]
    %v378 = vld [vmem:[#allocation7 + $0x24] sm:$0xf]
    %v379 = vld [vmem:[#allocation7 + $0x28] sm:$0xf]
    %v380 = vld [vmem:[#allocation7 + $0x2c] sm:$0xf]
    %v381 = vld [vmem:[#allocation7 + $0x30] sm:$0xf]
    %v382 = vld [vmem:[#allocation7 + $0x34] sm:$0xf]
    %v383 = vld [vmem:[#allocation7 + $0x38] sm:$0xf]
    %v384 = vld [vmem:[#allocation7 + $0x3c] sm:$0xf]
    %v385 = vld [vmem:[#allocation7 + $0x40] sm:$0xf]
    %v386 = vld [vmem:[#allocation7 + $0x44] sm:$0xf]
    %v387 = vld [vmem:[#allocation7 + $0x48] sm:$0xf]
    %v388 = vld [vmem:[#allocation7 + $0x4c] sm:$0xf]
    %v389 = vld [vmem:[#allocation7 + $0x50] sm:$0xf]
    %v390 = vld [vmem:[#allocation7 + $0x54] sm:$0xf]
    %v391 = vld [vmem:[#allocation7 + $0x58] sm:$0xf]
    %v392 = vld [vmem:[#allocation7 + $0x5c] sm:$0xf]
    %v393 = vld [vmem:[#allocation7 + $0x60] sm:$0xf]
    %v394 = vld [vmem:[#allocation7 + $0x64] sm:$0xf]
    %v395 = vld [vmem:[#allocation7 + $0x68] sm:$0xf]
    %v396 = vld [vmem:[#allocation7 + $0x6c] sm:$0xf]
    %v397 = vld [vmem:[#allocation7 + $0x70] sm:$0xf]
    %v398 = vld [vmem:[#allocation7 + $0x74] sm:$0xf]
    %v399 = vld [vmem:[#allocation7 + $0x78] sm:$0xf]
    %v400 = vld [vmem:[#allocation7 + $0x7c] sm:$0xf]
    %v401 = vld [vmem:[#allocation7 + $0x80] sm:$0xf]
    %v402 = vld [vmem:[#allocation7 + $0x84] sm:$0xf]
    %v403 = vld [vmem:[#allocation7 + $0x88] sm:$0xf]
    %v404 = vld [vmem:[#allocation7 + $0x8c] sm:$0xf]
    %v405 = vld [vmem:[#allocation7 + $0x90] sm:$0xf]
    %v406 = vld [vmem:[#allocation7 + $0x94] sm:$0xf]
    %v407 = vld [vmem:[#allocation7 + $0x98] sm:$0xf]
    %v408 = vld [vmem:[#allocation7 + $0x9c] sm:$0xf]
    %v409 = vld [vmem:[#allocation7 + $0xa0] sm:$0xf]
    %v410 = vld [vmem:[#allocation7 + $0xa4] sm:$0xf]
    %v411 = vld [vmem:[#allocation7 + $0xa8] sm:$0xf]
    %v412 = vld [vmem:[#allocation7 + $0xac] sm:$0xf]
    %v413 = vld [vmem:[#allocation7 + $0xb0] sm:$0xf]
    %v414 = vld [vmem:[#allocation7 + $0xb4] sm:$0xf]
    %v415 = vld [vmem:[#allocation7 + $0xb8] sm:$0xf]
    %v416 = vld [vmem:[#allocation7 + $0xbc] sm:$0xf]
    %v417 = vld [vmem:[#allocation7 + $0xc0] sm:$0xf]
    %v418 = vld [vmem:[#allocation7 + $0xc4] sm:$0xf]
    %v419 = vld [vmem:[#allocation7 + $0xc8] sm:$0xf]
    %v420 = vld [vmem:[#allocation7 + $0xcc] sm:$0xf]
    %v421 = vld [vmem:[#allocation7 + $0xd0] sm:$0xf]
    %v422 = vld [vmem:[#allocation7 + $0xd4] sm:$0xf]
    %v423 = vld [vmem:[#allocation7 + $0xd8] sm:$0xf]
    %v424 = vld [vmem:[#allocation7 + $0xdc] sm:$0xf]
    %v425 = vld [vmem:[#allocation7 + $0xe0] sm:$0xf]
    %v426 = vld [vmem:[#allocation7 + $0xe4] sm:$0xf]
    %v427 = vld [vmem:[#allocation7 + $0xe8] sm:$0xf]
    %v428 = vld [vmem:[#allocation7 + $0xec] sm:$0xf]
    %v429 = vld [vmem:[#allocation7 + $0xf0] sm:$0xf]
    %v430 = vld [vmem:[#allocation7 + $0xf4] sm:$0xf]
    %v431 = vld [vmem:[#allocation7 + $0xf8] sm:$0xf]
    %v432 = vld [vmem:[#allocation7 + $0xfc] sm:$0xf]
    %v433 = vld [vmem:[#allocation7 + $0x100] sm:$0xf]
    %v434 = vld [vmem:[#allocation7 + $0x104] sm:$0xf]
    %v435 = vld [vmem:[#allocation7 + $0x108] sm:$0xf]
    %v436 = vld [vmem:[#allocation7 + $0x10c] sm:$0xf]
    %v437 = vld [vmem:[#allocation7 + $0x110] sm:$0xf]
    %v438 = vld [vmem:[#allocation7 + $0x114] sm:$0xf]
    %v439 = vld [vmem:[#allocation7 + $0x118] sm:$0xf]
    %v440 = vld [vmem:[#allocation7 + $0x11c] sm:$0xf]
    %v441 = vld [vmem:[#allocation7 + $0x120] sm:$0xf]
    %v442 = vld [vmem:[#allocation7 + $0x124] sm:$0xf]
    %v443 = vld [vmem:[#allocation7 + $0x128] sm:$0xf]
    %v444 = vld [vmem:[#allocation7 + $0x12c] sm:$0xf]
    %v445 = vld [vmem:[#allocation7 + $0x130] sm:$0xf]
    %v446 = vld [vmem:[#allocation7 + $0x134] sm:$0xf]
    %v447 = vld [vmem:[#allocation7 + $0x138] sm:$0xf]
    %v448 = vld [vmem:[#allocation7 + $0x13c] sm:$0xf]
    %v449 = vld [vmem:[#allocation7 + $0x140] sm:$0xf]
    %v450 = vld [vmem:[#allocation7 + $0x144] sm:$0xf]
    %v451 = vld [vmem:[#allocation7 + $0x148] sm:$0xf]
    %v452 = vld [vmem:[#allocation7 + $0x14c] sm:$0xf]
    %v453 = vld [vmem:[#allocation7 + $0x150] sm:$0xf]
    %v454 = vld [vmem:[#allocation7 + $0x154] sm:$0xf]
    %v455 = vld [vmem:[#allocation7 + $0x158] sm:$0xf]
    %v456 = vld [vmem:[#allocation7 + $0x15c] sm:$0xf]
    %v457 = vld [vmem:[#allocation7 + $0x160] sm:$0xf]
    %v458 = vld [vmem:[#allocation7 + $0x164] sm:$0xf]
    %v459 = vld [vmem:[#allocation7 + $0x168] sm:$0xf]
    %v460 = vld [vmem:[#allocation7 + $0x16c] sm:$0xf]
    %v461 = vld [vmem:[#allocation7 + $0x170] sm:$0xf]
    %v462 = vld [vmem:[#allocation7 + $0x174] sm:$0xf]
    %v463 = vld [vmem:[#allocation7 + $0x178] sm:$0xf]
    %v464 = vld [vmem:[#allocation7 + $0x17c] sm:$0xf]
    %v465 = vld [vmem:[#allocation7 + $0x180] sm:$0xf]
    %v466 = vld [vmem:[#allocation7 + $0x184] sm:$0xf]
    %v467 = vld [vmem:[#allocation7 + $0x188] sm:$0xf]
    %v468 = vld [vmem:[#allocation7 + $0x18c] sm:$0xf]
    %v469 = vld [vmem:[#allocation7 + $0x190] sm:$0xf]
    %v470 = vld [vmem:[#allocation7 + $0x194] sm:$0xf]
    %v471 = vld [vmem:[#allocation7 + $0x198] sm:$0xf]
    %v472 = vld [vmem:[#allocation7 + $0x19c] sm:$0xf]
    %v473 = vld [vmem:[#allocation7 + $0x1a0] sm:$0xf]
    %v474 = vld [vmem:[#allocation7 + $0x1a4] sm:$0xf]
    %v475 = vld [vmem:[#allocation7 + $0x1a8] sm:$0xf]
    %v476 = vld [vmem:[#allocation7 + $0x1ac] sm:$0xf]
    %v477 = vld [vmem:[#allocation7 + $0x1b0] sm:$0xf]
    %v478 = vld [vmem:[#allocation7 + $0x1b4] sm:$0xf]
    %v479 = vld [vmem:[#allocation7 + $0x1b8] sm:$0xf]
    %v480 = vld [vmem:[#allocation7 + $0x1bc] sm:$0xf]
    %v481 = vld [vmem:[#allocation7 + $0x1c0] sm:$0xf]
    %v482 = vld [vmem:[#allocation7 + $0x1c4] sm:$0xf]
    %v483 = vld [vmem:[#allocation7 + $0x1c8] sm:$0xf]
    %v484 = vld [vmem:[#allocation7 + $0x1cc] sm:$0xf]
    %v485 = vld [vmem:[#allocation7 + $0x1d0] sm:$0xf]
    %v486 = vld [vmem:[#allocation7 + $0x1d4] sm:$0xf]
    %v487 = vld [vmem:[#allocation7 + $0x1d8] sm:$0xf]
    %v488 = vld [vmem:[#allocation7 + $0x1dc] sm:$0xf]
    %v489 = vld [vmem:[#allocation7 + $0x1e0] sm:$0xf]
    %v490 = vld [vmem:[#allocation7 + $0x1e4] sm:$0xf]
    %v491 = vld [vmem:[#allocation7 + $0x1e8] sm:$0xf]
    %v492 = vld [vmem:[#allocation7 + $0x1ec] sm:$0xf]
    %v493 = vld [vmem:[#allocation7 + $0x1f0] sm:$0xf]
    %v494 = vld [vmem:[#allocation7 + $0x1f4] sm:$0xf]
    %v495 = vld [vmem:[#allocation7 + $0x1f8] sm:$0xf]
    %v496 = vld [vmem:[#allocation7 + $0x1fc] sm:$0xf]
    %v497 = vld [vmem:[#allocation7 + $0x200] sm:$0xf]
    %v498 = vld [vmem:[#allocation7 + $0x204] sm:$0xf]
    %v499 = vld [vmem:[#allocation7 + $0x208] sm:$0xf]
    %v500 = vld [vmem:[#allocation7 + $0x20c] sm:$0xf]
    %v501 = vld [vmem:[#allocation7 + $0x210] sm:$0xf]
    %v502 = vld [vmem:[#allocation7 + $0x214] sm:$0xf]
    %v503 = vld [vmem:[#allocation7 + $0x218] sm:$0xf]
    %v504 = vld [vmem:[#allocation7 + $0x21c] sm:$0xf]
    %v505 = vld [vmem:[#allocation7 + $0x220] sm:$0xf]
    %v506 = vld [vmem:[#allocation7 + $0x224] sm:$0xf]
    %v507 = vld [vmem:[#allocation7 + $0x228] sm:$0xf]
    %v508 = vld [vmem:[#allocation7 + $0x22c] sm:$0xf]
    %v509 = vld [vmem:[#allocation7 + $0x230] sm:$0xf]
    %v510 = vld [vmem:[#allocation7 + $0x234] sm:$0xf]
    %v511 = vld [vmem:[#allocation7 + $0x238] sm:$0xf]
    %v512 = vld [vmem:[#allocation7 + $0x23c] sm:$0xf]
    %v513 = vld [vmem:[#allocation7 + $0x240] sm:$0xf]
    %v514 = vld [vmem:[#allocation7 + $0x244] sm:$0xf]
    %v515 = vld [vmem:[#allocation7 + $0x248] sm:$0xf]
    %v516 = vld [vmem:[#allocation7 + $0x24c] sm:$0xf]
    %v517 = vld [vmem:[#allocation7 + $0x250] sm:$0xf]
    %v518 = vld [vmem:[#allocation7 + $0x254] sm:$0xf]
    %v519 = vld [vmem:[#allocation7 + $0x258] sm:$0xf]
    %v520 = vld [vmem:[#allocation7 + $0x25c] sm:$0xf]
    %v521 = vld [vmem:[#allocation7 + $0x260] sm:$0xf]
    %v522 = vld [vmem:[#allocation7 + $0x264] sm:$0xf]
    %v523 = vld [vmem:[#allocation7 + $0x268] sm:$0xf]
    %v524 = vld [vmem:[#allocation7 + $0x26c] sm:$0xf]
    %v525 = vld [vmem:[#allocation7 + $0x270] sm:$0xf]
    %v526 = vld [vmem:[#allocation7 + $0x274] sm:$0xf]
    %v527 = vld [vmem:[#allocation7 + $0x278] sm:$0xf]
    %v528 = vld [vmem:[#allocation7 + $0x27c] sm:$0xf]
    %v529 = vld [vmem:[#allocation7 + $0x280] sm:$0xf]
    %v530 = vld [vmem:[#allocation7 + $0x284] sm:$0xf]
    %v531 = vld [vmem:[#allocation7 + $0x288] sm:$0xf]
    %v532 = vld [vmem:[#allocation7 + $0x28c] sm:$0xf]
    %v533 = vld [vmem:[#allocation7 + $0x290] sm:$0xf]
    %v534 = vld [vmem:[#allocation7 + $0x294] sm:$0xf]
    %v535 = vld [vmem:[#allocation7 + $0x298] sm:$0xf]
    %v536 = vld [vmem:[#allocation7 + $0x29c] sm:$0xf]
    %v537 = vld [vmem:[#allocation7 + $0x2a0] sm:$0xf]
    %v538 = vld [vmem:[#allocation7 + $0x2a4] sm:$0xf]
    %v539 = vld [vmem:[#allocation7 + $0x2a8] sm:$0xf]
    %v540 = vld [vmem:[#allocation7 + $0x2ac] sm:$0xf]
    %v541 = vld [vmem:[#allocation7 + $0x2b0] sm:$0xf]
    %v542 = vld [vmem:[#allocation7 + $0x2b4] sm:$0xf]
    %v543 = vld [vmem:[#allocation7 + $0x2b8] sm:$0xf]
    %v544 = vld [vmem:[#allocation7 + $0x2bc] sm:$0xf]
    %v545 = vld [vmem:[#allocation7 + $0x2c0] sm:$0xf]
    %v546 = vld [vmem:[#allocation7 + $0x2c4] sm:$0xf]
    %v547 = vld [vmem:[#allocation7 + $0x2c8] sm:$0xf]
    %v548 = vld [vmem:[#allocation7 + $0x2cc] sm:$0xf]
    %v549 = vld [vmem:[#allocation7 + $0x2d0] sm:$0xf]
    %v550 = vld [vmem:[#allocation7 + $0x2d4] sm:$0xf]
    %v551 = vld [vmem:[#allocation7 + $0x2d8] sm:$0xf]
    %v552 = vld [vmem:[#allocation7 + $0x2dc] sm:$0xf]
    %v553 = vld [vmem:[#allocation7 + $0x2e0] sm:$0xf]
    %v554 = vld [vmem:[#allocation7 + $0x2e4] sm:$0xf]
    %v555 = vld [vmem:[#allocation7 + $0x2e8] sm:$0xf]
    %v556 = vld [vmem:[#allocation7 + $0x2ec] sm:$0xf]
    %v557 = vld [vmem:[#allocation7 + $0x2f0] sm:$0xf]
    %v558 = vld [vmem:[#allocation7 + $0x2f4] sm:$0xf]
    %v559 = vld [vmem:[#allocation7 + $0x2f8] sm:$0xf]
    %v560 = vld [vmem:[#allocation7 + $0x2fc] sm:$0xf]
    %v561 = vld [vmem:[#allocation7 + $0x300] sm:$0xf]
    %v562 = vld [vmem:[#allocation7 + $0x304] sm:$0xf]
    %v563 = vld [vmem:[#allocation7 + $0x308] sm:$0xf]
    %v564 = vld [vmem:[#allocation7 + $0x30c] sm:$0xf]
    %v565 = vld [vmem:[#allocation7 + $0x310] sm:$0xf]
    %v566 = vld [vmem:[#allocation7 + $0x314] sm:$0xf]
    %v567 = vld [vmem:[#allocation7 + $0x318] sm:$0xf]
    %v568 = vld [vmem:[#allocation7 + $0x31c] sm:$0xf]
    %v569 = vld [vmem:[#allocation7 + $0x320] sm:$0xf]
    %v570 = vld [vmem:[#allocation7 + $0x324] sm:$0xf]
    %v571 = vld [vmem:[#allocation7 + $0x328] sm:$0xf]
    %v572 = vld [vmem:[#allocation7 + $0x32c] sm:$0xf]
    %v573 = vld [vmem:[#allocation7 + $0x330] sm:$0xf]
    %v574 = vld [vmem:[#allocation7 + $0x334] sm:$0xf]
    %v575 = vld [vmem:[#allocation7 + $0x338] sm:$0xf]
    %v576 = vld [vmem:[#allocation7 + $0x33c] sm:$0xf]
    %v577 = vld [vmem:[#allocation7 + $0x340] sm:$0xf]
    %v578 = vld [vmem:[#allocation7 + $0x344] sm:$0xf]
    %v579 = vld [vmem:[#allocation7 + $0x348] sm:$0xf]
    %v580 = vld [vmem:[#allocation7 + $0x34c] sm:$0xf]
    %v581 = vld [vmem:[#allocation7 + $0x350] sm:$0xf]
    %v582 = vld [vmem:[#allocation7 + $0x354] sm:$0xf]
    %v583 = vld [vmem:[#allocation7 + $0x358] sm:$0xf]
    %v584 = vld [vmem:[#allocation7 + $0x35c] sm:$0xf]
    %v585 = vld [vmem:[#allocation7 + $0x360] sm:$0xf]
    %v586 = vld [vmem:[#allocation7 + $0x364] sm:$0xf]
    %v587 = vld [vmem:[#allocation7 + $0x368] sm:$0xf]
    %v588 = vld [vmem:[#allocation7 + $0x36c] sm:$0xf]
    %v589 = vld [vmem:[#allocation7 + $0x370] sm:$0xf]
    %v590 = vld [vmem:[#allocation7 + $0x374] sm:$0xf]
    %v591 = vld [vmem:[#allocation7 + $0x378] sm:$0xf]
    %v592 = vld [vmem:[#allocation7 + $0x37c] sm:$0xf]
    %v593 = vld [vmem:[#allocation7 + $0x380] sm:$0xf]
    %v594 = vld [vmem:[#allocation7 + $0x384] sm:$0xf]
    %v595 = vld [vmem:[#allocation7 + $0x388] sm:$0xf]
    %v596 = vld [vmem:[#allocation7 + $0x38c] sm:$0xf]
    %v597 = vld [vmem:[#allocation7 + $0x390] sm:$0xf]
    %v598 = vld [vmem:[#allocation7 + $0x394] sm:$0xf]
    %v599 = vld [vmem:[#allocation7 + $0x398] sm:$0xf]
    %v600 = vld [vmem:[#allocation7 + $0x39c] sm:$0xf]
    %v601 = vld [vmem:[#allocation7 + $0x3a0] sm:$0xf]
    %v602 = vld [vmem:[#allocation7 + $0x3a4] sm:$0xf]
    %v603 = vld [vmem:[#allocation7 + $0x3a8] sm:$0xf]
    %v604 = vld [vmem:[#allocation7 + $0x3ac] sm:$0xf]
    %v605 = vld [vmem:[#allocation7 + $0x3b0] sm:$0xf]
    %v606 = vld [vmem:[#allocation7 + $0x3b4] sm:$0xf]
    %v607 = vld [vmem:[#allocation7 + $0x3b8] sm:$0xf]
    %v608 = vld [vmem:[#allocation7 + $0x3bc] sm:$0xf]
    %v609 = vld [vmem:[#allocation7 + $0x3c0] sm:$0xf]
    %v610 = vld [vmem:[#allocation7 + $0x3c4] sm:$0xf]
    %v611 = vld [vmem:[#allocation7 + $0x3c8] sm:$0xf]
    %v612 = vld [vmem:[#allocation7 + $0x3cc] sm:$0xf]
    %v613 = vld [vmem:[#allocation7 + $0x3d0] sm:$0xf]
    %v614 = vld [vmem:[#allocation7 + $0x3d4] sm:$0xf]
    %v615 = vld [vmem:[#allocation7 + $0x3d8] sm:$0xf]
    %v616 = vld [vmem:[#allocation7 + $0x3dc] sm:$0xf]
    %v617 = vld [vmem:[#allocation7 + $0x3e0] sm:$0xf]
    %v618 = vld [vmem:[#allocation7 + $0x3e4] sm:$0xf]
    %v619 = vld [vmem:[#allocation7 + $0x3e8] sm:$0xf]
    %v620 = vld [vmem:[#allocation7 + $0x3ec] sm:$0xf]
    %v621 = vld [vmem:[#allocation7 + $0x3f0] sm:$0xf]
    %v622 = vld [vmem:[#allocation7 + $0x3f4] sm:$0xf]
    %v623 = vld [vmem:[#allocation7 + $0x3f8] sm:$0xf]
    %v624 = vld [vmem:[#allocation7 + $0x3fc] sm:$0xf]
    %v625 = vld [vmem:[%s13] sm:$0x1]
    %v627 = vlaneseq
    %v628 = vshrl.u32 %v627, 7
    %v629 = vsub.s32 0, %v628
    %v630 = vrot.slane %v625, %v629
    %v888 = vunpack.c.l.b16 %v369
    %v889 = vunpack.c.l.b16 %v370
    %v890 = vunpack.c.l.b16 %v371
    %v891 = vunpack.c.l.b16 %v372
    %v892 = vunpack.c.l.b16 %v373
    %v893 = vunpack.c.l.b16 %v374
    %v894 = vunpack.c.l.b16 %v375
    %v895 = vunpack.c.l.b16 %v376
    %v896 = vunpack.c.l.b16 %v377
    %v897 = vunpack.c.l.b16 %v378
    %v898 = vunpack.c.l.b16 %v379
    %v899 = vunpack.c.l.b16 %v380
    %v900 = vunpack.c.l.b16 %v381
    %v901 = vunpack.c.l.b16 %v382
    %v902 = vunpack.c.l.b16 %v383
    %v903 = vunpack.c.l.b16 %v384
    %v904 = vunpack.c.l.b16 %v385
    %v905 = vunpack.c.l.b16 %v386
    %v906 = vunpack.c.l.b16 %v387
    %v907 = vunpack.c.l.b16 %v388
    %v908 = vunpack.c.l.b16 %v389
    %v909 = vunpack.c.l.b16 %v390
    %v910 = vunpack.c.l.b16 %v391
    %v911 = vunpack.c.l.b16 %v392
    %v912 = vunpack.c.l.b16 %v393
    %v913 = vunpack.c.l.b16 %v394
    %v914 = vunpack.c.l.b16 %v395
    %v915 = vunpack.c.l.b16 %v396
    %v916 = vunpack.c.l.b16 %v397
    %v917 = vunpack.c.l.b16 %v398
    %v918 = vunpack.c.l.b16 %v399
    %v919 = vunpack.c.l.b16 %v400
    %v920 = vunpack.c.l.b16 %v401
    %v921 = vunpack.c.l.b16 %v402
    %v922 = vunpack.c.l.b16 %v403
    %v923 = vunpack.c.l.b16 %v404
    %v924 = vunpack.c.l.b16 %v405
    %v925 = vunpack.c.l.b16 %v406
    %v926 = vunpack.c.l.b16 %v407
    %v927 = vunpack.c.l.b16 %v408
    %v928 = vunpack.c.l.b16 %v409
    %v929 = vunpack.c.l.b16 %v410
    %v930 = vunpack.c.l.b16 %v411
    %v931 = vunpack.c.l.b16 %v412
    %v932 = vunpack.c.l.b16 %v413
    %v933 = vunpack.c.l.b16 %v414
    %v934 = vunpack.c.l.b16 %v415
    %v935 = vunpack.c.l.b16 %v416
    %v936 = vunpack.c.l.b16 %v417
    %v937 = vunpack.c.l.b16 %v418
    %v938 = vunpack.c.l.b16 %v419
    %v939 = vunpack.c.l.b16 %v420
    %v940 = vunpack.c.l.b16 %v421
    %v941 = vunpack.c.l.b16 %v422
    %v942 = vunpack.c.l.b16 %v423
    %v943 = vunpack.c.l.b16 %v424
    %v944 = vunpack.c.l.b16 %v425
    %v945 = vunpack.c.l.b16 %v426
    %v946 = vunpack.c.l.b16 %v427
    %v947 = vunpack.c.l.b16 %v428
    %v948 = vunpack.c.l.b16 %v429
    %v949 = vunpack.c.l.b16 %v430
    %v950 = vunpack.c.l.b16 %v431
    %v951 = vunpack.c.l.b16 %v432
    %v952 = vunpack.c.l.b16 %v433
    %v953 = vunpack.c.l.b16 %v434
    %v954 = vunpack.c.l.b16 %v435
    %v955 = vunpack.c.l.b16 %v436
    %v956 = vunpack.c.l.b16 %v437
    %v957 = vunpack.c.l.b16 %v438
    %v958 = vunpack.c.l.b16 %v439
    %v959 = vunpack.c.l.b16 %v440
    %v960 = vunpack.c.l.b16 %v441
    %v961 = vunpack.c.l.b16 %v442
    %v962 = vunpack.c.l.b16 %v443
    %v963 = vunpack.c.l.b16 %v444
    %v964 = vunpack.c.l.b16 %v445
    %v965 = vunpack.c.l.b16 %v446
    %v966 = vunpack.c.l.b16 %v447
    %v967 = vunpack.c.l.b16 %v448
    %v968 = vunpack.c.l.b16 %v449
    %v969 = vunpack.c.l.b16 %v450
    %v970 = vunpack.c.l.b16 %v451
    %v971 = vunpack.c.l.b16 %v452
    %v972 = vunpack.c.l.b16 %v453
    %v973 = vunpack.c.l.b16 %v454
    %v974 = vunpack.c.l.b16 %v455
    %v975 = vunpack.c.l.b16 %v456
    %v976 = vunpack.c.l.b16 %v457
    %v977 = vunpack.c.l.b16 %v458
    %v978 = vunpack.c.l.b16 %v459
    %v979 = vunpack.c.l.b16 %v460
    %v980 = vunpack.c.l.b16 %v461
    %v981 = vunpack.c.l.b16 %v462
    %v982 = vunpack.c.l.b16 %v463
    %v983 = vunpack.c.l.b16 %v464
    %v984 = vunpack.c.l.b16 %v465
    %v985 = vunpack.c.l.b16 %v466
    %v986 = vunpack.c.l.b16 %v467
    %v987 = vunpack.c.l.b16 %v468
    %v988 = vunpack.c.l.b16 %v469
    %v989 = vunpack.c.l.b16 %v470
    %v990 = vunpack.c.l.b16 %v471
    %v991 = vunpack.c.l.b16 %v472
    %v992 = vunpack.c.l.b16 %v473
    %v993 = vunpack.c.l.b16 %v474
    %v994 = vunpack.c.l.b16 %v475
    %v995 = vunpack.c.l.b16 %v476
    %v996 = vunpack.c.l.b16 %v477
    %v997 = vunpack.c.l.b16 %v478
    %v998 = vunpack.c.l.b16 %v479
    %v999 = vunpack.c.l.b16 %v480
    %v1000 = vunpack.c.l.b16 %v481
    %v1001 = vunpack.c.l.b16 %v482
    %v1002 = vunpack.c.l.b16 %v483
    %v1003 = vunpack.c.l.b16 %v484
    %v1004 = vunpack.c.l.b16 %v485
    %v1005 = vunpack.c.l.b16 %v486
    %v1006 = vunpack.c.l.b16 %v487
    %v1007 = vunpack.c.l.b16 %v488
    %v1008 = vunpack.c.l.b16 %v489
    %v1009 = vunpack.c.l.b16 %v490
    %v1010 = vunpack.c.l.b16 %v491
    %v1011 = vunpack.c.l.b16 %v492
    %v1012 = vunpack.c.l.b16 %v493
    %v1013 = vunpack.c.l.b16 %v494
    %v1014 = vunpack.c.l.b16 %v495
    %v1015 = vunpack.c.l.b16 %v496
    %v1016 = vunpack.c.l.b16 %v497
    %v1017 = vunpack.c.l.b16 %v498
    %v1018 = vunpack.c.l.b16 %v499
    %v1019 = vunpack.c.l.b16 %v500
    %v1020 = vunpack.c.l.b16 %v501
    %v1021 = vunpack.c.l.b16 %v502
    %v1022 = vunpack.c.l.b16 %v503
    %v1023 = vunpack.c.l.b16 %v504
    %v1024 = vunpack.c.l.b16 %v505
    %v1025 = vunpack.c.l.b16 %v506
    %v1026 = vunpack.c.l.b16 %v507
    %v1027 = vunpack.c.l.b16 %v508
    %v1028 = vunpack.c.l.b16 %v509
    %v1029 = vunpack.c.l.b16 %v510
    %v1030 = vunpack.c.l.b16 %v511
    %v1031 = vunpack.c.l.b16 %v512
    %v1032 = vunpack.c.l.b16 %v513
    %v1033 = vunpack.c.l.b16 %v514
    %v1034 = vunpack.c.l.b16 %v515
    %v1035 = vunpack.c.l.b16 %v516
    %v1036 = vunpack.c.l.b16 %v517
    %v1037 = vunpack.c.l.b16 %v518
    %v1038 = vunpack.c.l.b16 %v519
    %v1039 = vunpack.c.l.b16 %v520
    %v1040 = vunpack.c.l.b16 %v521
    %v1041 = vunpack.c.l.b16 %v522
    %v1042 = vunpack.c.l.b16 %v523
    %v1043 = vunpack.c.l.b16 %v524
    %v1044 = vunpack.c.l.b16 %v525
    %v1045 = vunpack.c.l.b16 %v526
    %v1046 = vunpack.c.l.b16 %v527
    %v1047 = vunpack.c.l.b16 %v528
    %v1048 = vunpack.c.l.b16 %v529
    %v1049 = vunpack.c.l.b16 %v530
    %v1050 = vunpack.c.l.b16 %v531
    %v1051 = vunpack.c.l.b16 %v532
    %v1052 = vunpack.c.l.b16 %v533
    %v1053 = vunpack.c.l.b16 %v534
    %v1054 = vunpack.c.l.b16 %v535
    %v1055 = vunpack.c.l.b16 %v536
    %v1056 = vunpack.c.l.b16 %v537
    %v1057 = vunpack.c.l.b16 %v538
    %v1058 = vunpack.c.l.b16 %v539
    %v1059 = vunpack.c.l.b16 %v540
    %v1060 = vunpack.c.l.b16 %v541
    %v1061 = vunpack.c.l.b16 %v542
    %v1062 = vunpack.c.l.b16 %v543
    %v1063 = vunpack.c.l.b16 %v544
    %v1064 = vunpack.c.l.b16 %v545
    %v1065 = vunpack.c.l.b16 %v546
    %v1066 = vunpack.c.l.b16 %v547
    %v1067 = vunpack.c.l.b16 %v548
    %v1068 = vunpack.c.l.b16 %v549
    %v1069 = vunpack.c.l.b16 %v550
    %v1070 = vunpack.c.l.b16 %v551
    %v1071 = vunpack.c.l.b16 %v552
    %v1072 = vunpack.c.l.b16 %v553
    %v1073 = vunpack.c.l.b16 %v554
    %v1074 = vunpack.c.l.b16 %v555
    %v1075 = vunpack.c.l.b16 %v556
    %v1076 = vunpack.c.l.b16 %v557
    %v1077 = vunpack.c.l.b16 %v558
    %v1078 = vunpack.c.l.b16 %v559
    %v1079 = vunpack.c.l.b16 %v560
    %v1080 = vunpack.c.l.b16 %v561
    %v1081 = vunpack.c.l.b16 %v562
    %v1082 = vunpack.c.l.b16 %v563
    %v1083 = vunpack.c.l.b16 %v564
    %v1084 = vunpack.c.l.b16 %v565
    %v1085 = vunpack.c.l.b16 %v566
    %v1086 = vunpack.c.l.b16 %v567
    %v1087 = vunpack.c.l.b16 %v568
    %v1088 = vunpack.c.l.b16 %v569
    %v1089 = vunpack.c.l.b16 %v570
    %v1090 = vunpack.c.l.b16 %v571
    %v1091 = vunpack.c.l.b16 %v572
    %v1092 = vunpack.c.l.b16 %v573
    %v1093 = vunpack.c.l.b16 %v574
    %v1094 = vunpack.c.l.b16 %v575
    %v1095 = vunpack.c.l.b16 %v576
    %v1096 = vunpack.c.l.b16 %v577
    %v1097 = vunpack.c.l.b16 %v578
    %v1098 = vunpack.c.l.b16 %v579
    %v1099 = vunpack.c.l.b16 %v580
    %v1100 = vunpack.c.l.b16 %v581
    %v1101 = vunpack.c.l.b16 %v582
    %v1102 = vunpack.c.l.b16 %v583
    %v1103 = vunpack.c.l.b16 %v584
    %v1104 = vunpack.c.l.b16 %v585
    %v1105 = vunpack.c.l.b16 %v586
    %v1106 = vunpack.c.l.b16 %v587
    %v1107 = vunpack.c.l.b16 %v588
    %v1108 = vunpack.c.l.b16 %v589
    %v1109 = vunpack.c.l.b16 %v590
    %v1110 = vunpack.c.l.b16 %v591
    %v1111 = vunpack.c.l.b16 %v592
    %v1112 = vunpack.c.l.b16 %v593
    %v1113 = vunpack.c.l.b16 %v594
    %v1114 = vunpack.c.l.b16 %v595
    %v1115 = vunpack.c.l.b16 %v596
    %v1116 = vunpack.c.l.b16 %v597
    %v1117 = vunpack.c.l.b16 %v598
    %v1118 = vunpack.c.l.b16 %v599
    %v1119 = vunpack.c.l.b16 %v600
    %v1120 = vunpack.c.l.b16 %v601
    %v1121 = vunpack.c.l.b16 %v602
    %v1122 = vunpack.c.l.b16 %v603
    %v1123 = vunpack.c.l.b16 %v604
    %v1124 = vunpack.c.l.b16 %v605
    %v1125 = vunpack.c.l.b16 %v606
    %v1126 = vunpack.c.l.b16 %v607
    %v1127 = vunpack.c.l.b16 %v608
    %v1128 = vunpack.c.l.b16 %v609
    %v1129 = vunpack.c.l.b16 %v610
    %v1130 = vunpack.c.l.b16 %v611
    %v1131 = vunpack.c.l.b16 %v612
    %v1132 = vunpack.c.l.b16 %v613
    %v1133 = vunpack.c.l.b16 %v614
    %v1134 = vunpack.c.l.b16 %v615
    %v1135 = vunpack.c.l.b16 %v616
    %v1136 = vunpack.c.l.b16 %v617
    %v1137 = vunpack.c.l.b16 %v618
    %v1138 = vunpack.c.l.b16 %v619
    %v1139 = vunpack.c.l.b16 %v620
    %v1140 = vunpack.c.l.b16 %v621
    %v1141 = vunpack.c.l.b16 %v622
    %v1142 = vunpack.c.l.b16 %v623
    %v1143 = vunpack.c.l.b16 %v624
    %v1144 = vpack.c.b16 %v889, %v888
    %v1145 = vpack.c.b16 %v891, %v890
    %v1146 = vpack.c.b16 %v893, %v892
    %v1147 = vpack.c.b16 %v895, %v894
    %v1148 = vpack.c.b16 %v897, %v896
    %v1149 = vpack.c.b16 %v899, %v898
    %v1150 = vpack.c.b16 %v901, %v900
    %v1151 = vpack.c.b16 %v903, %v902
    %v1152 = vpack.c.b16 %v905, %v904
    %v1153 = vpack.c.b16 %v907, %v906
    %v1154 = vpack.c.b16 %v909, %v908
    %v1155 = vpack.c.b16 %v911, %v910
    %v1156 = vpack.c.b16 %v913, %v912
    %v1157 = vpack.c.b16 %v915, %v914
    %v1158 = vpack.c.b16 %v917, %v916
    %v1159 = vpack.c.b16 %v919, %v918
    %v1160 = vpack.c.b16 %v921, %v920
    %v1161 = vpack.c.b16 %v923, %v922
    %v1162 = vpack.c.b16 %v925, %v924
    %v1163 = vpack.c.b16 %v927, %v926
    %v1164 = vpack.c.b16 %v929, %v928
    %v1165 = vpack.c.b16 %v931, %v930
    %v1166 = vpack.c.b16 %v933, %v932
    %v1167 = vpack.c.b16 %v935, %v934
    %v1168 = vpack.c.b16 %v937, %v936
    %v1169 = vpack.c.b16 %v939, %v938
    %v1170 = vpack.c.b16 %v941, %v940
    %v1171 = vpack.c.b16 %v943, %v942
    %v1172 = vpack.c.b16 %v945, %v944
    %v1173 = vpack.c.b16 %v947, %v946
    %v1174 = vpack.c.b16 %v949, %v948
    %v1175 = vpack.c.b16 %v951, %v950
    %v1176 = vpack.c.b16 %v953, %v952
    %v1177 = vpack.c.b16 %v955, %v954
    %v1178 = vpack.c.b16 %v957, %v956
    %v1179 = vpack.c.b16 %v959, %v958
    %v1180 = vpack.c.b16 %v961, %v960
    %v1181 = vpack.c.b16 %v963, %v962
    %v1182 = vpack.c.b16 %v965, %v964
    %v1183 = vpack.c.b16 %v967, %v966
    %v1184 = vpack.c.b16 %v969, %v968
    %v1185 = vpack.c.b16 %v971, %v970
    %v1186 = vpack.c.b16 %v973, %v972
    %v1187 = vpack.c.b16 %v975, %v974
    %v1188 = vpack.c.b16 %v977, %v976
    %v1189 = vpack.c.b16 %v979, %v978
    %v1190 = vpack.c.b16 %v981, %v980
    %v1191 = vpack.c.b16 %v983, %v982
    %v1192 = vpack.c.b16 %v985, %v984
    %v1193 = vpack.c.b16 %v987, %v986
    %v1194 = vpack.c.b16 %v989, %v988
    %v1195 = vpack.c.b16 %v991, %v990
    %v1196 = vpack.c.b16 %v993, %v992
    %v1197 = vpack.c.b16 %v995, %v994
    %v1198 = vpack.c.b16 %v997, %v996
    %v1199 = vpack.c.b16 %v999, %v998
    %v1200 = vpack.c.b16 %v1001, %v1000
    %v1201 = vpack.c.b16 %v1003, %v1002
    %v1202 = vpack.c.b16 %v1005, %v1004
    %v1203 = vpack.c.b16 %v1007, %v1006
    %v1204 = vpack.c.b16 %v1009, %v1008
    %v1205 = vpack.c.b16 %v1011, %v1010
    %v1206 = vpack.c.b16 %v1013, %v1012
    %v1207 = vpack.c.b16 %v1015, %v1014
    %v1208 = vpack.c.b16 %v1017, %v1016
    %v1209 = vpack.c.b16 %v1019, %v1018
    %v1210 = vpack.c.b16 %v1021, %v1020
    %v1211 = vpack.c.b16 %v1023, %v1022
    %v1212 = vpack.c.b16 %v1025, %v1024
    %v1213 = vpack.c.b16 %v1027, %v1026
    %v1214 = vpack.c.b16 %v1029, %v1028
    %v1215 = vpack.c.b16 %v1031, %v1030
    %v1216 = vpack.c.b16 %v1033, %v1032
    %v1217 = vpack.c.b16 %v1035, %v1034
    %v1218 = vpack.c.b16 %v1037, %v1036
    %v1219 = vpack.c.b16 %v1039, %v1038
    %v1220 = vpack.c.b16 %v1041, %v1040
    %v1221 = vpack.c.b16 %v1043, %v1042
    %v1222 = vpack.c.b16 %v1045, %v1044
    %v1223 = vpack.c.b16 %v1047, %v1046
    %v1224 = vpack.c.b16 %v1049, %v1048
    %v1225 = vpack.c.b16 %v1051, %v1050
    %v1226 = vpack.c.b16 %v1053, %v1052
    %v1227 = vpack.c.b16 %v1055, %v1054
    %v1228 = vpack.c.b16 %v1057, %v1056
    %v1229 = vpack.c.b16 %v1059, %v1058
    %v1230 = vpack.c.b16 %v1061, %v1060
    %v1231 = vpack.c.b16 %v1063, %v1062
    %v1232 = vpack.c.b16 %v1065, %v1064
    %v1233 = vpack.c.b16 %v1067, %v1066
    %v1234 = vpack.c.b16 %v1069, %v1068
    %v1235 = vpack.c.b16 %v1071, %v1070
    %v1236 = vpack.c.b16 %v1073, %v1072
    %v1237 = vpack.c.b16 %v1075, %v1074
    %v1238 = vpack.c.b16 %v1077, %v1076
    %v1239 = vpack.c.b16 %v1079, %v1078
    %v1240 = vpack.c.b16 %v1081, %v1080
    %v1241 = vpack.c.b16 %v1083, %v1082
    %v1242 = vpack.c.b16 %v1085, %v1084
    %v1243 = vpack.c.b16 %v1087, %v1086
    %v1244 = vpack.c.b16 %v1089, %v1088
    %v1245 = vpack.c.b16 %v1091, %v1090
    %v1246 = vpack.c.b16 %v1093, %v1092
    %v1247 = vpack.c.b16 %v1095, %v1094
    %v1248 = vpack.c.b16 %v1097, %v1096
    %v1249 = vpack.c.b16 %v1099, %v1098
    %v1250 = vpack.c.b16 %v1101, %v1100
    %v1251 = vpack.c.b16 %v1103, %v1102
    %v1252 = vpack.c.b16 %v1105, %v1104
    %v1253 = vpack.c.b16 %v1107, %v1106
    %v1254 = vpack.c.b16 %v1109, %v1108
    %v1255 = vpack.c.b16 %v1111, %v1110
    %v1256 = vpack.c.b16 %v1113, %v1112
    %v1257 = vpack.c.b16 %v1115, %v1114
    %v1258 = vpack.c.b16 %v1117, %v1116
    %v1259 = vpack.c.b16 %v1119, %v1118
    %v1260 = vpack.c.b16 %v1121, %v1120
    %v1261 = vpack.c.b16 %v1123, %v1122
    %v1262 = vpack.c.b16 %v1125, %v1124
    %v1263 = vpack.c.b16 %v1127, %v1126
    %v1264 = vpack.c.b16 %v1129, %v1128
    %v1265 = vpack.c.b16 %v1131, %v1130
    %v1266 = vpack.c.b16 %v1133, %v1132
    %v1267 = vpack.c.b16 %v1135, %v1134
    %v1268 = vpack.c.b16 %v1137, %v1136
    %v1269 = vpack.c.b16 %v1139, %v1138
    %v1270 = vpack.c.b16 %v1141, %v1140
    %v1271 = vpack.c.b16 %v1143, %v1142
    %1400 = vmatprep.subr.bf16.mxu0 0
    %1401 = vmatpush1.bf16.msra.mxu0 %v1144
    %1402 = vmatprep.subr.bf16.mxu0 0
    %1403 = vmatpush1.bf16.msra.mxu0 %v1145
    %1404 = vmatprep.subr.bf16.mxu0 0
    %1405 = vmatpush1.bf16.msra.mxu0 %v1146
    %1406 = vmatprep.subr.bf16.mxu0 0
    %1407 = vmatpush1.bf16.msra.mxu0 %v1147
    %1408 = vmatprep.subr.bf16.mxu0 0
    %1409 = vmatpush1.bf16.msra.mxu0 %v1148
    %1410 = vmatprep.subr.bf16.mxu0 0
    %1411 = vmatpush1.bf16.msra.mxu0 %v1149
    %1412 = vmatprep.subr.bf16.mxu0 0
    %1413 = vmatpush1.bf16.msra.mxu0 %v1150
    %1414 = vmatprep.subr.bf16.mxu0 0
    %1415 = vmatpush1.bf16.msra.mxu0 %v1151
    %1416 = vmatprep.subr.bf16.mxu0 0
    %1417 = vmatpush1.bf16.msra.mxu0 %v1152
    %1418 = vmatprep.subr.bf16.mxu0 0
    %1419 = vmatpush1.bf16.msra.mxu0 %v1153
    %1420 = vmatprep.subr.bf16.mxu0 0
    %1421 = vmatpush1.bf16.msra.mxu0 %v1154
    %1422 = vmatprep.subr.bf16.mxu0 0
    %1423 = vmatpush1.bf16.msra.mxu0 %v1155
    %1424 = vmatprep.subr.bf16.mxu0 0
    %1425 = vmatpush1.bf16.msra.mxu0 %v1156
    %1426 = vmatprep.subr.bf16.mxu0 0
    %1427 = vmatpush1.bf16.msra.mxu0 %v1157
    %1428 = vmatprep.subr.bf16.mxu0 0
    %1429 = vmatpush1.bf16.msra.mxu0 %v1158
    %1430 = vmatprep.subr.bf16.mxu0 0
    %1431 = vmatpush1.bf16.msra.mxu0 %v1159
    %1432 = vmatprep.mubr.bf16.mxu0 %v354
    %1433 = vmatmul.mubr.bf16.gmra.mrb[0].mxu0 %v353
    %v1434 = vpop.f32.mrb[0].mxu0
    %v1435 = vadd.f32 %v630, %v1434
    %v1436 = vpop.f32.mrb[0].mxu0
    %v1437 = vpop.f32.mrb[0].mxu0
    %v1438 = vpop.f32.mrb[0].mxu0
    %1439 = vdwg.mxu0
    %1440 = vmatprep.subr.bf16.mxu0 0
    %1441 = vmatpush1.bf16.msra.mxu0 %v1160
    %1442 = vmatprep.subr.bf16.mxu0 0
    %1443 = vmatpush1.bf16.msra.mxu0 %v1161
    %1444 = vmatprep.subr.bf16.mxu0 0
    %1445 = vmatpush1.bf16.msra.mxu0 %v1162
    %1446 = vmatprep.subr.bf16.mxu0 0
    %1447 = vmatpush1.bf16.msra.mxu0 %v1163
    %1448 = vmatprep.subr.bf16.mxu0 0
    %1449 = vmatpush1.bf16.msra.mxu0 %v1164
    %1450 = vmatprep.subr.bf16.mxu0 0
    %1451 = vmatpush1.bf16.msra.mxu0 %v1165
    %1452 = vmatprep.subr.bf16.mxu0 0
    %1453 = vmatpush1.bf16.msra.mxu0 %v1166
    %1454 = vmatprep.subr.bf16.mxu0 0
    %1455 = vmatpush1.bf16.msra.mxu0 %v1167
    %1456 = vmatprep.subr.bf16.mxu0 0
    %1457 = vmatpush1.bf16.msra.mxu0 %v1168
    %1458 = vmatprep.subr.bf16.mxu0 0
    %1459 = vmatpush1.bf16.msra.mxu0 %v1169
    %1460 = vmatprep.subr.bf16.mxu0 0
    %1461 = vmatpush1.bf16.msra.mxu0 %v1170
    %1462 = vmatprep.subr.bf16.mxu0 0
    %1463 = vmatpush1.bf16.msra.mxu0 %v1171
    %1464 = vmatprep.subr.bf16.mxu0 0
    %1465 = vmatpush1.bf16.msra.mxu0 %v1172
    %1466 = vmatprep.subr.bf16.mxu0 0
    %1467 = vmatpush1.bf16.msra.mxu0 %v1173
    %1468 = vmatprep.subr.bf16.mxu0 0
    %1469 = vmatpush1.bf16.msra.mxu0 %v1174
    %1470 = vmatprep.subr.bf16.mxu0 0
    %1471 = vmatpush1.bf16.msra.mxu0 %v1175
    %1472 = vmatprep.mubr.bf16.mxu0 %v356
    %1473 = vmatmul.mubr.bf16.gmra.mrb[0].mxu0 %v355
    %v1474 = vpop.f32.mrb[0].mxu0
    %v1475 = vadd.f32 %v1435, %v1474
    %v1476 = vpop.f32.mrb[0].mxu0
    %v1477 = vpop.f32.mrb[0].mxu0
    %v1478 = vpop.f32.mrb[0].mxu0
    %1479 = vdwg.mxu0
    %1480 = vmatprep.subr.bf16.mxu0 0
    %1481 = vmatpush1.bf16.msra.mxu0 %v1176
    %1482 = vmatprep.subr.bf16.mxu0 0
    %1483 = vmatpush1.bf16.msra.mxu0 %v1177
    %1484 = vmatprep.subr.bf16.mxu0 0
    %1485 = vmatpush1.bf16.msra.mxu0 %v1178
    %1486 = vmatprep.subr.bf16.mxu0 0
    %1487 = vmatpush1.bf16.msra.mxu0 %v1179
    %1488 = vmatprep.subr.bf16.mxu0 0
    %1489 = vmatpush1.bf16.msra.mxu0 %v1180
    %1490 = vmatprep.subr.bf16.mxu0 0
    %1491 = vmatpush1.bf16.msra.mxu0 %v1181
    %1492 = vmatprep.subr.bf16.mxu0 0
    %1493 = vmatpush1.bf16.msra.mxu0 %v1182
    %1494 = vmatprep.subr.bf16.mxu0 0
    %1495 = vmatpush1.bf16.msra.mxu0 %v1183
    %1496 = vmatprep.subr.bf16.mxu0 0
    %1497 = vmatpush1.bf16.msra.mxu0 %v1184
    %1498 = vmatprep.subr.bf16.mxu0 0
    %1499 = vmatpush1.bf16.msra.mxu0 %v1185
    %1500 = vmatprep.subr.bf16.mxu0 0
    %1501 = vmatpush1.bf16.msra.mxu0 %v1186
    %1502 = vmatprep.subr.bf16.mxu0 0
    %1503 = vmatpush1.bf16.msra.mxu0 %v1187
    %1504 = vmatprep.subr.bf16.mxu0 0
    %1505 = vmatpush1.bf16.msra.mxu0 %v1188
    %1506 = vmatprep.subr.bf16.mxu0 0
    %1507 = vmatpush1.bf16.msra.mxu0 %v1189
    %1508 = vmatprep.subr.bf16.mxu0 0
    %1509 = vmatpush1.bf16.msra.mxu0 %v1190
    %1510 = vmatprep.subr.bf16.mxu0 0
    %1511 = vmatpush1.bf16.msra.mxu0 %v1191
    %1512 = vmatprep.mubr.bf16.mxu0 %v358
    %1513 = vmatmul.mubr.bf16.gmra.mrb[0].mxu0 %v357
    %v1514 = vpop.f32.mrb[0].mxu0
    %v1515 = vadd.f32 %v1475, %v1514
    %v1516 = vpop.f32.mrb[0].mxu0
    %v1517 = vpop.f32.mrb[0].mxu0
    %v1518 = vpop.f32.mrb[0].mxu0
    %1519 = vdwg.mxu0
    %1520 = vmatprep.subr.bf16.mxu0 0
    %1521 = vmatpush1.bf16.msra.mxu0 %v1192
    %1522 = vmatprep.subr.bf16.mxu0 0
    %1523 = vmatpush1.bf16.msra.mxu0 %v1193
    %1524 = vmatprep.subr.bf16.mxu0 0
    %1525 = vmatpush1.bf16.msra.mxu0 %v1194
    %1526 = vmatprep.subr.bf16.mxu0 0
    %1527 = vmatpush1.bf16.msra.mxu0 %v1195
    %1528 = vmatprep.subr.bf16.mxu0 0
    %1529 = vmatpush1.bf16.msra.mxu0 %v1196
    %1530 = vmatprep.subr.bf16.mxu0 0
    %1531 = vmatpush1.bf16.msra.mxu0 %v1197
    %1532 = vmatprep.subr.bf16.mxu0 0
    %1533 = vmatpush1.bf16.msra.mxu0 %v1198
    %1534 = vmatprep.subr.bf16.mxu0 0
    %1535 = vmatpush1.bf16.msra.mxu0 %v1199
    %1536 = vmatprep.subr.bf16.mxu0 0
    %1537 = vmatpush1.bf16.msra.mxu0 %v1200
    %1538 = vmatprep.subr.bf16.mxu0 0
    %1539 = vmatpush1.bf16.msra.mxu0 %v1201
    %1540 = vmatprep.subr.bf16.mxu0 0
    %1541 = vmatpush1.bf16.msra.mxu0 %v1202
    %1542 = vmatprep.subr.bf16.mxu0 0
    %1543 = vmatpush1.bf16.msra.mxu0 %v1203
    %1544 = vmatprep.subr.bf16.mxu0 0
    %1545 = vmatpush1.bf16.msra.mxu0 %v1204
    %1546 = vmatprep.subr.bf16.mxu0 0
    %1547 = vmatpush1.bf16.msra.mxu0 %v1205
    %1548 = vmatprep.subr.bf16.mxu0 0
    %1549 = vmatpush1.bf16.msra.mxu0 %v1206
    %1550 = vmatprep.subr.bf16.mxu0 0
    %1551 = vmatpush1.bf16.msra.mxu0 %v1207
    %1552 = vmatprep.mubr.bf16.mxu0 %v360
    %1553 = vmatmul.mubr.bf16.gmra.mrb[0].mxu0 %v359
    %v1554 = vpop.f32.mrb[0].mxu0
    %v1555 = vadd.f32 %v1515, %v1554
    %v1556 = vpop.f32.mrb[0].mxu0
    %v1557 = vpop.f32.mrb[0].mxu0
    %v1558 = vpop.f32.mrb[0].mxu0
    %1559 = vdwg.mxu0
    %1560 = vmatprep.subr.bf16.mxu0 0
    %1561 = vmatpush1.bf16.msra.mxu0 %v1208
    %1562 = vmatprep.subr.bf16.mxu0 0
    %1563 = vmatpush1.bf16.msra.mxu0 %v1209
    %1564 = vmatprep.subr.bf16.mxu0 0
    %1565 = vmatpush1.bf16.msra.mxu0 %v1210
    %1566 = vmatprep.subr.bf16.mxu0 0
    %1567 = vmatpush1.bf16.msra.mxu0 %v1211
    %1568 = vmatprep.subr.bf16.mxu0 0
    %1569 = vmatpush1.bf16.msra.mxu0 %v1212
    %1570 = vmatprep.subr.bf16.mxu0 0
    %1571 = vmatpush1.bf16.msra.mxu0 %v1213
    %1572 = vmatprep.subr.bf16.mxu0 0
    %1573 = vmatpush1.bf16.msra.mxu0 %v1214
    %1574 = vmatprep.subr.bf16.mxu0 0
    %1575 = vmatpush1.bf16.msra.mxu0 %v1215
    %1576 = vmatprep.subr.bf16.mxu0 0
    %1577 = vmatpush1.bf16.msra.mxu0 %v1216
    %1578 = vmatprep.subr.bf16.mxu0 0
    %1579 = vmatpush1.bf16.msra.mxu0 %v1217
    %1580 = vmatprep.subr.bf16.mxu0 0
    %1581 = vmatpush1.bf16.msra.mxu0 %v1218
    %1582 = vmatprep.subr.bf16.mxu0 0
    %1583 = vmatpush1.bf16.msra.mxu0 %v1219
    %1584 = vmatprep.subr.bf16.mxu0 0
    %1585 = vmatpush1.bf16.msra.mxu0 %v1220
    %1586 = vmatprep.subr.bf16.mxu0 0
    %1587 = vmatpush1.bf16.msra.mxu0 %v1221
    %1588 = vmatprep.subr.bf16.mxu0 0
    %1589 = vmatpush1.bf16.msra.mxu0 %v1222
    %1590 = vmatprep.subr.bf16.mxu0 0
    %1591 = vmatpush1.bf16.msra.mxu0 %v1223
    %1592 = vmatprep.mubr.bf16.mxu0 %v362
    %1593 = vmatmul.mubr.bf16.gmra.mrb[0].mxu0 %v361
    %v1594 = vpop.f32.mrb[0].mxu0
    %v1595 = vadd.f32 %v1555, %v1594
    %v1596 = vpop.f32.mrb[0].mxu0
    %v1597 = vpop.f32.mrb[0].mxu0
    %v1598 = vpop.f32.mrb[0].mxu0
    %1599 = vdwg.mxu0
    %1600 = vmatprep.subr.bf16.mxu0 0
    %1601 = vmatpush1.bf16.msra.mxu0 %v1224
    %1602 = vmatprep.subr.bf16.mxu0 0
    %1603 = vmatpush1.bf16.msra.mxu0 %v1225
    %1604 = vmatprep.subr.bf16.mxu0 0
    %1605 = vmatpush1.bf16.msra.mxu0 %v1226
    %1606 = vmatprep.subr.bf16.mxu0 0
    %1607 = vmatpush1.bf16.msra.mxu0 %v1227
    %1608 = vmatprep.subr.bf16.mxu0 0
    %1609 = vmatpush1.bf16.msra.mxu0 %v1228
    %1610 = vmatprep.subr.bf16.mxu0 0
    %1611 = vmatpush1.bf16.msra.mxu0 %v1229
    %1612 = vmatprep.subr.bf16.mxu0 0
    %1613 = vmatpush1.bf16.msra.mxu0 %v1230
    %1614 = vmatprep.subr.bf16.mxu0 0
    %1615 = vmatpush1.bf16.msra.mxu0 %v1231
    %1616 = vmatprep.subr.bf16.mxu0 0
    %1617 = vmatpush1.bf16.msra.mxu0 %v1232
    %1618 = vmatprep.subr.bf16.mxu0 0
    %1619 = vmatpush1.bf16.msra.mxu0 %v1233
    %1620 = vmatprep.subr.bf16.mxu0 0
    %1621 = vmatpush1.bf16.msra.mxu0 %v1234
    %1622 = vmatprep.subr.bf16.mxu0 0
    %1623 = vmatpush1.bf16.msra.mxu0 %v1235
    %1624 = vmatprep.subr.bf16.mxu0 0
    %1625 = vmatpush1.bf16.msra.mxu0 %v1236
    %1626 = vmatprep.subr.bf16.mxu0 0
    %1627 = vmatpush1.bf16.msra.mxu0 %v1237
    %1628 = vmatprep.subr.bf16.mxu0 0
    %1629 = vmatpush1.bf16.msra.mxu0 %v1238
    %1630 = vmatprep.subr.bf16.mxu0 0
    %1631 = vmatpush1.bf16.msra.mxu0 %v1239
    %1632 = vmatprep.mubr.bf16.mxu0 %v364
    %1633 = vmatmul.mubr.bf16.gmra.mrb[0].mxu0 %v363
    %v1634 = vpop.f32.mrb[0].mxu0
    %v1635 = vadd.f32 %v1595, %v1634
    %v1636 = vpop.f32.mrb[0].mxu0
    %v1637 = vpop.f32.mrb[0].mxu0
    %v1638 = vpop.f32.mrb[0].mxu0
    %1639 = vdwg.mxu0
    %1640 = vmatprep.subr.bf16.mxu0 0
    %1641 = vmatpush1.bf16.msra.mxu0 %v1240
    %1642 = vmatprep.subr.bf16.mxu0 0
    %1643 = vmatpush1.bf16.msra.mxu0 %v1241
    %1644 = vmatprep.subr.bf16.mxu0 0
    %1645 = vmatpush1.bf16.msra.mxu0 %v1242
    %1646 = vmatprep.subr.bf16.mxu0 0
    %1647 = vmatpush1.bf16.msra.mxu0 %v1243
    %1648 = vmatprep.subr.bf16.mxu0 0
    %1649 = vmatpush1.bf16.msra.mxu0 %v1244
    %1650 = vmatprep.subr.bf16.mxu0 0
    %1651 = vmatpush1.bf16.msra.mxu0 %v1245
    %1652 = vmatprep.subr.bf16.mxu0 0
    %1653 = vmatpush1.bf16.msra.mxu0 %v1246
    %1654 = vmatprep.subr.bf16.mxu0 0
    %1655 = vmatpush1.bf16.msra.mxu0 %v1247
    %1656 = vmatprep.subr.bf16.mxu0 0
    %1657 = vmatpush1.bf16.msra.mxu0 %v1248
    %1658 = vmatprep.subr.bf16.mxu0 0
    %1659 = vmatpush1.bf16.msra.mxu0 %v1249
    %1660 = vmatprep.subr.bf16.mxu0 0
    %1661 = vmatpush1.bf16.msra.mxu0 %v1250
    %1662 = vmatprep.subr.bf16.mxu0 0
    %1663 = vmatpush1.bf16.msra.mxu0 %v1251
    %1664 = vmatprep.subr.bf16.mxu0 0
    %1665 = vmatpush1.bf16.msra.mxu0 %v1252
    %1666 = vmatprep.subr.bf16.mxu0 0
    %1667 = vmatpush1.bf16.msra.mxu0 %v1253
    %1668 = vmatprep.subr.bf16.mxu0 0
    %1669 = vmatpush1.bf16.msra.mxu0 %v1254
    %1670 = vmatprep.subr.bf16.mxu0 0
    %1671 = vmatpush1.bf16.msra.mxu0 %v1255
    %1672 = vmatprep.mubr.bf16.mxu0 %v366
    %1673 = vmatmul.mubr.bf16.gmra.mrb[0].mxu0 %v365
    %v1674 = vpop.f32.mrb[0].mxu0
    %v1675 = vadd.f32 %v1635, %v1674
    %v1676 = vpop.f32.mrb[0].mxu0
    %v1677 = vpop.f32.mrb[0].mxu0
    %v1678 = vpop.f32.mrb[0].mxu0
    %1679 = vdwg.mxu0
    %1680 = vmatprep.subr.bf16.mxu0 0
    %1681 = vmatpush1.bf16.msra.mxu0 %v1256
    %1682 = vmatprep.subr.bf16.mxu0 0
    %1683 = vmatpush1.bf16.msra.mxu0 %v1257
    %1684 = vmatprep.subr.bf16.mxu0 0
    %1685 = vmatpush1.bf16.msra.mxu0 %v1258
    %1686 = vmatprep.subr.bf16.mxu0 0
    %1687 = vmatpush1.bf16.msra.mxu0 %v1259
    %1688 = vmatprep.subr.bf16.mxu0 0
    %1689 = vmatpush1.bf16.msra.mxu0 %v1260
    %1690 = vmatprep.subr.bf16.mxu0 0
    %1691 = vmatpush1.bf16.msra.mxu0 %v1261
    %1692 = vmatprep.subr.bf16.mxu0 0
    %1693 = vmatpush1.bf16.msra.mxu0 %v1262
    %1694 = vmatprep.subr.bf16.mxu0 0
    %1695 = vmatpush1.bf16.msra.mxu0 %v1263
    %1696 = vmatprep.subr.bf16.mxu0 0
    %1697 = vmatpush1.bf16.msra.mxu0 %v1264
    %1698 = vmatprep.subr.bf16.mxu0 0
    %1699 = vmatpush1.bf16.msra.mxu0 %v1265
    %1700 = vmatprep.subr.bf16.mxu0 0
    %1701 = vmatpush1.bf16.msra.mxu0 %v1266
    %1702 = vmatprep.subr.bf16.mxu0 0
    %1703 = vmatpush1.bf16.msra.mxu0 %v1267
    %1704 = vmatprep.subr.bf16.mxu0 0
    %1705 = vmatpush1.bf16.msra.mxu0 %v1268
    %1706 = vmatprep.subr.bf16.mxu0 0
    %1707 = vmatpush1.bf16.msra.mxu0 %v1269
    %1708 = vmatprep.subr.bf16.mxu0 0
    %1709 = vmatpush1.bf16.msra.mxu0 %v1270
    %1710 = vmatprep.subr.bf16.mxu0 0
    %1711 = vmatpush1.bf16.msra.mxu0 %v1271
    %1712 = vmatprep.mubr.bf16.mxu0 %v368
    %1713 = vmatmul.mubr.bf16.gmra.mrb[0].mxu0 %v367
    %v1714 = vpop.f32.mrb[0].mxu0
    %v1715 = vadd.f32 %v1675, %v1714
    %v1716 = vpop.f32.mrb[0].mxu0
    %v1717 = vpop.f32.mrb[0].mxu0
    %v1718 = vpop.f32.mrb[0].mxu0
    %1719 = vdwg.mxu0
    %v1720 = vmax.f32 %v1715, 0.0
    %v1721 = vpack.c.bf16 %v1720, %v1720
    %v1722 = vld [vmem:[#allocation11] sm:$0xf]
    %v1723 = vld [vmem:[#allocation11 + $0x4] sm:$0xf]
    %v1724 = vld [vmem:[#allocation11 + $0x8] sm:$0xf]
    %v1725 = vld [vmem:[#allocation11 + $0xc] sm:$0xf]
    %v1726 = vld [vmem:[#allocation11 + $0x10] sm:$0xf]
    %v1727 = vld [vmem:[#allocation11 + $0x14] sm:$0xf]
    %v1728 = vld [vmem:[#allocation11 + $0x18] sm:$0xf]
    %v1729 = vld [vmem:[#allocation11 + $0x1c] sm:$0xf]
    %v1730 = vld [vmem:[#allocation11 + $0x20] sm:$0xf]
    %v1731 = vld [vmem:[#allocation11 + $0x24] sm:$0xf]
    %v1732 = vld [vmem:[#allocation11 + $0x28] sm:$0xf]
    %v1733 = vld [vmem:[#allocation11 + $0x2c] sm:$0xf]
    %v1734 = vld [vmem:[#allocation11 + $0x30] sm:$0xf]
    %v1735 = vld [vmem:[#allocation11 + $0x34] sm:$0xf]
    %v1736 = vld [vmem:[#allocation11 + $0x38] sm:$0xf]
    %v1737 = vld [vmem:[#allocation11 + $0x3c] sm:$0xf]
    %v1754 = vunpack.c.l.b16 %v1722
    %v1755 = vunpack.c.l.b16 %v1723
    %v1756 = vunpack.c.l.b16 %v1724
    %v1757 = vunpack.c.l.b16 %v1725
    %v1758 = vunpack.c.l.b16 %v1726
    %v1759 = vunpack.c.l.b16 %v1727
    %v1760 = vunpack.c.l.b16 %v1728
    %v1761 = vunpack.c.l.b16 %v1729
    %v1762 = vunpack.c.l.b16 %v1730
    %v1763 = vunpack.c.l.b16 %v1731
    %v1764 = vunpack.c.l.b16 %v1732
    %v1765 = vunpack.c.l.b16 %v1733
    %v1766 = vunpack.c.l.b16 %v1734
    %v1767 = vunpack.c.l.b16 %v1735
    %v1768 = vunpack.c.l.b16 %v1736
    %v1769 = vunpack.c.l.b16 %v1737
    %v1770 = vpack.c.b16 %v1755, %v1754
    %v1771 = vpack.c.b16 %v1757, %v1756
    %v1772 = vpack.c.b16 %v1759, %v1758
    %v1773 = vpack.c.b16 %v1761, %v1760
    %v1774 = vpack.c.b16 %v1763, %v1762
    %v1775 = vpack.c.b16 %v1765, %v1764
    %v1776 = vpack.c.b16 %v1767, %v1766
    %v1777 = vpack.c.b16 %v1769, %v1768
    %1786 = vmatprep.subr.bf16.mxu0 0
    %1787 = vmatpush1.bf16.msra.mxu0 %v1770
    %1788 = vmatprep.subr.bf16.mxu0 0
    %1789 = vmatpush1.bf16.msra.mxu0 %v1771
    %1790 = vmatprep.subr.bf16.mxu0 0
    %1791 = vmatpush1.bf16.msra.mxu0 %v1772
    %1792 = vmatprep.subr.bf16.mxu0 0
    %1793 = vmatpush1.bf16.msra.mxu0 %v1773
    %1794 = vmatprep.subr.bf16.mxu0 0
    %1795 = vmatpush1.bf16.msra.mxu0 %v1774
    %1796 = vmatprep.subr.bf16.mxu0 0
    %1797 = vmatpush1.bf16.msra.mxu0 %v1775
    %1798 = vmatprep.subr.bf16.mxu0 0
    %1799 = vmatpush1.bf16.msra.mxu0 %v1776
    %1800 = vmatprep.subr.bf16.mxu0 0
    %1801 = vmatpush1.bf16.msra.mxu0 %v1777
    %1802 = vmatprep.subr.bf16.mxu0 0
    %1803 = vmatpush1.bf16.msra.mxu0 0
    %1804 = vmatprep.subr.bf16.mxu0 0
    %1805 = vmatpush1.bf16.msra.mxu0 0
    %1806 = vmatprep.subr.bf16.mxu0 0
    %1807 = vmatpush1.bf16.msra.mxu0 0
    %1808 = vmatprep.subr.bf16.mxu0 0
    %1809 = vmatpush1.bf16.msra.mxu0 0
    %1810 = vmatprep.subr.bf16.mxu0 0
    %1811 = vmatpush1.bf16.msra.mxu0 0
    %1812 = vmatprep.subr.bf16.mxu0 0
    %1813 = vmatpush1.bf16.msra.mxu0 0
    %1814 = vmatprep.subr.bf16.mxu0 0
    %1815 = vmatpush1.bf16.msra.mxu0 0
    %1816 = vmatprep.subr.bf16.mxu0 0
    %1817 = vmatpush1.bf16.msra.mxu0 0
    %1818 = vmatprep.mubr.bf16.mxu0 0
    %1819 = vmatmul.mubr.bf16.gmra.mrb[0].mxu0 %v1721
    %v1820 = vpop.f32.mrb[0].mxu0
    %v1821 = vadd.f32 0.0, %v1820
    %v1822 = vpop.f32.mrb[0].mxu0
    %v1823 = vpop.f32.mrb[0].mxu0
    %v1824 = vpop.f32.mrb[0].mxu0
    %1825 = vdwg.mxu0
    %v1826 = vld [vmem:[#allocation23] sm:$0xff]
    %v1827 = vld [vmem:[#allocation23 + $0x8] sm:$0xff]
    %v1828 = vld [vmem:[#allocation23 + $0x10] sm:$0xff]
    %v1829 = vld [vmem:[#allocation23 + $0x18] sm:$0xff]
    %vm1830 = vcmask 64512
    %v1832 = vsel %vm1830, %v1826, 0
    %v1835 = vsel %vm1830, %v1827, 0
    %v1838 = vsel %vm1830, %v1828, 0
    %v1841 = vsel %vm1830, %v1829, 0
    %1843 = vmatprep.subr.mxu0 0.0
    %1844 = vmatpush1.msra.mxu0 %v1821
    %1845 = vmatprep.subr.mxu0 0.0
    %1846 = vmatpush1.msra.mxu0 0.0
    %1847 = vmatprep.subr.mxu0 0.0
    %1848 = vmatpush1.msra.mxu0 0.0
    %1849 = vmatprep.subr.mxu0 0.0
    %1850 = vmatpush1.msra.mxu0 0.0
    %1851 = vmatprep.subr.mxu0 0.0
    %1852 = vmatpush1.msra.mxu0 0.0
    %1853 = vmatprep.subr.mxu0 0.0
    %1854 = vmatpush1.msra.mxu0 0.0
    %1855 = vmatprep.subr.mxu0 0.0
    %1856 = vmatpush1.msra.mxu0 0.0
    %1857 = vmatprep.subr.mxu0 0.0
    %1858 = vmatpush1.msra.mxu0 0.0
    %1859 = vmatprep.subr.mxu0 0.0
    %1860 = vmatpush1.msra.mxu0 0.0
    %1861 = vmatprep.subr.mxu0 0.0
    %1862 = vmatpush1.msra.mxu0 0.0
    %1863 = vmatprep.subr.mxu0 0.0
    %1864 = vmatpush1.msra.mxu0 0.0
    %1865 = vmatprep.subr.mxu0 0.0
    %1866 = vmatpush1.msra.mxu0 0.0
    %1867 = vmatprep.subr.mxu0 0.0
    %1868 = vmatpush1.msra.mxu0 0.0
    %1869 = vmatprep.subr.mxu0 0.0
    %1870 = vmatpush1.msra.mxu0 0.0
    %1871 = vmatprep.subr.mxu0 0.0
    %1872 = vmatpush1.msra.mxu0 0.0
    %1873 = vmatprep.subr.mxu0 0.0
    %1874 = vmatpush1.msra.mxu0 0.0
    %1875 = vmatprep.subr.mxu0 0.0
    %1876 = vmatpush1.msra.mxu0 0.0
    %1877 = vmatprep.subr.mxu0 0.0
    %1878 = vmatpush1.msra.mxu0 0.0
    %1879 = vmatprep.subr.mxu0 0.0
    %1880 = vmatpush1.msra.mxu0 0.0
    %1881 = vmatprep.subr.mxu0 0.0
    %1882 = vmatpush1.msra.mxu0 0.0
    %1883 = vmatprep.subr.mxu0 0.0
    %1884 = vmatpush1.msra.mxu0 0.0
    %1885 = vmatprep.subr.mxu0 0.0
    %1886 = vmatpush1.msra.mxu0 0.0
    %1887 = vmatprep.subr.mxu0 0.0
    %1888 = vmatpush1.msra.mxu0 0.0
    %1889 = vmatprep.subr.mxu0 0.0
    %1890 = vmatpush1.msra.mxu0 0.0
    %1891 = vmatprep.subr.mxu0 0.0
    %1892 = vmatpush1.msra.mxu0 0.0
    %1893 = vmatprep.subr.mxu0 0.0
    %1894 = vmatpush1.msra.mxu0 0.0
    %1895 = vmatprep.subr.mxu0 0.0
    %1896 = vmatpush1.msra.mxu0 0.0
    %1897 = vmatprep.subr.mxu0 0.0
    %1898 = vmatpush1.msra.mxu0 0.0
    %1899 = vmatprep.subr.mxu0 0.0
    %1900 = vmatpush1.msra.mxu0 0.0
    %1901 = vmatprep.subr.mxu0 0.0
    %1902 = vmatpush1.msra.mxu0 0.0
    %1903 = vmatprep.subr.mxu0 0.0
    %1904 = vmatpush1.msra.mxu0 0.0
    %1905 = vmatprep.subr.mxu0 0.0
    %1906 = vmatpush1.msra.mxu0 0.0
    %1907 = vmatprep.mubr.f32.mxu0 0.0
    %1908 = vmatmul.mubr.f32.gmra.mrb[0].mxu0 %v1832
    %v1909 = vpop.f32.mrb[0].mxu0
    %v1910 = vadd.f32 0.0, %v1909
    %v1911 = vpop.f32.mrb[0].mxu0
    %1912 = vmatprep.mubr.f32.mxu0 0.0
    %1913 = vmatmul.mubr.f32.gmra.mrb[0].mxu0 %v1835
    %v1914 = vpop.f32.mrb[0].mxu0
    %v1915 = vadd.f32 0.0, %v1914
    %v1916 = vpop.f32.mrb[0].mxu0
    %1917 = vmatprep.mubr.f32.mxu0 0.0
    %1918 = vmatmul.mubr.f32.gmra.mrb[0].mxu0 %v1838
    %v1919 = vpop.f32.mrb[0].mxu0
    %v1920 = vadd.f32 0.0, %v1919
    %v1921 = vpop.f32.mrb[0].mxu0
    %1922 = vmatprep.mubr.f32.mxu0 0.0
    %1923 = vmatmul.mubr.f32.gmra.mrb[0].mxu0 %v1841
    %v1924 = vpop.f32.mrb[0].mxu0
    %v1925 = vadd.f32 0.0, %v1924
    %v1926 = vpop.f32.mrb[0].mxu0
    %1927 = vdwg.mxu0
    %v1928 = vld [vmem:[%s3] sm:$0xff]
    %v1929 = vld [vmem:[%s3 + $0x8] sm:$0xff]
    %v1930 = vld [vmem:[%s3 + $0x10] sm:$0xff]
    %v1931 = vld [vmem:[%s3 + $0x18] sm:$0xff]
    %v1932 = vld [vmem:[%s3 + $0x20] sm:$0xff]
    %v1933 = vld [vmem:[%s3 + $0x28] sm:$0xff]
    %v1934 = vld [vmem:[%s3 + $0x30] sm:$0xff]
    %v1935 = vld [vmem:[%s3 + $0x38] sm:$0xff]
    %v1936 = vld [vmem:[%s3 + $0x40] sm:$0xff]
    %v1937 = vld [vmem:[%s3 + $0x48] sm:$0xff]
    %v1938 = vld [vmem:[%s3 + $0x50] sm:$0xff]
    %v1939 = vld [vmem:[%s3 + $0x58] sm:$0xff]
    %v1940 = vld [vmem:[%s3 + $0x60] sm:$0xff]
    %v1941 = vld [vmem:[%s3 + $0x68] sm:$0xff]
    %v1942 = vld [vmem:[%s3 + $0x70] sm:$0xff]
    %v1943 = vld [vmem:[%s3 + $0x78] sm:$0xff]
    %v1944 = vld [vmem:[%s3 + $0x80] sm:$0xff]
    %v1945 = vld [vmem:[%s3 + $0x88] sm:$0xff]
    %v1946 = vld [vmem:[%s3 + $0x90] sm:$0xff]
    %v1947 = vld [vmem:[%s3 + $0x98] sm:$0xff]
    %v1948 = vld [vmem:[%s3 + $0xa0] sm:$0xff]
    %v1949 = vld [vmem:[%s3 + $0xa8] sm:$0xff]
    %v1950 = vld [vmem:[%s3 + $0xb0] sm:$0xff]
    %v1951 = vld [vmem:[%s3 + $0xb8] sm:$0xff]
    %v1952 = vld [vmem:[%s3 + $0xc0] sm:$0xff]
    %v1953 = vld [vmem:[%s3 + $0xc8] sm:$0xff]
    %v1954 = vld [vmem:[%s3 + $0xd0] sm:$0xff]
    %v1955 = vld [vmem:[%s3 + $0xd8] sm:$0xff]
    %v1956 = vld [vmem:[%s3 + $0xe0] sm:$0xff]
    %v1957 = vld [vmem:[%s3 + $0xe8] sm:$0xff]
    %v1958 = vld [vmem:[%s3 + $0xf0] sm:$0xff]
    %v1959 = vld [vmem:[%s3 + $0xf8] sm:$0xff]
    %v1960 = vpack.c.bf16 %v1936, %v1928
    %v1961 = vpack.c.bf16 %v1937, %v1929
    %v1962 = vpack.c.bf16 %v1938, %v1930
    %v1963 = vpack.c.bf16 %v1939, %v1931
    %v1964 = vpack.c.bf16 %v1940, %v1932
    %v1965 = vpack.c.bf16 %v1941, %v1933
    %v1966 = vpack.c.bf16 %v1942, %v1934
    %v1967 = vpack.c.bf16 %v1943, %v1935
    %v1968 = vpack.c.bf16 %v1952, %v1944
    %v1969 = vpack.c.bf16 %v1953, %v1945
    %v1970 = vpack.c.bf16 %v1954, %v1946
    %v1971 = vpack.c.bf16 %v1955, %v1947
    %v1972 = vpack.c.bf16 %v1956, %v1948
    %v1973 = vpack.c.bf16 %v1957, %v1949
    %v1974 = vpack.c.bf16 %v1958, %v1950
    %v1975 = vpack.c.bf16 %v1959, %v1951
    %v1976 = vld [vmem:[#allocation8] sm:$0xf]
    %v1977 = vld [vmem:[#allocation8 + $0x4] sm:$0xf]
    %v1978 = vld [vmem:[#allocation8 + $0x8] sm:$0xf]
    %v1979 = vld [vmem:[#allocation8 + $0xc] sm:$0xf]
    %v1980 = vld [vmem:[#allocation8 + $0x10] sm:$0xf]
    %v1981 = vld [vmem:[#allocation8 + $0x14] sm:$0xf]
    %v1982 = vld [vmem:[#allocation8 + $0x18] sm:$0xf]
    %v1983 = vld [vmem:[#allocation8 + $0x1c] sm:$0xf]
    %v1984 = vld [vmem:[#allocation8 + $0x20] sm:$0xf]
    %v1985 = vld [vmem:[#allocation8 + $0x24] sm:$0xf]
    %v1986 = vld [vmem:[#allocation8 + $0x28] sm:$0xf]
    %v1987 = vld [vmem:[#allocation8 + $0x2c] sm:$0xf]
    %v1988 = vld [vmem:[#allocation8 + $0x30] sm:$0xf]
    %v1989 = vld [vmem:[#allocation8 + $0x34] sm:$0xf]
    %v1990 = vld [vmem:[#allocation8 + $0x38] sm:$0xf]
    %v1991 = vld [vmem:[#allocation8 + $0x3c] sm:$0xf]
    %v1992 = vld [vmem:[#allocation8 + $0x40] sm:$0xf]
    %v1993 = vld [vmem:[#allocation8 + $0x44] sm:$0xf]
    %v1994 = vld [vmem:[#allocation8 + $0x48] sm:$0xf]
    %v1995 = vld [vmem:[#allocation8 + $0x4c] sm:$0xf]
    %v1996 = vld [vmem:[#allocation8 + $0x50] sm:$0xf]
    %v1997 = vld [vmem:[#allocation8 + $0x54] sm:$0xf]
    %v1998 = vld [vmem:[#allocation8 + $0x58] sm:$0xf]
    %v1999 = vld [vmem:[#allocation8 + $0x5c] sm:$0xf]
    %v2000 = vld [vmem:[#allocation8 + $0x60] sm:$0xf]
    %v2001 = vld [vmem:[#allocation8 + $0x64] sm:$0xf]
    %v2002 = vld [vmem:[#allocation8 + $0x68] sm:$0xf]
    %v2003 = vld [vmem:[#allocation8 + $0x6c] sm:$0xf]
    %v2004 = vld [vmem:[#allocation8 + $0x70] sm:$0xf]
    %v2005 = vld [vmem:[#allocation8 + $0x74] sm:$0xf]
    %v2006 = vld [vmem:[#allocation8 + $0x78] sm:$0xf]
    %v2007 = vld [vmem:[#allocation8 + $0x7c] sm:$0xf]
    %v2008 = vld [vmem:[#allocation8 + $0x80] sm:$0xf]
    %v2009 = vld [vmem:[#allocation8 + $0x84] sm:$0xf]
    %v2010 = vld [vmem:[#allocation8 + $0x88] sm:$0xf]
    %v2011 = vld [vmem:[#allocation8 + $0x8c] sm:$0xf]
    %v2012 = vld [vmem:[#allocation8 + $0x90] sm:$0xf]
    %v2013 = vld [vmem:[#allocation8 + $0x94] sm:$0xf]
    %v2014 = vld [vmem:[#allocation8 + $0x98] sm:$0xf]
    %v2015 = vld [vmem:[#allocation8 + $0x9c] sm:$0xf]
    %v2016 = vld [vmem:[#allocation8 + $0xa0] sm:$0xf]
    %v2017 = vld [vmem:[#allocation8 + $0xa4] sm:$0xf]
    %v2018 = vld [vmem:[#allocation8 + $0xa8] sm:$0xf]
    %v2019 = vld [vmem:[#allocation8 + $0xac] sm:$0xf]
    %v2020 = vld [vmem:[#allocation8 + $0xb0] sm:$0xf]
    %v2021 = vld [vmem:[#allocation8 + $0xb4] sm:$0xf]
    %v2022 = vld [vmem:[#allocation8 + $0xb8] sm:$0xf]
    %v2023 = vld [vmem:[#allocation8 + $0xbc] sm:$0xf]
    %v2024 = vld [vmem:[#allocation8 + $0xc0] sm:$0xf]
    %v2025 = vld [vmem:[#allocation8 + $0xc4] sm:$0xf]
    %v2026 = vld [vmem:[#allocation8 + $0xc8] sm:$0xf]
    %v2027 = vld [vmem:[#allocation8 + $0xcc] sm:$0xf]
    %v2028 = vld [vmem:[#allocation8 + $0xd0] sm:$0xf]
    %v2029 = vld [vmem:[#allocation8 + $0xd4] sm:$0xf]
    %v2030 = vld [vmem:[#allocation8 + $0xd8] sm:$0xf]
    %v2031 = vld [vmem:[#allocation8 + $0xdc] sm:$0xf]
    %v2032 = vld [vmem:[#allocation8 + $0xe0] sm:$0xf]
    %v2033 = vld [vmem:[#allocation8 + $0xe4] sm:$0xf]
    %v2034 = vld [vmem:[#allocation8 + $0xe8] sm:$0xf]
    %v2035 = vld [vmem:[#allocation8 + $0xec] sm:$0xf]
    %v2036 = vld [vmem:[#allocation8 + $0xf0] sm:$0xf]
    %v2037 = vld [vmem:[#allocation8 + $0xf4] sm:$0xf]
    %v2038 = vld [vmem:[#allocation8 + $0xf8] sm:$0xf]
    %v2039 = vld [vmem:[#allocation8 + $0xfc] sm:$0xf]
    %v2040 = vld [vmem:[#allocation8 + $0x100] sm:$0xf]
    %v2041 = vld [vmem:[#allocation8 + $0x104] sm:$0xf]
    %v2042 = vld [vmem:[#allocation8 + $0x108] sm:$0xf]
    %v2043 = vld [vmem:[#allocation8 + $0x10c] sm:$0xf]
    %v2044 = vld [vmem:[#allocation8 + $0x110] sm:$0xf]
    %v2045 = vld [vmem:[#allocation8 + $0x114] sm:$0xf]
    %v2046 = vld [vmem:[#allocation8 + $0x118] sm:$0xf]
    %v2047 = vld [vmem:[#allocation8 + $0x11c] sm:$0xf]
    %v2048 = vld [vmem:[#allocation8 + $0x120] sm:$0xf]
    %v2049 = vld [vmem:[#allocation8 + $0x124] sm:$0xf]
    %v2050 = vld [vmem:[#allocation8 + $0x128] sm:$0xf]
    %v2051 = vld [vmem:[#allocation8 + $0x12c] sm:$0xf]
    %v2052 = vld [vmem:[#allocation8 + $0x130] sm:$0xf]
    %v2053 = vld [vmem:[#allocation8 + $0x134] sm:$0xf]
    %v2054 = vld [vmem:[#allocation8 + $0x138] sm:$0xf]
    %v2055 = vld [vmem:[#allocation8 + $0x13c] sm:$0xf]
    %v2056 = vld [vmem:[#allocation8 + $0x140] sm:$0xf]
    %v2057 = vld [vmem:[#allocation8 + $0x144] sm:$0xf]
    %v2058 = vld [vmem:[#allocation8 + $0x148] sm:$0xf]
    %v2059 = vld [vmem:[#allocation8 + $0x14c] sm:$0xf]
    %v2060 = vld [vmem:[#allocation8 + $0x150] sm:$0xf]
    %v2061 = vld [vmem:[#allocation8 + $0x154] sm:$0xf]
    %v2062 = vld [vmem:[#allocation8 + $0x158] sm:$0xf]
    %v2063 = vld [vmem:[#allocation8 + $0x15c] sm:$0xf]
    %v2064 = vld [vmem:[#allocation8 + $0x160] sm:$0xf]
    %v2065 = vld [vmem:[#allocation8 + $0x164] sm:$0xf]
    %v2066 = vld [vmem:[#allocation8 + $0x168] sm:$0xf]
    %v2067 = vld [vmem:[#allocation8 + $0x16c] sm:$0xf]
    %v2068 = vld [vmem:[#allocation8 + $0x170] sm:$0xf]
    %v2069 = vld [vmem:[#allocation8 + $0x174] sm:$0xf]
    %v2070 = vld [vmem:[#allocation8 + $0x178] sm:$0xf]
    %v2071 = vld [vmem:[#allocation8 + $0x17c] sm:$0xf]
    %v2072 = vld [vmem:[#allocation8 + $0x180] sm:$0xf]
    %v2073 = vld [vmem:[#allocation8 + $0x184] sm:$0xf]
    %v2074 = vld [vmem:[#allocation8 + $0x188] sm:$0xf]
    %v2075 = vld [vmem:[#allocation8 + $0x18c] sm:$0xf]
    %v2076 = vld [vmem:[#allocation8 + $0x190] sm:$0xf]
    %v2077 = vld [vmem:[#allocation8 + $0x194] sm:$0xf]
    %v2078 = vld [vmem:[#allocation8 + $0x198] sm:$0xf]
    %v2079 = vld [vmem:[#allocation8 + $0x19c] sm:$0xf]
    %v2080 = vld [vmem:[#allocation8 + $0x1a0] sm:$0xf]
    %v2081 = vld [vmem:[#allocation8 + $0x1a4] sm:$0xf]
    %v2082 = vld [vmem:[#allocation8 + $0x1a8] sm:$0xf]
    %v2083 = vld [vmem:[#allocation8 + $0x1ac] sm:$0xf]
    %v2084 = vld [vmem:[#allocation8 + $0x1b0] sm:$0xf]
    %v2085 = vld [vmem:[#allocation8 + $0x1b4] sm:$0xf]
    %v2086 = vld [vmem:[#allocation8 + $0x1b8] sm:$0xf]
    %v2087 = vld [vmem:[#allocation8 + $0x1bc] sm:$0xf]
    %v2088 = vld [vmem:[#allocation8 + $0x1c0] sm:$0xf]
    %v2089 = vld [vmem:[#allocation8 + $0x1c4] sm:$0xf]
    %v2090 = vld [vmem:[#allocation8 + $0x1c8] sm:$0xf]
    %v2091 = vld [vmem:[#allocation8 + $0x1cc] sm:$0xf]
    %v2092 = vld [vmem:[#allocation8 + $0x1d0] sm:$0xf]
    %v2093 = vld [vmem:[#allocation8 + $0x1d4] sm:$0xf]
    %v2094 = vld [vmem:[#allocation8 + $0x1d8] sm:$0xf]
    %v2095 = vld [vmem:[#allocation8 + $0x1dc] sm:$0xf]
    %v2096 = vld [vmem:[#allocation8 + $0x1e0] sm:$0xf]
    %v2097 = vld [vmem:[#allocation8 + $0x1e4] sm:$0xf]
    %v2098 = vld [vmem:[#allocation8 + $0x1e8] sm:$0xf]
    %v2099 = vld [vmem:[#allocation8 + $0x1ec] sm:$0xf]
    %v2100 = vld [vmem:[#allocation8 + $0x1f0] sm:$0xf]
    %v2101 = vld [vmem:[#allocation8 + $0x1f4] sm:$0xf]
    %v2102 = vld [vmem:[#allocation8 + $0x1f8] sm:$0xf]
    %v2103 = vld [vmem:[#allocation8 + $0x1fc] sm:$0xf]
    %v2104 = vld [vmem:[%s17] sm:$0x1]
    %v2106 = vlaneseq
    %v2107 = vshrl.u32 %v2106, 7
    %v2108 = vsub.s32 0, %v2107
    %v2109 = vrot.slane %v2104, %v2108
    %v2239 = vunpack.c.l.b16 %v1976
    %v2240 = vunpack.c.l.b16 %v1977
    %v2241 = vunpack.c.l.b16 %v1978
    %v2242 = vunpack.c.l.b16 %v1979
    %v2243 = vunpack.c.l.b16 %v1980
    %v2244 = vunpack.c.l.b16 %v1981
    %v2245 = vunpack.c.l.b16 %v1982
    %v2246 = vunpack.c.l.b16 %v1983
    %v2247 = vunpack.c.l.b16 %v1984
    %v2248 = vunpack.c.l.b16 %v1985
    %v2249 = vunpack.c.l.b16 %v1986
    %v2250 = vunpack.c.l.b16 %v1987
    %v2251 = vunpack.c.l.b16 %v1988
    %v2252 = vunpack.c.l.b16 %v1989
    %v2253 = vunpack.c.l.b16 %v1990
    %v2254 = vunpack.c.l.b16 %v1991
    %v2255 = vunpack.c.l.b16 %v1992
    %v2256 = vunpack.c.l.b16 %v1993
    %v2257 = vunpack.c.l.b16 %v1994
    %v2258 = vunpack.c.l.b16 %v1995
    %v2259 = vunpack.c.l.b16 %v1996
    %v2260 = vunpack.c.l.b16 %v1997
    %v2261 = vunpack.c.l.b16 %v1998
    %v2262 = vunpack.c.l.b16 %v1999
    %v2263 = vunpack.c.l.b16 %v2000
    %v2264 = vunpack.c.l.b16 %v2001
    %v2265 = vunpack.c.l.b16 %v2002
    %v2266 = vunpack.c.l.b16 %v2003
    %v2267 = vunpack.c.l.b16 %v2004
    %v2268 = vunpack.c.l.b16 %v2005
    %v2269 = vunpack.c.l.b16 %v2006
    %v2270 = vunpack.c.l.b16 %v2007
    %v2271 = vunpack.c.l.b16 %v2008
    %v2272 = vunpack.c.l.b16 %v2009
    %v2273 = vunpack.c.l.b16 %v2010
    %v2274 = vunpack.c.l.b16 %v2011
    %v2275 = vunpack.c.l.b16 %v2012
    %v2276 = vunpack.c.l.b16 %v2013
    %v2277 = vunpack.c.l.b16 %v2014
    %v2278 = vunpack.c.l.b16 %v2015
    %v2279 = vunpack.c.l.b16 %v2016
    %v2280 = vunpack.c.l.b16 %v2017
    %v2281 = vunpack.c.l.b16 %v2018
    %v2282 = vunpack.c.l.b16 %v2019
    %v2283 = vunpack.c.l.b16 %v2020
    %v2284 = vunpack.c.l.b16 %v2021
    %v2285 = vunpack.c.l.b16 %v2022
    %v2286 = vunpack.c.l.b16 %v2023
    %v2287 = vunpack.c.l.b16 %v2024
    %v2288 = vunpack.c.l.b16 %v2025
    %v2289 = vunpack.c.l.b16 %v2026
    %v2290 = vunpack.c.l.b16 %v2027
    %v2291 = vunpack.c.l.b16 %v2028
    %v2292 = vunpack.c.l.b16 %v2029
    %v2293 = vunpack.c.l.b16 %v2030
    %v2294 = vunpack.c.l.b16 %v2031
    %v2295 = vunpack.c.l.b16 %v2032
    %v2296 = vunpack.c.l.b16 %v2033
    %v2297 = vunpack.c.l.b16 %v2034
    %v2298 = vunpack.c.l.b16 %v2035
    %v2299 = vunpack.c.l.b16 %v2036
    %v2300 = vunpack.c.l.b16 %v2037
    %v2301 = vunpack.c.l.b16 %v2038
    %v2302 = vunpack.c.l.b16 %v2039
    %v2303 = vunpack.c.l.b16 %v2040
    %v2304 = vunpack.c.l.b16 %v2041
    %v2305 = vunpack.c.l.b16 %v2042
    %v2306 = vunpack.c.l.b16 %v2043
    %v2307 = vunpack.c.l.b16 %v2044
    %v2308 = vunpack.c.l.b16 %v2045
    %v2309 = vunpack.c.l.b16 %v2046
    %v2310 = vunpack.c.l.b16 %v2047
    %v2311 = vunpack.c.l.b16 %v2048
    %v2312 = vunpack.c.l.b16 %v2049
    %v2313 = vunpack.c.l.b16 %v2050
    %v2314 = vunpack.c.l.b16 %v2051
    %v2315 = vunpack.c.l.b16 %v2052
    %v2316 = vunpack.c.l.b16 %v2053
    %v2317 = vunpack.c.l.b16 %v2054
    %v2318 = vunpack.c.l.b16 %v2055
    %v2319 = vunpack.c.l.b16 %v2056
    %v2320 = vunpack.c.l.b16 %v2057
    %v2321 = vunpack.c.l.b16 %v2058
    %v2322 = vunpack.c.l.b16 %v2059
    %v2323 = vunpack.c.l.b16 %v2060
    %v2324 = vunpack.c.l.b16 %v2061
    %v2325 = vunpack.c.l.b16 %v2062
    %v2326 = vunpack.c.l.b16 %v2063
    %v2327 = vunpack.c.l.b16 %v2064
    %v2328 = vunpack.c.l.b16 %v2065
    %v2329 = vunpack.c.l.b16 %v2066
    %v2330 = vunpack.c.l.b16 %v2067
    %v2331 = vunpack.c.l.b16 %v2068
    %v2332 = vunpack.c.l.b16 %v2069
    %v2333 = vunpack.c.l.b16 %v2070
    %v2334 = vunpack.c.l.b16 %v2071
    %v2335 = vunpack.c.l.b16 %v2072
    %v2336 = vunpack.c.l.b16 %v2073
    %v2337 = vunpack.c.l.b16 %v2074
    %v2338 = vunpack.c.l.b16 %v2075
    %v2339 = vunpack.c.l.b16 %v2076
    %v2340 = vunpack.c.l.b16 %v2077
    %v2341 = vunpack.c.l.b16 %v2078
    %v2342 = vunpack.c.l.b16 %v2079
    %v2343 = vunpack.c.l.b16 %v2080
    %v2344 = vunpack.c.l.b16 %v2081
    %v2345 = vunpack.c.l.b16 %v2082
    %v2346 = vunpack.c.l.b16 %v2083
    %v2347 = vunpack.c.l.b16 %v2084
    %v2348 = vunpack.c.l.b16 %v2085
    %v2349 = vunpack.c.l.b16 %v2086
    %v2350 = vunpack.c.l.b16 %v2087
    %v2351 = vunpack.c.l.b16 %v2088
    %v2352 = vunpack.c.l.b16 %v2089
    %v2353 = vunpack.c.l.b16 %v2090
    %v2354 = vunpack.c.l.b16 %v2091
    %v2355 = vunpack.c.l.b16 %v2092
    %v2356 = vunpack.c.l.b16 %v2093
    %v2357 = vunpack.c.l.b16 %v2094
    %v2358 = vunpack.c.l.b16 %v2095
    %v2359 = vunpack.c.l.b16 %v2096
    %v2360 = vunpack.c.l.b16 %v2097
    %v2361 = vunpack.c.l.b16 %v2098
    %v2362 = vunpack.c.l.b16 %v2099
    %v2363 = vunpack.c.l.b16 %v2100
    %v2364 = vunpack.c.l.b16 %v2101
    %v2365 = vunpack.c.l.b16 %v2102
    %v2366 = vunpack.c.l.b16 %v2103
    %v2367 = vpack.c.b16 %v2240, %v2239
    %v2368 = vpack.c.b16 %v2242, %v2241
    %v2369 = vpack.c.b16 %v2244, %v2243
    %v2370 = vpack.c.b16 %v2246, %v2245
    %v2371 = vpack.c.b16 %v2248, %v2247
    %v2372 = vpack.c.b16 %v2250, %v2249
    %v2373 = vpack.c.b16 %v2252, %v2251
    %v2374 = vpack.c.b16 %v2254, %v2253
    %v2375 = vpack.c.b16 %v2256, %v2255
    %v2376 = vpack.c.b16 %v2258, %v2257
    %v2377 = vpack.c.b16 %v2260, %v2259
    %v2378 = vpack.c.b16 %v2262, %v2261
    %v2379 = vpack.c.b16 %v2264, %v2263
    %v2380 = vpack.c.b16 %v2266, %v2265
    %v2381 = vpack.c.b16 %v2268, %v2267
    %v2382 = vpack.c.b16 %v2270, %v2269
    %v2383 = vpack.c.b16 %v2272, %v2271
    %v2384 = vpack.c.b16 %v2274, %v2273
    %v2385 = vpack.c.b16 %v2276, %v2275
    %v2386 = vpack.c.b16 %v2278, %v2277
    %v2387 = vpack.c.b16 %v2280, %v2279
    %v2388 = vpack.c.b16 %v2282, %v2281
    %v2389 = vpack.c.b16 %v2284, %v2283
    %v2390 = vpack.c.b16 %v2286, %v2285
    %v2391 = vpack.c.b16 %v2288, %v2287
    %v2392 = vpack.c.b16 %v2290, %v2289
    %v2393 = vpack.c.b16 %v2292, %v2291
    %v2394 = vpack.c.b16 %v2294, %v2293
    %v2395 = vpack.c.b16 %v2296, %v2295
    %v2396 = vpack.c.b16 %v2298, %v2297
    %v2397 = vpack.c.b16 %v2300, %v2299
    %v2398 = vpack.c.b16 %v2302, %v2301
    %v2399 = vpack.c.b16 %v2304, %v2303
    %v2400 = vpack.c.b16 %v2306, %v2305
    %v2401 = vpack.c.b16 %v2308, %v2307
    %v2402 = vpack.c.b16 %v2310, %v2309
    %v2403 = vpack.c.b16 %v2312, %v2311
    %v2404 = vpack.c.b16 %v2314, %v2313
    %v2405 = vpack.c.b16 %v2316, %v2315
    %v2406 = vpack.c.b16 %v2318, %v2317
    %v2407 = vpack.c.b16 %v2320, %v2319
    %v2408 = vpack.c.b16 %v2322, %v2321
    %v2409 = vpack.c.b16 %v2324, %v2323
    %v2410 = vpack.c.b16 %v2326, %v2325
    %v2411 = vpack.c.b16 %v2328, %v2327
    %v2412 = vpack.c.b16 %v2330, %v2329
    %v2413 = vpack.c.b16 %v2332, %v2331
    %v2414 = vpack.c.b16 %v2334, %v2333
    %v2415 = vpack.c.b16 %v2336, %v2335
    %v2416 = vpack.c.b16 %v2338, %v2337
    %v2417 = vpack.c.b16 %v2340, %v2339
    %v2418 = vpack.c.b16 %v2342, %v2341
    %v2419 = vpack.c.b16 %v2344, %v2343
    %v2420 = vpack.c.b16 %v2346, %v2345
    %v2421 = vpack.c.b16 %v2348, %v2347
    %v2422 = vpack.c.b16 %v2350, %v2349
    %v2423 = vpack.c.b16 %v2352, %v2351
    %v2424 = vpack.c.b16 %v2354, %v2353
    %v2425 = vpack.c.b16 %v2356, %v2355
    %v2426 = vpack.c.b16 %v2358, %v2357
    %v2427 = vpack.c.b16 %v2360, %v2359
    %v2428 = vpack.c.b16 %v2362, %v2361
    %v2429 = vpack.c.b16 %v2364, %v2363
    %v2430 = vpack.c.b16 %v2366, %v2365
    %2495 = vmatprep.subr.bf16.mxu0 0
    %2496 = vmatpush1.bf16.msra.mxu0 %v2367
    %2497 = vmatprep.subr.bf16.mxu0 0
    %2498 = vmatpush1.bf16.msra.mxu0 %v2368
    %2499 = vmatprep.subr.bf16.mxu0 0
    %2500 = vmatpush1.bf16.msra.mxu0 %v2369
    %2501 = vmatprep.subr.bf16.mxu0 0
    %2502 = vmatpush1.bf16.msra.mxu0 %v2370
    %2503 = vmatprep.subr.bf16.mxu0 0
    %2504 = vmatpush1.bf16.msra.mxu0 %v2371
    %2505 = vmatprep.subr.bf16.mxu0 0
    %2506 = vmatpush1.bf16.msra.mxu0 %v2372
    %2507 = vmatprep.subr.bf16.mxu0 0
    %2508 = vmatpush1.bf16.msra.mxu0 %v2373
    %2509 = vmatprep.subr.bf16.mxu0 0
    %2510 = vmatpush1.bf16.msra.mxu0 %v2374
    %2511 = vmatprep.subr.bf16.mxu0 0
    %2512 = vmatpush1.bf16.msra.mxu0 %v2375
    %2513 = vmatprep.subr.bf16.mxu0 0
    %2514 = vmatpush1.bf16.msra.mxu0 %v2376
    %2515 = vmatprep.subr.bf16.mxu0 0
    %2516 = vmatpush1.bf16.msra.mxu0 %v2377
    %2517 = vmatprep.subr.bf16.mxu0 0
    %2518 = vmatpush1.bf16.msra.mxu0 %v2378
    %2519 = vmatprep.subr.bf16.mxu0 0
    %2520 = vmatpush1.bf16.msra.mxu0 %v2379
    %2521 = vmatprep.subr.bf16.mxu0 0
    %2522 = vmatpush1.bf16.msra.mxu0 %v2380
    %2523 = vmatprep.subr.bf16.mxu0 0
    %2524 = vmatpush1.bf16.msra.mxu0 %v2381
    %2525 = vmatprep.subr.bf16.mxu0 0
    %2526 = vmatpush1.bf16.msra.mxu0 %v2382
    %2527 = vmatprep.mubr.bf16.mxu0 %v1961
    %2528 = vmatmul.mubr.bf16.gmra.mrb[0].mxu0 %v1960
    %v2529 = vpop.f32.mrb[0].mxu0
    %v2530 = vadd.f32 %v2109, %v2529
    %v2531 = vpop.f32.mrb[0].mxu0
    %v2532 = vpop.f32.mrb[0].mxu0
    %v2533 = vadd.f32 %v2109, %v2532
    %v2534 = vpop.f32.mrb[0].mxu0
    %2535 = vmatprep.mubr.bf16.mxu0 %v1969
    %2536 = vmatmul.mubr.bf16.gmra.mrb[0].mxu0 %v1968
    %v2537 = vpop.f32.mrb[0].mxu0
    %v2538 = vadd.f32 %v2109, %v2537
    %v2539 = vpop.f32.mrb[0].mxu0
    %v2540 = vpop.f32.mrb[0].mxu0
    %v2541 = vadd.f32 %v2109, %v2540
    %v2542 = vpop.f32.mrb[0].mxu0
    %2543 = vdwg.mxu0
    %2544 = vmatprep.subr.bf16.mxu0 0
    %2545 = vmatpush1.bf16.msra.mxu0 %v2383
    %2546 = vmatprep.subr.bf16.mxu0 0
    %2547 = vmatpush1.bf16.msra.mxu0 %v2384
    %2548 = vmatprep.subr.bf16.mxu0 0
    %2549 = vmatpush1.bf16.msra.mxu0 %v2385
    %2550 = vmatprep.subr.bf16.mxu0 0
    %2551 = vmatpush1.bf16.msra.mxu0 %v2386
    %2552 = vmatprep.subr.bf16.mxu0 0
    %2553 = vmatpush1.bf16.msra.mxu0 %v2387
    %2554 = vmatprep.subr.bf16.mxu0 0
    %2555 = vmatpush1.bf16.msra.mxu0 %v2388
    %2556 = vmatprep.subr.bf16.mxu0 0
    %2557 = vmatpush1.bf16.msra.mxu0 %v2389
    %2558 = vmatprep.subr.bf16.mxu0 0
    %2559 = vmatpush1.bf16.msra.mxu0 %v2390
    %2560 = vmatprep.subr.bf16.mxu0 0
    %2561 = vmatpush1.bf16.msra.mxu0 %v2391
    %2562 = vmatprep.subr.bf16.mxu0 0
    %2563 = vmatpush1.bf16.msra.mxu0 %v2392
    %2564 = vmatprep.subr.bf16.mxu0 0
    %2565 = vmatpush1.bf16.msra.mxu0 %v2393
    %2566 = vmatprep.subr.bf16.mxu0 0
    %2567 = vmatpush1.bf16.msra.mxu0 %v2394
    %2568 = vmatprep.subr.bf16.mxu0 0
    %2569 = vmatpush1.bf16.msra.mxu0 %v2395
    %2570 = vmatprep.subr.bf16.mxu0 0
    %2571 = vmatpush1.bf16.msra.mxu0 %v2396
    %2572 = vmatprep.subr.bf16.mxu0 0
    %2573 = vmatpush1.bf16.msra.mxu0 %v2397
    %2574 = vmatprep.subr.bf16.mxu0 0
    %2575 = vmatpush1.bf16.msra.mxu0 %v2398
    %2576 = vmatprep.mubr.bf16.mxu0 %v1963
    %2577 = vmatmul.mubr.bf16.gmra.mrb[0].mxu0 %v1962
    %v2578 = vpop.f32.mrb[0].mxu0
    %v2579 = vadd.f32 %v2530, %v2578
    %v2580 = vpop.f32.mrb[0].mxu0
    %v2581 = vpop.f32.mrb[0].mxu0
    %v2582 = vadd.f32 %v2533, %v2581
    %v2583 = vpop.f32.mrb[0].mxu0
    %2584 = vmatprep.mubr.bf16.mxu0 %v1971
    %2585 = vmatmul.mubr.bf16.gmra.mrb[0].mxu0 %v1970
    %v2586 = vpop.f32.mrb[0].mxu0
    %v2587 = vadd.f32 %v2538, %v2586
    %v2588 = vpop.f32.mrb[0].mxu0
    %v2589 = vpop.f32.mrb[0].mxu0
    %v2590 = vadd.f32 %v2541, %v2589
    %v2591 = vpop.f32.mrb[0].mxu0
    %2592 = vdwg.mxu0
    %2593 = vmatprep.subr.bf16.mxu0 0
    %2594 = vmatpush1.bf16.msra.mxu0 %v2399
    %2595 = vmatprep.subr.bf16.mxu0 0
    %2596 = vmatpush1.bf16.msra.mxu0 %v2400
    %2597 = vmatprep.subr.bf16.mxu0 0
    %2598 = vmatpush1.bf16.msra.mxu0 %v2401
    %2599 = vmatprep.subr.bf16.mxu0 0
    %2600 = vmatpush1.bf16.msra.mxu0 %v2402
    %2601 = vmatprep.subr.bf16.mxu0 0
    %2602 = vmatpush1.bf16.msra.mxu0 %v2403
    %2603 = vmatprep.subr.bf16.mxu0 0
    %2604 = vmatpush1.bf16.msra.mxu0 %v2404
    %2605 = vmatprep.subr.bf16.mxu0 0
    %2606 = vmatpush1.bf16.msra.mxu0 %v2405
    %2607 = vmatprep.subr.bf16.mxu0 0
    %2608 = vmatpush1.bf16.msra.mxu0 %v2406
    %2609 = vmatprep.subr.bf16.mxu0 0
    %2610 = vmatpush1.bf16.msra.mxu0 %v2407
    %2611 = vmatprep.subr.bf16.mxu0 0
    %2612 = vmatpush1.bf16.msra.mxu0 %v2408
    %2613 = vmatprep.subr.bf16.mxu0 0
    %2614 = vmatpush1.bf16.msra.mxu0 %v2409
    %2615 = vmatprep.subr.bf16.mxu0 0
    %2616 = vmatpush1.bf16.msra.mxu0 %v2410
    %2617 = vmatprep.subr.bf16.mxu0 0
    %2618 = vmatpush1.bf16.msra.mxu0 %v2411
    %2619 = vmatprep.subr.bf16.mxu0 0
    %2620 = vmatpush1.bf16.msra.mxu0 %v2412
    %2621 = vmatprep.subr.bf16.mxu0 0
    %2622 = vmatpush1.bf16.msra.mxu0 %v2413
    %2623 = vmatprep.subr.bf16.mxu0 0
    %2624 = vmatpush1.bf16.msra.mxu0 %v2414
    %2625 = vmatprep.mubr.bf16.mxu0 %v1965
    %2626 = vmatmul.mubr.bf16.gmra.mrb[0].mxu0 %v1964
    %v2627 = vpop.f32.mrb[0].mxu0
    %v2628 = vadd.f32 %v2579, %v2627
    %v2629 = vpop.f32.mrb[0].mxu0
    %v2630 = vpop.f32.mrb[0].mxu0
    %v2631 = vadd.f32 %v2582, %v2630
    %v2632 = vpop.f32.mrb[0].mxu0
    %2633 = vmatprep.mubr.bf16.mxu0 %v1973
    %2634 = vmatmul.mubr.bf16.gmra.mrb[0].mxu0 %v1972
    %v2635 = vpop.f32.mrb[0].mxu0
    %v2636 = vadd.f32 %v2587, %v2635
    %v2637 = vpop.f32.mrb[0].mxu0
    %v2638 = vpop.f32.mrb[0].mxu0
    %v2639 = vadd.f32 %v2590, %v2638
    %v2640 = vpop.f32.mrb[0].mxu0
    %2641 = vdwg.mxu0
    %2642 = vmatprep.subr.bf16.mxu0 0
    %2643 = vmatpush1.bf16.msra.mxu0 %v2415
    %2644 = vmatprep.subr.bf16.mxu0 0
    %2645 = vmatpush1.bf16.msra.mxu0 %v2416
    %2646 = vmatprep.subr.bf16.mxu0 0
    %2647 = vmatpush1.bf16.msra.mxu0 %v2417
    %2648 = vmatprep.subr.bf16.mxu0 0
    %2649 = vmatpush1.bf16.msra.mxu0 %v2418
    %2650 = vmatprep.subr.bf16.mxu0 0
    %2651 = vmatpush1.bf16.msra.mxu0 %v2419
    %2652 = vmatprep.subr.bf16.mxu0 0
    %2653 = vmatpush1.bf16.msra.mxu0 %v2420
    %2654 = vmatprep.subr.bf16.mxu0 0
    %2655 = vmatpush1.bf16.msra.mxu0 %v2421
    %2656 = vmatprep.subr.bf16.mxu0 0
    %2657 = vmatpush1.bf16.msra.mxu0 %v2422
    %2658 = vmatprep.subr.bf16.mxu0 0
    %2659 = vmatpush1.bf16.msra.mxu0 %v2423
    %2660 = vmatprep.subr.bf16.mxu0 0
    %2661 = vmatpush1.bf16.msra.mxu0 %v2424
    %2662 = vmatprep.subr.bf16.mxu0 0
    %2663 = vmatpush1.bf16.msra.mxu0 %v2425
    %2664 = vmatprep.subr.bf16.mxu0 0
    %2665 = vmatpush1.bf16.msra.mxu0 %v2426
    %2666 = vmatprep.subr.bf16.mxu0 0
    %2667 = vmatpush1.bf16.msra.mxu0 %v2427
    %2668 = vmatprep.subr.bf16.mxu0 0
    %2669 = vmatpush1.bf16.msra.mxu0 %v2428
    %2670 = vmatprep.subr.bf16.mxu0 0
    %2671 = vmatpush1.bf16.msra.mxu0 %v2429
    %2672 = vmatprep.subr.bf16.mxu0 0
    %2673 = vmatpush1.bf16.msra.mxu0 %v2430
    %2674 = vmatprep.mubr.bf16.mxu0 %v1967
    %2675 = vmatmul.mubr.bf16.gmra.mrb[0].mxu0 %v1966
    %v2676 = vpop.f32.mrb[0].mxu0
    %v2677 = vadd.f32 %v2628, %v2676
    %v2678 = vpop.f32.mrb[0].mxu0
    %v2679 = vpop.f32.mrb[0].mxu0
    %v2680 = vadd.f32 %v2631, %v2679
    %v2681 = vpop.f32.mrb[0].mxu0
    %2682 = vmatprep.mubr.bf16.mxu0 %v1975
    %2683 = vmatmul.mubr.bf16.gmra.mrb[0].mxu0 %v1974
    %v2684 = vpop.f32.mrb[0].mxu0
    %v2685 = vadd.f32 %v2636, %v2684
    %v2686 = vpop.f32.mrb[0].mxu0
    %v2687 = vpop.f32.mrb[0].mxu0
    %v2688 = vadd.f32 %v2639, %v2687
    %v2689 = vpop.f32.mrb[0].mxu0
    %2690 = vdwg.mxu0
    %v2691 = vmax.f32 %v2677, 0.0
    %v2692 = vmax.f32 %v2680, 0.0
    %v2693 = vmax.f32 %v2685, 0.0
    %v2694 = vmax.f32 %v2688, 0.0
    %v2695 = vpack.c.bf16 %v2692, %v2691
    %v2696 = vpack.c.bf16 %v2694, %v2693
    %v2697 = vld [vmem:[#allocation10] sm:$0xf]
    %v2698 = vld [vmem:[#allocation10 + $0x4] sm:$0xf]
    %v2699 = vld [vmem:[#allocation10 + $0x8] sm:$0xf]
    %v2700 = vld [vmem:[#allocation10 + $0xc] sm:$0xf]
    %v2701 = vld [vmem:[#allocation10 + $0x10] sm:$0xf]
    %v2702 = vld [vmem:[#allocation10 + $0x14] sm:$0xf]
    %v2703 = vld [vmem:[#allocation10 + $0x18] sm:$0xf]
    %v2704 = vld [vmem:[#allocation10 + $0x1c] sm:$0xf]
    %v2705 = vld [vmem:[#allocation10 + $0x20] sm:$0xf]
    %v2706 = vld [vmem:[#allocation10 + $0x24] sm:$0xf]
    %v2707 = vld [vmem:[#allocation10 + $0x28] sm:$0xf]
    %v2708 = vld [vmem:[#allocation10 + $0x2c] sm:$0xf]
    %v2709 = vld [vmem:[#allocation10 + $0x30] sm:$0xf]
    %v2710 = vld [vmem:[#allocation10 + $0x34] sm:$0xf]
    %v2711 = vld [vmem:[#allocation10 + $0x38] sm:$0xf]
    %v2712 = vld [vmem:[#allocation10 + $0x3c] sm:$0xf]
    %v2729 = vunpack.c.l.b16 %v2697
    %v2730 = vunpack.c.l.b16 %v2698
    %v2731 = vunpack.c.l.b16 %v2699
    %v2732 = vunpack.c.l.b16 %v2700
    %v2733 = vunpack.c.l.b16 %v2701
    %v2734 = vunpack.c.l.b16 %v2702
    %v2735 = vunpack.c.l.b16 %v2703
    %v2736 = vunpack.c.l.b16 %v2704
    %v2737 = vunpack.c.l.b16 %v2705
    %v2738 = vunpack.c.l.b16 %v2706
    %v2739 = vunpack.c.l.b16 %v2707
    %v2740 = vunpack.c.l.b16 %v2708
    %v2741 = vunpack.c.l.b16 %v2709
    %v2742 = vunpack.c.l.b16 %v2710
    %v2743 = vunpack.c.l.b16 %v2711
    %v2744 = vunpack.c.l.b16 %v2712
    %v2745 = vpack.c.b16 %v2730, %v2729
    %v2746 = vpack.c.b16 %v2732, %v2731
    %v2747 = vpack.c.b16 %v2734, %v2733
    %v2748 = vpack.c.b16 %v2736, %v2735
    %v2749 = vpack.c.b16 %v2738, %v2737
    %v2750 = vpack.c.b16 %v2740, %v2739
    %v2751 = vpack.c.b16 %v2742, %v2741
    %v2752 = vpack.c.b16 %v2744, %v2743
    %2761 = vmatprep.subr.bf16.mxu0 0
    %2762 = vmatpush1.bf16.msra.mxu0 %v2745
    %2763 = vmatprep.subr.bf16.mxu0 0
    %2764 = vmatpush1.bf16.msra.mxu0 %v2746
    %2765 = vmatprep.subr.bf16.mxu0 0
    %2766 = vmatpush1.bf16.msra.mxu0 %v2747
    %2767 = vmatprep.subr.bf16.mxu0 0
    %2768 = vmatpush1.bf16.msra.mxu0 %v2748
    %2769 = vmatprep.subr.bf16.mxu0 0
    %2770 = vmatpush1.bf16.msra.mxu0 %v2749
    %2771 = vmatprep.subr.bf16.mxu0 0
    %2772 = vmatpush1.bf16.msra.mxu0 %v2750
    %2773 = vmatprep.subr.bf16.mxu0 0
    %2774 = vmatpush1.bf16.msra.mxu0 %v2751
    %2775 = vmatprep.subr.bf16.mxu0 0
    %2776 = vmatpush1.bf16.msra.mxu0 %v2752
    %2777 = vmatprep.subr.bf16.mxu0 0
    %2778 = vmatpush1.bf16.msra.mxu0 0
    %2779 = vmatprep.subr.bf16.mxu0 0
    %2780 = vmatpush1.bf16.msra.mxu0 0
    %2781 = vmatprep.subr.bf16.mxu0 0
    %2782 = vmatpush1.bf16.msra.mxu0 0
    %2783 = vmatprep.subr.bf16.mxu0 0
    %2784 = vmatpush1.bf16.msra.mxu0 0
    %2785 = vmatprep.subr.bf16.mxu0 0
    %2786 = vmatpush1.bf16.msra.mxu0 0
    %2787 = vmatprep.subr.bf16.mxu0 0
    %2788 = vmatpush1.bf16.msra.mxu0 0
    %2789 = vmatprep.subr.bf16.mxu0 0
    %2790 = vmatpush1.bf16.msra.mxu0 0
    %2791 = vmatprep.subr.bf16.mxu0 0
    %2792 = vmatpush1.bf16.msra.mxu0 0
    %2793 = vmatprep.mubr.bf16.mxu0 0
    %2794 = vmatmul.mubr.bf16.gmra.mrb[0].mxu0 %v2695
    %v2795 = vpop.f32.mrb[0].mxu0
    %v2796 = vadd.f32 %v1910, %v2795
    %v2797 = vpop.f32.mrb[0].mxu0
    %v2798 = vpop.f32.mrb[0].mxu0
    %v2799 = vadd.f32 %v1915, %v2798
    %v2800 = vpop.f32.mrb[0].mxu0
    %2801 = vmatprep.mubr.bf16.mxu0 0
    %2802 = vmatmul.mubr.bf16.gmra.mrb[0].mxu0 %v2696
    %v2803 = vpop.f32.mrb[0].mxu0
    %v2804 = vadd.f32 %v1920, %v2803
    %v2805 = vpop.f32.mrb[0].mxu0
    %v2806 = vpop.f32.mrb[0].mxu0
    %v2807 = vadd.f32 %v1925, %v2806
    %v2808 = vpop.f32.mrb[0].mxu0
    %2809 = vdwg.mxu0
    %v2810 = vld [vmem:[%s31] sm:$0x1]
    %v2812 = vlaneseq
    %v2813 = vshrl.u32 %v2812, 7
    %v2814 = vsub.s32 0, %v2813
    %v2815 = vrot.slane %v2810, %v2814
    %v2817 = vadd.f32 %v2796, %v2815
    %v2818 = vadd.f32 %v2799, %v2815
    %v2819 = vadd.f32 %v2804, %v2815
    %v2820 = vadd.f32 %v2807, %v2815
    %v2821 = vmax.f32 %v2817, 0.0
    %v2822 = vmax.f32 %v2818, 0.0
    %v2823 = vmax.f32 %v2819, 0.0
    %v2824 = vmax.f32 %v2820, 0.0
    %v2825 = vpack.c.bf16 %v2822, %v2821
    %v2826 = vpack.c.bf16 %v2824, %v2823
    %v2827 = vld [vmem:[#allocation14] sm:$0xf]
    %v2828 = vld [vmem:[#allocation14 + $0x4] sm:$0xf]
    %v2829 = vld [vmem:[#allocation14 + $0x8] sm:$0xf]
    %v2830 = vld [vmem:[#allocation14 + $0xc] sm:$0xf]
    %v2831 = vld [vmem:[#allocation14 + $0x10] sm:$0xf]
    %v2832 = vld [vmem:[#allocation14 + $0x14] sm:$0xf]
    %v2833 = vld [vmem:[#allocation14 + $0x18] sm:$0xf]
    %v2834 = vld [vmem:[#allocation14 + $0x1c] sm:$0xf]
    %v2835 = vld [vmem:[#allocation14 + $0x20] sm:$0xf]
    %v2836 = vld [vmem:[#allocation14 + $0x24] sm:$0xf]
    %v2837 = vld [vmem:[#allocation14 + $0x28] sm:$0xf]
    %v2838 = vld [vmem:[#allocation14 + $0x2c] sm:$0xf]
    %v2839 = vld [vmem:[#allocation14 + $0x30] sm:$0xf]
    %v2840 = vld [vmem:[#allocation14 + $0x34] sm:$0xf]
    %v2841 = vld [vmem:[#allocation14 + $0x38] sm:$0xf]
    %v2842 = vld [vmem:[#allocation14 + $0x3c] sm:$0xf]
    %v2859 = vunpack.c.l.b16 %v2827
    %v2860 = vunpack.c.l.b16 %v2828
    %v2861 = vunpack.c.l.b16 %v2829
    %v2862 = vunpack.c.l.b16 %v2830
    %v2863 = vunpack.c.l.b16 %v2831
    %v2864 = vunpack.c.l.b16 %v2832
    %v2865 = vunpack.c.l.b16 %v2833
    %v2866 = vunpack.c.l.b16 %v2834
    %v2867 = vunpack.c.l.b16 %v2835
    %v2868 = vunpack.c.l.b16 %v2836
    %v2869 = vunpack.c.l.b16 %v2837
    %v2870 = vunpack.c.l.b16 %v2838
    %v2871 = vunpack.c.l.b16 %v2839
    %v2872 = vunpack.c.l.b16 %v2840
    %v2873 = vunpack.c.l.b16 %v2841
    %v2874 = vunpack.c.l.b16 %v2842
    %v2875 = vpack.c.b16 %v2860, %v2859
    %v2876 = vpack.c.b16 %v2862, %v2861
    %v2877 = vpack.c.b16 %v2864, %v2863
    %v2878 = vpack.c.b16 %v2866, %v2865
    %v2879 = vpack.c.b16 %v2868, %v2867
    %v2880 = vpack.c.b16 %v2870, %v2869
    %v2881 = vpack.c.b16 %v2872, %v2871
    %v2882 = vpack.c.b16 %v2874, %v2873
    %2891 = vmatprep.subr.bf16.mxu0 0
    %2892 = vmatpush1.bf16.msra.mxu0 %v2875
    %2893 = vmatprep.subr.bf16.mxu0 0
    %2894 = vmatpush1.bf16.msra.mxu0 %v2876
    %2895 = vmatprep.subr.bf16.mxu0 0
    %2896 = vmatpush1.bf16.msra.mxu0 %v2877
    %2897 = vmatprep.subr.bf16.mxu0 0
    %2898 = vmatpush1.bf16.msra.mxu0 %v2878
    %2899 = vmatprep.subr.bf16.mxu0 0
    %2900 = vmatpush1.bf16.msra.mxu0 %v2879
    %2901 = vmatprep.subr.bf16.mxu0 0
    %2902 = vmatpush1.bf16.msra.mxu0 %v2880
    %2903 = vmatprep.subr.bf16.mxu0 0
    %2904 = vmatpush1.bf16.msra.mxu0 %v2881
    %2905 = vmatprep.subr.bf16.mxu0 0
    %2906 = vmatpush1.bf16.msra.mxu0 %v2882
    %2907 = vmatprep.subr.bf16.mxu0 0
    %2908 = vmatpush1.bf16.msra.mxu0 0
    %2909 = vmatprep.subr.bf16.mxu0 0
    %2910 = vmatpush1.bf16.msra.mxu0 0
    %2911 = vmatprep.subr.bf16.mxu0 0
    %2912 = vmatpush1.bf16.msra.mxu0 0
    %2913 = vmatprep.subr.bf16.mxu0 0
    %2914 = vmatpush1.bf16.msra.mxu0 0
    %2915 = vmatprep.subr.bf16.mxu0 0
    %2916 = vmatpush1.bf16.msra.mxu0 0
    %2917 = vmatprep.subr.bf16.mxu0 0
    %2918 = vmatpush1.bf16.msra.mxu0 0
    %2919 = vmatprep.subr.bf16.mxu0 0
    %2920 = vmatpush1.bf16.msra.mxu0 0
    %2921 = vmatprep.subr.bf16.mxu0 0
    %2922 = vmatpush1.bf16.msra.mxu0 0
    %2923 = vmatprep.mubr.bf16.mxu0 0
    %2924 = vmatmul.mubr.bf16.gmra.mrb[0].mxu0 %v2825
    %v2925 = vpop.f32.mrb[0].mxu0
    %v2926 = vadd.f32 0.0, %v2925
    %v2927 = vpop.f32.mrb[0].mxu0
    %v2928 = vpop.f32.mrb[0].mxu0
    %v2929 = vadd.f32 0.0, %v2928
    %v2930 = vpop.f32.mrb[0].mxu0
    %2931 = vmatprep.mubr.bf16.mxu0 0
    %2932 = vmatmul.mubr.bf16.gmra.mrb[0].mxu0 %v2826
    %v2933 = vpop.f32.mrb[0].mxu0
    %v2934 = vadd.f32 0.0, %v2933
    %v2935 = vpop.f32.mrb[0].mxu0
    %v2936 = vpop.f32.mrb[0].mxu0
    %v2937 = vadd.f32 0.0, %v2936
    %v2938 = vpop.f32.mrb[0].mxu0
    %2939 = vdwg.mxu0
    %v2940 = vld [vmem:[%s53] sm:$0xff]
    %v2941 = vld [vmem:[%s53 + $0x8] sm:$0xff]
    %v2942 = vld [vmem:[%s53 + $0x10] sm:$0xff]
    %v2943 = vld [vmem:[%s53 + $0x18] sm:$0xff]
    %v2944 = vld [vmem:[%s53 + $0x20] sm:$0xff]
    %v2945 = vld [vmem:[%s53 + $0x28] sm:$0xff]
    %v2946 = vld [vmem:[%s53 + $0x30] sm:$0xff]
    %v2947 = vld [vmem:[%s53 + $0x38] sm:$0xff]
    %vm2948 = vcmask 130048
    %v2950 = vsel %vm2948, %v2940, 0
    %v2953 = vsel %vm2948, %v2941, 0
    %v2956 = vsel %vm2948, %v2942, 0
    %v2959 = vsel %vm2948, %v2943, 0
    %v2962 = vsel %vm2948, %v2944, 0
    %v2965 = vsel %vm2948, %v2945, 0
    %v2968 = vsel %vm2948, %v2946, 0
    %v2971 = vsel %vm2948, %v2947, 0
    %2973 = vmatprep.subr.mxu0 0.0
    %2974 = vmatpush1.msra.mxu0 %v2926
    %2975 = vmatprep.subr.mxu0 0.0
    %2976 = vmatpush1.msra.mxu0 %v2929
    %2977 = vmatprep.subr.mxu0 0.0
    %2978 = vmatpush1.msra.mxu0 0.0
    %2979 = vmatprep.subr.mxu0 0.0
    %2980 = vmatpush1.msra.mxu0 0.0
    %2981 = vmatprep.subr.mxu0 0.0
    %2982 = vmatpush1.msra.mxu0 0.0
    %2983 = vmatprep.subr.mxu0 0.0
    %2984 = vmatpush1.msra.mxu0 0.0
    %2985 = vmatprep.subr.mxu0 0.0
    %2986 = vmatpush1.msra.mxu0 0.0
    %2987 = vmatprep.subr.mxu0 0.0
    %2988 = vmatpush1.msra.mxu0 0.0
    %2989 = vmatprep.subr.mxu0 0.0
    %2990 = vmatpush1.msra.mxu0 0.0
    %2991 = vmatprep.subr.mxu0 0.0
    %2992 = vmatpush1.msra.mxu0 0.0
    %2993 = vmatprep.subr.mxu0 0.0
    %2994 = vmatpush1.msra.mxu0 0.0
    %2995 = vmatprep.subr.mxu0 0.0
    %2996 = vmatpush1.msra.mxu0 0.0
    %2997 = vmatprep.subr.mxu0 0.0
    %2998 = vmatpush1.msra.mxu0 0.0
    %2999 = vmatprep.subr.mxu0 0.0
    %3000 = vmatpush1.msra.mxu0 0.0
    %3001 = vmatprep.subr.mxu0 0.0
    %3002 = vmatpush1.msra.mxu0 0.0
    %3003 = vmatprep.subr.mxu0 0.0
    %3004 = vmatpush1.msra.mxu0 0.0
    %3005 = vmatprep.subr.mxu0 0.0
    %3006 = vmatpush1.msra.mxu0 0.0
    %3007 = vmatprep.subr.mxu0 0.0
    %3008 = vmatpush1.msra.mxu0 0.0
    %3009 = vmatprep.subr.mxu0 0.0
    %3010 = vmatpush1.msra.mxu0 0.0
    %3011 = vmatprep.subr.mxu0 0.0
    %3012 = vmatpush1.msra.mxu0 0.0
    %3013 = vmatprep.subr.mxu0 0.0
    %3014 = vmatpush1.msra.mxu0 0.0
    %3015 = vmatprep.subr.mxu0 0.0
    %3016 = vmatpush1.msra.mxu0 0.0
    %3017 = vmatprep.subr.mxu0 0.0
    %3018 = vmatpush1.msra.mxu0 0.0
    %3019 = vmatprep.subr.mxu0 0.0
    %3020 = vmatpush1.msra.mxu0 0.0
    %3021 = vmatprep.subr.mxu0 0.0
    %3022 = vmatpush1.msra.mxu0 0.0
    %3023 = vmatprep.subr.mxu0 0.0
    %3024 = vmatpush1.msra.mxu0 0.0
    %3025 = vmatprep.subr.mxu0 0.0
    %3026 = vmatpush1.msra.mxu0 0.0
    %3027 = vmatprep.subr.mxu0 0.0
    %3028 = vmatpush1.msra.mxu0 0.0
    %3029 = vmatprep.subr.mxu0 0.0
    %3030 = vmatpush1.msra.mxu0 0.0
    %3031 = vmatprep.subr.mxu0 0.0
    %3032 = vmatpush1.msra.mxu0 0.0
    %3033 = vmatprep.subr.mxu0 0.0
    %3034 = vmatpush1.msra.mxu0 0.0
    %3035 = vmatprep.subr.mxu0 0.0
    %3036 = vmatpush1.msra.mxu0 0.0
    %3037 = vmatprep.mubr.f32.mxu0 0.0
    %3038 = vmatmul.mubr.f32.gmra.mrb[0].mxu0 %v2950
    %v3039 = vpop.f32.mrb[0].mxu0
    %v3040 = vadd.f32 0.0, %v3039
    %v3041 = vpop.f32.mrb[0].mxu0
    %3042 = vmatprep.mubr.f32.mxu0 0.0
    %3043 = vmatmul.mubr.f32.gmra.mrb[0].mxu0 %v2953
    %v3044 = vpop.f32.mrb[0].mxu0
    %v3045 = vadd.f32 0.0, %v3044
    %v3046 = vpop.f32.mrb[0].mxu0
    %3047 = vmatprep.mubr.f32.mxu0 0.0
    %3048 = vmatmul.mubr.f32.gmra.mrb[0].mxu0 %v2956
    %v3049 = vpop.f32.mrb[0].mxu0
    %v3050 = vadd.f32 0.0, %v3049
    %v3051 = vpop.f32.mrb[0].mxu0
    %3052 = vmatprep.mubr.f32.mxu0 0.0
    %3053 = vmatmul.mubr.f32.gmra.mrb[0].mxu0 %v2959
    %v3054 = vpop.f32.mrb[0].mxu0
    %v3055 = vadd.f32 0.0, %v3054
    %v3056 = vpop.f32.mrb[0].mxu0
    %3057 = vmatprep.mubr.f32.mxu0 0.0
    %3058 = vmatmul.mubr.f32.gmra.mrb[0].mxu0 %v2962
    %v3059 = vpop.f32.mrb[0].mxu0
    %v3060 = vadd.f32 0.0, %v3059
    %v3061 = vpop.f32.mrb[0].mxu0
    %3062 = vmatprep.mubr.f32.mxu0 0.0
    %3063 = vmatmul.mubr.f32.gmra.mrb[0].mxu0 %v2965
    %v3064 = vpop.f32.mrb[0].mxu0
    %v3065 = vadd.f32 0.0, %v3064
    %v3066 = vpop.f32.mrb[0].mxu0
    %3067 = vmatprep.mubr.f32.mxu0 0.0
    %3068 = vmatmul.mubr.f32.gmra.mrb[0].mxu0 %v2968
    %v3069 = vpop.f32.mrb[0].mxu0
    %v3070 = vadd.f32 0.0, %v3069
    %v3071 = vpop.f32.mrb[0].mxu0
    %3072 = vmatprep.mubr.f32.mxu0 0.0
    %3073 = vmatmul.mubr.f32.gmra.mrb[0].mxu0 %v2971
    %v3074 = vpop.f32.mrb[0].mxu0
    %v3075 = vadd.f32 0.0, %v3074
    %v3076 = vpop.f32.mrb[0].mxu0
    %3077 = vdwg.mxu0
    %3078 = vmatprep.subr.mxu0 0.0
    %3079 = vmatpush1.msra.mxu0 %v2934
    %3080 = vmatprep.subr.mxu0 0.0
    %3081 = vmatpush1.msra.mxu0 %v2937
    %3082 = vmatprep.subr.mxu0 0.0
    %3083 = vmatpush1.msra.mxu0 0.0
    %3084 = vmatprep.subr.mxu0 0.0
    %3085 = vmatpush1.msra.mxu0 0.0
    %3086 = vmatprep.subr.mxu0 0.0
    %3087 = vmatpush1.msra.mxu0 0.0
    %3088 = vmatprep.subr.mxu0 0.0
    %3089 = vmatpush1.msra.mxu0 0.0
    %3090 = vmatprep.subr.mxu0 0.0
    %3091 = vmatpush1.msra.mxu0 0.0
    %3092 = vmatprep.subr.mxu0 0.0
    %3093 = vmatpush1.msra.mxu0 0.0
    %3094 = vmatprep.subr.mxu0 0.0
    %3095 = vmatpush1.msra.mxu0 0.0
    %3096 = vmatprep.subr.mxu0 0.0
    %3097 = vmatpush1.msra.mxu0 0.0
    %3098 = vmatprep.subr.mxu0 0.0
    %3099 = vmatpush1.msra.mxu0 0.0
    %3100 = vmatprep.subr.mxu0 0.0
    %3101 = vmatpush1.msra.mxu0 0.0
    %3102 = vmatprep.subr.mxu0 0.0
    %3103 = vmatpush1.msra.mxu0 0.0
    %3104 = vmatprep.subr.mxu0 0.0
    %3105 = vmatpush1.msra.mxu0 0.0
    %3106 = vmatprep.subr.mxu0 0.0
    %3107 = vmatpush1.msra.mxu0 0.0
    %3108 = vmatprep.subr.mxu0 0.0
    %3109 = vmatpush1.msra.mxu0 0.0
    %3110 = vmatprep.subr.mxu0 0.0
    %3111 = vmatpush1.msra.mxu0 0.0
    %3112 = vmatprep.subr.mxu0 0.0
    %3113 = vmatpush1.msra.mxu0 0.0
    %3114 = vmatprep.subr.mxu0 0.0
    %3115 = vmatpush1.msra.mxu0 0.0
    %3116 = vmatprep.subr.mxu0 0.0
    %3117 = vmatpush1.msra.mxu0 0.0
    %3118 = vmatprep.subr.mxu0 0.0
    %3119 = vmatpush1.msra.mxu0 0.0
    %3120 = vmatprep.subr.mxu0 0.0
    %3121 = vmatpush1.msra.mxu0 0.0
    %3122 = vmatprep.subr.mxu0 0.0
    %3123 = vmatpush1.msra.mxu0 0.0
    %3124 = vmatprep.subr.mxu0 0.0
    %3125 = vmatpush1.msra.mxu0 0.0
    %3126 = vmatprep.subr.mxu0 0.0
    %3127 = vmatpush1.msra.mxu0 0.0
    %3128 = vmatprep.subr.mxu0 0.0
    %3129 = vmatpush1.msra.mxu0 0.0
    %3130 = vmatprep.subr.mxu0 0.0
    %3131 = vmatpush1.msra.mxu0 0.0
    %3132 = vmatprep.subr.mxu0 0.0
    %3133 = vmatpush1.msra.mxu0 0.0
    %3134 = vmatprep.subr.mxu0 0.0
    %3135 = vmatpush1.msra.mxu0 0.0
    %3136 = vmatprep.subr.mxu0 0.0
    %3137 = vmatpush1.msra.mxu0 0.0
    %3138 = vmatprep.subr.mxu0 0.0
    %3139 = vmatpush1.msra.mxu0 0.0
    %3140 = vmatprep.subr.mxu0 0.0
    %3141 = vmatpush1.msra.mxu0 0.0
    %3142 = vmatprep.mubr.f32.mxu0 0.0
    %3143 = vmatmul.mubr.f32.gmra.mrb[0].mxu0 %v2950
    %v3144 = vpop.f32.mrb[0].mxu0
    %v3145 = vadd.f32 0.0, %v3144
    %v3146 = vpop.f32.mrb[0].mxu0
    %3147 = vmatprep.mubr.f32.mxu0 0.0
    %3148 = vmatmul.mubr.f32.gmra.mrb[0].mxu0 %v2953
    %v3149 = vpop.f32.mrb[0].mxu0
    %v3150 = vadd.f32 0.0, %v3149
    %v3151 = vpop.f32.mrb[0].mxu0
    %3152 = vmatprep.mubr.f32.mxu0 0.0
    %3153 = vmatmul.mubr.f32.gmra.mrb[0].mxu0 %v2956
    %v3154 = vpop.f32.mrb[0].mxu0
    %v3155 = vadd.f32 0.0, %v3154
    %v3156 = vpop.f32.mrb[0].mxu0
    %3157 = vmatprep.mubr.f32.mxu0 0.0
    %3158 = vmatmul.mubr.f32.gmra.mrb[0].mxu0 %v2959
    %v3159 = vpop.f32.mrb[0].mxu0
    %v3160 = vadd.f32 0.0, %v3159
    %v3161 = vpop.f32.mrb[0].mxu0
    %3162 = vmatprep.mubr.f32.mxu0 0.0
    %3163 = vmatmul.mubr.f32.gmra.mrb[0].mxu0 %v2962
    %v3164 = vpop.f32.mrb[0].mxu0
    %v3165 = vadd.f32 0.0, %v3164
    %v3166 = vpop.f32.mrb[0].mxu0
    %3167 = vmatprep.mubr.f32.mxu0 0.0
    %3168 = vmatmul.mubr.f32.gmra.mrb[0].mxu0 %v2965
    %v3169 = vpop.f32.mrb[0].mxu0
    %v3170 = vadd.f32 0.0, %v3169
    %v3171 = vpop.f32.mrb[0].mxu0
    %3172 = vmatprep.mubr.f32.mxu0 0.0
    %3173 = vmatmul.mubr.f32.gmra.mrb[0].mxu0 %v2968
    %v3174 = vpop.f32.mrb[0].mxu0
    %v3175 = vadd.f32 0.0, %v3174
    %v3176 = vpop.f32.mrb[0].mxu0
    %3177 = vmatprep.mubr.f32.mxu0 0.0
    %3178 = vmatmul.mubr.f32.gmra.mrb[0].mxu0 %v2971
    %v3179 = vpop.f32.mrb[0].mxu0
    %v3180 = vadd.f32 0.0, %v3179
    %v3181 = vpop.f32.mrb[0].mxu0
    %3182 = vdwg.mxu0
    %v3183 = vld [vmem:[%s5] sm:$0xff]
    %v3184 = vld [vmem:[%s5 + $0x8] sm:$0xff]
    %v3185 = vld [vmem:[%s5 + $0x10] sm:$0xff]
    %v3186 = vld [vmem:[%s5 + $0x18] sm:$0xff]
    %v3187 = vld [vmem:[%s5 + $0x20] sm:$0xff]
    %v3188 = vld [vmem:[%s5 + $0x28] sm:$0xff]
    %v3189 = vld [vmem:[%s5 + $0x30] sm:$0xff]
    %v3190 = vld [vmem:[%s5 + $0x38] sm:$0xff]
    %v3191 = vld [vmem:[%s5 + $0x40] sm:$0xff]
    %v3192 = vld [vmem:[%s5 + $0x48] sm:$0xff]
    %v3193 = vld [vmem:[%s5 + $0x50] sm:$0xff]
    %v3194 = vld [vmem:[%s5 + $0x58] sm:$0xff]
    %v3195 = vld [vmem:[%s5 + $0x60] sm:$0xff]
    %v3196 = vld [vmem:[%s5 + $0x68] sm:$0xff]
    %v3197 = vld [vmem:[%s5 + $0x70] sm:$0xff]
    %v3198 = vld [vmem:[%s5 + $0x78] sm:$0xff]
    %v3199 = vld [vmem:[%s5 + $0x80] sm:$0xff]
    %v3200 = vld [vmem:[%s5 + $0x88] sm:$0xff]
    %v3201 = vld [vmem:[%s5 + $0x90] sm:$0xff]
    %v3202 = vld [vmem:[%s5 + $0x98] sm:$0xff]
    %v3203 = vld [vmem:[%s5 + $0xa0] sm:$0xff]
    %v3204 = vld [vmem:[%s5 + $0xa8] sm:$0xff]
    %v3205 = vld [vmem:[%s5 + $0xb0] sm:$0xff]
    %v3206 = vld [vmem:[%s5 + $0xb8] sm:$0xff]
    %v3207 = vld [vmem:[%s5 + $0xc0] sm:$0xff]
    %v3208 = vld [vmem:[%s5 + $0xc8] sm:$0xff]
    %v3209 = vld [vmem:[%s5 + $0xd0] sm:$0xff]
    %v3210 = vld [vmem:[%s5 + $0xd8] sm:$0xff]
    %v3211 = vld [vmem:[%s5 + $0xe0] sm:$0xff]
    %v3212 = vld [vmem:[%s5 + $0xe8] sm:$0xff]
    %v3213 = vld [vmem:[%s5 + $0xf0] sm:$0xff]
    %v3214 = vld [vmem:[%s5 + $0xf8] sm:$0xff]
    %v3215 = vld [vmem:[%s5 + $0x100] sm:$0xff]
    %v3216 = vld [vmem:[%s5 + $0x108] sm:$0xff]
    %v3217 = vld [vmem:[%s5 + $0x110] sm:$0xff]
    %v3218 = vld [vmem:[%s5 + $0x118] sm:$0xff]
    %v3219 = vld [vmem:[%s5 + $0x120] sm:$0xff]
    %v3220 = vld [vmem:[%s5 + $0x128] sm:$0xff]
    %v3221 = vld [vmem:[%s5 + $0x130] sm:$0xff]
    %v3222 = vld [vmem:[%s5 + $0x138] sm:$0xff]
    %v3223 = vld [vmem:[%s5 + $0x140] sm:$0xff]
    %v3224 = vld [vmem:[%s5 + $0x148] sm:$0xff]
    %v3225 = vld [vmem:[%s5 + $0x150] sm:$0xff]
    %v3226 = vld [vmem:[%s5 + $0x158] sm:$0xff]
    %v3227 = vld [vmem:[%s5 + $0x160] sm:$0xff]
    %v3228 = vld [vmem:[%s5 + $0x168] sm:$0xff]
    %v3229 = vld [vmem:[%s5 + $0x170] sm:$0xff]
    %v3230 = vld [vmem:[%s5 + $0x178] sm:$0xff]
    %v3231 = vld [vmem:[%s5 + $0x180] sm:$0xff]
    %v3232 = vld [vmem:[%s5 + $0x188] sm:$0xff]
    %v3233 = vld [vmem:[%s5 + $0x190] sm:$0xff]
    %v3234 = vld [vmem:[%s5 + $0x198] sm:$0xff]
    %v3235 = vld [vmem:[%s5 + $0x1a0] sm:$0xff]
    %v3236 = vld [vmem:[%s5 + $0x1a8] sm:$0xff]
    %v3237 = vld [vmem:[%s5 + $0x1b0] sm:$0xff]
    %v3238 = vld [vmem:[%s5 + $0x1b8] sm:$0xff]
    %v3239 = vld [vmem:[%s5 + $0x1c0] sm:$0xff]
    %v3240 = vld [vmem:[%s5 + $0x1c8] sm:$0xff]
    %v3241 = vld [vmem:[%s5 + $0x1d0] sm:$0xff]
    %v3242 = vld [vmem:[%s5 + $0x1d8] sm:$0xff]
    %v3243 = vld [vmem:[%s5 + $0x1e0] sm:$0xff]
    %v3244 = vld [vmem:[%s5 + $0x1e8] sm:$0xff]
    %v3245 = vld [vmem:[%s5 + $0x1f0] sm:$0xff]
    %v3246 = vld [vmem:[%s5 + $0x1f8] sm:$0xff]
    %v3247 = vpack.c.bf16 %v3187, %v3183
    %v3248 = vpack.c.bf16 %v3188, %v3184
    %v3249 = vpack.c.bf16 %v3189, %v3185
    %v3250 = vpack.c.bf16 %v3190, %v3186
    %v3251 = vpack.c.bf16 %v3195, %v3191
    %v3252 = vpack.c.bf16 %v3196, %v3192
    %v3253 = vpack.c.bf16 %v3197, %v3193
    %v3254 = vpack.c.bf16 %v3198, %v3194
    %v3255 = vpack.c.bf16 %v3203, %v3199
    %v3256 = vpack.c.bf16 %v3204, %v3200
    %v3257 = vpack.c.bf16 %v3205, %v3201
    %v3258 = vpack.c.bf16 %v3206, %v3202
    %v3259 = vpack.c.bf16 %v3211, %v3207
    %v3260 = vpack.c.bf16 %v3212, %v3208
    %v3261 = vpack.c.bf16 %v3213, %v3209
    %v3262 = vpack.c.bf16 %v3214, %v3210
    %v3263 = vpack.c.bf16 %v3219, %v3215
    %v3264 = vpack.c.bf16 %v3220, %v3216
    %v3265 = vpack.c.bf16 %v3221, %v3217
    %v3266 = vpack.c.bf16 %v3222, %v3218
    %v3267 = vpack.c.bf16 %v3227, %v3223
    %v3268 = vpack.c.bf16 %v3228, %v3224
    %v3269 = vpack.c.bf16 %v3229, %v3225
    %v3270 = vpack.c.bf16 %v3230, %v3226
    %v3271 = vpack.c.bf16 %v3235, %v3231
    %v3272 = vpack.c.bf16 %v3236, %v3232
    %v3273 = vpack.c.bf16 %v3237, %v3233
    %v3274 = vpack.c.bf16 %v3238, %v3234
    %v3275 = vpack.c.bf16 %v3243, %v3239
    %v3276 = vpack.c.bf16 %v3244, %v3240
    %v3277 = vpack.c.bf16 %v3245, %v3241
    %v3278 = vpack.c.bf16 %v3246, %v3242
    %v3279 = vld [vmem:[%s19] sm:$0xf]
    %v3280 = vld [vmem:[%s19 + $0x4] sm:$0xf]
    %v3281 = vld [vmem:[%s19 + $0x8] sm:$0xf]
    %v3282 = vld [vmem:[%s19 + $0xc] sm:$0xf]
    %v3283 = vld [vmem:[%s19 + $0x10] sm:$0xf]
    %v3284 = vld [vmem:[%s19 + $0x14] sm:$0xf]
    %v3285 = vld [vmem:[%s19 + $0x18] sm:$0xf]
    %v3286 = vld [vmem:[%s19 + $0x1c] sm:$0xf]
    %v3287 = vld [vmem:[%s19 + $0x20] sm:$0xf]
    %v3288 = vld [vmem:[%s19 + $0x24] sm:$0xf]
    %v3289 = vld [vmem:[%s19 + $0x28] sm:$0xf]
    %v3290 = vld [vmem:[%s19 + $0x2c] sm:$0xf]
    %v3291 = vld [vmem:[%s19 + $0x30] sm:$0xf]
    %v3292 = vld [vmem:[%s19 + $0x34] sm:$0xf]
    %v3293 = vld [vmem:[%s19 + $0x38] sm:$0xf]
    %v3294 = vld [vmem:[%s19 + $0x3c] sm:$0xf]
    %v3295 = vld [vmem:[%s19 + $0x40] sm:$0xf]
    %v3296 = vld [vmem:[%s19 + $0x44] sm:$0xf]
    %v3297 = vld [vmem:[%s19 + $0x48] sm:$0xf]
    %v3298 = vld [vmem:[%s19 + $0x4c] sm:$0xf]
    %v3299 = vld [vmem:[%s19 + $0x50] sm:$0xf]
    %v3300 = vld [vmem:[%s19 + $0x54] sm:$0xf]
    %v3301 = vld [vmem:[%s19 + $0x58] sm:$0xf]
    %v3302 = vld [vmem:[%s19 + $0x5c] sm:$0xf]
    %v3303 = vld [vmem:[%s19 + $0x60] sm:$0xf]
    %v3304 = vld [vmem:[%s19 + $0x64] sm:$0xf]
    %v3305 = vld [vmem:[%s19 + $0x68] sm:$0xf]
    %v3306 = vld [vmem:[%s19 + $0x6c] sm:$0xf]
    %v3307 = vld [vmem:[%s19 + $0x70] sm:$0xf]
    %v3308 = vld [vmem:[%s19 + $0x74] sm:$0xf]
    %v3309 = vld [vmem:[%s19 + $0x78] sm:$0xf]
    %v3310 = vld [vmem:[%s19 + $0x7c] sm:$0xf]
    %v3311 = vld [vmem:[%s19 + $0x80] sm:$0xf]
    %v3312 = vld [vmem:[%s19 + $0x84] sm:$0xf]
    %v3313 = vld [vmem:[%s19 + $0x88] sm:$0xf]
    %v3314 = vld [vmem:[%s19 + $0x8c] sm:$0xf]
    %v3315 = vld [vmem:[%s19 + $0x90] sm:$0xf]
    %v3316 = vld [vmem:[%s19 + $0x94] sm:$0xf]
    %v3317 = vld [vmem:[%s19 + $0x98] sm:$0xf]
    %v3318 = vld [vmem:[%s19 + $0x9c] sm:$0xf]
    %v3319 = vld [vmem:[%s19 + $0xa0] sm:$0xf]
    %v3320 = vld [vmem:[%s19 + $0xa4] sm:$0xf]
    %v3321 = vld [vmem:[%s19 + $0xa8] sm:$0xf]
    %v3322 = vld [vmem:[%s19 + $0xac] sm:$0xf]
    %v3323 = vld [vmem:[%s19 + $0xb0] sm:$0xf]
    %v3324 = vld [vmem:[%s19 + $0xb4] sm:$0xf]
    %v3325 = vld [vmem:[%s19 + $0xb8] sm:$0xf]
    %v3326 = vld [vmem:[%s19 + $0xbc] sm:$0xf]
    %v3327 = vld [vmem:[%s19 + $0xc0] sm:$0xf]
    %v3328 = vld [vmem:[%s19 + $0xc4] sm:$0xf]
    %v3329 = vld [vmem:[%s19 + $0xc8] sm:$0xf]
    %v3330 = vld [vmem:[%s19 + $0xcc] sm:$0xf]
    %v3331 = vld [vmem:[%s19 + $0xd0] sm:$0xf]
    %v3332 = vld [vmem:[%s19 + $0xd4] sm:$0xf]
    %v3333 = vld [vmem:[%s19 + $0xd8] sm:$0xf]
    %v3334 = vld [vmem:[%s19 + $0xdc] sm:$0xf]
    %v3335 = vld [vmem:[%s19 + $0xe0] sm:$0xf]
    %v3336 = vld [vmem:[%s19 + $0xe4] sm:$0xf]
    %v3337 = vld [vmem:[%s19 + $0xe8] sm:$0xf]
    %v3338 = vld [vmem:[%s19 + $0xec] sm:$0xf]
    %v3339 = vld [vmem:[%s19 + $0xf0] sm:$0xf]
    %v3340 = vld [vmem:[%s19 + $0xf4] sm:$0xf]
    %v3341 = vld [vmem:[%s19 + $0xf8] sm:$0xf]
    %v3342 = vld [vmem:[%s19 + $0xfc] sm:$0xf]
    %v3343 = vld [vmem:[%s21] sm:$0x1]
    %v3345 = vlaneseq
    %v3346 = vshrl.u32 %v3345, 7
    %v3347 = vsub.s32 0, %v3346
    %v3348 = vrot.slane %v3343, %v3347
    %v3414 = vunpack.c.l.b16 %v3279
    %v3415 = vunpack.c.l.b16 %v3280
    %v3416 = vunpack.c.l.b16 %v3281
    %v3417 = vunpack.c.l.b16 %v3282
    %v3418 = vunpack.c.l.b16 %v3283
    %v3419 = vunpack.c.l.b16 %v3284
    %v3420 = vunpack.c.l.b16 %v3285
    %v3421 = vunpack.c.l.b16 %v3286
    %v3422 = vunpack.c.l.b16 %v3287
    %v3423 = vunpack.c.l.b16 %v3288
    %v3424 = vunpack.c.l.b16 %v3289
    %v3425 = vunpack.c.l.b16 %v3290
    %v3426 = vunpack.c.l.b16 %v3291
    %v3427 = vunpack.c.l.b16 %v3292
    %v3428 = vunpack.c.l.b16 %v3293
    %v3429 = vunpack.c.l.b16 %v3294
    %v3430 = vunpack.c.l.b16 %v3295
    %v3431 = vunpack.c.l.b16 %v3296
    %v3432 = vunpack.c.l.b16 %v3297
    %v3433 = vunpack.c.l.b16 %v3298
    %v3434 = vunpack.c.l.b16 %v3299
    %v3435 = vunpack.c.l.b16 %v3300
    %v3436 = vunpack.c.l.b16 %v3301
    %v3437 = vunpack.c.l.b16 %v3302
    %v3438 = vunpack.c.l.b16 %v3303
    %v3439 = vunpack.c.l.b16 %v3304
    %v3440 = vunpack.c.l.b16 %v3305
    %v3441 = vunpack.c.l.b16 %v3306
    %v3442 = vunpack.c.l.b16 %v3307
    %v3443 = vunpack.c.l.b16 %v3308
    %v3444 = vunpack.c.l.b16 %v3309
    %v3445 = vunpack.c.l.b16 %v3310
    %v3446 = vunpack.c.l.b16 %v3311
    %v3447 = vunpack.c.l.b16 %v3312
    %v3448 = vunpack.c.l.b16 %v3313
    %v3449 = vunpack.c.l.b16 %v3314
    %v3450 = vunpack.c.l.b16 %v3315
    %v3451 = vunpack.c.l.b16 %v3316
    %v3452 = vunpack.c.l.b16 %v3317
    %v3453 = vunpack.c.l.b16 %v3318
    %v3454 = vunpack.c.l.b16 %v3319
    %v3455 = vunpack.c.l.b16 %v3320
    %v3456 = vunpack.c.l.b16 %v3321
    %v3457 = vunpack.c.l.b16 %v3322
    %v3458 = vunpack.c.l.b16 %v3323
    %v3459 = vunpack.c.l.b16 %v3324
    %v3460 = vunpack.c.l.b16 %v3325
    %v3461 = vunpack.c.l.b16 %v3326
    %v3462 = vunpack.c.l.b16 %v3327
    %v3463 = vunpack.c.l.b16 %v3328
    %v3464 = vunpack.c.l.b16 %v3329
    %v3465 = vunpack.c.l.b16 %v3330
    %v3466 = vunpack.c.l.b16 %v3331
    %v3467 = vunpack.c.l.b16 %v3332
    %v3468 = vunpack.c.l.b16 %v3333
    %v3469 = vunpack.c.l.b16 %v3334
    %v3470 = vunpack.c.l.b16 %v3335
    %v3471 = vunpack.c.l.b16 %v3336
    %v3472 = vunpack.c.l.b16 %v3337
    %v3473 = vunpack.c.l.b16 %v3338
    %v3474 = vunpack.c.l.b16 %v3339
    %v3475 = vunpack.c.l.b16 %v3340
    %v3476 = vunpack.c.l.b16 %v3341
    %v3477 = vunpack.c.l.b16 %v3342
    %v3478 = vpack.c.b16 %v3415, %v3414
    %v3479 = vpack.c.b16 %v3417, %v3416
    %v3480 = vpack.c.b16 %v3419, %v3418
    %v3481 = vpack.c.b16 %v3421, %v3420
    %v3482 = vpack.c.b16 %v3423, %v3422
    %v3483 = vpack.c.b16 %v3425, %v3424
    %v3484 = vpack.c.b16 %v3427, %v3426
    %v3485 = vpack.c.b16 %v3429, %v3428
    %v3486 = vpack.c.b16 %v3431, %v3430
    %v3487 = vpack.c.b16 %v3433, %v3432
    %v3488 = vpack.c.b16 %v3435, %v3434
    %v3489 = vpack.c.b16 %v3437, %v3436
    %v3490 = vpack.c.b16 %v3439, %v3438
    %v3491 = vpack.c.b16 %v3441, %v3440
    %v3492 = vpack.c.b16 %v3443, %v3442
    %v3493 = vpack.c.b16 %v3445, %v3444
    %v3494 = vpack.c.b16 %v3447, %v3446
    %v3495 = vpack.c.b16 %v3449, %v3448
    %v3496 = vpack.c.b16 %v3451, %v3450
    %v3497 = vpack.c.b16 %v3453, %v3452
    %v3498 = vpack.c.b16 %v3455, %v3454
    %v3499 = vpack.c.b16 %v3457, %v3456
    %v3500 = vpack.c.b16 %v3459, %v3458
    %v3501 = vpack.c.b16 %v3461, %v3460
    %v3502 = vpack.c.b16 %v3463, %v3462
    %v3503 = vpack.c.b16 %v3465, %v3464
    %v3504 = vpack.c.b16 %v3467, %v3466
    %v3505 = vpack.c.b16 %v3469, %v3468
    %v3506 = vpack.c.b16 %v3471, %v3470
    %v3507 = vpack.c.b16 %v3473, %v3472
    %v3508 = vpack.c.b16 %v3475, %v3474
    %v3509 = vpack.c.b16 %v3477, %v3476
    %3542 = vmatprep.subr.bf16.mxu0 0
    %3543 = vmatpush1.bf16.msra.mxu0 %v3478
    %3544 = vmatprep.subr.bf16.mxu0 0
    %3545 = vmatpush1.bf16.msra.mxu0 %v3479
    %3546 = vmatprep.subr.bf16.mxu0 0
    %3547 = vmatpush1.bf16.msra.mxu0 %v3480
    %3548 = vmatprep.subr.bf16.mxu0 0
    %3549 = vmatpush1.bf16.msra.mxu0 %v3481
    %3550 = vmatprep.subr.bf16.mxu0 0
    %3551 = vmatpush1.bf16.msra.mxu0 %v3482
    %3552 = vmatprep.subr.bf16.mxu0 0
    %3553 = vmatpush1.bf16.msra.mxu0 %v3483
    %3554 = vmatprep.subr.bf16.mxu0 0
    %3555 = vmatpush1.bf16.msra.mxu0 %v3484
    %3556 = vmatprep.subr.bf16.mxu0 0
    %3557 = vmatpush1.bf16.msra.mxu0 %v3485
    %3558 = vmatprep.subr.bf16.mxu0 0
    %3559 = vmatpush1.bf16.msra.mxu0 %v3486
    %3560 = vmatprep.subr.bf16.mxu0 0
    %3561 = vmatpush1.bf16.msra.mxu0 %v3487
    %3562 = vmatprep.subr.bf16.mxu0 0
    %3563 = vmatpush1.bf16.msra.mxu0 %v3488
    %3564 = vmatprep.subr.bf16.mxu0 0
    %3565 = vmatpush1.bf16.msra.mxu0 %v3489
    %3566 = vmatprep.subr.bf16.mxu0 0
    %3567 = vmatpush1.bf16.msra.mxu0 %v3490
    %3568 = vmatprep.subr.bf16.mxu0 0
    %3569 = vmatpush1.bf16.msra.mxu0 %v3491
    %3570 = vmatprep.subr.bf16.mxu0 0
    %3571 = vmatpush1.bf16.msra.mxu0 %v3492
    %3572 = vmatprep.subr.bf16.mxu0 0
    %3573 = vmatpush1.bf16.msra.mxu0 %v3493
    %3574 = vmatprep.mubr.bf16.mxu0 %v3248
    %3575 = vmatmul.mubr.bf16.gmra.mrb[0].mxu0 %v3247
    %v3576 = vpop.f32.mrb[0].mxu0
    %v3577 = vadd.f32 %v3348, %v3576
    %v3578 = vpop.f32.mrb[0].mxu0
    %v3579 = vpop.f32.mrb[0].mxu0
    %v3580 = vadd.f32 %v3348, %v3579
    %v3581 = vpop.f32.mrb[0].mxu0
    %3582 = vmatprep.mubr.bf16.mxu0 %v3252
    %3583 = vmatmul.mubr.bf16.gmra.mrb[0].mxu0 %v3251
    %v3584 = vpop.f32.mrb[0].mxu0
    %v3585 = vadd.f32 %v3348, %v3584
    %v3586 = vpop.f32.mrb[0].mxu0
    %v3587 = vpop.f32.mrb[0].mxu0
    %v3588 = vadd.f32 %v3348, %v3587
    %v3589 = vpop.f32.mrb[0].mxu0
    %3590 = vmatprep.mubr.bf16.mxu0 %v3256
    %3591 = vmatmul.mubr.bf16.gmra.mrb[0].mxu0 %v3255
    %v3592 = vpop.f32.mrb[0].mxu0
    %v3593 = vadd.f32 %v3348, %v3592
    %v3594 = vpop.f32.mrb[0].mxu0
    %v3595 = vpop.f32.mrb[0].mxu0
    %v3596 = vadd.f32 %v3348, %v3595
    %v3597 = vpop.f32.mrb[0].mxu0
    %3598 = vmatprep.mubr.bf16.mxu0 %v3260
    %3599 = vmatmul.mubr.bf16.gmra.mrb[0].mxu0 %v3259
    %v3600 = vpop.f32.mrb[0].mxu0
    %v3601 = vadd.f32 %v3348, %v3600
    %v3602 = vpop.f32.mrb[0].mxu0
    %v3603 = vpop.f32.mrb[0].mxu0
    %v3604 = vadd.f32 %v3348, %v3603
    %v3605 = vpop.f32.mrb[0].mxu0
    %3606 = vmatprep.mubr.bf16.mxu0 %v3264
    %3607 = vmatmul.mubr.bf16.gmra.mrb[0].mxu0 %v3263
    %v3608 = vpop.f32.mrb[0].mxu0
    %v3609 = vadd.f32 %v3348, %v3608
    %v3610 = vpop.f32.mrb[0].mxu0
    %v3611 = vpop.f32.mrb[0].mxu0
    %v3612 = vadd.f32 %v3348, %v3611
    %v3613 = vpop.f32.mrb[0].mxu0
    %3614 = vmatprep.mubr.bf16.mxu0 %v3268
    %3615 = vmatmul.mubr.bf16.gmra.mrb[0].mxu0 %v3267
    %v3616 = vpop.f32.mrb[0].mxu0
    %v3617 = vadd.f32 %v3348, %v3616
    %v3618 = vpop.f32.mrb[0].mxu0
    %v3619 = vpop.f32.mrb[0].mxu0
    %v3620 = vadd.f32 %v3348, %v3619
    %v3621 = vpop.f32.mrb[0].mxu0
    %3622 = vmatprep.mubr.bf16.mxu0 %v3272
    %3623 = vmatmul.mubr.bf16.gmra.mrb[0].mxu0 %v3271
    %v3624 = vpop.f32.mrb[0].mxu0
    %v3625 = vadd.f32 %v3348, %v3624
    %v3626 = vpop.f32.mrb[0].mxu0
    %v3627 = vpop.f32.mrb[0].mxu0
    %v3628 = vadd.f32 %v3348, %v3627
    %v3629 = vpop.f32.mrb[0].mxu0
    %3630 = vmatprep.mubr.bf16.mxu0 %v3276
    %3631 = vmatmul.mubr.bf16.gmra.mrb[0].mxu0 %v3275
    %v3632 = vpop.f32.mrb[0].mxu0
    %v3633 = vadd.f32 %v3348, %v3632
    %v3634 = vpop.f32.mrb[0].mxu0
    %v3635 = vpop.f32.mrb[0].mxu0
    %v3636 = vadd.f32 %v3348, %v3635
    %v3637 = vpop.f32.mrb[0].mxu0
    %3638 = vdwg.mxu0
    %3639 = vmatprep.subr.bf16.mxu0 0
    %3640 = vmatpush1.bf16.msra.mxu0 %v3494
    %3641 = vmatprep.subr.bf16.mxu0 0
    %3642 = vmatpush1.bf16.msra.mxu0 %v3495
    %3643 = vmatprep.subr.bf16.mxu0 0
    %3644 = vmatpush1.bf16.msra.mxu0 %v3496
    %3645 = vmatprep.subr.bf16.mxu0 0
    %3646 = vmatpush1.bf16.msra.mxu0 %v3497
    %3647 = vmatprep.subr.bf16.mxu0 0
    %3648 = vmatpush1.bf16.msra.mxu0 %v3498
    %3649 = vmatprep.subr.bf16.mxu0 0
    %3650 = vmatpush1.bf16.msra.mxu0 %v3499
    %3651 = vmatprep.subr.bf16.mxu0 0
    %3652 = vmatpush1.bf16.msra.mxu0 %v3500
    %3653 = vmatprep.subr.bf16.mxu0 0
    %3654 = vmatpush1.bf16.msra.mxu0 %v3501
    %3655 = vmatprep.subr.bf16.mxu0 0
    %3656 = vmatpush1.bf16.msra.mxu0 %v3502
    %3657 = vmatprep.subr.bf16.mxu0 0
    %3658 = vmatpush1.bf16.msra.mxu0 %v3503
    %3659 = vmatprep.subr.bf16.mxu0 0
    %3660 = vmatpush1.bf16.msra.mxu0 %v3504
    %3661 = vmatprep.subr.bf16.mxu0 0
    %3662 = vmatpush1.bf16.msra.mxu0 %v3505
    %3663 = vmatprep.subr.bf16.mxu0 0
    %3664 = vmatpush1.bf16.msra.mxu0 %v3506
    %3665 = vmatprep.subr.bf16.mxu0 0
    %3666 = vmatpush1.bf16.msra.mxu0 %v3507
    %3667 = vmatprep.subr.bf16.mxu0 0
    %3668 = vmatpush1.bf16.msra.mxu0 %v3508
    %3669 = vmatprep.subr.bf16.mxu0 0
    %3670 = vmatpush1.bf16.msra.mxu0 %v3509
    %3671 = vmatprep.mubr.bf16.mxu0 %v3250
    %3672 = vmatmul.mubr.bf16.gmra.mrb[0].mxu0 %v3249
    %v3673 = vpop.f32.mrb[0].mxu0
    %v3674 = vadd.f32 %v3577, %v3673
    %v3675 = vpop.f32.mrb[0].mxu0
    %v3676 = vpop.f32.mrb[0].mxu0
    %v3677 = vadd.f32 %v3580, %v3676
    %v3678 = vpop.f32.mrb[0].mxu0
    %3679 = vmatprep.mubr.bf16.mxu0 %v3254
    %3680 = vmatmul.mubr.bf16.gmra.mrb[0].mxu0 %v3253
    %v3681 = vpop.f32.mrb[0].mxu0
    %v3682 = vadd.f32 %v3585, %v3681
    %v3683 = vpop.f32.mrb[0].mxu0
    %v3684 = vpop.f32.mrb[0].mxu0
    %v3685 = vadd.f32 %v3588, %v3684
    %v3686 = vpop.f32.mrb[0].mxu0
    %3687 = vmatprep.mubr.bf16.mxu0 %v3258
    %3688 = vmatmul.mubr.bf16.gmra.mrb[0].mxu0 %v3257
    %v3689 = vpop.f32.mrb[0].mxu0
    %v3690 = vadd.f32 %v3593, %v3689
    %v3691 = vpop.f32.mrb[0].mxu0
    %v3692 = vpop.f32.mrb[0].mxu0
    %v3693 = vadd.f32 %v3596, %v3692
    %v3694 = vpop.f32.mrb[0].mxu0
    %3695 = vmatprep.mubr.bf16.mxu0 %v3262
    %3696 = vmatmul.mubr.bf16.gmra.mrb[0].mxu0 %v3261
    %v3697 = vpop.f32.mrb[0].mxu0
    %v3698 = vadd.f32 %v3601, %v3697
    %v3699 = vpop.f32.mrb[0].mxu0
    %v3700 = vpop.f32.mrb[0].mxu0
    %v3701 = vadd.f32 %v3604, %v3700
    %v3702 = vpop.f32.mrb[0].mxu0
    %3703 = vmatprep.mubr.bf16.mxu0 %v3266
    %3704 = vmatmul.mubr.bf16.gmra.mrb[0].mxu0 %v3265
    %v3705 = vpop.f32.mrb[0].mxu0
    %v3706 = vadd.f32 %v3609, %v3705
    %v3707 = vpop.f32.mrb[0].mxu0
    %v3708 = vpop.f32.mrb[0].mxu0
    %v3709 = vadd.f32 %v3612, %v3708
    %v3710 = vpop.f32.mrb[0].mxu0
    %3711 = vmatprep.mubr.bf16.mxu0 %v3270
    %3712 = vmatmul.mubr.bf16.gmra.mrb[0].mxu0 %v3269
    %v3713 = vpop.f32.mrb[0].mxu0
    %v3714 = vadd.f32 %v3617, %v3713
    %v3715 = vpop.f32.mrb[0].mxu0
    %v3716 = vpop.f32.mrb[0].mxu0
    %v3717 = vadd.f32 %v3620, %v3716
    %v3718 = vpop.f32.mrb[0].mxu0
    %3719 = vmatprep.mubr.bf16.mxu0 %v3274
    %3720 = vmatmul.mubr.bf16.gmra.mrb[0].mxu0 %v3273
    %v3721 = vpop.f32.mrb[0].mxu0
    %v3722 = vadd.f32 %v3625, %v3721
    %v3723 = vpop.f32.mrb[0].mxu0
    %v3724 = vpop.f32.mrb[0].mxu0
    %v3725 = vadd.f32 %v3628, %v3724
    %v3726 = vpop.f32.mrb[0].mxu0
    %3727 = vmatprep.mubr.bf16.mxu0 %v3278
    %3728 = vmatmul.mubr.bf16.gmra.mrb[0].mxu0 %v3277
    %v3729 = vpop.f32.mrb[0].mxu0
    %v3730 = vadd.f32 %v3633, %v3729
    %v3731 = vpop.f32.mrb[0].mxu0
    %v3732 = vpop.f32.mrb[0].mxu0
    %v3733 = vadd.f32 %v3636, %v3732
    %v3734 = vpop.f32.mrb[0].mxu0
    %3735 = vdwg.mxu0
    %v3736 = vmax.f32 %v3674, 0.0
    %v3737 = vmax.f32 %v3677, 0.0
    %v3738 = vmax.f32 %v3682, 0.0
    %v3739 = vmax.f32 %v3685, 0.0
    %v3740 = vmax.f32 %v3690, 0.0
    %v3741 = vmax.f32 %v3693, 0.0
    %v3742 = vmax.f32 %v3698, 0.0
    %v3743 = vmax.f32 %v3701, 0.0
    %v3744 = vmax.f32 %v3706, 0.0
    %v3745 = vmax.f32 %v3709, 0.0
    %v3746 = vmax.f32 %v3714, 0.0
    %v3747 = vmax.f32 %v3717, 0.0
    %v3748 = vmax.f32 %v3722, 0.0
    %v3749 = vmax.f32 %v3725, 0.0
    %v3750 = vmax.f32 %v3730, 0.0
    %v3751 = vmax.f32 %v3733, 0.0
    %v3752 = vpack.c.bf16 %v3737, %v3736
    %v3753 = vpack.c.bf16 %v3739, %v3738
    %v3754 = vpack.c.bf16 %v3741, %v3740
    %v3755 = vpack.c.bf16 %v3743, %v3742
    %v3756 = vpack.c.bf16 %v3745, %v3744
    %v3757 = vpack.c.bf16 %v3747, %v3746
    %v3758 = vpack.c.bf16 %v3749, %v3748
    %v3759 = vpack.c.bf16 %v3751, %v3750
    %v3760 = vld [vmem:[#allocation13] sm:$0xf]
    %v3761 = vld [vmem:[#allocation13 + $0x4] sm:$0xf]
    %v3762 = vld [vmem:[#allocation13 + $0x8] sm:$0xf]
    %v3763 = vld [vmem:[#allocation13 + $0xc] sm:$0xf]
    %v3764 = vld [vmem:[#allocation13 + $0x10] sm:$0xf]
    %v3765 = vld [vmem:[#allocation13 + $0x14] sm:$0xf]
    %v3766 = vld [vmem:[#allocation13 + $0x18] sm:$0xf]
    %v3767 = vld [vmem:[#allocation13 + $0x1c] sm:$0xf]
    %v3768 = vld [vmem:[#allocation13 + $0x20] sm:$0xf]
    %v3769 = vld [vmem:[#allocation13 + $0x24] sm:$0xf]
    %v3770 = vld [vmem:[#allocation13 + $0x28] sm:$0xf]
    %v3771 = vld [vmem:[#allocation13 + $0x2c] sm:$0xf]
    %v3772 = vld [vmem:[#allocation13 + $0x30] sm:$0xf]
    %v3773 = vld [vmem:[#allocation13 + $0x34] sm:$0xf]
    %v3774 = vld [vmem:[#allocation13 + $0x38] sm:$0xf]
    %v3775 = vld [vmem:[#allocation13 + $0x3c] sm:$0xf]
    %v3792 = vunpack.c.l.b16 %v3760
    %v3793 = vunpack.c.l.b16 %v3761
    %v3794 = vunpack.c.l.b16 %v3762
    %v3795 = vunpack.c.l.b16 %v3763
    %v3796 = vunpack.c.l.b16 %v3764
    %v3797 = vunpack.c.l.b16 %v3765
    %v3798 = vunpack.c.l.b16 %v3766
    %v3799 = vunpack.c.l.b16 %v3767
    %v3800 = vunpack.c.l.b16 %v3768
    %v3801 = vunpack.c.l.b16 %v3769
    %v3802 = vunpack.c.l.b16 %v3770
    %v3803 = vunpack.c.l.b16 %v3771
    %v3804 = vunpack.c.l.b16 %v3772
    %v3805 = vunpack.c.l.b16 %v3773
    %v3806 = vunpack.c.l.b16 %v3774
    %v3807 = vunpack.c.l.b16 %v3775
    %v3808 = vpack.c.b16 %v3793, %v3792
    %v3809 = vpack.c.b16 %v3795, %v3794
    %v3810 = vpack.c.b16 %v3797, %v3796
    %v3811 = vpack.c.b16 %v3799, %v3798
    %v3812 = vpack.c.b16 %v3801, %v3800
    %v3813 = vpack.c.b16 %v3803, %v3802
    %v3814 = vpack.c.b16 %v3805, %v3804
    %v3815 = vpack.c.b16 %v3807, %v3806
    %3824 = vmatprep.subr.bf16.mxu0 0
    %3825 = vmatpush1.bf16.msra.mxu0 %v3808
    %3826 = vmatprep.subr.bf16.mxu0 0
    %3827 = vmatpush1.bf16.msra.mxu0 %v3809
    %3828 = vmatprep.subr.bf16.mxu0 0
    %3829 = vmatpush1.bf16.msra.mxu0 %v3810
    %3830 = vmatprep.subr.bf16.mxu0 0
    %3831 = vmatpush1.bf16.msra.mxu0 %v3811
    %3832 = vmatprep.subr.bf16.mxu0 0
    %3833 = vmatpush1.bf16.msra.mxu0 %v3812
    %3834 = vmatprep.subr.bf16.mxu0 0
    %3835 = vmatpush1.bf16.msra.mxu0 %v3813
    %3836 = vmatprep.subr.bf16.mxu0 0
    %3837 = vmatpush1.bf16.msra.mxu0 %v3814
    %3838 = vmatprep.subr.bf16.mxu0 0
    %3839 = vmatpush1.bf16.msra.mxu0 %v3815
    %3840 = vmatprep.subr.bf16.mxu0 0
    %3841 = vmatpush1.bf16.msra.mxu0 0
    %3842 = vmatprep.subr.bf16.mxu0 0
    %3843 = vmatpush1.bf16.msra.mxu0 0
    %3844 = vmatprep.subr.bf16.mxu0 0
    %3845 = vmatpush1.bf16.msra.mxu0 0
    %3846 = vmatprep.subr.bf16.mxu0 0
    %3847 = vmatpush1.bf16.msra.mxu0 0
    %3848 = vmatprep.subr.bf16.mxu0 0
    %3849 = vmatpush1.bf16.msra.mxu0 0
    %3850 = vmatprep.subr.bf16.mxu0 0
    %3851 = vmatpush1.bf16.msra.mxu0 0
    %3852 = vmatprep.subr.bf16.mxu0 0
    %3853 = vmatpush1.bf16.msra.mxu0 0
    %3854 = vmatprep.subr.bf16.mxu0 0
    %3855 = vmatpush1.bf16.msra.mxu0 0
    %3856 = vmatprep.mubr.bf16.mxu0 0
    %3857 = vmatmul.mubr.bf16.gmra.mrb[0].mxu0 %v3752
    %v3858 = vpop.f32.mrb[0].mxu0
    %v3859 = vadd.f32 %v3040, %v3858
    %v3860 = vpop.f32.mrb[0].mxu0
    %v3861 = vpop.f32.mrb[0].mxu0
    %v3862 = vadd.f32 %v3045, %v3861
    %v3863 = vpop.f32.mrb[0].mxu0
    %3864 = vmatprep.mubr.bf16.mxu0 0
    %3865 = vmatmul.mubr.bf16.gmra.mrb[0].mxu0 %v3753
    %v3866 = vpop.f32.mrb[0].mxu0
    %v3867 = vadd.f32 %v3050, %v3866
    %v3868 = vpop.f32.mrb[0].mxu0
    %v3869 = vpop.f32.mrb[0].mxu0
    %v3870 = vadd.f32 %v3055, %v3869
    %v3871 = vpop.f32.mrb[0].mxu0
    %3872 = vmatprep.mubr.bf16.mxu0 0
    %3873 = vmatmul.mubr.bf16.gmra.mrb[0].mxu0 %v3754
    %v3874 = vpop.f32.mrb[0].mxu0
    %v3875 = vadd.f32 %v3060, %v3874
    %v3876 = vpop.f32.mrb[0].mxu0
    %v3877 = vpop.f32.mrb[0].mxu0
    %v3878 = vadd.f32 %v3065, %v3877
    %v3879 = vpop.f32.mrb[0].mxu0
    %3880 = vmatprep.mubr.bf16.mxu0 0
    %3881 = vmatmul.mubr.bf16.gmra.mrb[0].mxu0 %v3755
    %v3882 = vpop.f32.mrb[0].mxu0
    %v3883 = vadd.f32 %v3070, %v3882
    %v3884 = vpop.f32.mrb[0].mxu0
    %v3885 = vpop.f32.mrb[0].mxu0
    %v3886 = vadd.f32 %v3075, %v3885
    %v3887 = vpop.f32.mrb[0].mxu0
    %3888 = vmatprep.mubr.bf16.mxu0 0
    %3889 = vmatmul.mubr.bf16.gmra.mrb[0].mxu0 %v3756
    %v3890 = vpop.f32.mrb[0].mxu0
    %v3891 = vadd.f32 %v3145, %v3890
    %v3892 = vpop.f32.mrb[0].mxu0
    %v3893 = vpop.f32.mrb[0].mxu0
    %v3894 = vadd.f32 %v3150, %v3893
    %v3895 = vpop.f32.mrb[0].mxu0
    %3896 = vmatprep.mubr.bf16.mxu0 0
    %3897 = vmatmul.mubr.bf16.gmra.mrb[0].mxu0 %v3757
    %v3898 = vpop.f32.mrb[0].mxu0
    %v3899 = vadd.f32 %v3155, %v3898
    %v3900 = vpop.f32.mrb[0].mxu0
    %v3901 = vpop.f32.mrb[0].mxu0
    %v3902 = vadd.f32 %v3160, %v3901
    %v3903 = vpop.f32.mrb[0].mxu0
    %3904 = vmatprep.mubr.bf16.mxu0 0
    %3905 = vmatmul.mubr.bf16.gmra.mrb[0].mxu0 %v3758
    %v3906 = vpop.f32.mrb[0].mxu0
    %v3907 = vadd.f32 %v3165, %v3906
    %v3908 = vpop.f32.mrb[0].mxu0
    %v3909 = vpop.f32.mrb[0].mxu0
    %v3910 = vadd.f32 %v3170, %v3909
    %v3911 = vpop.f32.mrb[0].mxu0
    %3912 = vmatprep.mubr.bf16.mxu0 0
    %3913 = vmatmul.mubr.bf16.gmra.mrb[0].mxu0 %v3759
    %v3914 = vpop.f32.mrb[0].mxu0
    %v3915 = vadd.f32 %v3175, %v3914
    %v3916 = vpop.f32.mrb[0].mxu0
    %v3917 = vpop.f32.mrb[0].mxu0
    %v3918 = vadd.f32 %v3180, %v3917
    %v3919 = vpop.f32.mrb[0].mxu0
    %3920 = vdwg.mxu0
    %v3921 = vld [vmem:[%s37] sm:$0x1]
    %v3923 = vlaneseq
    %v3924 = vshrl.u32 %v3923, 7
    %v3925 = vsub.s32 0, %v3924
    %v3926 = vrot.slane %v3921, %v3925
    %v3928 = vadd.f32 %v3859, %v3926
    %v3929 = vadd.f32 %v3862, %v3926
    %v3930 = vadd.f32 %v3867, %v3926
    %v3931 = vadd.f32 %v3870, %v3926
    %v3932 = vadd.f32 %v3875, %v3926
    %v3933 = vadd.f32 %v3878, %v3926
    %v3934 = vadd.f32 %v3883, %v3926
    %v3935 = vadd.f32 %v3886, %v3926
    %v3936 = vadd.f32 %v3891, %v3926
    %v3937 = vadd.f32 %v3894, %v3926
    %v3938 = vadd.f32 %v3899, %v3926
    %v3939 = vadd.f32 %v3902, %v3926
    %v3940 = vadd.f32 %v3907, %v3926
    %v3941 = vadd.f32 %v3910, %v3926
    %v3942 = vadd.f32 %v3915, %v3926
    %v3943 = vadd.f32 %v3918, %v3926
    %v3944 = vmax.f32 %v3928, 0.0
    %v3945 = vmax.f32 %v3929, 0.0
    %v3946 = vmax.f32 %v3930, 0.0
    %v3947 = vmax.f32 %v3931, 0.0
    %v3948 = vmax.f32 %v3932, 0.0
    %v3949 = vmax.f32 %v3933, 0.0
    %v3950 = vmax.f32 %v3934, 0.0
    %v3951 = vmax.f32 %v3935, 0.0
    %v3952 = vmax.f32 %v3936, 0.0
    %v3953 = vmax.f32 %v3937, 0.0
    %v3954 = vmax.f32 %v3938, 0.0
    %v3955 = vmax.f32 %v3939, 0.0
    %v3956 = vmax.f32 %v3940, 0.0
    %v3957 = vmax.f32 %v3941, 0.0
    %v3958 = vmax.f32 %v3942, 0.0
    %v3959 = vmax.f32 %v3943, 0.0
    %v3960 = vpack.c.bf16 %v3945, %v3944
    %v3961 = vpack.c.bf16 %v3947, %v3946
    %v3962 = vpack.c.bf16 %v3949, %v3948
    %v3963 = vpack.c.bf16 %v3951, %v3950
    %v3964 = vpack.c.bf16 %v3953, %v3952
    %v3965 = vpack.c.bf16 %v3955, %v3954
    %v3966 = vpack.c.bf16 %v3957, %v3956
    %v3967 = vpack.c.bf16 %v3959, %v3958
    %v3968 = vld [vmem:[#allocation17] sm:$0xf]
    %v3969 = vld [vmem:[#allocation17 + $0x4] sm:$0xf]
    %v3970 = vld [vmem:[#allocation17 + $0x8] sm:$0xf]
    %v3971 = vld [vmem:[#allocation17 + $0xc] sm:$0xf]
    %v3972 = vld [vmem:[#allocation17 + $0x10] sm:$0xf]
    %v3973 = vld [vmem:[#allocation17 + $0x14] sm:$0xf]
    %v3974 = vld [vmem:[#allocation17 + $0x18] sm:$0xf]
    %v3975 = vld [vmem:[#allocation17 + $0x1c] sm:$0xf]
    %v3976 = vld [vmem:[#allocation17 + $0x20] sm:$0xf]
    %v3977 = vld [vmem:[#allocation17 + $0x24] sm:$0xf]
    %v3978 = vld [vmem:[#allocation17 + $0x28] sm:$0xf]
    %v3979 = vld [vmem:[#allocation17 + $0x2c] sm:$0xf]
    %v3980 = vld [vmem:[#allocation17 + $0x30] sm:$0xf]
    %v3981 = vld [vmem:[#allocation17 + $0x34] sm:$0xf]
    %v3982 = vld [vmem:[#allocation17 + $0x38] sm:$0xf]
    %v3983 = vld [vmem:[#allocation17 + $0x3c] sm:$0xf]
    %v4000 = vunpack.c.l.b16 %v3968
    %v4001 = vunpack.c.l.b16 %v3969
    %v4002 = vunpack.c.l.b16 %v3970
    %v4003 = vunpack.c.l.b16 %v3971
    %v4004 = vunpack.c.l.b16 %v3972
    %v4005 = vunpack.c.l.b16 %v3973
    %v4006 = vunpack.c.l.b16 %v3974
    %v4007 = vunpack.c.l.b16 %v3975
    %v4008 = vunpack.c.l.b16 %v3976
    %v4009 = vunpack.c.l.b16 %v3977
    %v4010 = vunpack.c.l.b16 %v3978
    %v4011 = vunpack.c.l.b16 %v3979
    %v4012 = vunpack.c.l.b16 %v3980
    %v4013 = vunpack.c.l.b16 %v3981
    %v4014 = vunpack.c.l.b16 %v3982
    %v4015 = vunpack.c.l.b16 %v3983
    %v4016 = vpack.c.b16 %v4001, %v4000
    %v4017 = vpack.c.b16 %v4003, %v4002
    %v4018 = vpack.c.b16 %v4005, %v4004
    %v4019 = vpack.c.b16 %v4007, %v4006
    %v4020 = vpack.c.b16 %v4009, %v4008
    %v4021 = vpack.c.b16 %v4011, %v4010
    %v4022 = vpack.c.b16 %v4013, %v4012
    %v4023 = vpack.c.b16 %v4015, %v4014
    %4032 = vmatprep.subr.bf16.mxu0 0
    %4033 = vmatpush1.bf16.msra.mxu0 %v4016
    %4034 = vmatprep.subr.bf16.mxu0 0
    %4035 = vmatpush1.bf16.msra.mxu0 %v4017
    %4036 = vmatprep.subr.bf16.mxu0 0
    %4037 = vmatpush1.bf16.msra.mxu0 %v4018
    %4038 = vmatprep.subr.bf16.mxu0 0
    %4039 = vmatpush1.bf16.msra.mxu0 %v4019
    %4040 = vmatprep.subr.bf16.mxu0 0
    %4041 = vmatpush1.bf16.msra.mxu0 %v4020
    %4042 = vmatprep.subr.bf16.mxu0 0
    %4043 = vmatpush1.bf16.msra.mxu0 %v4021
    %4044 = vmatprep.subr.bf16.mxu0 0
    %4045 = vmatpush1.bf16.msra.mxu0 %v4022
    %4046 = vmatprep.subr.bf16.mxu0 0
    %4047 = vmatpush1.bf16.msra.mxu0 %v4023
    %4048 = vmatprep.subr.bf16.mxu0 0
    %4049 = vmatpush1.bf16.msra.mxu0 0
    %4050 = vmatprep.subr.bf16.mxu0 0
    %4051 = vmatpush1.bf16.msra.mxu0 0
    %4052 = vmatprep.subr.bf16.mxu0 0
    %4053 = vmatpush1.bf16.msra.mxu0 0
    %4054 = vmatprep.subr.bf16.mxu0 0
    %4055 = vmatpush1.bf16.msra.mxu0 0
    %4056 = vmatprep.subr.bf16.mxu0 0
    %4057 = vmatpush1.bf16.msra.mxu0 0
    %4058 = vmatprep.subr.bf16.mxu0 0
    %4059 = vmatpush1.bf16.msra.mxu0 0
    %4060 = vmatprep.subr.bf16.mxu0 0
    %4061 = vmatpush1.bf16.msra.mxu0 0
    %4062 = vmatprep.subr.bf16.mxu0 0
    %4063 = vmatpush1.bf16.msra.mxu0 0
    %4064 = vmatprep.mubr.bf16.mxu0 0
    %4065 = vmatmul.mubr.bf16.gmra.mrb[0].mxu0 %v3960
    %v4066 = vpop.f32.mrb[0].mxu0
    %v4067 = vadd.f32 0.0, %v4066
    %v4068 = vpop.f32.mrb[0].mxu0
    %v4069 = vpop.f32.mrb[0].mxu0
    %v4070 = vadd.f32 0.0, %v4069
    %v4071 = vpop.f32.mrb[0].mxu0
    %4072 = vmatprep.mubr.bf16.mxu0 0
    %4073 = vmatmul.mubr.bf16.gmra.mrb[0].mxu0 %v3961
    %v4074 = vpop.f32.mrb[0].mxu0
    %v4075 = vadd.f32 0.0, %v4074
    %v4076 = vpop.f32.mrb[0].mxu0
    %v4077 = vpop.f32.mrb[0].mxu0
    %v4078 = vadd.f32 0.0, %v4077
    %v4079 = vpop.f32.mrb[0].mxu0
    %4080 = vmatprep.mubr.bf16.mxu0 0
    %4081 = vmatmul.mubr.bf16.gmra.mrb[0].mxu0 %v3962
    %v4082 = vpop.f32.mrb[0].mxu0
    %v4083 = vadd.f32 0.0, %v4082
    %v4084 = vpop.f32.mrb[0].mxu0
    %v4085 = vpop.f32.mrb[0].mxu0
    %v4086 = vadd.f32 0.0, %v4085
    %v4087 = vpop.f32.mrb[0].mxu0
    %4088 = vmatprep.mubr.bf16.mxu0 0
    %4089 = vmatmul.mubr.bf16.gmra.mrb[0].mxu0 %v3963
    %v4090 = vpop.f32.mrb[0].mxu0
    %v4091 = vadd.f32 0.0, %v4090
    %v4092 = vpop.f32.mrb[0].mxu0
    %v4093 = vpop.f32.mrb[0].mxu0
    %v4094 = vadd.f32 0.0, %v4093
    %v4095 = vpop.f32.mrb[0].mxu0
    %4096 = vmatprep.mubr.bf16.mxu0 0
    %4097 = vmatmul.mubr.bf16.gmra.mrb[0].mxu0 %v3964
    %v4098 = vpop.f32.mrb[0].mxu0
    %v4099 = vadd.f32 0.0, %v4098
    %v4100 = vpop.f32.mrb[0].mxu0
    %v4101 = vpop.f32.mrb[0].mxu0
    %v4102 = vadd.f32 0.0, %v4101
    %v4103 = vpop.f32.mrb[0].mxu0
    %4104 = vmatprep.mubr.bf16.mxu0 0
    %4105 = vmatmul.mubr.bf16.gmra.mrb[0].mxu0 %v3965
    %v4106 = vpop.f32.mrb[0].mxu0
    %v4107 = vadd.f32 0.0, %v4106
    %v4108 = vpop.f32.mrb[0].mxu0
    %v4109 = vpop.f32.mrb[0].mxu0
    %v4110 = vadd.f32 0.0, %v4109
    %v4111 = vpop.f32.mrb[0].mxu0
    %4112 = vmatprep.mubr.bf16.mxu0 0
    %4113 = vmatmul.mubr.bf16.gmra.mrb[0].mxu0 %v3966
    %v4114 = vpop.f32.mrb[0].mxu0
    %v4115 = vadd.f32 0.0, %v4114
    %v4116 = vpop.f32.mrb[0].mxu0
    %v4117 = vpop.f32.mrb[0].mxu0
    %v4118 = vadd.f32 0.0, %v4117
    %v4119 = vpop.f32.mrb[0].mxu0
    %4120 = vmatprep.mubr.bf16.mxu0 0
    %4121 = vmatmul.mubr.bf16.gmra.mrb[0].mxu0 %v3967
    %v4122 = vpop.f32.mrb[0].mxu0
    %v4123 = vadd.f32 0.0, %v4122
    %v4124 = vpop.f32.mrb[0].mxu0
    %v4125 = vpop.f32.mrb[0].mxu0
    %v4126 = vadd.f32 0.0, %v4125
    %v4127 = vpop.f32.mrb[0].mxu0
    %4128 = vdwg.mxu0
    %v4129 = vld [vmem:[#allocation25] sm:$0xff]
    %v4130 = vld [vmem:[#allocation25 + $0x8] sm:$0xff]
    %v4131 = vld [vmem:[#allocation25 + $0x10] sm:$0xff]
    %v4132 = vld [vmem:[#allocation25 + $0x18] sm:$0xff]
    %v4133 = vld [vmem:[#allocation25 + $0x20] sm:$0xff]
    %v4134 = vld [vmem:[#allocation25 + $0x28] sm:$0xff]
    %v4135 = vld [vmem:[#allocation25 + $0x30] sm:$0xff]
    %v4136 = vld [vmem:[#allocation25 + $0x38] sm:$0xff]
    %v4137 = vld [vmem:[#allocation25 + $0x40] sm:$0xff]
    %v4138 = vld [vmem:[#allocation25 + $0x48] sm:$0xff]
    %v4139 = vld [vmem:[#allocation25 + $0x50] sm:$0xff]
    %v4140 = vld [vmem:[#allocation25 + $0x58] sm:$0xff]
    %v4141 = vld [vmem:[#allocation25 + $0x60] sm:$0xff]
    %v4142 = vld [vmem:[#allocation25 + $0x68] sm:$0xff]
    %v4143 = vld [vmem:[#allocation25 + $0x70] sm:$0xff]
    %v4144 = vld [vmem:[#allocation25 + $0x78] sm:$0xff]
    %v4145 = vld [vmem:[#allocation25 + $0x80] sm:$0xff]
    %v4146 = vld [vmem:[#allocation25 + $0x88] sm:$0xff]
    %v4147 = vld [vmem:[#allocation25 + $0x90] sm:$0xff]
    %v4148 = vld [vmem:[#allocation25 + $0x98] sm:$0xff]
    %v4149 = vld [vmem:[#allocation25 + $0xa0] sm:$0xff]
    %v4150 = vld [vmem:[#allocation25 + $0xa8] sm:$0xff]
    %v4151 = vld [vmem:[#allocation25 + $0xb0] sm:$0xff]
    %v4152 = vld [vmem:[#allocation25 + $0xb8] sm:$0xff]
    %v4153 = vld [vmem:[#allocation25 + $0xc0] sm:$0xff]
    %v4154 = vld [vmem:[#allocation25 + $0xc8] sm:$0xff]
    %v4155 = vld [vmem:[#allocation25 + $0xd0] sm:$0xff]
    %v4156 = vld [vmem:[#allocation25 + $0xd8] sm:$0xff]
    %v4157 = vld [vmem:[#allocation25 + $0xe0] sm:$0xff]
    %v4158 = vld [vmem:[#allocation25 + $0xe8] sm:$0xff]
    %v4159 = vld [vmem:[#allocation25 + $0xf0] sm:$0xff]
    %v4160 = vld [vmem:[#allocation25 + $0xf8] sm:$0xff]
    %vm4161 = vcmask 523264
    %v4163 = vsel %vm4161, %v4129, 0
    %v4166 = vsel %vm4161, %v4130, 0
    %v4169 = vsel %vm4161, %v4131, 0
    %v4172 = vsel %vm4161, %v4132, 0
    %v4175 = vsel %vm4161, %v4133, 0
    %v4178 = vsel %vm4161, %v4134, 0
    %v4181 = vsel %vm4161, %v4135, 0
    %v4184 = vsel %vm4161, %v4136, 0
    %v4187 = vsel %vm4161, %v4137, 0
    %v4190 = vsel %vm4161, %v4138, 0
    %v4193 = vsel %vm4161, %v4139, 0
    %v4196 = vsel %vm4161, %v4140, 0
    %v4199 = vsel %vm4161, %v4141, 0
    %v4202 = vsel %vm4161, %v4142, 0
    %v4205 = vsel %vm4161, %v4143, 0
    %v4208 = vsel %vm4161, %v4144, 0
    %v4211 = vsel %vm4161, %v4145, 0
    %v4214 = vsel %vm4161, %v4146, 0
    %v4217 = vsel %vm4161, %v4147, 0
    %v4220 = vsel %vm4161, %v4148, 0
    %v4223 = vsel %vm4161, %v4149, 0
    %v4226 = vsel %vm4161, %v4150, 0
    %v4229 = vsel %vm4161, %v4151, 0
    %v4232 = vsel %vm4161, %v4152, 0
    %v4235 = vsel %vm4161, %v4153, 0
    %v4238 = vsel %vm4161, %v4154, 0
    %v4241 = vsel %vm4161, %v4155, 0
    %v4244 = vsel %vm4161, %v4156, 0
    %v4247 = vsel %vm4161, %v4157, 0
    %v4250 = vsel %vm4161, %v4158, 0
    %v4253 = vsel %vm4161, %v4159, 0
    %v4256 = vsel %vm4161, %v4160, 0
    %4258 = vmatprep.subr.mxu0 0.0
    %4259 = vmatpush1.msra.mxu0 %v4067
    %4260 = vmatprep.subr.mxu0 0.0
    %4261 = vmatpush1.msra.mxu0 %v4070
    %4262 = vmatprep.subr.mxu0 0.0
    %4263 = vmatpush1.msra.mxu0 %v4075
    %4264 = vmatprep.subr.mxu0 0.0
    %4265 = vmatpush1.msra.mxu0 %v4078
    %4266 = vmatprep.subr.mxu0 0.0
    %4267 = vmatpush1.msra.mxu0 %v4083
    %4268 = vmatprep.subr.mxu0 0.0
    %4269 = vmatpush1.msra.mxu0 %v4086
    %4270 = vmatprep.subr.mxu0 0.0
    %4271 = vmatpush1.msra.mxu0 %v4091
    %4272 = vmatprep.subr.mxu0 0.0
    %4273 = vmatpush1.msra.mxu0 %v4094
    %4274 = vmatprep.subr.mxu0 0.0
    %4275 = vmatpush1.msra.mxu0 0.0
    %4276 = vmatprep.subr.mxu0 0.0
    %4277 = vmatpush1.msra.mxu0 0.0
    %4278 = vmatprep.subr.mxu0 0.0
    %4279 = vmatpush1.msra.mxu0 0.0
    %4280 = vmatprep.subr.mxu0 0.0
    %4281 = vmatpush1.msra.mxu0 0.0
    %4282 = vmatprep.subr.mxu0 0.0
    %4283 = vmatpush1.msra.mxu0 0.0
    %4284 = vmatprep.subr.mxu0 0.0
    %4285 = vmatpush1.msra.mxu0 0.0
    %4286 = vmatprep.subr.mxu0 0.0
    %4287 = vmatpush1.msra.mxu0 0.0
    %4288 = vmatprep.subr.mxu0 0.0
    %4289 = vmatpush1.msra.mxu0 0.0
    %4290 = vmatprep.subr.mxu0 0.0
    %4291 = vmatpush1.msra.mxu0 0.0
    %4292 = vmatprep.subr.mxu0 0.0
    %4293 = vmatpush1.msra.mxu0 0.0
    %4294 = vmatprep.subr.mxu0 0.0
    %4295 = vmatpush1.msra.mxu0 0.0
    %4296 = vmatprep.subr.mxu0 0.0
    %4297 = vmatpush1.msra.mxu0 0.0
    %4298 = vmatprep.subr.mxu0 0.0
    %4299 = vmatpush1.msra.mxu0 0.0
    %4300 = vmatprep.subr.mxu0 0.0
    %4301 = vmatpush1.msra.mxu0 0.0
    %4302 = vmatprep.subr.mxu0 0.0
    %4303 = vmatpush1.msra.mxu0 0.0
    %4304 = vmatprep.subr.mxu0 0.0
    %4305 = vmatpush1.msra.mxu0 0.0
    %4306 = vmatprep.subr.mxu0 0.0
    %4307 = vmatpush1.msra.mxu0 0.0
    %4308 = vmatprep.subr.mxu0 0.0
    %4309 = vmatpush1.msra.mxu0 0.0
    %4310 = vmatprep.subr.mxu0 0.0
    %4311 = vmatpush1.msra.mxu0 0.0
    %4312 = vmatprep.subr.mxu0 0.0
    %4313 = vmatpush1.msra.mxu0 0.0
    %4314 = vmatprep.subr.mxu0 0.0
    %4315 = vmatpush1.msra.mxu0 0.0
    %4316 = vmatprep.subr.mxu0 0.0
    %4317 = vmatpush1.msra.mxu0 0.0
    %4318 = vmatprep.subr.mxu0 0.0
    %4319 = vmatpush1.msra.mxu0 0.0
    %4320 = vmatprep.subr.mxu0 0.0
    %4321 = vmatpush1.msra.mxu0 0.0
    %4322 = vmatprep.mubr.f32.mxu0 0.0
    %4323 = vmatmul.mubr.f32.gmra.mrb[0].mxu0 %v4163
    %v4324 = vpop.f32.mrb[0].mxu0
    %v4325 = vadd.f32 0.0, %v4324
    %v4326 = vpop.f32.mrb[0].mxu0
    %4327 = vmatprep.mubr.f32.mxu0 0.0
    %4328 = vmatmul.mubr.f32.gmra.mrb[0].mxu0 %v4166
    %v4329 = vpop.f32.mrb[0].mxu0
    %v4330 = vadd.f32 0.0, %v4329
    %v4331 = vpop.f32.mrb[0].mxu0
    %4332 = vmatprep.mubr.f32.mxu0 0.0
    %4333 = vmatmul.mubr.f32.gmra.mrb[0].mxu0 %v4169
    %v4334 = vpop.f32.mrb[0].mxu0
    %v4335 = vadd.f32 0.0, %v4334
    %v4336 = vpop.f32.mrb[0].mxu0
    %4337 = vmatprep.mubr.f32.mxu0 0.0
    %4338 = vmatmul.mubr.f32.gmra.mrb[0].mxu0 %v4172
    %v4339 = vpop.f32.mrb[0].mxu0
    %v4340 = vadd.f32 0.0, %v4339
    %v4341 = vpop.f32.mrb[0].mxu0
    %4342 = vmatprep.mubr.f32.mxu0 0.0
    %4343 = vmatmul.mubr.f32.gmra.mrb[0].mxu0 %v4175
    %v4344 = vpop.f32.mrb[0].mxu0
    %v4345 = vadd.f32 0.0, %v4344
    %v4346 = vpop.f32.mrb[0].mxu0
    %4347 = vmatprep.mubr.f32.mxu0 0.0
    %4348 = vmatmul.mubr.f32.gmra.mrb[0].mxu0 %v4178
    %v4349 = vpop.f32.mrb[0].mxu0
    %v4350 = vadd.f32 0.0, %v4349
    %v4351 = vpop.f32.mrb[0].mxu0
    %4352 = vmatprep.mubr.f32.mxu0 0.0
    %4353 = vmatmul.mubr.f32.gmra.mrb[0].mxu0 %v4181
    %v4354 = vpop.f32.mrb[0].mxu0
    %v4355 = vadd.f32 0.0, %v4354
    %v4356 = vpop.f32.mrb[0].mxu0
    %4357 = vmatprep.mubr.f32.mxu0 0.0
    %4358 = vmatmul.mubr.f32.gmra.mrb[0].mxu0 %v4184
    %v4359 = vpop.f32.mrb[0].mxu0
    %v4360 = vadd.f32 0.0, %v4359
    %v4361 = vpop.f32.mrb[0].mxu0
    %4362 = vmatprep.mubr.f32.mxu0 0.0
    %4363 = vmatmul.mubr.f32.gmra.mrb[0].mxu0 %v4187
    %v4364 = vpop.f32.mrb[0].mxu0
    %v4365 = vadd.f32 0.0, %v4364
    %v4366 = vpop.f32.mrb[0].mxu0
    %4367 = vmatprep.mubr.f32.mxu0 0.0
    %4368 = vmatmul.mubr.f32.gmra.mrb[0].mxu0 %v4190
    %v4369 = vpop.f32.mrb[0].mxu0
    %v4370 = vadd.f32 0.0, %v4369
    %v4371 = vpop.f32.mrb[0].mxu0
    %4372 = vmatprep.mubr.f32.mxu0 0.0
    %4373 = vmatmul.mubr.f32.gmra.mrb[0].mxu0 %v4193
    %v4374 = vpop.f32.mrb[0].mxu0
    %v4375 = vadd.f32 0.0, %v4374
    %v4376 = vpop.f32.mrb[0].mxu0
    %4377 = vmatprep.mubr.f32.mxu0 0.0
    %4378 = vmatmul.mubr.f32.gmra.mrb[0].mxu0 %v4196
    %v4379 = vpop.f32.mrb[0].mxu0
    %v4380 = vadd.f32 0.0, %v4379
    %v4381 = vpop.f32.mrb[0].mxu0
    %4382 = vmatprep.mubr.f32.mxu0 0.0
    %4383 = vmatmul.mubr.f32.gmra.mrb[0].mxu0 %v4199
    %v4384 = vpop.f32.mrb[0].mxu0
    %v4385 = vadd.f32 0.0, %v4384
    %v4386 = vpop.f32.mrb[0].mxu0
    %4387 = vmatprep.mubr.f32.mxu0 0.0
    %4388 = vmatmul.mubr.f32.gmra.mrb[0].mxu0 %v4202
    %v4389 = vpop.f32.mrb[0].mxu0
    %v4390 = vadd.f32 0.0, %v4389
    %v4391 = vpop.f32.mrb[0].mxu0
    %4392 = vmatprep.mubr.f32.mxu0 0.0
    %4393 = vmatmul.mubr.f32.gmra.mrb[0].mxu0 %v4205
    %v4394 = vpop.f32.mrb[0].mxu0
    %v4395 = vadd.f32 0.0, %v4394
    %v4396 = vpop.f32.mrb[0].mxu0
    %4397 = vmatprep.mubr.f32.mxu0 0.0
    %4398 = vmatmul.mubr.f32.gmra.mrb[0].mxu0 %v4208
    %v4399 = vpop.f32.mrb[0].mxu0
    %v4400 = vadd.f32 0.0, %v4399
    %v4401 = vpop.f32.mrb[0].mxu0
    %4402 = vmatprep.mubr.f32.mxu0 0.0
    %4403 = vmatmul.mubr.f32.gmra.mrb[0].mxu0 %v4211
    %v4404 = vpop.f32.mrb[0].mxu0
    %v4405 = vadd.f32 0.0, %v4404
    %v4406 = vpop.f32.mrb[0].mxu0
    %4407 = vmatprep.mubr.f32.mxu0 0.0
    %4408 = vmatmul.mubr.f32.gmra.mrb[0].mxu0 %v4214
    %v4409 = vpop.f32.mrb[0].mxu0
    %v4410 = vadd.f32 0.0, %v4409
    %v4411 = vpop.f32.mrb[0].mxu0
    %4412 = vmatprep.mubr.f32.mxu0 0.0
    %4413 = vmatmul.mubr.f32.gmra.mrb[0].mxu0 %v4217
    %v4414 = vpop.f32.mrb[0].mxu0
    %v4415 = vadd.f32 0.0, %v4414
    %v4416 = vpop.f32.mrb[0].mxu0
    %4417 = vmatprep.mubr.f32.mxu0 0.0
    %4418 = vmatmul.mubr.f32.gmra.mrb[0].mxu0 %v4220
    %v4419 = vpop.f32.mrb[0].mxu0
    %v4420 = vadd.f32 0.0, %v4419
    %v4421 = vpop.f32.mrb[0].mxu0
    %4422 = vmatprep.mubr.f32.mxu0 0.0
    %4423 = vmatmul.mubr.f32.gmra.mrb[0].mxu0 %v4223
    %v4424 = vpop.f32.mrb[0].mxu0
    %v4425 = vadd.f32 0.0, %v4424
    %v4426 = vpop.f32.mrb[0].mxu0
    %4427 = vmatprep.mubr.f32.mxu0 0.0
    %4428 = vmatmul.mubr.f32.gmra.mrb[0].mxu0 %v4226
    %v4429 = vpop.f32.mrb[0].mxu0
    %v4430 = vadd.f32 0.0, %v4429
    %v4431 = vpop.f32.mrb[0].mxu0
    %4432 = vmatprep.mubr.f32.mxu0 0.0
    %4433 = vmatmul.mubr.f32.gmra.mrb[0].mxu0 %v4229
    %v4434 = vpop.f32.mrb[0].mxu0
    %v4435 = vadd.f32 0.0, %v4434
    %v4436 = vpop.f32.mrb[0].mxu0
    %4437 = vmatprep.mubr.f32.mxu0 0.0
    %4438 = vmatmul.mubr.f32.gmra.mrb[0].mxu0 %v4232
    %v4439 = vpop.f32.mrb[0].mxu0
    %v4440 = vadd.f32 0.0, %v4439
    %v4441 = vpop.f32.mrb[0].mxu0
    %4442 = vmatprep.mubr.f32.mxu0 0.0
    %4443 = vmatmul.mubr.f32.gmra.mrb[0].mxu0 %v4235
    %v4444 = vpop.f32.mrb[0].mxu0
    %v4445 = vadd.f32 0.0, %v4444
    %v4446 = vpop.f32.mrb[0].mxu0
    %4447 = vmatprep.mubr.f32.mxu0 0.0
    %4448 = vmatmul.mubr.f32.gmra.mrb[0].mxu0 %v4238
    %v4449 = vpop.f32.mrb[0].mxu0
    %v4450 = vadd.f32 0.0, %v4449
    %v4451 = vpop.f32.mrb[0].mxu0
    %4452 = vmatprep.mubr.f32.mxu0 0.0
    %4453 = vmatmul.mubr.f32.gmra.mrb[0].mxu0 %v4241
    %v4454 = vpop.f32.mrb[0].mxu0
    %v4455 = vadd.f32 0.0, %v4454
    %v4456 = vpop.f32.mrb[0].mxu0
    %4457 = vmatprep.mubr.f32.mxu0 0.0
    %4458 = vmatmul.mubr.f32.gmra.mrb[0].mxu0 %v4244
    %v4459 = vpop.f32.mrb[0].mxu0
    %v4460 = vadd.f32 0.0, %v4459
    %v4461 = vpop.f32.mrb[0].mxu0
    %4462 = vmatprep.mubr.f32.mxu0 0.0
    %4463 = vmatmul.mubr.f32.gmra.mrb[0].mxu0 %v4247
    %v4464 = vpop.f32.mrb[0].mxu0
    %v4465 = vadd.f32 0.0, %v4464
    %v4466 = vpop.f32.mrb[0].mxu0
    %4467 = vmatprep.mubr.f32.mxu0 0.0
    %4468 = vmatmul.mubr.f32.gmra.mrb[0].mxu0 %v4250
    %v4469 = vpop.f32.mrb[0].mxu0
    %v4470 = vadd.f32 0.0, %v4469
    %v4471 = vpop.f32.mrb[0].mxu0
    %4472 = vmatprep.mubr.f32.mxu0 0.0
    %4473 = vmatmul.mubr.f32.gmra.mrb[0].mxu0 %v4253
    %v4474 = vpop.f32.mrb[0].mxu0
    %v4475 = vadd.f32 0.0, %v4474
    %v4476 = vpop.f32.mrb[0].mxu0
    %4477 = vmatprep.mubr.f32.mxu0 0.0
    %4478 = vmatmul.mubr.f32.gmra.mrb[0].mxu0 %v4256
    %v4479 = vpop.f32.mrb[0].mxu0
    %v4480 = vadd.f32 0.0, %v4479
    %v4481 = vpop.f32.mrb[0].mxu0
    %4482 = vdwg.mxu0
    %4483 = vmatprep.subr.mxu0 0.0
    %4484 = vmatpush1.msra.mxu0 %v4099
    %4485 = vmatprep.subr.mxu0 0.0
    %4486 = vmatpush1.msra.mxu0 %v4102
    %4487 = vmatprep.subr.mxu0 0.0
    %4488 = vmatpush1.msra.mxu0 %v4107
    %4489 = vmatprep.subr.mxu0 0.0
    %4490 = vmatpush1.msra.mxu0 %v4110
    %4491 = vmatprep.subr.mxu0 0.0
    %4492 = vmatpush1.msra.mxu0 %v4115
    %4493 = vmatprep.subr.mxu0 0.0
    %4494 = vmatpush1.msra.mxu0 %v4118
    %4495 = vmatprep.subr.mxu0 0.0
    %4496 = vmatpush1.msra.mxu0 %v4123
    %4497 = vmatprep.subr.mxu0 0.0
    %4498 = vmatpush1.msra.mxu0 %v4126
    %4499 = vmatprep.subr.mxu0 0.0
    %4500 = vmatpush1.msra.mxu0 0.0
    %4501 = vmatprep.subr.mxu0 0.0
    %4502 = vmatpush1.msra.mxu0 0.0
    %4503 = vmatprep.subr.mxu0 0.0
    %4504 = vmatpush1.msra.mxu0 0.0
    %4505 = vmatprep.subr.mxu0 0.0
    %4506 = vmatpush1.msra.mxu0 0.0
    %4507 = vmatprep.subr.mxu0 0.0
    %4508 = vmatpush1.msra.mxu0 0.0
    %4509 = vmatprep.subr.mxu0 0.0
    %4510 = vmatpush1.msra.mxu0 0.0
    %4511 = vmatprep.subr.mxu0 0.0
    %4512 = vmatpush1.msra.mxu0 0.0
    %4513 = vmatprep.subr.mxu0 0.0
    %4514 = vmatpush1.msra.mxu0 0.0
    %4515 = vmatprep.subr.mxu0 0.0
    %4516 = vmatpush1.msra.mxu0 0.0
    %4517 = vmatprep.subr.mxu0 0.0
    %4518 = vmatpush1.msra.mxu0 0.0
    %4519 = vmatprep.subr.mxu0 0.0
    %4520 = vmatpush1.msra.mxu0 0.0
    %4521 = vmatprep.subr.mxu0 0.0
    %4522 = vmatpush1.msra.mxu0 0.0
    %4523 = vmatprep.subr.mxu0 0.0
    %4524 = vmatpush1.msra.mxu0 0.0
    %4525 = vmatprep.subr.mxu0 0.0
    %4526 = vmatpush1.msra.mxu0 0.0
    %4527 = vmatprep.subr.mxu0 0.0
    %4528 = vmatpush1.msra.mxu0 0.0
    %4529 = vmatprep.subr.mxu0 0.0
    %4530 = vmatpush1.msra.mxu0 0.0
    %4531 = vmatprep.subr.mxu0 0.0
    %4532 = vmatpush1.msra.mxu0 0.0
    %4533 = vmatprep.subr.mxu0 0.0
    %4534 = vmatpush1.msra.mxu0 0.0
    %4535 = vmatprep.subr.mxu0 0.0
    %4536 = vmatpush1.msra.mxu0 0.0
    %4537 = vmatprep.subr.mxu0 0.0
    %4538 = vmatpush1.msra.mxu0 0.0
    %4539 = vmatprep.subr.mxu0 0.0
    %4540 = vmatpush1.msra.mxu0 0.0
    %4541 = vmatprep.subr.mxu0 0.0
    %4542 = vmatpush1.msra.mxu0 0.0
    %4543 = vmatprep.subr.mxu0 0.0
    %4544 = vmatpush1.msra.mxu0 0.0
    %4545 = vmatprep.subr.mxu0 0.0
    %4546 = vmatpush1.msra.mxu0 0.0
    %4547 = vmatprep.mubr.f32.mxu0 0.0
    %4548 = vmatmul.mubr.f32.gmra.mrb[0].mxu0 %v4163
    %v4549 = vpop.f32.mrb[0].mxu0
    %v4550 = vadd.f32 0.0, %v4549
    %v4551 = vpop.f32.mrb[0].mxu0
    %4552 = vmatprep.mubr.f32.mxu0 0.0
    %4553 = vmatmul.mubr.f32.gmra.mrb[0].mxu0 %v4166
    %v4554 = vpop.f32.mrb[0].mxu0
    %v4555 = vadd.f32 0.0, %v4554
    %v4556 = vpop.f32.mrb[0].mxu0
    %4557 = vmatprep.mubr.f32.mxu0 0.0
    %4558 = vmatmul.mubr.f32.gmra.mrb[0].mxu0 %v4169
    %v4559 = vpop.f32.mrb[0].mxu0
    %v4560 = vadd.f32 0.0, %v4559
    %v4561 = vpop.f32.mrb[0].mxu0
    %4562 = vmatprep.mubr.f32.mxu0 0.0
    %4563 = vmatmul.mubr.f32.gmra.mrb[0].mxu0 %v4172
    %v4564 = vpop.f32.mrb[0].mxu0
    %v4565 = vadd.f32 0.0, %v4564
    %v4566 = vpop.f32.mrb[0].mxu0
    %4567 = vmatprep.mubr.f32.mxu0 0.0
    %4568 = vmatmul.mubr.f32.gmra.mrb[0].mxu0 %v4175
    %v4569 = vpop.f32.mrb[0].mxu0
    %v4570 = vadd.f32 0.0, %v4569
    %v4571 = vpop.f32.mrb[0].mxu0
    %4572 = vmatprep.mubr.f32.mxu0 0.0
    %4573 = vmatmul.mubr.f32.gmra.mrb[0].mxu0 %v4178
    %v4574 = vpop.f32.mrb[0].mxu0
    %v4575 = vadd.f32 0.0, %v4574
    %v4576 = vpop.f32.mrb[0].mxu0
    %4577 = vmatprep.mubr.f32.mxu0 0.0
    %4578 = vmatmul.mubr.f32.gmra.mrb[0].mxu0 %v4181
    %v4579 = vpop.f32.mrb[0].mxu0
    %v4580 = vadd.f32 0.0, %v4579
    %v4581 = vpop.f32.mrb[0].mxu0
    %4582 = vmatprep.mubr.f32.mxu0 0.0
    %4583 = vmatmul.mubr.f32.gmra.mrb[0].mxu0 %v4184
    %v4584 = vpop.f32.mrb[0].mxu0
    %v4585 = vadd.f32 0.0, %v4584
    %v4586 = vpop.f32.mrb[0].mxu0
    %4587 = vmatprep.mubr.f32.mxu0 0.0
    %4588 = vmatmul.mubr.f32.gmra.mrb[0].mxu0 %v4187
    %v4589 = vpop.f32.mrb[0].mxu0
    %v4590 = vadd.f32 0.0, %v4589
    %v4591 = vpop.f32.mrb[0].mxu0
    %4592 = vmatprep.mubr.f32.mxu0 0.0
    %4593 = vmatmul.mubr.f32.gmra.mrb[0].mxu0 %v4190
    %v4594 = vpop.f32.mrb[0].mxu0
    %v4595 = vadd.f32 0.0, %v4594
    %v4596 = vpop.f32.mrb[0].mxu0
    %4597 = vmatprep.mubr.f32.mxu0 0.0
    %4598 = vmatmul.mubr.f32.gmra.mrb[0].mxu0 %v4193
    %v4599 = vpop.f32.mrb[0].mxu0
    %v4600 = vadd.f32 0.0, %v4599
    %v4601 = vpop.f32.mrb[0].mxu0
    %4602 = vmatprep.mubr.f32.mxu0 0.0
    %4603 = vmatmul.mubr.f32.gmra.mrb[0].mxu0 %v4196
    %v4604 = vpop.f32.mrb[0].mxu0
    %v4605 = vadd.f32 0.0, %v4604
    %v4606 = vpop.f32.mrb[0].mxu0
    %4607 = vmatprep.mubr.f32.mxu0 0.0
    %4608 = vmatmul.mubr.f32.gmra.mrb[0].mxu0 %v4199
    %v4609 = vpop.f32.mrb[0].mxu0
    %v4610 = vadd.f32 0.0, %v4609
    %v4611 = vpop.f32.mrb[0].mxu0
    %4612 = vmatprep.mubr.f32.mxu0 0.0
    %4613 = vmatmul.mubr.f32.gmra.mrb[0].mxu0 %v4202
    %v4614 = vpop.f32.mrb[0].mxu0
    %v4615 = vadd.f32 0.0, %v4614
    %v4616 = vpop.f32.mrb[0].mxu0
    %4617 = vmatprep.mubr.f32.mxu0 0.0
    %4618 = vmatmul.mubr.f32.gmra.mrb[0].mxu0 %v4205
    %v4619 = vpop.f32.mrb[0].mxu0
    %v4620 = vadd.f32 0.0, %v4619
    %v4621 = vpop.f32.mrb[0].mxu0
    %4622 = vmatprep.mubr.f32.mxu0 0.0
    %4623 = vmatmul.mubr.f32.gmra.mrb[0].mxu0 %v4208
    %v4624 = vpop.f32.mrb[0].mxu0
    %v4625 = vadd.f32 0.0, %v4624
    %v4626 = vpop.f32.mrb[0].mxu0
    %4627 = vmatprep.mubr.f32.mxu0 0.0
    %4628 = vmatmul.mubr.f32.gmra.mrb[0].mxu0 %v4211
    %v4629 = vpop.f32.mrb[0].mxu0
    %v4630 = vadd.f32 0.0, %v4629
    %v4631 = vpop.f32.mrb[0].mxu0
    %4632 = vmatprep.mubr.f32.mxu0 0.0
    %4633 = vmatmul.mubr.f32.gmra.mrb[0].mxu0 %v4214
    %v4634 = vpop.f32.mrb[0].mxu0
    %v4635 = vadd.f32 0.0, %v4634
    %v4636 = vpop.f32.mrb[0].mxu0
    %4637 = vmatprep.mubr.f32.mxu0 0.0
    %4638 = vmatmul.mubr.f32.gmra.mrb[0].mxu0 %v4217
    %v4639 = vpop.f32.mrb[0].mxu0
    %v4640 = vadd.f32 0.0, %v4639
    %v4641 = vpop.f32.mrb[0].mxu0
    %4642 = vmatprep.mubr.f32.mxu0 0.0
    %4643 = vmatmul.mubr.f32.gmra.mrb[0].mxu0 %v4220
    %v4644 = vpop.f32.mrb[0].mxu0
    %v4645 = vadd.f32 0.0, %v4644
    %v4646 = vpop.f32.mrb[0].mxu0
    %4647 = vmatprep.mubr.f32.mxu0 0.0
    %4648 = vmatmul.mubr.f32.gmra.mrb[0].mxu0 %v4223
    %v4649 = vpop.f32.mrb[0].mxu0
    %v4650 = vadd.f32 0.0, %v4649
    %v4651 = vpop.f32.mrb[0].mxu0
    %4652 = vmatprep.mubr.f32.mxu0 0.0
    %4653 = vmatmul.mubr.f32.gmra.mrb[0].mxu0 %v4226
    %v4654 = vpop.f32.mrb[0].mxu0
    %v4655 = vadd.f32 0.0, %v4654
    %v4656 = vpop.f32.mrb[0].mxu0
    %4657 = vmatprep.mubr.f32.mxu0 0.0
    %4658 = vmatmul.mubr.f32.gmra.mrb[0].mxu0 %v4229
    %v4659 = vpop.f32.mrb[0].mxu0
    %v4660 = vadd.f32 0.0, %v4659
    %v4661 = vpop.f32.mrb[0].mxu0
    %4662 = vmatprep.mubr.f32.mxu0 0.0
    %4663 = vmatmul.mubr.f32.gmra.mrb[0].mxu0 %v4232
    %v4664 = vpop.f32.mrb[0].mxu0
    %v4665 = vadd.f32 0.0, %v4664
    %v4666 = vpop.f32.mrb[0].mxu0
    %4667 = vmatprep.mubr.f32.mxu0 0.0
    %4668 = vmatmul.mubr.f32.gmra.mrb[0].mxu0 %v4235
    %v4669 = vpop.f32.mrb[0].mxu0
    %v4670 = vadd.f32 0.0, %v4669
    %v4671 = vpop.f32.mrb[0].mxu0
    %4672 = vmatprep.mubr.f32.mxu0 0.0
    %4673 = vmatmul.mubr.f32.gmra.mrb[0].mxu0 %v4238
    %v4674 = vpop.f32.mrb[0].mxu0
    %v4675 = vadd.f32 0.0, %v4674
    %v4676 = vpop.f32.mrb[0].mxu0
    %4677 = vmatprep.mubr.f32.mxu0 0.0
    %4678 = vmatmul.mubr.f32.gmra.mrb[0].mxu0 %v4241
    %v4679 = vpop.f32.mrb[0].mxu0
    %v4680 = vadd.f32 0.0, %v4679
    %v4681 = vpop.f32.mrb[0].mxu0
    %4682 = vmatprep.mubr.f32.mxu0 0.0
    %4683 = vmatmul.mubr.f32.gmra.mrb[0].mxu0 %v4244
    %v4684 = vpop.f32.mrb[0].mxu0
    %v4685 = vadd.f32 0.0, %v4684
    %v4686 = vpop.f32.mrb[0].mxu0
    %4687 = vmatprep.mubr.f32.mxu0 0.0
    %4688 = vmatmul.mubr.f32.gmra.mrb[0].mxu0 %v4247
    %v4689 = vpop.f32.mrb[0].mxu0
    %v4690 = vadd.f32 0.0, %v4689
    %v4691 = vpop.f32.mrb[0].mxu0
    %4692 = vmatprep.mubr.f32.mxu0 0.0
    %4693 = vmatmul.mubr.f32.gmra.mrb[0].mxu0 %v4250
    %v4694 = vpop.f32.mrb[0].mxu0
    %v4695 = vadd.f32 0.0, %v4694
    %v4696 = vpop.f32.mrb[0].mxu0
    %4697 = vmatprep.mubr.f32.mxu0 0.0
    %4698 = vmatmul.mubr.f32.gmra.mrb[0].mxu0 %v4253
    %v4699 = vpop.f32.mrb[0].mxu0
    %v4700 = vadd.f32 0.0, %v4699
    %v4701 = vpop.f32.mrb[0].mxu0
    %4702 = vmatprep.mubr.f32.mxu0 0.0
    %4703 = vmatmul.mubr.f32.gmra.mrb[0].mxu0 %v4256
    %v4704 = vpop.f32.mrb[0].mxu0
    %v4705 = vadd.f32 0.0, %v4704
    %v4706 = vpop.f32.mrb[0].mxu0
    %4707 = vdwg.mxu0
    %v4708 = vld [vmem:[#allocation2] sm:$0xff]
    %v4709 = vld [vmem:[#allocation2 + $0x8] sm:$0xff]
    %v4710 = vld [vmem:[#allocation2 + $0x10] sm:$0xff]
    %v4711 = vld [vmem:[#allocation2 + $0x18] sm:$0xff]
    %v4712 = vld [vmem:[#allocation2 + $0x20] sm:$0xff]
    %v4713 = vld [vmem:[#allocation2 + $0x28] sm:$0xff]
    %v4714 = vld [vmem:[#allocation2 + $0x30] sm:$0xff]
    %v4715 = vld [vmem:[#allocation2 + $0x38] sm:$0xff]
    %v4716 = vld [vmem:[#allocation2 + $0x40] sm:$0xff]
    %v4717 = vld [vmem:[#allocation2 + $0x48] sm:$0xff]
    %v4718 = vld [vmem:[#allocation2 + $0x50] sm:$0xff]
    %v4719 = vld [vmem:[#allocation2 + $0x58] sm:$0xff]
    %v4720 = vld [vmem:[#allocation2 + $0x60] sm:$0xff]
    %v4721 = vld [vmem:[#allocation2 + $0x68] sm:$0xff]
    %v4722 = vld [vmem:[#allocation2 + $0x70] sm:$0xff]
    %v4723 = vld [vmem:[#allocation2 + $0x78] sm:$0xff]
    %v4724 = vld [vmem:[#allocation2 + $0x80] sm:$0xff]
    %v4725 = vld [vmem:[#allocation2 + $0x88] sm:$0xff]
    %v4726 = vld [vmem:[#allocation2 + $0x90] sm:$0xff]
    %v4727 = vld [vmem:[#allocation2 + $0x98] sm:$0xff]
    %v4728 = vld [vmem:[#allocation2 + $0xa0] sm:$0xff]
    %v4729 = vld [vmem:[#allocation2 + $0xa8] sm:$0xff]
    %v4730 = vld [vmem:[#allocation2 + $0xb0] sm:$0xff]
    %v4731 = vld [vmem:[#allocation2 + $0xb8] sm:$0xff]
    %v4732 = vld [vmem:[#allocation2 + $0xc0] sm:$0xff]
    %v4733 = vld [vmem:[#allocation2 + $0xc8] sm:$0xff]
    %v4734 = vld [vmem:[#allocation2 + $0xd0] sm:$0xff]
    %v4735 = vld [vmem:[#allocation2 + $0xd8] sm:$0xff]
    %v4736 = vld [vmem:[#allocation2 + $0xe0] sm:$0xff]
    %v4737 = vld [vmem:[#allocation2 + $0xe8] sm:$0xff]
    %v4738 = vld [vmem:[#allocation2 + $0xf0] sm:$0xff]
    %v4739 = vld [vmem:[#allocation2 + $0xf8] sm:$0xff]
    %v4740 = vld [vmem:[#allocation2 + $0x100] sm:$0xff]
    %v4741 = vld [vmem:[#allocation2 + $0x108] sm:$0xff]
    %v4742 = vld [vmem:[#allocation2 + $0x110] sm:$0xff]
    %v4743 = vld [vmem:[#allocation2 + $0x118] sm:$0xff]
    %v4744 = vld [vmem:[#allocation2 + $0x120] sm:$0xff]
    %v4745 = vld [vmem:[#allocation2 + $0x128] sm:$0xff]
    %v4746 = vld [vmem:[#allocation2 + $0x130] sm:$0xff]
    %v4747 = vld [vmem:[#allocation2 + $0x138] sm:$0xff]
    %v4748 = vld [vmem:[#allocation2 + $0x140] sm:$0xff]
    %v4749 = vld [vmem:[#allocation2 + $0x148] sm:$0xff]
    %v4750 = vld [vmem:[#allocation2 + $0x150] sm:$0xff]
    %v4751 = vld [vmem:[#allocation2 + $0x158] sm:$0xff]
    %v4752 = vld [vmem:[#allocation2 + $0x160] sm:$0xff]
    %v4753 = vld [vmem:[#allocation2 + $0x168] sm:$0xff]
    %v4754 = vld [vmem:[#allocation2 + $0x170] sm:$0xff]
    %v4755 = vld [vmem:[#allocation2 + $0x178] sm:$0xff]
    %v4756 = vld [vmem:[#allocation2 + $0x180] sm:$0xff]
    %v4757 = vld [vmem:[#allocation2 + $0x188] sm:$0xff]
    %v4758 = vld [vmem:[#allocation2 + $0x190] sm:$0xff]
    %v4759 = vld [vmem:[#allocation2 + $0x198] sm:$0xff]
    %v4760 = vld [vmem:[#allocation2 + $0x1a0] sm:$0xff]
    %v4761 = vld [vmem:[#allocation2 + $0x1a8] sm:$0xff]
    %v4762 = vld [vmem:[#allocation2 + $0x1b0] sm:$0xff]
    %v4763 = vld [vmem:[#allocation2 + $0x1b8] sm:$0xff]
    %v4764 = vld [vmem:[#allocation2 + $0x1c0] sm:$0xff]
    %v4765 = vld [vmem:[#allocation2 + $0x1c8] sm:$0xff]
    %v4766 = vld [vmem:[#allocation2 + $0x1d0] sm:$0xff]
    %v4767 = vld [vmem:[#allocation2 + $0x1d8] sm:$0xff]
    %v4768 = vld [vmem:[#allocation2 + $0x1e0] sm:$0xff]
    %v4769 = vld [vmem:[#allocation2 + $0x1e8] sm:$0xff]
    %v4770 = vld [vmem:[#allocation2 + $0x1f0] sm:$0xff]
    %v4771 = vld [vmem:[#allocation2 + $0x1f8] sm:$0xff]
    %v4772 = vld [vmem:[#allocation2 + $0x200] sm:$0xff]
    %v4773 = vld [vmem:[#allocation2 + $0x208] sm:$0xff]
    %v4774 = vld [vmem:[#allocation2 + $0x210] sm:$0xff]
    %v4775 = vld [vmem:[#allocation2 + $0x218] sm:$0xff]
    %v4776 = vld [vmem:[#allocation2 + $0x220] sm:$0xff]
    %v4777 = vld [vmem:[#allocation2 + $0x228] sm:$0xff]
    %v4778 = vld [vmem:[#allocation2 + $0x230] sm:$0xff]
    %v4779 = vld [vmem:[#allocation2 + $0x238] sm:$0xff]
    %v4780 = vld [vmem:[#allocation2 + $0x240] sm:$0xff]
    %v4781 = vld [vmem:[#allocation2 + $0x248] sm:$0xff]
    %v4782 = vld [vmem:[#allocation2 + $0x250] sm:$0xff]
    %v4783 = vld [vmem:[#allocation2 + $0x258] sm:$0xff]
    %v4784 = vld [vmem:[#allocation2 + $0x260] sm:$0xff]
    %v4785 = vld [vmem:[#allocation2 + $0x268] sm:$0xff]
    %v4786 = vld [vmem:[#allocation2 + $0x270] sm:$0xff]
    %v4787 = vld [vmem:[#allocation2 + $0x278] sm:$0xff]
    %v4788 = vld [vmem:[#allocation2 + $0x280] sm:$0xff]
    %v4789 = vld [vmem:[#allocation2 + $0x288] sm:$0xff]
    %v4790 = vld [vmem:[#allocation2 + $0x290] sm:$0xff]
    %v4791 = vld [vmem:[#allocation2 + $0x298] sm:$0xff]
    %v4792 = vld [vmem:[#allocation2 + $0x2a0] sm:$0xff]
    %v4793 = vld [vmem:[#allocation2 + $0x2a8] sm:$0xff]
    %v4794 = vld [vmem:[#allocation2 + $0x2b0] sm:$0xff]
    %v4795 = vld [vmem:[#allocation2 + $0x2b8] sm:$0xff]
    %v4796 = vld [vmem:[#allocation2 + $0x2c0] sm:$0xff]
    %v4797 = vld [vmem:[#allocation2 + $0x2c8] sm:$0xff]
    %v4798 = vld [vmem:[#allocation2 + $0x2d0] sm:$0xff]
    %v4799 = vld [vmem:[#allocation2 + $0x2d8] sm:$0xff]
    %v4800 = vld [vmem:[#allocation2 + $0x2e0] sm:$0xff]
    %v4801 = vld [vmem:[#allocation2 + $0x2e8] sm:$0xff]
    %v4802 = vld [vmem:[#allocation2 + $0x2f0] sm:$0xff]
    %v4803 = vld [vmem:[#allocation2 + $0x2f8] sm:$0xff]
    %v4804 = vld [vmem:[#allocation2 + $0x300] sm:$0xff]
    %v4805 = vld [vmem:[#allocation2 + $0x308] sm:$0xff]
    %v4806 = vld [vmem:[#allocation2 + $0x310] sm:$0xff]
    %v4807 = vld [vmem:[#allocation2 + $0x318] sm:$0xff]
    %v4808 = vld [vmem:[#allocation2 + $0x320] sm:$0xff]
    %v4809 = vld [vmem:[#allocation2 + $0x328] sm:$0xff]
    %v4810 = vld [vmem:[#allocation2 + $0x330] sm:$0xff]
    %v4811 = vld [vmem:[#allocation2 + $0x338] sm:$0xff]
    %v4812 = vld [vmem:[#allocation2 + $0x340] sm:$0xff]
    %v4813 = vld [vmem:[#allocation2 + $0x348] sm:$0xff]
    %v4814 = vld [vmem:[#allocation2 + $0x350] sm:$0xff]
    %v4815 = vld [vmem:[#allocation2 + $0x358] sm:$0xff]
    %v4816 = vld [vmem:[#allocation2 + $0x360] sm:$0xff]
    %v4817 = vld [vmem:[#allocation2 + $0x368] sm:$0xff]
    %v4818 = vld [vmem:[#allocation2 + $0x370] sm:$0xff]
    %v4819 = vld [vmem:[#allocation2 + $0x378] sm:$0xff]
    %v4820 = vld [vmem:[#allocation2 + $0x380] sm:$0xff]
    %v4821 = vld [vmem:[#allocation2 + $0x388] sm:$0xff]
    %v4822 = vld [vmem:[#allocation2 + $0x390] sm:$0xff]
    %v4823 = vld [vmem:[#allocation2 + $0x398] sm:$0xff]
    %v4824 = vld [vmem:[#allocation2 + $0x3a0] sm:$0xff]
    %v4825 = vld [vmem:[#allocation2 + $0x3a8] sm:$0xff]
    %v4826 = vld [vmem:[#allocation2 + $0x3b0] sm:$0xff]
    %v4827 = vld [vmem:[#allocation2 + $0x3b8] sm:$0xff]
    %v4828 = vld [vmem:[#allocation2 + $0x3c0] sm:$0xff]
    %v4829 = vld [vmem:[#allocation2 + $0x3c8] sm:$0xff]
    %v4830 = vld [vmem:[#allocation2 + $0x3d0] sm:$0xff]
    %v4831 = vld [vmem:[#allocation2 + $0x3d8] sm:$0xff]
    %v4832 = vld [vmem:[#allocation2 + $0x3e0] sm:$0xff]
    %v4833 = vld [vmem:[#allocation2 + $0x3e8] sm:$0xff]
    %v4834 = vld [vmem:[#allocation2 + $0x3f0] sm:$0xff]
    %v4835 = vld [vmem:[#allocation2 + $0x3f8] sm:$0xff]
    %v4836 = vpack.c.bf16 %v4710, %v4708
    %v4837 = vpack.c.bf16 %v4711, %v4709
    %v4838 = vpack.c.bf16 %v4714, %v4712
    %v4839 = vpack.c.bf16 %v4715, %v4713
    %v4840 = vpack.c.bf16 %v4718, %v4716
    %v4841 = vpack.c.bf16 %v4719, %v4717
    %v4842 = vpack.c.bf16 %v4722, %v4720
    %v4843 = vpack.c.bf16 %v4723, %v4721
    %v4844 = vpack.c.bf16 %v4726, %v4724
    %v4845 = vpack.c.bf16 %v4727, %v4725
    %v4846 = vpack.c.bf16 %v4730, %v4728
    %v4847 = vpack.c.bf16 %v4731, %v4729
    %v4848 = vpack.c.bf16 %v4734, %v4732
    %v4849 = vpack.c.bf16 %v4735, %v4733
    %v4850 = vpack.c.bf16 %v4738, %v4736
    %v4851 = vpack.c.bf16 %v4739, %v4737
    %v4852 = vpack.c.bf16 %v4742, %v4740
    %v4853 = vpack.c.bf16 %v4743, %v4741
    %v4854 = vpack.c.bf16 %v4746, %v4744
    %v4855 = vpack.c.bf16 %v4747, %v4745
    %v4856 = vpack.c.bf16 %v4750, %v4748
    %v4857 = vpack.c.bf16 %v4751, %v4749
    %v4858 = vpack.c.bf16 %v4754, %v4752
    %v4859 = vpack.c.bf16 %v4755, %v4753
    %v4860 = vpack.c.bf16 %v4758, %v4756
    %v4861 = vpack.c.bf16 %v4759, %v4757
    %v4862 = vpack.c.bf16 %v4762, %v4760
    %v4863 = vpack.c.bf16 %v4763, %v4761
    %v4864 = vpack.c.bf16 %v4766, %v4764
    %v4865 = vpack.c.bf16 %v4767, %v4765
    %v4866 = vpack.c.bf16 %v4770, %v4768
    %v4867 = vpack.c.bf16 %v4771, %v4769
    %v4868 = vpack.c.bf16 %v4774, %v4772
    %v4869 = vpack.c.bf16 %v4775, %v4773
    %v4870 = vpack.c.bf16 %v4778, %v4776
    %v4871 = vpack.c.bf16 %v4779, %v4777
    %v4872 = vpack.c.bf16 %v4782, %v4780
    %v4873 = vpack.c.bf16 %v4783, %v4781
    %v4874 = vpack.c.bf16 %v4786, %v4784
    %v4875 = vpack.c.bf16 %v4787, %v4785
    %v4876 = vpack.c.bf16 %v4790, %v4788
    %v4877 = vpack.c.bf16 %v4791, %v4789
    %v4878 = vpack.c.bf16 %v4794, %v4792
    %v4879 = vpack.c.bf16 %v4795, %v4793
    %v4880 = vpack.c.bf16 %v4798, %v4796
    %v4881 = vpack.c.bf16 %v4799, %v4797
    %v4882 = vpack.c.bf16 %v4802, %v4800
    %v4883 = vpack.c.bf16 %v4803, %v4801
    %v4884 = vpack.c.bf16 %v4806, %v4804
    %v4885 = vpack.c.bf16 %v4807, %v4805
    %v4886 = vpack.c.bf16 %v4810, %v4808
    %v4887 = vpack.c.bf16 %v4811, %v4809
    %v4888 = vpack.c.bf16 %v4814, %v4812
    %v4889 = vpack.c.bf16 %v4815, %v4813
    %v4890 = vpack.c.bf16 %v4818, %v4816
    %v4891 = vpack.c.bf16 %v4819, %v4817
    %v4892 = vpack.c.bf16 %v4822, %v4820
    %v4893 = vpack.c.bf16 %v4823, %v4821
    %v4894 = vpack.c.bf16 %v4826, %v4824
    %v4895 = vpack.c.bf16 %v4827, %v4825
    %v4896 = vpack.c.bf16 %v4830, %v4828
    %v4897 = vpack.c.bf16 %v4831, %v4829
    %v4898 = vpack.c.bf16 %v4834, %v4832
    %v4899 = vpack.c.bf16 %v4835, %v4833
    %v4900 = vld [vmem:[%s23] sm:$0xf]
    %v4901 = vld [vmem:[%s23 + $0x4] sm:$0xf]
    %v4902 = vld [vmem:[%s23 + $0x8] sm:$0xf]
    %v4903 = vld [vmem:[%s23 + $0xc] sm:$0xf]
    %v4904 = vld [vmem:[%s23 + $0x10] sm:$0xf]
    %v4905 = vld [vmem:[%s23 + $0x14] sm:$0xf]
    %v4906 = vld [vmem:[%s23 + $0x18] sm:$0xf]
    %v4907 = vld [vmem:[%s23 + $0x1c] sm:$0xf]
    %v4908 = vld [vmem:[%s23 + $0x20] sm:$0xf]
    %v4909 = vld [vmem:[%s23 + $0x24] sm:$0xf]
    %v4910 = vld [vmem:[%s23 + $0x28] sm:$0xf]
    %v4911 = vld [vmem:[%s23 + $0x2c] sm:$0xf]
    %v4912 = vld [vmem:[%s23 + $0x30] sm:$0xf]
    %v4913 = vld [vmem:[%s23 + $0x34] sm:$0xf]
    %v4914 = vld [vmem:[%s23 + $0x38] sm:$0xf]
    %v4915 = vld [vmem:[%s23 + $0x3c] sm:$0xf]
    %v4916 = vld [vmem:[%s23 + $0x40] sm:$0xf]
    %v4917 = vld [vmem:[%s23 + $0x44] sm:$0xf]
    %v4918 = vld [vmem:[%s23 + $0x48] sm:$0xf]
    %v4919 = vld [vmem:[%s23 + $0x4c] sm:$0xf]
    %v4920 = vld [vmem:[%s23 + $0x50] sm:$0xf]
    %v4921 = vld [vmem:[%s23 + $0x54] sm:$0xf]
    %v4922 = vld [vmem:[%s23 + $0x58] sm:$0xf]
    %v4923 = vld [vmem:[%s23 + $0x5c] sm:$0xf]
    %v4924 = vld [vmem:[%s23 + $0x60] sm:$0xf]
    %v4925 = vld [vmem:[%s23 + $0x64] sm:$0xf]
    %v4926 = vld [vmem:[%s23 + $0x68] sm:$0xf]
    %v4927 = vld [vmem:[%s23 + $0x6c] sm:$0xf]
    %v4928 = vld [vmem:[%s23 + $0x70] sm:$0xf]
    %v4929 = vld [vmem:[%s23 + $0x74] sm:$0xf]
    %v4930 = vld [vmem:[%s23 + $0x78] sm:$0xf]
    %v4931 = vld [vmem:[%s23 + $0x7c] sm:$0xf]
    %v4932 = vld [vmem:[%s25] sm:$0x1]
    %v4934 = vlaneseq
    %v4935 = vshrl.u32 %v4934, 7
    %v4936 = vsub.s32 0, %v4935
    %v4937 = vrot.slane %v4932, %v4936
    %v4971 = vunpack.c.l.b16 %v4900
    %v4972 = vunpack.c.l.b16 %v4901
    %v4973 = vunpack.c.l.b16 %v4902
    %v4974 = vunpack.c.l.b16 %v4903
    %v4975 = vunpack.c.l.b16 %v4904
    %v4976 = vunpack.c.l.b16 %v4905
    %v4977 = vunpack.c.l.b16 %v4906
    %v4978 = vunpack.c.l.b16 %v4907
    %v4979 = vunpack.c.l.b16 %v4908
    %v4980 = vunpack.c.l.b16 %v4909
    %v4981 = vunpack.c.l.b16 %v4910
    %v4982 = vunpack.c.l.b16 %v4911
    %v4983 = vunpack.c.l.b16 %v4912
    %v4984 = vunpack.c.l.b16 %v4913
    %v4985 = vunpack.c.l.b16 %v4914
    %v4986 = vunpack.c.l.b16 %v4915
    %v4987 = vunpack.c.l.b16 %v4916
    %v4988 = vunpack.c.l.b16 %v4917
    %v4989 = vunpack.c.l.b16 %v4918
    %v4990 = vunpack.c.l.b16 %v4919
    %v4991 = vunpack.c.l.b16 %v4920
    %v4992 = vunpack.c.l.b16 %v4921
    %v4993 = vunpack.c.l.b16 %v4922
    %v4994 = vunpack.c.l.b16 %v4923
    %v4995 = vunpack.c.l.b16 %v4924
    %v4996 = vunpack.c.l.b16 %v4925
    %v4997 = vunpack.c.l.b16 %v4926
    %v4998 = vunpack.c.l.b16 %v4927
    %v4999 = vunpack.c.l.b16 %v4928
    %v5000 = vunpack.c.l.b16 %v4929
    %v5001 = vunpack.c.l.b16 %v4930
    %v5002 = vunpack.c.l.b16 %v4931
    %v5003 = vpack.c.b16 %v4972, %v4971
    %v5004 = vpack.c.b16 %v4974, %v4973
    %v5005 = vpack.c.b16 %v4976, %v4975
    %v5006 = vpack.c.b16 %v4978, %v4977
    %v5007 = vpack.c.b16 %v4980, %v4979
    %v5008 = vpack.c.b16 %v4982, %v4981
    %v5009 = vpack.c.b16 %v4984, %v4983
    %v5010 = vpack.c.b16 %v4986, %v4985
    %v5011 = vpack.c.b16 %v4988, %v4987
    %v5012 = vpack.c.b16 %v4990, %v4989
    %v5013 = vpack.c.b16 %v4992, %v4991
    %v5014 = vpack.c.b16 %v4994, %v4993
    %v5015 = vpack.c.b16 %v4996, %v4995
    %v5016 = vpack.c.b16 %v4998, %v4997
    %v5017 = vpack.c.b16 %v5000, %v4999
    %v5018 = vpack.c.b16 %v5002, %v5001
    %5035 = vmatprep.subr.bf16.mxu0 0
    %5036 = vmatpush1.bf16.msra.mxu0 %v5003
    %5037 = vmatprep.subr.bf16.mxu0 0
    %5038 = vmatpush1.bf16.msra.mxu0 %v5004
    %5039 = vmatprep.subr.bf16.mxu0 0
    %5040 = vmatpush1.bf16.msra.mxu0 %v5005
    %5041 = vmatprep.subr.bf16.mxu0 0
    %5042 = vmatpush1.bf16.msra.mxu0 %v5006
    %5043 = vmatprep.subr.bf16.mxu0 0
    %5044 = vmatpush1.bf16.msra.mxu0 %v5007
    %5045 = vmatprep.subr.bf16.mxu0 0
    %5046 = vmatpush1.bf16.msra.mxu0 %v5008
    %5047 = vmatprep.subr.bf16.mxu0 0
    %5048 = vmatpush1.bf16.msra.mxu0 %v5009
    %5049 = vmatprep.subr.bf16.mxu0 0
    %5050 = vmatpush1.bf16.msra.mxu0 %v5010
    %5051 = vmatprep.subr.bf16.mxu0 0
    %5052 = vmatpush1.bf16.msra.mxu0 %v5011
    %5053 = vmatprep.subr.bf16.mxu0 0
    %5054 = vmatpush1.bf16.msra.mxu0 %v5012
    %5055 = vmatprep.subr.bf16.mxu0 0
    %5056 = vmatpush1.bf16.msra.mxu0 %v5013
    %5057 = vmatprep.subr.bf16.mxu0 0
    %5058 = vmatpush1.bf16.msra.mxu0 %v5014
    %5059 = vmatprep.subr.bf16.mxu0 0
    %5060 = vmatpush1.bf16.msra.mxu0 %v5015
    %5061 = vmatprep.subr.bf16.mxu0 0
    %5062 = vmatpush1.bf16.msra.mxu0 %v5016
    %5063 = vmatprep.subr.bf16.mxu0 0
    %5064 = vmatpush1.bf16.msra.mxu0 %v5017
    %5065 = vmatprep.subr.bf16.mxu0 0
    %5066 = vmatpush1.bf16.msra.mxu0 %v5018
    %5067 = vmatprep.mubr.bf16.mxu0 %v4837
    %5068 = vmatmul.mubr.bf16.gmra.mrb[0].mxu0 %v4836
    %v5069 = vpop.f32.mrb[0].mxu0
    %v5070 = vadd.f32 %v4937, %v5069
    %v5071 = vpop.f32.mrb[0].mxu0
    %v5072 = vpop.f32.mrb[0].mxu0
    %v5073 = vadd.f32 %v4937, %v5072
    %v5074 = vpop.f32.mrb[0].mxu0
    %5075 = vmatprep.mubr.bf16.mxu0 %v4839
    %5076 = vmatmul.mubr.bf16.gmra.mrb[0].mxu0 %v4838
    %v5077 = vpop.f32.mrb[0].mxu0
    %v5078 = vadd.f32 %v4937, %v5077
    %v5079 = vpop.f32.mrb[0].mxu0
    %v5080 = vpop.f32.mrb[0].mxu0
    %v5081 = vadd.f32 %v4937, %v5080
    %v5082 = vpop.f32.mrb[0].mxu0
    %5083 = vmatprep.mubr.bf16.mxu0 %v4841
    %5084 = vmatmul.mubr.bf16.gmra.mrb[0].mxu0 %v4840
    %v5085 = vpop.f32.mrb[0].mxu0
    %v5086 = vadd.f32 %v4937, %v5085
    %v5087 = vpop.f32.mrb[0].mxu0
    %v5088 = vpop.f32.mrb[0].mxu0
    %v5089 = vadd.f32 %v4937, %v5088
    %v5090 = vpop.f32.mrb[0].mxu0
    %5091 = vmatprep.mubr.bf16.mxu0 %v4843
    %5092 = vmatmul.mubr.bf16.gmra.mrb[0].mxu0 %v4842
    %v5093 = vpop.f32.mrb[0].mxu0
    %v5094 = vadd.f32 %v4937, %v5093
    %v5095 = vpop.f32.mrb[0].mxu0
    %v5096 = vpop.f32.mrb[0].mxu0
    %v5097 = vadd.f32 %v4937, %v5096
    %v5098 = vpop.f32.mrb[0].mxu0
    %5099 = vmatprep.mubr.bf16.mxu0 %v4845
    %5100 = vmatmul.mubr.bf16.gmra.mrb[0].mxu0 %v4844
    %v5101 = vpop.f32.mrb[0].mxu0
    %v5102 = vadd.f32 %v4937, %v5101
    %v5103 = vpop.f32.mrb[0].mxu0
    %v5104 = vpop.f32.mrb[0].mxu0
    %v5105 = vadd.f32 %v4937, %v5104
    %v5106 = vpop.f32.mrb[0].mxu0
    %5107 = vmatprep.mubr.bf16.mxu0 %v4847
    %5108 = vmatmul.mubr.bf16.gmra.mrb[0].mxu0 %v4846
    %v5109 = vpop.f32.mrb[0].mxu0
    %v5110 = vadd.f32 %v4937, %v5109
    %v5111 = vpop.f32.mrb[0].mxu0
    %v5112 = vpop.f32.mrb[0].mxu0
    %v5113 = vadd.f32 %v4937, %v5112
    %v5114 = vpop.f32.mrb[0].mxu0
    %5115 = vmatprep.mubr.bf16.mxu0 %v4849
    %5116 = vmatmul.mubr.bf16.gmra.mrb[0].mxu0 %v4848
    %v5117 = vpop.f32.mrb[0].mxu0
    %v5118 = vadd.f32 %v4937, %v5117
    %v5119 = vpop.f32.mrb[0].mxu0
    %v5120 = vpop.f32.mrb[0].mxu0
    %v5121 = vadd.f32 %v4937, %v5120
    %v5122 = vpop.f32.mrb[0].mxu0
    %5123 = vmatprep.mubr.bf16.mxu0 %v4851
    %5124 = vmatmul.mubr.bf16.gmra.mrb[0].mxu0 %v4850
    %v5125 = vpop.f32.mrb[0].mxu0
    %v5126 = vadd.f32 %v4937, %v5125
    %v5127 = vpop.f32.mrb[0].mxu0
    %v5128 = vpop.f32.mrb[0].mxu0
    %v5129 = vadd.f32 %v4937, %v5128
    %v5130 = vpop.f32.mrb[0].mxu0
    %5131 = vmatprep.mubr.bf16.mxu0 %v4853
    %5132 = vmatmul.mubr.bf16.gmra.mrb[0].mxu0 %v4852
    %v5133 = vpop.f32.mrb[0].mxu0
    %v5134 = vadd.f32 %v4937, %v5133
    %v5135 = vpop.f32.mrb[0].mxu0
    %v5136 = vpop.f32.mrb[0].mxu0
    %v5137 = vadd.f32 %v4937, %v5136
    %v5138 = vpop.f32.mrb[0].mxu0
    %5139 = vmatprep.mubr.bf16.mxu0 %v4855
    %5140 = vmatmul.mubr.bf16.gmra.mrb[0].mxu0 %v4854
    %v5141 = vpop.f32.mrb[0].mxu0
    %v5142 = vadd.f32 %v4937, %v5141
    %v5143 = vpop.f32.mrb[0].mxu0
    %v5144 = vpop.f32.mrb[0].mxu0
    %v5145 = vadd.f32 %v4937, %v5144
    %v5146 = vpop.f32.mrb[0].mxu0
    %5147 = vmatprep.mubr.bf16.mxu0 %v4857
    %5148 = vmatmul.mubr.bf16.gmra.mrb[0].mxu0 %v4856
    %v5149 = vpop.f32.mrb[0].mxu0
    %v5150 = vadd.f32 %v4937, %v5149
    %v5151 = vpop.f32.mrb[0].mxu0
    %v5152 = vpop.f32.mrb[0].mxu0
    %v5153 = vadd.f32 %v4937, %v5152
    %v5154 = vpop.f32.mrb[0].mxu0
    %5155 = vmatprep.mubr.bf16.mxu0 %v4859
    %5156 = vmatmul.mubr.bf16.gmra.mrb[0].mxu0 %v4858
    %v5157 = vpop.f32.mrb[0].mxu0
    %v5158 = vadd.f32 %v4937, %v5157
    %v5159 = vpop.f32.mrb[0].mxu0
    %v5160 = vpop.f32.mrb[0].mxu0
    %v5161 = vadd.f32 %v4937, %v5160
    %v5162 = vpop.f32.mrb[0].mxu0
    %5163 = vmatprep.mubr.bf16.mxu0 %v4861
    %5164 = vmatmul.mubr.bf16.gmra.mrb[0].mxu0 %v4860
    %v5165 = vpop.f32.mrb[0].mxu0
    %v5166 = vadd.f32 %v4937, %v5165
    %v5167 = vpop.f32.mrb[0].mxu0
    %v5168 = vpop.f32.mrb[0].mxu0
    %v5169 = vadd.f32 %v4937, %v5168
    %v5170 = vpop.f32.mrb[0].mxu0
    %5171 = vmatprep.mubr.bf16.mxu0 %v4863
    %5172 = vmatmul.mubr.bf16.gmra.mrb[0].mxu0 %v4862
    %v5173 = vpop.f32.mrb[0].mxu0
    %v5174 = vadd.f32 %v4937, %v5173
    %v5175 = vpop.f32.mrb[0].mxu0
    %v5176 = vpop.f32.mrb[0].mxu0
    %v5177 = vadd.f32 %v4937, %v5176
    %v5178 = vpop.f32.mrb[0].mxu0
    %5179 = vmatprep.mubr.bf16.mxu0 %v4865
    %5180 = vmatmul.mubr.bf16.gmra.mrb[0].mxu0 %v4864
    %v5181 = vpop.f32.mrb[0].mxu0
    %v5182 = vadd.f32 %v4937, %v5181
    %v5183 = vpop.f32.mrb[0].mxu0
    %v5184 = vpop.f32.mrb[0].mxu0
    %v5185 = vadd.f32 %v4937, %v5184
    %v5186 = vpop.f32.mrb[0].mxu0
    %5187 = vmatprep.mubr.bf16.mxu0 %v4867
    %5188 = vmatmul.mubr.bf16.gmra.mrb[0].mxu0 %v4866
    %v5189 = vpop.f32.mrb[0].mxu0
    %v5190 = vadd.f32 %v4937, %v5189
    %v5191 = vpop.f32.mrb[0].mxu0
    %v5192 = vpop.f32.mrb[0].mxu0
    %v5193 = vadd.f32 %v4937, %v5192
    %v5194 = vpop.f32.mrb[0].mxu0
    %5195 = vmatprep.mubr.bf16.mxu0 %v4869
    %5196 = vmatmul.mubr.bf16.gmra.mrb[0].mxu0 %v4868
    %v5197 = vpop.f32.mrb[0].mxu0
    %v5198 = vadd.f32 %v4937, %v5197
    %v5199 = vpop.f32.mrb[0].mxu0
    %v5200 = vpop.f32.mrb[0].mxu0
    %v5201 = vadd.f32 %v4937, %v5200
    %v5202 = vpop.f32.mrb[0].mxu0
    %5203 = vmatprep.mubr.bf16.mxu0 %v4871
    %5204 = vmatmul.mubr.bf16.gmra.mrb[0].mxu0 %v4870
    %v5205 = vpop.f32.mrb[0].mxu0
    %v5206 = vadd.f32 %v4937, %v5205
    %v5207 = vpop.f32.mrb[0].mxu0
    %v5208 = vpop.f32.mrb[0].mxu0
    %v5209 = vadd.f32 %v4937, %v5208
    %v5210 = vpop.f32.mrb[0].mxu0
    %5211 = vmatprep.mubr.bf16.mxu0 %v4873
    %5212 = vmatmul.mubr.bf16.gmra.mrb[0].mxu0 %v4872
    %v5213 = vpop.f32.mrb[0].mxu0
    %v5214 = vadd.f32 %v4937, %v5213
    %v5215 = vpop.f32.mrb[0].mxu0
    %v5216 = vpop.f32.mrb[0].mxu0
    %v5217 = vadd.f32 %v4937, %v5216
    %v5218 = vpop.f32.mrb[0].mxu0
    %5219 = vmatprep.mubr.bf16.mxu0 %v4875
    %5220 = vmatmul.mubr.bf16.gmra.mrb[0].mxu0 %v4874
    %v5221 = vpop.f32.mrb[0].mxu0
    %v5222 = vadd.f32 %v4937, %v5221
    %v5223 = vpop.f32.mrb[0].mxu0
    %v5224 = vpop.f32.mrb[0].mxu0
    %v5225 = vadd.f32 %v4937, %v5224
    %v5226 = vpop.f32.mrb[0].mxu0
    %5227 = vmatprep.mubr.bf16.mxu0 %v4877
    %5228 = vmatmul.mubr.bf16.gmra.mrb[0].mxu0 %v4876
    %v5229 = vpop.f32.mrb[0].mxu0
    %v5230 = vadd.f32 %v4937, %v5229
    %v5231 = vpop.f32.mrb[0].mxu0
    %v5232 = vpop.f32.mrb[0].mxu0
    %v5233 = vadd.f32 %v4937, %v5232
    %v5234 = vpop.f32.mrb[0].mxu0
    %5235 = vmatprep.mubr.bf16.mxu0 %v4879
    %5236 = vmatmul.mubr.bf16.gmra.mrb[0].mxu0 %v4878
    %v5237 = vpop.f32.mrb[0].mxu0
    %v5238 = vadd.f32 %v4937, %v5237
    %v5239 = vpop.f32.mrb[0].mxu0
    %v5240 = vpop.f32.mrb[0].mxu0
    %v5241 = vadd.f32 %v4937, %v5240
    %v5242 = vpop.f32.mrb[0].mxu0
    %5243 = vmatprep.mubr.bf16.mxu0 %v4881
    %5244 = vmatmul.mubr.bf16.gmra.mrb[0].mxu0 %v4880
    %v5245 = vpop.f32.mrb[0].mxu0
    %v5246 = vadd.f32 %v4937, %v5245
    %v5247 = vpop.f32.mrb[0].mxu0
    %v5248 = vpop.f32.mrb[0].mxu0
    %v5249 = vadd.f32 %v4937, %v5248
    %v5250 = vpop.f32.mrb[0].mxu0
    %5251 = vmatprep.mubr.bf16.mxu0 %v4883
    %5252 = vmatmul.mubr.bf16.gmra.mrb[0].mxu0 %v4882
    %v5253 = vpop.f32.mrb[0].mxu0
    %v5254 = vadd.f32 %v4937, %v5253
    %v5255 = vpop.f32.mrb[0].mxu0
    %v5256 = vpop.f32.mrb[0].mxu0
    %v5257 = vadd.f32 %v4937, %v5256
    %v5258 = vpop.f32.mrb[0].mxu0
    %5259 = vmatprep.mubr.bf16.mxu0 %v4885
    %5260 = vmatmul.mubr.bf16.gmra.mrb[0].mxu0 %v4884
    %v5261 = vpop.f32.mrb[0].mxu0
    %v5262 = vadd.f32 %v4937, %v5261
    %v5263 = vpop.f32.mrb[0].mxu0
    %v5264 = vpop.f32.mrb[0].mxu0
    %v5265 = vadd.f32 %v4937, %v5264
    %v5266 = vpop.f32.mrb[0].mxu0
    %5267 = vmatprep.mubr.bf16.mxu0 %v4887
    %5268 = vmatmul.mubr.bf16.gmra.mrb[0].mxu0 %v4886
    %v5269 = vpop.f32.mrb[0].mxu0
    %v5270 = vadd.f32 %v4937, %v5269
    %v5271 = vpop.f32.mrb[0].mxu0
    %v5272 = vpop.f32.mrb[0].mxu0
    %v5273 = vadd.f32 %v4937, %v5272
    %v5274 = vpop.f32.mrb[0].mxu0
    %5275 = vmatprep.mubr.bf16.mxu0 %v4889
    %5276 = vmatmul.mubr.bf16.gmra.mrb[0].mxu0 %v4888
    %v5277 = vpop.f32.mrb[0].mxu0
    %v5278 = vadd.f32 %v4937, %v5277
    %v5279 = vpop.f32.mrb[0].mxu0
    %v5280 = vpop.f32.mrb[0].mxu0
    %v5281 = vadd.f32 %v4937, %v5280
    %v5282 = vpop.f32.mrb[0].mxu0
    %5283 = vmatprep.mubr.bf16.mxu0 %v4891
    %5284 = vmatmul.mubr.bf16.gmra.mrb[0].mxu0 %v4890
    %v5285 = vpop.f32.mrb[0].mxu0
    %v5286 = vadd.f32 %v4937, %v5285
    %v5287 = vpop.f32.mrb[0].mxu0
    %v5288 = vpop.f32.mrb[0].mxu0
    %v5289 = vadd.f32 %v4937, %v5288
    %v5290 = vpop.f32.mrb[0].mxu0
    %5291 = vmatprep.mubr.bf16.mxu0 %v4893
    %5292 = vmatmul.mubr.bf16.gmra.mrb[0].mxu0 %v4892
    %v5293 = vpop.f32.mrb[0].mxu0
    %v5294 = vadd.f32 %v4937, %v5293
    %v5295 = vpop.f32.mrb[0].mxu0
    %v5296 = vpop.f32.mrb[0].mxu0
    %v5297 = vadd.f32 %v4937, %v5296
    %v5298 = vpop.f32.mrb[0].mxu0
    %5299 = vmatprep.mubr.bf16.mxu0 %v4895
    %5300 = vmatmul.mubr.bf16.gmra.mrb[0].mxu0 %v4894
    %v5301 = vpop.f32.mrb[0].mxu0
    %v5302 = vadd.f32 %v4937, %v5301
    %v5303 = vpop.f32.mrb[0].mxu0
    %v5304 = vpop.f32.mrb[0].mxu0
    %v5305 = vadd.f32 %v4937, %v5304
    %v5306 = vpop.f32.mrb[0].mxu0
    %5307 = vmatprep.mubr.bf16.mxu0 %v4897
    %5308 = vmatmul.mubr.bf16.gmra.mrb[0].mxu0 %v4896
    %v5309 = vpop.f32.mrb[0].mxu0
    %v5310 = vadd.f32 %v4937, %v5309
    %v5311 = vpop.f32.mrb[0].mxu0
    %v5312 = vpop.f32.mrb[0].mxu0
    %v5313 = vadd.f32 %v4937, %v5312
    %v5314 = vpop.f32.mrb[0].mxu0
    %5315 = vmatprep.mubr.bf16.mxu0 %v4899
    %5316 = vmatmul.mubr.bf16.gmra.mrb[0].mxu0 %v4898
    %v5317 = vpop.f32.mrb[0].mxu0
    %v5318 = vadd.f32 %v4937, %v5317
    %v5319 = vpop.f32.mrb[0].mxu0
    %v5320 = vpop.f32.mrb[0].mxu0
    %v5321 = vadd.f32 %v4937, %v5320
    %v5322 = vpop.f32.mrb[0].mxu0
    %5323 = vdwg.mxu0
    %v5324 = vmax.f32 %v5070, 0.0
    %v5325 = vmax.f32 %v5073, 0.0
    %v5326 = vmax.f32 %v5078, 0.0
    %v5327 = vmax.f32 %v5081, 0.0
    %v5328 = vmax.f32 %v5086, 0.0
    %v5329 = vmax.f32 %v5089, 0.0
    %v5330 = vmax.f32 %v5094, 0.0
    %v5331 = vmax.f32 %v5097, 0.0
    %v5332 = vmax.f32 %v5102, 0.0
    %v5333 = vmax.f32 %v5105, 0.0
    %v5334 = vmax.f32 %v5110, 0.0
    %v5335 = vmax.f32 %v5113, 0.0
    %v5336 = vmax.f32 %v5118, 0.0
    %v5337 = vmax.f32 %v5121, 0.0
    %v5338 = vmax.f32 %v5126, 0.0
    %v5339 = vmax.f32 %v5129, 0.0
    %v5340 = vmax.f32 %v5134, 0.0
    %v5341 = vmax.f32 %v5137, 0.0
    %v5342 = vmax.f32 %v5142, 0.0
    %v5343 = vmax.f32 %v5145, 0.0
    %v5344 = vmax.f32 %v5150, 0.0
    %v5345 = vmax.f32 %v5153, 0.0
    %v5346 = vmax.f32 %v5158, 0.0
    %v5347 = vmax.f32 %v5161, 0.0
    %v5348 = vmax.f32 %v5166, 0.0
    %v5349 = vmax.f32 %v5169, 0.0
    %v5350 = vmax.f32 %v5174, 0.0
    %v5351 = vmax.f32 %v5177, 0.0
    %v5352 = vmax.f32 %v5182, 0.0
    %v5353 = vmax.f32 %v5185, 0.0
    %v5354 = vmax.f32 %v5190, 0.0
    %v5355 = vmax.f32 %v5193, 0.0
    %v5356 = vmax.f32 %v5198, 0.0
    %v5357 = vmax.f32 %v5201, 0.0
    %v5358 = vmax.f32 %v5206, 0.0
    %v5359 = vmax.f32 %v5209, 0.0
    %v5360 = vmax.f32 %v5214, 0.0
    %v5361 = vmax.f32 %v5217, 0.0
    %v5362 = vmax.f32 %v5222, 0.0
    %v5363 = vmax.f32 %v5225, 0.0
    %v5364 = vmax.f32 %v5230, 0.0
    %v5365 = vmax.f32 %v5233, 0.0
    %v5366 = vmax.f32 %v5238, 0.0
    %v5367 = vmax.f32 %v5241, 0.0
    %v5368 = vmax.f32 %v5246, 0.0
    %v5369 = vmax.f32 %v5249, 0.0
    %v5370 = vmax.f32 %v5254, 0.0
    %v5371 = vmax.f32 %v5257, 0.0
    %v5372 = vmax.f32 %v5262, 0.0
    %v5373 = vmax.f32 %v5265, 0.0
    %v5374 = vmax.f32 %v5270, 0.0
    %v5375 = vmax.f32 %v5273, 0.0
    %v5376 = vmax.f32 %v5278, 0.0
    %v5377 = vmax.f32 %v5281, 0.0
    %v5378 = vmax.f32 %v5286, 0.0
    %v5379 = vmax.f32 %v5289, 0.0
    %v5380 = vmax.f32 %v5294, 0.0
    %v5381 = vmax.f32 %v5297, 0.0
    %v5382 = vmax.f32 %v5302, 0.0
    %v5383 = vmax.f32 %v5305, 0.0
    %v5384 = vmax.f32 %v5310, 0.0
    %v5385 = vmax.f32 %v5313, 0.0
    %v5386 = vmax.f32 %v5318, 0.0
    %v5387 = vmax.f32 %v5321, 0.0
    %v5388 = vpack.c.bf16 %v5325, %v5324
    %v5389 = vpack.c.bf16 %v5327, %v5326
    %v5390 = vpack.c.bf16 %v5329, %v5328
    %v5391 = vpack.c.bf16 %v5331, %v5330
    %v5392 = vpack.c.bf16 %v5333, %v5332
    %v5393 = vpack.c.bf16 %v5335, %v5334
    %v5394 = vpack.c.bf16 %v5337, %v5336
    %v5395 = vpack.c.bf16 %v5339, %v5338
    %v5396 = vpack.c.bf16 %v5341, %v5340
    %v5397 = vpack.c.bf16 %v5343, %v5342
    %v5398 = vpack.c.bf16 %v5345, %v5344
    %v5399 = vpack.c.bf16 %v5347, %v5346
    %v5400 = vpack.c.bf16 %v5349, %v5348
    %v5401 = vpack.c.bf16 %v5351, %v5350
    %v5402 = vpack.c.bf16 %v5353, %v5352
    %v5403 = vpack.c.bf16 %v5355, %v5354
    %v5404 = vpack.c.bf16 %v5357, %v5356
    %v5405 = vpack.c.bf16 %v5359, %v5358
    %v5406 = vpack.c.bf16 %v5361, %v5360
    %v5407 = vpack.c.bf16 %v5363, %v5362
    %v5408 = vpack.c.bf16 %v5365, %v5364
    %v5409 = vpack.c.bf16 %v5367, %v5366
    %v5410 = vpack.c.bf16 %v5369, %v5368
    %v5411 = vpack.c.bf16 %v5371, %v5370
    %v5412 = vpack.c.bf16 %v5373, %v5372
    %v5413 = vpack.c.bf16 %v5375, %v5374
    %v5414 = vpack.c.bf16 %v5377, %v5376
    %v5415 = vpack.c.bf16 %v5379, %v5378
    %v5416 = vpack.c.bf16 %v5381, %v5380
    %v5417 = vpack.c.bf16 %v5383, %v5382
    %v5418 = vpack.c.bf16 %v5385, %v5384
    %v5419 = vpack.c.bf16 %v5387, %v5386
    %v5420 = vld [vmem:[#allocation16] sm:$0xf]
    %v5421 = vld [vmem:[#allocation16 + $0x4] sm:$0xf]
    %v5422 = vld [vmem:[#allocation16 + $0x8] sm:$0xf]
    %v5423 = vld [vmem:[#allocation16 + $0xc] sm:$0xf]
    %v5424 = vld [vmem:[#allocation16 + $0x10] sm:$0xf]
    %v5425 = vld [vmem:[#allocation16 + $0x14] sm:$0xf]
    %v5426 = vld [vmem:[#allocation16 + $0x18] sm:$0xf]
    %v5427 = vld [vmem:[#allocation16 + $0x1c] sm:$0xf]
    %v5428 = vld [vmem:[#allocation16 + $0x20] sm:$0xf]
    %v5429 = vld [vmem:[#allocation16 + $0x24] sm:$0xf]
    %v5430 = vld [vmem:[#allocation16 + $0x28] sm:$0xf]
    %v5431 = vld [vmem:[#allocation16 + $0x2c] sm:$0xf]
    %v5432 = vld [vmem:[#allocation16 + $0x30] sm:$0xf]
    %v5433 = vld [vmem:[#allocation16 + $0x34] sm:$0xf]
    %v5434 = vld [vmem:[#allocation16 + $0x38] sm:$0xf]
    %v5435 = vld [vmem:[#allocation16 + $0x3c] sm:$0xf]
    %v5452 = vunpack.c.l.b16 %v5420
    %v5453 = vunpack.c.l.b16 %v5421
    %v5454 = vunpack.c.l.b16 %v5422
    %v5455 = vunpack.c.l.b16 %v5423
    %v5456 = vunpack.c.l.b16 %v5424
    %v5457 = vunpack.c.l.b16 %v5425
    %v5458 = vunpack.c.l.b16 %v5426
    %v5459 = vunpack.c.l.b16 %v5427
    %v5460 = vunpack.c.l.b16 %v5428
    %v5461 = vunpack.c.l.b16 %v5429
    %v5462 = vunpack.c.l.b16 %v5430
    %v5463 = vunpack.c.l.b16 %v5431
    %v5464 = vunpack.c.l.b16 %v5432
    %v5465 = vunpack.c.l.b16 %v5433
    %v5466 = vunpack.c.l.b16 %v5434
    %v5467 = vunpack.c.l.b16 %v5435
    %v5468 = vpack.c.b16 %v5453, %v5452
    %v5469 = vpack.c.b16 %v5455, %v5454
    %v5470 = vpack.c.b16 %v5457, %v5456
    %v5471 = vpack.c.b16 %v5459, %v5458
    %v5472 = vpack.c.b16 %v5461, %v5460
    %v5473 = vpack.c.b16 %v5463, %v5462
    %v5474 = vpack.c.b16 %v5465, %v5464
    %v5475 = vpack.c.b16 %v5467, %v5466
    %5484 = vmatprep.subr.bf16.mxu0 0
    %5485 = vmatpush1.bf16.msra.mxu0 %v5468
    %5486 = vmatprep.subr.bf16.mxu0 0
    %5487 = vmatpush1.bf16.msra.mxu0 %v5469
    %5488 = vmatprep.subr.bf16.mxu0 0
    %5489 = vmatpush1.bf16.msra.mxu0 %v5470
    %5490 = vmatprep.subr.bf16.mxu0 0
    %5491 = vmatpush1.bf16.msra.mxu0 %v5471
    %5492 = vmatprep.subr.bf16.mxu0 0
    %5493 = vmatpush1.bf16.msra.mxu0 %v5472
    %5494 = vmatprep.subr.bf16.mxu0 0
    %5495 = vmatpush1.bf16.msra.mxu0 %v5473
    %5496 = vmatprep.subr.bf16.mxu0 0
    %5497 = vmatpush1.bf16.msra.mxu0 %v5474
    %5498 = vmatprep.subr.bf16.mxu0 0
    %5499 = vmatpush1.bf16.msra.mxu0 %v5475
    %5500 = vmatprep.subr.bf16.mxu0 0
    %5501 = vmatpush1.bf16.msra.mxu0 0
    %5502 = vmatprep.subr.bf16.mxu0 0
    %5503 = vmatpush1.bf16.msra.mxu0 0
    %5504 = vmatprep.subr.bf16.mxu0 0
    %5505 = vmatpush1.bf16.msra.mxu0 0
    %5506 = vmatprep.subr.bf16.mxu0 0
    %5507 = vmatpush1.bf16.msra.mxu0 0
    %5508 = vmatprep.subr.bf16.mxu0 0
    %5509 = vmatpush1.bf16.msra.mxu0 0
    %5510 = vmatprep.subr.bf16.mxu0 0
    %5511 = vmatpush1.bf16.msra.mxu0 0
    %5512 = vmatprep.subr.bf16.mxu0 0
    %5513 = vmatpush1.bf16.msra.mxu0 0
    %5514 = vmatprep.subr.bf16.mxu0 0
    %5515 = vmatpush1.bf16.msra.mxu0 0
    %5516 = vmatprep.mubr.bf16.mxu0 0
    %5517 = vmatmul.mubr.bf16.gmra.mrb[0].mxu0 %v5388
    %v5518 = vpop.f32.mrb[0].mxu0
    %v5519 = vadd.f32 %v4325, %v5518
    %v5520 = vpop.f32.mrb[0].mxu0
    %v5521 = vpop.f32.mrb[0].mxu0
    %v5522 = vadd.f32 %v4330, %v5521
    %v5523 = vpop.f32.mrb[0].mxu0
    %5524 = vmatprep.mubr.bf16.mxu0 0
    %5525 = vmatmul.mubr.bf16.gmra.mrb[0].mxu0 %v5389
    %v5526 = vpop.f32.mrb[0].mxu0
    %v5527 = vadd.f32 %v4335, %v5526
    %v5528 = vpop.f32.mrb[0].mxu0
    %v5529 = vpop.f32.mrb[0].mxu0
    %v5530 = vadd.f32 %v4340, %v5529
    %v5531 = vpop.f32.mrb[0].mxu0
    %5532 = vmatprep.mubr.bf16.mxu0 0
    %5533 = vmatmul.mubr.bf16.gmra.mrb[0].mxu0 %v5390
    %v5534 = vpop.f32.mrb[0].mxu0
    %v5535 = vadd.f32 %v4345, %v5534
    %v5536 = vpop.f32.mrb[0].mxu0
    %v5537 = vpop.f32.mrb[0].mxu0
    %v5538 = vadd.f32 %v4350, %v5537
    %v5539 = vpop.f32.mrb[0].mxu0
    %5540 = vmatprep.mubr.bf16.mxu0 0
    %5541 = vmatmul.mubr.bf16.gmra.mrb[0].mxu0 %v5391
    %v5542 = vpop.f32.mrb[0].mxu0
    %v5543 = vadd.f32 %v4355, %v5542
    %v5544 = vpop.f32.mrb[0].mxu0
    %v5545 = vpop.f32.mrb[0].mxu0
    %v5546 = vadd.f32 %v4360, %v5545
    %v5547 = vpop.f32.mrb[0].mxu0
    %5548 = vmatprep.mubr.bf16.mxu0 0
    %5549 = vmatmul.mubr.bf16.gmra.mrb[0].mxu0 %v5392
    %v5550 = vpop.f32.mrb[0].mxu0
    %v5551 = vadd.f32 %v4365, %v5550
    %v5552 = vpop.f32.mrb[0].mxu0
    %v5553 = vpop.f32.mrb[0].mxu0
    %v5554 = vadd.f32 %v4370, %v5553
    %v5555 = vpop.f32.mrb[0].mxu0
    %5556 = vmatprep.mubr.bf16.mxu0 0
    %5557 = vmatmul.mubr.bf16.gmra.mrb[0].mxu0 %v5393
    %v5558 = vpop.f32.mrb[0].mxu0
    %v5559 = vadd.f32 %v4375, %v5558
    %v5560 = vpop.f32.mrb[0].mxu0
    %v5561 = vpop.f32.mrb[0].mxu0
    %v5562 = vadd.f32 %v4380, %v5561
    %v5563 = vpop.f32.mrb[0].mxu0
    %5564 = vmatprep.mubr.bf16.mxu0 0
    %5565 = vmatmul.mubr.bf16.gmra.mrb[0].mxu0 %v5394
    %v5566 = vpop.f32.mrb[0].mxu0
    %v5567 = vadd.f32 %v4385, %v5566
    %v5568 = vpop.f32.mrb[0].mxu0
    %v5569 = vpop.f32.mrb[0].mxu0
    %v5570 = vadd.f32 %v4390, %v5569
    %v5571 = vpop.f32.mrb[0].mxu0
    %5572 = vmatprep.mubr.bf16.mxu0 0
    %5573 = vmatmul.mubr.bf16.gmra.mrb[0].mxu0 %v5395
    %v5574 = vpop.f32.mrb[0].mxu0
    %v5575 = vadd.f32 %v4395, %v5574
    %v5576 = vpop.f32.mrb[0].mxu0
    %v5577 = vpop.f32.mrb[0].mxu0
    %v5578 = vadd.f32 %v4400, %v5577
    %v5579 = vpop.f32.mrb[0].mxu0
    %5580 = vmatprep.mubr.bf16.mxu0 0
    %5581 = vmatmul.mubr.bf16.gmra.mrb[0].mxu0 %v5396
    %v5582 = vpop.f32.mrb[0].mxu0
    %v5583 = vadd.f32 %v4405, %v5582
    %v5584 = vpop.f32.mrb[0].mxu0
    %v5585 = vpop.f32.mrb[0].mxu0
    %v5586 = vadd.f32 %v4410, %v5585
    %v5587 = vpop.f32.mrb[0].mxu0
    %5588 = vmatprep.mubr.bf16.mxu0 0
    %5589 = vmatmul.mubr.bf16.gmra.mrb[0].mxu0 %v5397
    %v5590 = vpop.f32.mrb[0].mxu0
    %v5591 = vadd.f32 %v4415, %v5590
    %v5592 = vpop.f32.mrb[0].mxu0
    %v5593 = vpop.f32.mrb[0].mxu0
    %v5594 = vadd.f32 %v4420, %v5593
    %v5595 = vpop.f32.mrb[0].mxu0
    %5596 = vmatprep.mubr.bf16.mxu0 0
    %5597 = vmatmul.mubr.bf16.gmra.mrb[0].mxu0 %v5398
    %v5598 = vpop.f32.mrb[0].mxu0
    %v5599 = vadd.f32 %v4425, %v5598
    %v5600 = vpop.f32.mrb[0].mxu0
    %v5601 = vpop.f32.mrb[0].mxu0
    %v5602 = vadd.f32 %v4430, %v5601
    %v5603 = vpop.f32.mrb[0].mxu0
    %5604 = vmatprep.mubr.bf16.mxu0 0
    %5605 = vmatmul.mubr.bf16.gmra.mrb[0].mxu0 %v5399
    %v5606 = vpop.f32.mrb[0].mxu0
    %v5607 = vadd.f32 %v4435, %v5606
    %v5608 = vpop.f32.mrb[0].mxu0
    %v5609 = vpop.f32.mrb[0].mxu0
    %v5610 = vadd.f32 %v4440, %v5609
    %v5611 = vpop.f32.mrb[0].mxu0
    %5612 = vmatprep.mubr.bf16.mxu0 0
    %5613 = vmatmul.mubr.bf16.gmra.mrb[0].mxu0 %v5400
    %v5614 = vpop.f32.mrb[0].mxu0
    %v5615 = vadd.f32 %v4445, %v5614
    %v5616 = vpop.f32.mrb[0].mxu0
    %v5617 = vpop.f32.mrb[0].mxu0
    %v5618 = vadd.f32 %v4450, %v5617
    %v5619 = vpop.f32.mrb[0].mxu0
    %5620 = vmatprep.mubr.bf16.mxu0 0
    %5621 = vmatmul.mubr.bf16.gmra.mrb[0].mxu0 %v5401
    %v5622 = vpop.f32.mrb[0].mxu0
    %v5623 = vadd.f32 %v4455, %v5622
    %v5624 = vpop.f32.mrb[0].mxu0
    %v5625 = vpop.f32.mrb[0].mxu0
    %v5626 = vadd.f32 %v4460, %v5625
    %v5627 = vpop.f32.mrb[0].mxu0
    %5628 = vmatprep.mubr.bf16.mxu0 0
    %5629 = vmatmul.mubr.bf16.gmra.mrb[0].mxu0 %v5402
    %v5630 = vpop.f32.mrb[0].mxu0
    %v5631 = vadd.f32 %v4465, %v5630
    %v5632 = vpop.f32.mrb[0].mxu0
    %v5633 = vpop.f32.mrb[0].mxu0
    %v5634 = vadd.f32 %v4470, %v5633
    %v5635 = vpop.f32.mrb[0].mxu0
    %5636 = vmatprep.mubr.bf16.mxu0 0
    %5637 = vmatmul.mubr.bf16.gmra.mrb[0].mxu0 %v5403
    %v5638 = vpop.f32.mrb[0].mxu0
    %v5639 = vadd.f32 %v4475, %v5638
    %v5640 = vpop.f32.mrb[0].mxu0
    %v5641 = vpop.f32.mrb[0].mxu0
    %v5642 = vadd.f32 %v4480, %v5641
    %v5643 = vpop.f32.mrb[0].mxu0
    %5644 = vmatprep.mubr.bf16.mxu0 0
    %5645 = vmatmul.mubr.bf16.gmra.mrb[0].mxu0 %v5404
    %v5646 = vpop.f32.mrb[0].mxu0
    %v5647 = vadd.f32 %v4550, %v5646
    %v5648 = vpop.f32.mrb[0].mxu0
    %v5649 = vpop.f32.mrb[0].mxu0
    %v5650 = vadd.f32 %v4555, %v5649
    %v5651 = vpop.f32.mrb[0].mxu0
    %5652 = vmatprep.mubr.bf16.mxu0 0
    %5653 = vmatmul.mubr.bf16.gmra.mrb[0].mxu0 %v5405
    %v5654 = vpop.f32.mrb[0].mxu0
    %v5655 = vadd.f32 %v4560, %v5654
    %v5656 = vpop.f32.mrb[0].mxu0
    %v5657 = vpop.f32.mrb[0].mxu0
    %v5658 = vadd.f32 %v4565, %v5657
    %v5659 = vpop.f32.mrb[0].mxu0
    %5660 = vmatprep.mubr.bf16.mxu0 0
    %5661 = vmatmul.mubr.bf16.gmra.mrb[0].mxu0 %v5406
    %v5662 = vpop.f32.mrb[0].mxu0
    %v5663 = vadd.f32 %v4570, %v5662
    %v5664 = vpop.f32.mrb[0].mxu0
    %v5665 = vpop.f32.mrb[0].mxu0
    %v5666 = vadd.f32 %v4575, %v5665
    %v5667 = vpop.f32.mrb[0].mxu0
    %5668 = vmatprep.mubr.bf16.mxu0 0
    %5669 = vmatmul.mubr.bf16.gmra.mrb[0].mxu0 %v5407
    %v5670 = vpop.f32.mrb[0].mxu0
    %v5671 = vadd.f32 %v4580, %v5670
    %v5672 = vpop.f32.mrb[0].mxu0
    %v5673 = vpop.f32.mrb[0].mxu0
    %v5674 = vadd.f32 %v4585, %v5673
    %v5675 = vpop.f32.mrb[0].mxu0
    %5676 = vmatprep.mubr.bf16.mxu0 0
    %5677 = vmatmul.mubr.bf16.gmra.mrb[0].mxu0 %v5408
    %v5678 = vpop.f32.mrb[0].mxu0
    %v5679 = vadd.f32 %v4590, %v5678
    %v5680 = vpop.f32.mrb[0].mxu0
    %v5681 = vpop.f32.mrb[0].mxu0
    %v5682 = vadd.f32 %v4595, %v5681
    %v5683 = vpop.f32.mrb[0].mxu0
    %5684 = vmatprep.mubr.bf16.mxu0 0
    %5685 = vmatmul.mubr.bf16.gmra.mrb[0].mxu0 %v5409
    %v5686 = vpop.f32.mrb[0].mxu0
    %v5687 = vadd.f32 %v4600, %v5686
    %v5688 = vpop.f32.mrb[0].mxu0
    %v5689 = vpop.f32.mrb[0].mxu0
    %v5690 = vadd.f32 %v4605, %v5689
    %v5691 = vpop.f32.mrb[0].mxu0
    %5692 = vmatprep.mubr.bf16.mxu0 0
    %5693 = vmatmul.mubr.bf16.gmra.mrb[0].mxu0 %v5410
    %v5694 = vpop.f32.mrb[0].mxu0
    %v5695 = vadd.f32 %v4610, %v5694
    %v5696 = vpop.f32.mrb[0].mxu0
    %v5697 = vpop.f32.mrb[0].mxu0
    %v5698 = vadd.f32 %v4615, %v5697
    %v5699 = vpop.f32.mrb[0].mxu0
    %5700 = vmatprep.mubr.bf16.mxu0 0
    %5701 = vmatmul.mubr.bf16.gmra.mrb[0].mxu0 %v5411
    %v5702 = vpop.f32.mrb[0].mxu0
    %v5703 = vadd.f32 %v4620, %v5702
    %v5704 = vpop.f32.mrb[0].mxu0
    %v5705 = vpop.f32.mrb[0].mxu0
    %v5706 = vadd.f32 %v4625, %v5705
    %v5707 = vpop.f32.mrb[0].mxu0
    %5708 = vmatprep.mubr.bf16.mxu0 0
    %5709 = vmatmul.mubr.bf16.gmra.mrb[0].mxu0 %v5412
    %v5710 = vpop.f32.mrb[0].mxu0
    %v5711 = vadd.f32 %v4630, %v5710
    %v5712 = vpop.f32.mrb[0].mxu0
    %v5713 = vpop.f32.mrb[0].mxu0
    %v5714 = vadd.f32 %v4635, %v5713
    %v5715 = vpop.f32.mrb[0].mxu0
    %5716 = vmatprep.mubr.bf16.mxu0 0
    %5717 = vmatmul.mubr.bf16.gmra.mrb[0].mxu0 %v5413
    %v5718 = vpop.f32.mrb[0].mxu0
    %v5719 = vadd.f32 %v4640, %v5718
    %v5720 = vpop.f32.mrb[0].mxu0
    %v5721 = vpop.f32.mrb[0].mxu0
    %v5722 = vadd.f32 %v4645, %v5721
    %v5723 = vpop.f32.mrb[0].mxu0
    %5724 = vmatprep.mubr.bf16.mxu0 0
    %5725 = vmatmul.mubr.bf16.gmra.mrb[0].mxu0 %v5414
    %v5726 = vpop.f32.mrb[0].mxu0
    %v5727 = vadd.f32 %v4650, %v5726
    %v5728 = vpop.f32.mrb[0].mxu0
    %v5729 = vpop.f32.mrb[0].mxu0
    %v5730 = vadd.f32 %v4655, %v5729
    %v5731 = vpop.f32.mrb[0].mxu0
    %5732 = vmatprep.mubr.bf16.mxu0 0
    %5733 = vmatmul.mubr.bf16.gmra.mrb[0].mxu0 %v5415
    %v5734 = vpop.f32.mrb[0].mxu0
    %v5735 = vadd.f32 %v4660, %v5734
    %v5736 = vpop.f32.mrb[0].mxu0
    %v5737 = vpop.f32.mrb[0].mxu0
    %v5738 = vadd.f32 %v4665, %v5737
    %v5739 = vpop.f32.mrb[0].mxu0
    %5740 = vmatprep.mubr.bf16.mxu0 0
    %5741 = vmatmul.mubr.bf16.gmra.mrb[0].mxu0 %v5416
    %v5742 = vpop.f32.mrb[0].mxu0
    %v5743 = vadd.f32 %v4670, %v5742
    %v5744 = vpop.f32.mrb[0].mxu0
    %v5745 = vpop.f32.mrb[0].mxu0
    %v5746 = vadd.f32 %v4675, %v5745
    %v5747 = vpop.f32.mrb[0].mxu0
    %5748 = vmatprep.mubr.bf16.mxu0 0
    %5749 = vmatmul.mubr.bf16.gmra.mrb[0].mxu0 %v5417
    %v5750 = vpop.f32.mrb[0].mxu0
    %v5751 = vadd.f32 %v4680, %v5750
    %v5752 = vpop.f32.mrb[0].mxu0
    %v5753 = vpop.f32.mrb[0].mxu0
    %v5754 = vadd.f32 %v4685, %v5753
    %v5755 = vpop.f32.mrb[0].mxu0
    %5756 = vmatprep.mubr.bf16.mxu0 0
    %5757 = vmatmul.mubr.bf16.gmra.mrb[0].mxu0 %v5418
    %v5758 = vpop.f32.mrb[0].mxu0
    %v5759 = vadd.f32 %v4690, %v5758
    %v5760 = vpop.f32.mrb[0].mxu0
    %v5761 = vpop.f32.mrb[0].mxu0
    %v5762 = vadd.f32 %v4695, %v5761
    %v5763 = vpop.f32.mrb[0].mxu0
    %5764 = vmatprep.mubr.bf16.mxu0 0
    %5765 = vmatmul.mubr.bf16.gmra.mrb[0].mxu0 %v5419
    %v5766 = vpop.f32.mrb[0].mxu0
    %v5767 = vadd.f32 %v4700, %v5766
    %v5768 = vpop.f32.mrb[0].mxu0
    %v5769 = vpop.f32.mrb[0].mxu0
    %v5770 = vadd.f32 %v4705, %v5769
    %v5771 = vpop.f32.mrb[0].mxu0
    %5772 = vdwg.mxu0
    %v5773 = vld [vmem:[#allocation19] sm:$0x1]
    %v5775 = vlaneseq
    %v5776 = vshrl.u32 %v5775, 7
    %v5777 = vsub.s32 0, %v5776
    %v5778 = vrot.slane %v5773, %v5777
    %v5780 = vadd.f32 %v5519, %v5778
    %v5781 = vadd.f32 %v5522, %v5778
    %v5782 = vadd.f32 %v5527, %v5778
    %v5783 = vadd.f32 %v5530, %v5778
    %v5784 = vadd.f32 %v5535, %v5778
    %v5785 = vadd.f32 %v5538, %v5778
    %v5786 = vadd.f32 %v5543, %v5778
    %v5787 = vadd.f32 %v5546, %v5778
    %v5788 = vadd.f32 %v5551, %v5778
    %v5789 = vadd.f32 %v5554, %v5778
    %v5790 = vadd.f32 %v5559, %v5778
    %v5791 = vadd.f32 %v5562, %v5778
    %v5792 = vadd.f32 %v5567, %v5778
    %v5793 = vadd.f32 %v5570, %v5778
    %v5794 = vadd.f32 %v5575, %v5778
    %v5795 = vadd.f32 %v5578, %v5778
    %v5796 = vadd.f32 %v5583, %v5778
    %v5797 = vadd.f32 %v5586, %v5778
    %v5798 = vadd.f32 %v5591, %v5778
    %v5799 = vadd.f32 %v5594, %v5778
    %v5800 = vadd.f32 %v5599, %v5778
    %v5801 = vadd.f32 %v5602, %v5778
    %v5802 = vadd.f32 %v5607, %v5778
    %v5803 = vadd.f32 %v5610, %v5778
    %v5804 = vadd.f32 %v5615, %v5778
    %v5805 = vadd.f32 %v5618, %v5778
    %v5806 = vadd.f32 %v5623, %v5778
    %v5807 = vadd.f32 %v5626, %v5778
    %v5808 = vadd.f32 %v5631, %v5778
    %v5809 = vadd.f32 %v5634, %v5778
    %v5810 = vadd.f32 %v5639, %v5778
    %v5811 = vadd.f32 %v5642, %v5778
    %v5812 = vadd.f32 %v5647, %v5778
    %v5813 = vadd.f32 %v5650, %v5778
    %v5814 = vadd.f32 %v5655, %v5778
    %v5815 = vadd.f32 %v5658, %v5778
    %v5816 = vadd.f32 %v5663, %v5778
    %v5817 = vadd.f32 %v5666, %v5778
    %v5818 = vadd.f32 %v5671, %v5778
    %v5819 = vadd.f32 %v5674, %v5778
    %v5820 = vadd.f32 %v5679, %v5778
    %v5821 = vadd.f32 %v5682, %v5778
    %v5822 = vadd.f32 %v5687, %v5778
    %v5823 = vadd.f32 %v5690, %v5778
    %v5824 = vadd.f32 %v5695, %v5778
    %v5825 = vadd.f32 %v5698, %v5778
    %v5826 = vadd.f32 %v5703, %v5778
    %v5827 = vadd.f32 %v5706, %v5778
    %v5828 = vadd.f32 %v5711, %v5778
    %v5829 = vadd.f32 %v5714, %v5778
    %v5830 = vadd.f32 %v5719, %v5778
    %v5831 = vadd.f32 %v5722, %v5778
    %v5832 = vadd.f32 %v5727, %v5778
    %v5833 = vadd.f32 %v5730, %v5778
    %v5834 = vadd.f32 %v5735, %v5778
    %v5835 = vadd.f32 %v5738, %v5778
    %v5836 = vadd.f32 %v5743, %v5778
    %v5837 = vadd.f32 %v5746, %v5778
    %v5838 = vadd.f32 %v5751, %v5778
    %v5839 = vadd.f32 %v5754, %v5778
    %v5840 = vadd.f32 %v5759, %v5778
    %v5841 = vadd.f32 %v5762, %v5778
    %v5842 = vadd.f32 %v5767, %v5778
    %v5843 = vadd.f32 %v5770, %v5778
    %v5844 = vmax.f32 %v5780, 0.0
    %v5845 = vmax.f32 %v5781, 0.0
    %v5846 = vmax.f32 %v5782, 0.0
    %v5847 = vmax.f32 %v5783, 0.0
    %v5848 = vmax.f32 %v5784, 0.0
    %v5849 = vmax.f32 %v5785, 0.0
    %v5850 = vmax.f32 %v5786, 0.0
    %v5851 = vmax.f32 %v5787, 0.0
    %v5852 = vmax.f32 %v5788, 0.0
    %v5853 = vmax.f32 %v5789, 0.0
    %v5854 = vmax.f32 %v5790, 0.0
    %v5855 = vmax.f32 %v5791, 0.0
    %v5856 = vmax.f32 %v5792, 0.0
    %v5857 = vmax.f32 %v5793, 0.0
    %v5858 = vmax.f32 %v5794, 0.0
    %v5859 = vmax.f32 %v5795, 0.0
    %v5860 = vmax.f32 %v5796, 0.0
    %v5861 = vmax.f32 %v5797, 0.0
    %v5862 = vmax.f32 %v5798, 0.0
    %v5863 = vmax.f32 %v5799, 0.0
    %v5864 = vmax.f32 %v5800, 0.0
    %v5865 = vmax.f32 %v5801, 0.0
    %v5866 = vmax.f32 %v5802, 0.0
    %v5867 = vmax.f32 %v5803, 0.0
    %v5868 = vmax.f32 %v5804, 0.0
    %v5869 = vmax.f32 %v5805, 0.0
    %v5870 = vmax.f32 %v5806, 0.0
    %v5871 = vmax.f32 %v5807, 0.0
    %v5872 = vmax.f32 %v5808, 0.0
    %v5873 = vmax.f32 %v5809, 0.0
    %v5874 = vmax.f32 %v5810, 0.0
    %v5875 = vmax.f32 %v5811, 0.0
    %v5876 = vmax.f32 %v5812, 0.0
    %v5877 = vmax.f32 %v5813, 0.0
    %v5878 = vmax.f32 %v5814, 0.0
    %v5879 = vmax.f32 %v5815, 0.0
    %v5880 = vmax.f32 %v5816, 0.0
    %v5881 = vmax.f32 %v5817, 0.0
    %v5882 = vmax.f32 %v5818, 0.0
    %v5883 = vmax.f32 %v5819, 0.0
    %v5884 = vmax.f32 %v5820, 0.0
    %v5885 = vmax.f32 %v5821, 0.0
    %v5886 = vmax.f32 %v5822, 0.0
    %v5887 = vmax.f32 %v5823, 0.0
    %v5888 = vmax.f32 %v5824, 0.0
    %v5889 = vmax.f32 %v5825, 0.0
    %v5890 = vmax.f32 %v5826, 0.0
    %v5891 = vmax.f32 %v5827, 0.0
    %v5892 = vmax.f32 %v5828, 0.0
    %v5893 = vmax.f32 %v5829, 0.0
    %v5894 = vmax.f32 %v5830, 0.0
    %v5895 = vmax.f32 %v5831, 0.0
    %v5896 = vmax.f32 %v5832, 0.0
    %v5897 = vmax.f32 %v5833, 0.0
    %v5898 = vmax.f32 %v5834, 0.0
    %v5899 = vmax.f32 %v5835, 0.0
    %v5900 = vmax.f32 %v5836, 0.0
    %v5901 = vmax.f32 %v5837, 0.0
    %v5902 = vmax.f32 %v5838, 0.0
    %v5903 = vmax.f32 %v5839, 0.0
    %v5904 = vmax.f32 %v5840, 0.0
    %v5905 = vmax.f32 %v5841, 0.0
    %v5906 = vmax.f32 %v5842, 0.0
    %v5907 = vmax.f32 %v5843, 0.0
    %v5908 = vpack.c.bf16 %v5845, %v5844
    %v5909 = vpack.c.bf16 %v5847, %v5846
    %v5910 = vpack.c.bf16 %v5849, %v5848
    %v5911 = vpack.c.bf16 %v5851, %v5850
    %v5912 = vpack.c.bf16 %v5853, %v5852
    %v5913 = vpack.c.bf16 %v5855, %v5854
    %v5914 = vpack.c.bf16 %v5857, %v5856
    %v5915 = vpack.c.bf16 %v5859, %v5858
    %v5916 = vpack.c.bf16 %v5861, %v5860
    %v5917 = vpack.c.bf16 %v5863, %v5862
    %v5918 = vpack.c.bf16 %v5865, %v5864
    %v5919 = vpack.c.bf16 %v5867, %v5866
    %v5920 = vpack.c.bf16 %v5869, %v5868
    %v5921 = vpack.c.bf16 %v5871, %v5870
    %v5922 = vpack.c.bf16 %v5873, %v5872
    %v5923 = vpack.c.bf16 %v5875, %v5874
    %v5924 = vpack.c.bf16 %v5877, %v5876
    %v5925 = vpack.c.bf16 %v5879, %v5878
    %v5926 = vpack.c.bf16 %v5881, %v5880
    %v5927 = vpack.c.bf16 %v5883, %v5882
    %v5928 = vpack.c.bf16 %v5885, %v5884
    %v5929 = vpack.c.bf16 %v5887, %v5886
    %v5930 = vpack.c.bf16 %v5889, %v5888
    %v5931 = vpack.c.bf16 %v5891, %v5890
    %v5932 = vpack.c.bf16 %v5893, %v5892
    %v5933 = vpack.c.bf16 %v5895, %v5894
    %v5934 = vpack.c.bf16 %v5897, %v5896
    %v5935 = vpack.c.bf16 %v5899, %v5898
    %v5936 = vpack.c.bf16 %v5901, %v5900
    %v5937 = vpack.c.bf16 %v5903, %v5902
    %v5938 = vpack.c.bf16 %v5905, %v5904
    %v5939 = vpack.c.bf16 %v5907, %v5906
    %v5940 = vld [vmem:[%s47] sm:$0xf]
    %v5941 = vld [vmem:[%s47 + $0x4] sm:$0xf]
    %v5942 = vld [vmem:[%s47 + $0x8] sm:$0xf]
    %v5943 = vld [vmem:[%s47 + $0xc] sm:$0xf]
    %v5944 = vld [vmem:[%s47 + $0x10] sm:$0xf]
    %v5945 = vld [vmem:[%s47 + $0x14] sm:$0xf]
    %v5946 = vld [vmem:[%s47 + $0x18] sm:$0xf]
    %v5947 = vld [vmem:[%s47 + $0x1c] sm:$0xf]
    %v5948 = vld [vmem:[%s47 + $0x20] sm:$0xf]
    %v5949 = vld [vmem:[%s47 + $0x24] sm:$0xf]
    %v5950 = vld [vmem:[%s47 + $0x28] sm:$0xf]
    %v5951 = vld [vmem:[%s47 + $0x2c] sm:$0xf]
    %v5952 = vld [vmem:[%s47 + $0x30] sm:$0xf]
    %v5953 = vld [vmem:[%s47 + $0x34] sm:$0xf]
    %v5954 = vld [vmem:[%s47 + $0x38] sm:$0xf]
    %v5955 = vld [vmem:[%s47 + $0x3c] sm:$0xf]
    %v5972 = vunpack.c.l.b16 %v5940
    %v5973 = vunpack.c.l.b16 %v5941
    %v5974 = vunpack.c.l.b16 %v5942
    %v5975 = vunpack.c.l.b16 %v5943
    %v5976 = vunpack.c.l.b16 %v5944
    %v5977 = vunpack.c.l.b16 %v5945
    %v5978 = vunpack.c.l.b16 %v5946
    %v5979 = vunpack.c.l.b16 %v5947
    %v5980 = vunpack.c.l.b16 %v5948
    %v5981 = vunpack.c.l.b16 %v5949
    %v5982 = vunpack.c.l.b16 %v5950
    %v5983 = vunpack.c.l.b16 %v5951
    %v5984 = vunpack.c.l.b16 %v5952
    %v5985 = vunpack.c.l.b16 %v5953
    %v5986 = vunpack.c.l.b16 %v5954
    %v5987 = vunpack.c.l.b16 %v5955
    %v5988 = vpack.c.b16 %v5973, %v5972
    %v5989 = vpack.c.b16 %v5975, %v5974
    %v5990 = vpack.c.b16 %v5977, %v5976
    %v5991 = vpack.c.b16 %v5979, %v5978
    %v5992 = vpack.c.b16 %v5981, %v5980
    %v5993 = vpack.c.b16 %v5983, %v5982
    %v5994 = vpack.c.b16 %v5985, %v5984
    %v5995 = vpack.c.b16 %v5987, %v5986
    %6004 = vmatprep.subr.bf16.mxu0 0
    %6005 = vmatpush1.bf16.msra.mxu0 %v5988
    %6006 = vmatprep.subr.bf16.mxu0 0
    %6007 = vmatpush1.bf16.msra.mxu0 %v5989
    %6008 = vmatprep.subr.bf16.mxu0 0
    %6009 = vmatpush1.bf16.msra.mxu0 %v5990
    %6010 = vmatprep.subr.bf16.mxu0 0
    %6011 = vmatpush1.bf16.msra.mxu0 %v5991
    %6012 = vmatprep.subr.bf16.mxu0 0
    %6013 = vmatpush1.bf16.msra.mxu0 %v5992
    %6014 = vmatprep.subr.bf16.mxu0 0
    %6015 = vmatpush1.bf16.msra.mxu0 %v5993
    %6016 = vmatprep.subr.bf16.mxu0 0
    %6017 = vmatpush1.bf16.msra.mxu0 %v5994
    %6018 = vmatprep.subr.bf16.mxu0 0
    %6019 = vmatpush1.bf16.msra.mxu0 %v5995
    %6020 = vmatprep.subr.bf16.mxu0 0
    %6021 = vmatpush1.bf16.msra.mxu0 0
    %6022 = vmatprep.subr.bf16.mxu0 0
    %6023 = vmatpush1.bf16.msra.mxu0 0
    %6024 = vmatprep.subr.bf16.mxu0 0
    %6025 = vmatpush1.bf16.msra.mxu0 0
    %6026 = vmatprep.subr.bf16.mxu0 0
    %6027 = vmatpush1.bf16.msra.mxu0 0
    %6028 = vmatprep.subr.bf16.mxu0 0
    %6029 = vmatpush1.bf16.msra.mxu0 0
    %6030 = vmatprep.subr.bf16.mxu0 0
    %6031 = vmatpush1.bf16.msra.mxu0 0
    %6032 = vmatprep.subr.bf16.mxu0 0
    %6033 = vmatpush1.bf16.msra.mxu0 0
    %6034 = vmatprep.subr.bf16.mxu0 0
    %6035 = vmatpush1.bf16.msra.mxu0 0
    %6036 = vmatprep.mubr.bf16.mxu0 0
    %6037 = vmatmul.mubr.bf16.gmra.mrb[0].mxu0 %v5908
    %v6038 = vpop.f32.mrb[0].mxu0
    %v6039 = vadd.f32 0.0, %v6038
    %v6040 = vpop.f32.mrb[0].mxu0
    %v6041 = vpop.f32.mrb[0].mxu0
    %v6042 = vadd.f32 0.0, %v6041
    %v6043 = vpop.f32.mrb[0].mxu0
    %6044 = vmatprep.mubr.bf16.mxu0 0
    %6045 = vmatmul.mubr.bf16.gmra.mrb[0].mxu0 %v5909
    %v6046 = vpop.f32.mrb[0].mxu0
    %v6047 = vadd.f32 0.0, %v6046
    %v6048 = vpop.f32.mrb[0].mxu0
    %v6049 = vpop.f32.mrb[0].mxu0
    %v6050 = vadd.f32 0.0, %v6049
    %v6051 = vpop.f32.mrb[0].mxu0
    %6052 = vmatprep.mubr.bf16.mxu0 0
    %6053 = vmatmul.mubr.bf16.gmra.mrb[0].mxu0 %v5910
    %v6054 = vpop.f32.mrb[0].mxu0
    %v6055 = vadd.f32 0.0, %v6054
    %v6056 = vpop.f32.mrb[0].mxu0
    %v6057 = vpop.f32.mrb[0].mxu0
    %v6058 = vadd.f32 0.0, %v6057
    %v6059 = vpop.f32.mrb[0].mxu0
    %6060 = vmatprep.mubr.bf16.mxu0 0
    %6061 = vmatmul.mubr.bf16.gmra.mrb[0].mxu0 %v5911
    %v6062 = vpop.f32.mrb[0].mxu0
    %v6063 = vadd.f32 0.0, %v6062
    %v6064 = vpop.f32.mrb[0].mxu0
    %v6065 = vpop.f32.mrb[0].mxu0
    %v6066 = vadd.f32 0.0, %v6065
    %v6067 = vpop.f32.mrb[0].mxu0
    %6068 = vmatprep.mubr.bf16.mxu0 0
    %6069 = vmatmul.mubr.bf16.gmra.mrb[0].mxu0 %v5912
    %v6070 = vpop.f32.mrb[0].mxu0
    %v6071 = vadd.f32 0.0, %v6070
    %v6072 = vpop.f32.mrb[0].mxu0
    %v6073 = vpop.f32.mrb[0].mxu0
    %v6074 = vadd.f32 0.0, %v6073
    %v6075 = vpop.f32.mrb[0].mxu0
    %6076 = vmatprep.mubr.bf16.mxu0 0
    %6077 = vmatmul.mubr.bf16.gmra.mrb[0].mxu0 %v5913
    %v6078 = vpop.f32.mrb[0].mxu0
    %v6079 = vadd.f32 0.0, %v6078
    %v6080 = vpop.f32.mrb[0].mxu0
    %v6081 = vpop.f32.mrb[0].mxu0
    %v6082 = vadd.f32 0.0, %v6081
    %v6083 = vpop.f32.mrb[0].mxu0
    %6084 = vmatprep.mubr.bf16.mxu0 0
    %6085 = vmatmul.mubr.bf16.gmra.mrb[0].mxu0 %v5914
    %v6086 = vpop.f32.mrb[0].mxu0
    %v6087 = vadd.f32 0.0, %v6086
    %v6088 = vpop.f32.mrb[0].mxu0
    %v6089 = vpop.f32.mrb[0].mxu0
    %v6090 = vadd.f32 0.0, %v6089
    %v6091 = vpop.f32.mrb[0].mxu0
    %6092 = vmatprep.mubr.bf16.mxu0 0
    %6093 = vmatmul.mubr.bf16.gmra.mrb[0].mxu0 %v5915
    %v6094 = vpop.f32.mrb[0].mxu0
    %v6095 = vadd.f32 0.0, %v6094
    %v6096 = vpop.f32.mrb[0].mxu0
    %v6097 = vpop.f32.mrb[0].mxu0
    %v6098 = vadd.f32 0.0, %v6097
    %v6099 = vpop.f32.mrb[0].mxu0
    %6100 = vmatprep.mubr.bf16.mxu0 0
    %6101 = vmatmul.mubr.bf16.gmra.mrb[0].mxu0 %v5916
    %v6102 = vpop.f32.mrb[0].mxu0
    %v6103 = vadd.f32 0.0, %v6102
    %v6104 = vpop.f32.mrb[0].mxu0
    %v6105 = vpop.f32.mrb[0].mxu0
    %v6106 = vadd.f32 0.0, %v6105
    %v6107 = vpop.f32.mrb[0].mxu0
    %6108 = vmatprep.mubr.bf16.mxu0 0
    %6109 = vmatmul.mubr.bf16.gmra.mrb[0].mxu0 %v5917
    %v6110 = vpop.f32.mrb[0].mxu0
    %v6111 = vadd.f32 0.0, %v6110
    %v6112 = vpop.f32.mrb[0].mxu0
    %v6113 = vpop.f32.mrb[0].mxu0
    %v6114 = vadd.f32 0.0, %v6113
    %v6115 = vpop.f32.mrb[0].mxu0
    %6116 = vmatprep.mubr.bf16.mxu0 0
    %6117 = vmatmul.mubr.bf16.gmra.mrb[0].mxu0 %v5918
    %v6118 = vpop.f32.mrb[0].mxu0
    %v6119 = vadd.f32 0.0, %v6118
    %v6120 = vpop.f32.mrb[0].mxu0
    %v6121 = vpop.f32.mrb[0].mxu0
    %v6122 = vadd.f32 0.0, %v6121
    %v6123 = vpop.f32.mrb[0].mxu0
    %6124 = vmatprep.mubr.bf16.mxu0 0
    %6125 = vmatmul.mubr.bf16.gmra.mrb[0].mxu0 %v5919
    %v6126 = vpop.f32.mrb[0].mxu0
    %v6127 = vadd.f32 0.0, %v6126
    %v6128 = vpop.f32.mrb[0].mxu0
    %v6129 = vpop.f32.mrb[0].mxu0
    %v6130 = vadd.f32 0.0, %v6129
    %v6131 = vpop.f32.mrb[0].mxu0
    %6132 = vmatprep.mubr.bf16.mxu0 0
    %6133 = vmatmul.mubr.bf16.gmra.mrb[0].mxu0 %v5920
    %v6134 = vpop.f32.mrb[0].mxu0
    %v6135 = vadd.f32 0.0, %v6134
    %v6136 = vpop.f32.mrb[0].mxu0
    %v6137 = vpop.f32.mrb[0].mxu0
    %v6138 = vadd.f32 0.0, %v6137
    %v6139 = vpop.f32.mrb[0].mxu0
    %6140 = vmatprep.mubr.bf16.mxu0 0
    %6141 = vmatmul.mubr.bf16.gmra.mrb[0].mxu0 %v5921
    %v6142 = vpop.f32.mrb[0].mxu0
    %v6143 = vadd.f32 0.0, %v6142
    %v6144 = vpop.f32.mrb[0].mxu0
    %v6145 = vpop.f32.mrb[0].mxu0
    %v6146 = vadd.f32 0.0, %v6145
    %v6147 = vpop.f32.mrb[0].mxu0
    %6148 = vmatprep.mubr.bf16.mxu0 0
    %6149 = vmatmul.mubr.bf16.gmra.mrb[0].mxu0 %v5922
    %v6150 = vpop.f32.mrb[0].mxu0
    %v6151 = vadd.f32 0.0, %v6150
    %v6152 = vpop.f32.mrb[0].mxu0
    %v6153 = vpop.f32.mrb[0].mxu0
    %v6154 = vadd.f32 0.0, %v6153
    %v6155 = vpop.f32.mrb[0].mxu0
    %6156 = vmatprep.mubr.bf16.mxu0 0
    %6157 = vmatmul.mubr.bf16.gmra.mrb[0].mxu0 %v5923
    %v6158 = vpop.f32.mrb[0].mxu0
    %v6159 = vadd.f32 0.0, %v6158
    %v6160 = vpop.f32.mrb[0].mxu0
    %v6161 = vpop.f32.mrb[0].mxu0
    %v6162 = vadd.f32 0.0, %v6161
    %v6163 = vpop.f32.mrb[0].mxu0
    %6164 = vmatprep.mubr.bf16.mxu0 0
    %6165 = vmatmul.mubr.bf16.gmra.mrb[0].mxu0 %v5924
    %v6166 = vpop.f32.mrb[0].mxu0
    %v6167 = vadd.f32 0.0, %v6166
    %v6168 = vpop.f32.mrb[0].mxu0
    %v6169 = vpop.f32.mrb[0].mxu0
    %v6170 = vadd.f32 0.0, %v6169
    %v6171 = vpop.f32.mrb[0].mxu0
    %6172 = vmatprep.mubr.bf16.mxu0 0
    %6173 = vmatmul.mubr.bf16.gmra.mrb[0].mxu0 %v5925
    %v6174 = vpop.f32.mrb[0].mxu0
    %v6175 = vadd.f32 0.0, %v6174
    %v6176 = vpop.f32.mrb[0].mxu0
    %v6177 = vpop.f32.mrb[0].mxu0
    %v6178 = vadd.f32 0.0, %v6177
    %v6179 = vpop.f32.mrb[0].mxu0
    %6180 = vmatprep.mubr.bf16.mxu0 0
    %6181 = vmatmul.mubr.bf16.gmra.mrb[0].mxu0 %v5926
    %v6182 = vpop.f32.mrb[0].mxu0
    %v6183 = vadd.f32 0.0, %v6182
    %v6184 = vpop.f32.mrb[0].mxu0
    %v6185 = vpop.f32.mrb[0].mxu0
    %v6186 = vadd.f32 0.0, %v6185
    %v6187 = vpop.f32.mrb[0].mxu0
    %6188 = vmatprep.mubr.bf16.mxu0 0
    %6189 = vmatmul.mubr.bf16.gmra.mrb[0].mxu0 %v5927
    %v6190 = vpop.f32.mrb[0].mxu0
    %v6191 = vadd.f32 0.0, %v6190
    %v6192 = vpop.f32.mrb[0].mxu0
    %v6193 = vpop.f32.mrb[0].mxu0
    %v6194 = vadd.f32 0.0, %v6193
    %v6195 = vpop.f32.mrb[0].mxu0
    %6196 = vmatprep.mubr.bf16.mxu0 0
    %6197 = vmatmul.mubr.bf16.gmra.mrb[0].mxu0 %v5928
    %v6198 = vpop.f32.mrb[0].mxu0
    %v6199 = vadd.f32 0.0, %v6198
    %v6200 = vpop.f32.mrb[0].mxu0
    %v6201 = vpop.f32.mrb[0].mxu0
    %v6202 = vadd.f32 0.0, %v6201
    %v6203 = vpop.f32.mrb[0].mxu0
    %6204 = vmatprep.mubr.bf16.mxu0 0
    %6205 = vmatmul.mubr.bf16.gmra.mrb[0].mxu0 %v5929
    %v6206 = vpop.f32.mrb[0].mxu0
    %v6207 = vadd.f32 0.0, %v6206
    %v6208 = vpop.f32.mrb[0].mxu0
    %v6209 = vpop.f32.mrb[0].mxu0
    %v6210 = vadd.f32 0.0, %v6209
    %v6211 = vpop.f32.mrb[0].mxu0
    %6212 = vmatprep.mubr.bf16.mxu0 0
    %6213 = vmatmul.mubr.bf16.gmra.mrb[0].mxu0 %v5930
    %v6214 = vpop.f32.mrb[0].mxu0
    %v6215 = vadd.f32 0.0, %v6214
    %v6216 = vpop.f32.mrb[0].mxu0
    %v6217 = vpop.f32.mrb[0].mxu0
    %v6218 = vadd.f32 0.0, %v6217
    %v6219 = vpop.f32.mrb[0].mxu0
    %6220 = vmatprep.mubr.bf16.mxu0 0
    %6221 = vmatmul.mubr.bf16.gmra.mrb[0].mxu0 %v5931
    %v6222 = vpop.f32.mrb[0].mxu0
    %v6223 = vadd.f32 0.0, %v6222
    %v6224 = vpop.f32.mrb[0].mxu0
    %v6225 = vpop.f32.mrb[0].mxu0
    %v6226 = vadd.f32 0.0, %v6225
    %v6227 = vpop.f32.mrb[0].mxu0
    %6228 = vmatprep.mubr.bf16.mxu0 0
    %6229 = vmatmul.mubr.bf16.gmra.mrb[0].mxu0 %v5932
    %v6230 = vpop.f32.mrb[0].mxu0
    %v6231 = vadd.f32 0.0, %v6230
    %v6232 = vpop.f32.mrb[0].mxu0
    %v6233 = vpop.f32.mrb[0].mxu0
    %v6234 = vadd.f32 0.0, %v6233
    %v6235 = vpop.f32.mrb[0].mxu0
    %6236 = vmatprep.mubr.bf16.mxu0 0
    %6237 = vmatmul.mubr.bf16.gmra.mrb[0].mxu0 %v5933
    %v6238 = vpop.f32.mrb[0].mxu0
    %v6239 = vadd.f32 0.0, %v6238
    %v6240 = vpop.f32.mrb[0].mxu0
    %v6241 = vpop.f32.mrb[0].mxu0
    %v6242 = vadd.f32 0.0, %v6241
    %v6243 = vpop.f32.mrb[0].mxu0
    %6244 = vmatprep.mubr.bf16.mxu0 0
    %6245 = vmatmul.mubr.bf16.gmra.mrb[0].mxu0 %v5934
    %v6246 = vpop.f32.mrb[0].mxu0
    %v6247 = vadd.f32 0.0, %v6246
    %v6248 = vpop.f32.mrb[0].mxu0
    %v6249 = vpop.f32.mrb[0].mxu0
    %v6250 = vadd.f32 0.0, %v6249
    %v6251 = vpop.f32.mrb[0].mxu0
    %6252 = vmatprep.mubr.bf16.mxu0 0
    %6253 = vmatmul.mubr.bf16.gmra.mrb[0].mxu0 %v5935
    %v6254 = vpop.f32.mrb[0].mxu0
    %v6255 = vadd.f32 0.0, %v6254
    %v6256 = vpop.f32.mrb[0].mxu0
    %v6257 = vpop.f32.mrb[0].mxu0
    %v6258 = vadd.f32 0.0, %v6257
    %v6259 = vpop.f32.mrb[0].mxu0
    %6260 = vmatprep.mubr.bf16.mxu0 0
    %6261 = vmatmul.mubr.bf16.gmra.mrb[0].mxu0 %v5936
    %v6262 = vpop.f32.mrb[0].mxu0
    %v6263 = vadd.f32 0.0, %v6262
    %v6264 = vpop.f32.mrb[0].mxu0
    %v6265 = vpop.f32.mrb[0].mxu0
    %v6266 = vadd.f32 0.0, %v6265
    %v6267 = vpop.f32.mrb[0].mxu0
    %6268 = vmatprep.mubr.bf16.mxu0 0
    %6269 = vmatmul.mubr.bf16.gmra.mrb[0].mxu0 %v5937
    %v6270 = vpop.f32.mrb[0].mxu0
    %v6271 = vadd.f32 0.0, %v6270
    %v6272 = vpop.f32.mrb[0].mxu0
    %v6273 = vpop.f32.mrb[0].mxu0
    %v6274 = vadd.f32 0.0, %v6273
    %v6275 = vpop.f32.mrb[0].mxu0
    %6276 = vmatprep.mubr.bf16.mxu0 0
    %6277 = vmatmul.mubr.bf16.gmra.mrb[0].mxu0 %v5938
    %v6278 = vpop.f32.mrb[0].mxu0
    %v6279 = vadd.f32 0.0, %v6278
    %v6280 = vpop.f32.mrb[0].mxu0
    %v6281 = vpop.f32.mrb[0].mxu0
    %v6282 = vadd.f32 0.0, %v6281
    %v6283 = vpop.f32.mrb[0].mxu0
    %6284 = vmatprep.mubr.bf16.mxu0 0
    %6285 = vmatmul.mubr.bf16.gmra.mrb[0].mxu0 %v5939
    %v6286 = vpop.f32.mrb[0].mxu0
    %v6287 = vadd.f32 0.0, %v6286
    %v6288 = vpop.f32.mrb[0].mxu0
    %v6289 = vpop.f32.mrb[0].mxu0
    %v6290 = vadd.f32 0.0, %v6289
    %v6291 = vpop.f32.mrb[0].mxu0
    %6292 = vdwg.mxu0
    %v6293 = vld [vmem:[#allocation26] sm:$0xff]
    %v6294 = vld [vmem:[#allocation26 + $0x8] sm:$0xff]
    %v6295 = vld [vmem:[#allocation26 + $0x10] sm:$0xff]
    %v6296 = vld [vmem:[#allocation26 + $0x18] sm:$0xff]
    %v6297 = vld [vmem:[#allocation26 + $0x20] sm:$0xff]
    %v6298 = vld [vmem:[#allocation26 + $0x28] sm:$0xff]
    %v6299 = vld [vmem:[#allocation26 + $0x30] sm:$0xff]
    %v6300 = vld [vmem:[#allocation26 + $0x38] sm:$0xff]
    %v6301 = vld [vmem:[#allocation26 + $0x40] sm:$0xff]
    %v6302 = vld [vmem:[#allocation26 + $0x48] sm:$0xff]
    %v6303 = vld [vmem:[#allocation26 + $0x50] sm:$0xff]
    %v6304 = vld [vmem:[#allocation26 + $0x58] sm:$0xff]
    %v6305 = vld [vmem:[#allocation26 + $0x60] sm:$0xff]
    %v6306 = vld [vmem:[#allocation26 + $0x68] sm:$0xff]
    %v6307 = vld [vmem:[#allocation26 + $0x70] sm:$0xff]
    %v6308 = vld [vmem:[#allocation26 + $0x78] sm:$0xff]
    %v6309 = vld [vmem:[#allocation26 + $0x80] sm:$0xff]
    %v6310 = vld [vmem:[#allocation26 + $0x88] sm:$0xff]
    %v6311 = vld [vmem:[#allocation26 + $0x90] sm:$0xff]
    %v6312 = vld [vmem:[#allocation26 + $0x98] sm:$0xff]
    %v6313 = vld [vmem:[#allocation26 + $0xa0] sm:$0xff]
    %v6314 = vld [vmem:[#allocation26 + $0xa8] sm:$0xff]
    %v6315 = vld [vmem:[#allocation26 + $0xb0] sm:$0xff]
    %v6316 = vld [vmem:[#allocation26 + $0xb8] sm:$0xff]
    %v6317 = vld [vmem:[#allocation26 + $0xc0] sm:$0xff]
    %v6318 = vld [vmem:[#allocation26 + $0xc8] sm:$0xff]
    %v6319 = vld [vmem:[#allocation26 + $0xd0] sm:$0xff]
    %v6320 = vld [vmem:[#allocation26 + $0xd8] sm:$0xff]
    %v6321 = vld [vmem:[#allocation26 + $0xe0] sm:$0xff]
    %v6322 = vld [vmem:[#allocation26 + $0xe8] sm:$0xff]
    %v6323 = vld [vmem:[#allocation26 + $0xf0] sm:$0xff]
    %v6324 = vld [vmem:[#allocation26 + $0xf8] sm:$0xff]
    %v6325 = vld [vmem:[#allocation26 + $0x100] sm:$0xff]
    %v6326 = vld [vmem:[#allocation26 + $0x108] sm:$0xff]
    %v6327 = vld [vmem:[#allocation26 + $0x110] sm:$0xff]
    %v6328 = vld [vmem:[#allocation26 + $0x118] sm:$0xff]
    %v6329 = vld [vmem:[#allocation26 + $0x120] sm:$0xff]
    %v6330 = vld [vmem:[#allocation26 + $0x128] sm:$0xff]
    %v6331 = vld [vmem:[#allocation26 + $0x130] sm:$0xff]
    %v6332 = vld [vmem:[#allocation26 + $0x138] sm:$0xff]
    %v6333 = vld [vmem:[#allocation26 + $0x140] sm:$0xff]
    %v6334 = vld [vmem:[#allocation26 + $0x148] sm:$0xff]
    %v6335 = vld [vmem:[#allocation26 + $0x150] sm:$0xff]
    %v6336 = vld [vmem:[#allocation26 + $0x158] sm:$0xff]
    %v6337 = vld [vmem:[#allocation26 + $0x160] sm:$0xff]
    %v6338 = vld [vmem:[#allocation26 + $0x168] sm:$0xff]
    %v6339 = vld [vmem:[#allocation26 + $0x170] sm:$0xff]
    %v6340 = vld [vmem:[#allocation26 + $0x178] sm:$0xff]
    %v6341 = vld [vmem:[#allocation26 + $0x180] sm:$0xff]
    %v6342 = vld [vmem:[#allocation26 + $0x188] sm:$0xff]
    %v6343 = vld [vmem:[#allocation26 + $0x190] sm:$0xff]
    %v6344 = vld [vmem:[#allocation26 + $0x198] sm:$0xff]
    %v6345 = vld [vmem:[#allocation26 + $0x1a0] sm:$0xff]
    %v6346 = vld [vmem:[#allocation26 + $0x1a8] sm:$0xff]
    %v6347 = vld [vmem:[#allocation26 + $0x1b0] sm:$0xff]
    %v6348 = vld [vmem:[#allocation26 + $0x1b8] sm:$0xff]
    %v6349 = vld [vmem:[#allocation26 + $0x1c0] sm:$0xff]
    %v6350 = vld [vmem:[#allocation26 + $0x1c8] sm:$0xff]
    %v6351 = vld [vmem:[#allocation26 + $0x1d0] sm:$0xff]
    %v6352 = vld [vmem:[#allocation26 + $0x1d8] sm:$0xff]
    %v6353 = vld [vmem:[#allocation26 + $0x1e0] sm:$0xff]
    %v6354 = vld [vmem:[#allocation26 + $0x1e8] sm:$0xff]
    %v6355 = vld [vmem:[#allocation26 + $0x1f0] sm:$0xff]
    %v6356 = vld [vmem:[#allocation26 + $0x1f8] sm:$0xff]
    %v6357 = vld [vmem:[#allocation26 + $0x200] sm:$0xff]
    %v6358 = vld [vmem:[#allocation26 + $0x208] sm:$0xff]
    %v6359 = vld [vmem:[#allocation26 + $0x210] sm:$0xff]
    %v6360 = vld [vmem:[#allocation26 + $0x218] sm:$0xff]
    %v6361 = vld [vmem:[#allocation26 + $0x220] sm:$0xff]
    %v6362 = vld [vmem:[#allocation26 + $0x228] sm:$0xff]
    %v6363 = vld [vmem:[#allocation26 + $0x230] sm:$0xff]
    %v6364 = vld [vmem:[#allocation26 + $0x238] sm:$0xff]
    %v6365 = vld [vmem:[#allocation26 + $0x240] sm:$0xff]
    %v6366 = vld [vmem:[#allocation26 + $0x248] sm:$0xff]
    %v6367 = vld [vmem:[#allocation26 + $0x250] sm:$0xff]
    %v6368 = vld [vmem:[#allocation26 + $0x258] sm:$0xff]
    %v6369 = vld [vmem:[#allocation26 + $0x260] sm:$0xff]
    %v6370 = vld [vmem:[#allocation26 + $0x268] sm:$0xff]
    %v6371 = vld [vmem:[#allocation26 + $0x270] sm:$0xff]
    %v6372 = vld [vmem:[#allocation26 + $0x278] sm:$0xff]
    %v6373 = vld [vmem:[#allocation26 + $0x280] sm:$0xff]
    %v6374 = vld [vmem:[#allocation26 + $0x288] sm:$0xff]
    %v6375 = vld [vmem:[#allocation26 + $0x290] sm:$0xff]
    %v6376 = vld [vmem:[#allocation26 + $0x298] sm:$0xff]
    %v6377 = vld [vmem:[#allocation26 + $0x2a0] sm:$0xff]
    %v6378 = vld [vmem:[#allocation26 + $0x2a8] sm:$0xff]
    %v6379 = vld [vmem:[#allocation26 + $0x2b0] sm:$0xff]
    %v6380 = vld [vmem:[#allocation26 + $0x2b8] sm:$0xff]
    %v6381 = vld [vmem:[#allocation26 + $0x2c0] sm:$0xff]
    %v6382 = vld [vmem:[#allocation26 + $0x2c8] sm:$0xff]
    %v6383 = vld [vmem:[#allocation26 + $0x2d0] sm:$0xff]
    %v6384 = vld [vmem:[#allocation26 + $0x2d8] sm:$0xff]
    %v6385 = vld [vmem:[#allocation26 + $0x2e0] sm:$0xff]
    %v6386 = vld [vmem:[#allocation26 + $0x2e8] sm:$0xff]
    %v6387 = vld [vmem:[#allocation26 + $0x2f0] sm:$0xff]
    %v6388 = vld [vmem:[#allocation26 + $0x2f8] sm:$0xff]
    %v6389 = vld [vmem:[#allocation26 + $0x300] sm:$0xff]
    %v6390 = vld [vmem:[#allocation26 + $0x308] sm:$0xff]
    %v6391 = vld [vmem:[#allocation26 + $0x310] sm:$0xff]
    %v6392 = vld [vmem:[#allocation26 + $0x318] sm:$0xff]
    %v6393 = vld [vmem:[#allocation26 + $0x320] sm:$0xff]
    %v6394 = vld [vmem:[#allocation26 + $0x328] sm:$0xff]
    %v6395 = vld [vmem:[#allocation26 + $0x330] sm:$0xff]
    %v6396 = vld [vmem:[#allocation26 + $0x338] sm:$0xff]
    %v6397 = vld [vmem:[#allocation26 + $0x340] sm:$0xff]
    %v6398 = vld [vmem:[#allocation26 + $0x348] sm:$0xff]
    %v6399 = vld [vmem:[#allocation26 + $0x350] sm:$0xff]
    %v6400 = vld [vmem:[#allocation26 + $0x358] sm:$0xff]
    %v6401 = vld [vmem:[#allocation26 + $0x360] sm:$0xff]
    %v6402 = vld [vmem:[#allocation26 + $0x368] sm:$0xff]
    %v6403 = vld [vmem:[#allocation26 + $0x370] sm:$0xff]
    %v6404 = vld [vmem:[#allocation26 + $0x378] sm:$0xff]
    %v6405 = vld [vmem:[#allocation26 + $0x380] sm:$0xff]
    %v6406 = vld [vmem:[#allocation26 + $0x388] sm:$0xff]
    %v6407 = vld [vmem:[#allocation26 + $0x390] sm:$0xff]
    %v6408 = vld [vmem:[#allocation26 + $0x398] sm:$0xff]
    %v6409 = vld [vmem:[#allocation26 + $0x3a0] sm:$0xff]
    %v6410 = vld [vmem:[#allocation26 + $0x3a8] sm:$0xff]
    %v6411 = vld [vmem:[#allocation26 + $0x3b0] sm:$0xff]
    %v6412 = vld [vmem:[#allocation26 + $0x3b8] sm:$0xff]
    %v6413 = vld [vmem:[#allocation26 + $0x3c0] sm:$0xff]
    %v6414 = vld [vmem:[#allocation26 + $0x3c8] sm:$0xff]
    %v6415 = vld [vmem:[#allocation26 + $0x3d0] sm:$0xff]
    %v6416 = vld [vmem:[#allocation26 + $0x3d8] sm:$0xff]
    %v6417 = vld [vmem:[#allocation26 + $0x3e0] sm:$0xff]
    %v6418 = vld [vmem:[#allocation26 + $0x3e8] sm:$0xff]
    %v6419 = vld [vmem:[#allocation26 + $0x3f0] sm:$0xff]
    %v6420 = vld [vmem:[#allocation26 + $0x3f8] sm:$0xff]
    %v6421 = vld [vmem:[#allocation26 + $0x400] sm:$0xff]
    %v6422 = vld [vmem:[#allocation26 + $0x408] sm:$0xff]
    %v6423 = vld [vmem:[#allocation26 + $0x410] sm:$0xff]
    %v6424 = vld [vmem:[#allocation26 + $0x418] sm:$0xff]
    %v6425 = vld [vmem:[#allocation26 + $0x420] sm:$0xff]
    %v6426 = vld [vmem:[#allocation26 + $0x428] sm:$0xff]
    %v6427 = vld [vmem:[#allocation26 + $0x430] sm:$0xff]
    %v6428 = vld [vmem:[#allocation26 + $0x438] sm:$0xff]
    %v6429 = vld [vmem:[#allocation26 + $0x440] sm:$0xff]
    %v6430 = vld [vmem:[#allocation26 + $0x448] sm:$0xff]
    %v6431 = vld [vmem:[#allocation26 + $0x450] sm:$0xff]
    %v6432 = vld [vmem:[#allocation26 + $0x458] sm:$0xff]
    %v6433 = vld [vmem:[#allocation26 + $0x460] sm:$0xff]
    %v6434 = vld [vmem:[#allocation26 + $0x468] sm:$0xff]
    %v6435 = vld [vmem:[#allocation26 + $0x470] sm:$0xff]
    %v6436 = vld [vmem:[#allocation26 + $0x478] sm:$0xff]
    %v6437 = vld [vmem:[#allocation26 + $0x480] sm:$0xff]
    %v6438 = vld [vmem:[#allocation26 + $0x488] sm:$0xff]
    %v6439 = vld [vmem:[#allocation26 + $0x490] sm:$0xff]
    %v6440 = vld [vmem:[#allocation26 + $0x498] sm:$0xff]
    %v6441 = vld [vmem:[#allocation26 + $0x4a0] sm:$0xff]
    %v6442 = vld [vmem:[#allocation26 + $0x4a8] sm:$0xff]
    %v6443 = vld [vmem:[#allocation26 + $0x4b0] sm:$0xff]
    %v6444 = vld [vmem:[#allocation26 + $0x4b8] sm:$0xff]
    %v6445 = vld [vmem:[#allocation26 + $0x4c0] sm:$0xff]
    %v6446 = vld [vmem:[#allocation26 + $0x4c8] sm:$0xff]
    %v6447 = vld [vmem:[#allocation26 + $0x4d0] sm:$0xff]
    %v6448 = vld [vmem:[#allocation26 + $0x4d8] sm:$0xff]
    %v6449 = vld [vmem:[#allocation26 + $0x4e0] sm:$0xff]
    %v6450 = vld [vmem:[#allocation26 + $0x4e8] sm:$0xff]
    %v6451 = vld [vmem:[#allocation26 + $0x4f0] sm:$0xff]
    %v6452 = vld [vmem:[#allocation26 + $0x4f8] sm:$0xff]
    %v6453 = vld [vmem:[#allocation26 + $0x500] sm:$0xff]
    %v6454 = vld [vmem:[#allocation26 + $0x508] sm:$0xff]
    %v6455 = vld [vmem:[#allocation26 + $0x510] sm:$0xff]
    %v6456 = vld [vmem:[#allocation26 + $0x518] sm:$0xff]
    %v6457 = vld [vmem:[#allocation26 + $0x520] sm:$0xff]
    %v6458 = vld [vmem:[#allocation26 + $0x528] sm:$0xff]
    %v6459 = vld [vmem:[#allocation26 + $0x530] sm:$0xff]
    %v6460 = vld [vmem:[#allocation26 + $0x538] sm:$0xff]
    %v6461 = vld [vmem:[#allocation26 + $0x540] sm:$0xff]
    %v6462 = vld [vmem:[#allocation26 + $0x548] sm:$0xff]
    %v6463 = vld [vmem:[#allocation26 + $0x550] sm:$0xff]
    %v6464 = vld [vmem:[#allocation26 + $0x558] sm:$0xff]
    %v6465 = vld [vmem:[#allocation26 + $0x560] sm:$0xff]
    %v6466 = vld [vmem:[#allocation26 + $0x568] sm:$0xff]
    %v6467 = vld [vmem:[#allocation26 + $0x570] sm:$0xff]
    %v6468 = vld [vmem:[#allocation26 + $0x578] sm:$0xff]
    %v6469 = vld [vmem:[#allocation26 + $0x580] sm:$0xff]
    %v6470 = vld [vmem:[#allocation26 + $0x588] sm:$0xff]
    %v6471 = vld [vmem:[#allocation26 + $0x590] sm:$0xff]
    %v6472 = vld [vmem:[#allocation26 + $0x598] sm:$0xff]
    %v6473 = vld [vmem:[#allocation26 + $0x5a0] sm:$0xff]
    %v6474 = vld [vmem:[#allocation26 + $0x5a8] sm:$0xff]
    %v6475 = vld [vmem:[#allocation26 + $0x5b0] sm:$0xff]
    %v6476 = vld [vmem:[#allocation26 + $0x5b8] sm:$0xff]
    %v6477 = vld [vmem:[#allocation26 + $0x5c0] sm:$0xff]
    %v6478 = vld [vmem:[#allocation26 + $0x5c8] sm:$0xff]
    %v6479 = vld [vmem:[#allocation26 + $0x5d0] sm:$0xff]
    %v6480 = vld [vmem:[#allocation26 + $0x5d8] sm:$0xff]
    %v6481 = vld [vmem:[#allocation26 + $0x5e0] sm:$0xff]
    %v6482 = vld [vmem:[#allocation26 + $0x5e8] sm:$0xff]
    %v6483 = vld [vmem:[#allocation26 + $0x5f0] sm:$0xff]
    %v6484 = vld [vmem:[#allocation26 + $0x5f8] sm:$0xff]
    %v6485 = vld [vmem:[#allocation26 + $0x600] sm:$0xff]
    %v6486 = vld [vmem:[#allocation26 + $0x608] sm:$0xff]
    %v6487 = vld [vmem:[#allocation26 + $0x610] sm:$0xff]
    %v6488 = vld [vmem:[#allocation26 + $0x618] sm:$0xff]
    %v6489 = vld [vmem:[#allocation26 + $0x620] sm:$0xff]
    %v6490 = vld [vmem:[#allocation26 + $0x628] sm:$0xff]
    %v6491 = vld [vmem:[#allocation26 + $0x630] sm:$0xff]
    %v6492 = vld [vmem:[#allocation26 + $0x638] sm:$0xff]
    %v6493 = vld [vmem:[#allocation26 + $0x640] sm:$0xff]
    %v6494 = vld [vmem:[#allocation26 + $0x648] sm:$0xff]
    %v6495 = vld [vmem:[#allocation26 + $0x650] sm:$0xff]
    %v6496 = vld [vmem:[#allocation26 + $0x658] sm:$0xff]
    %v6497 = vld [vmem:[#allocation26 + $0x660] sm:$0xff]
    %v6498 = vld [vmem:[#allocation26 + $0x668] sm:$0xff]
    %v6499 = vld [vmem:[#allocation26 + $0x670] sm:$0xff]
    %v6500 = vld [vmem:[#allocation26 + $0x678] sm:$0xff]
    %v6501 = vld [vmem:[#allocation26 + $0x680] sm:$0xff]
    %v6502 = vld [vmem:[#allocation26 + $0x688] sm:$0xff]
    %v6503 = vld [vmem:[#allocation26 + $0x690] sm:$0xff]
    %v6504 = vld [vmem:[#allocation26 + $0x698] sm:$0xff]
    %v6505 = vld [vmem:[#allocation26 + $0x6a0] sm:$0xff]
    %v6506 = vld [vmem:[#allocation26 + $0x6a8] sm:$0xff]
    %v6507 = vld [vmem:[#allocation26 + $0x6b0] sm:$0xff]
    %v6508 = vld [vmem:[#allocation26 + $0x6b8] sm:$0xff]
    %v6509 = vld [vmem:[#allocation26 + $0x6c0] sm:$0xff]
    %v6510 = vld [vmem:[#allocation26 + $0x6c8] sm:$0xff]
    %v6511 = vld [vmem:[#allocation26 + $0x6d0] sm:$0xff]
    %v6512 = vld [vmem:[#allocation26 + $0x6d8] sm:$0xff]
    %v6513 = vld [vmem:[#allocation26 + $0x6e0] sm:$0xff]
    %v6514 = vld [vmem:[#allocation26 + $0x6e8] sm:$0xff]
    %v6515 = vld [vmem:[#allocation26 + $0x6f0] sm:$0xff]
    %v6516 = vld [vmem:[#allocation26 + $0x6f8] sm:$0xff]
    %v6517 = vld [vmem:[#allocation26 + $0x700] sm:$0xff]
    %v6518 = vld [vmem:[#allocation26 + $0x708] sm:$0xff]
    %v6519 = vld [vmem:[#allocation26 + $0x710] sm:$0xff]
    %v6520 = vld [vmem:[#allocation26 + $0x718] sm:$0xff]
    %v6521 = vld [vmem:[#allocation26 + $0x720] sm:$0xff]
    %v6522 = vld [vmem:[#allocation26 + $0x728] sm:$0xff]
    %v6523 = vld [vmem:[#allocation26 + $0x730] sm:$0xff]
    %v6524 = vld [vmem:[#allocation26 + $0x738] sm:$0xff]
    %v6525 = vld [vmem:[#allocation26 + $0x740] sm:$0xff]
    %v6526 = vld [vmem:[#allocation26 + $0x748] sm:$0xff]
    %v6527 = vld [vmem:[#allocation26 + $0x750] sm:$0xff]
    %v6528 = vld [vmem:[#allocation26 + $0x758] sm:$0xff]
    %v6529 = vld [vmem:[#allocation26 + $0x760] sm:$0xff]
    %v6530 = vld [vmem:[#allocation26 + $0x768] sm:$0xff]
    %v6531 = vld [vmem:[#allocation26 + $0x770] sm:$0xff]
    %v6532 = vld [vmem:[#allocation26 + $0x778] sm:$0xff]
    %v6533 = vld [vmem:[#allocation26 + $0x780] sm:$0xff]
    %v6534 = vld [vmem:[#allocation26 + $0x788] sm:$0xff]
    %v6535 = vld [vmem:[#allocation26 + $0x790] sm:$0xff]
    %v6536 = vld [vmem:[#allocation26 + $0x798] sm:$0xff]
    %v6537 = vld [vmem:[#allocation26 + $0x7a0] sm:$0xff]
    %v6538 = vld [vmem:[#allocation26 + $0x7a8] sm:$0xff]
    %v6539 = vld [vmem:[#allocation26 + $0x7b0] sm:$0xff]
    %v6540 = vld [vmem:[#allocation26 + $0x7b8] sm:$0xff]
    %v6541 = vld [vmem:[#allocation26 + $0x7c0] sm:$0xff]
    %v6542 = vld [vmem:[#allocation26 + $0x7c8] sm:$0xff]
    %v6543 = vld [vmem:[#allocation26 + $0x7d0] sm:$0xff]
    %v6544 = vld [vmem:[#allocation26 + $0x7d8] sm:$0xff]
    %v6545 = vld [vmem:[#allocation26 + $0x7e0] sm:$0xff]
    %v6546 = vld [vmem:[#allocation26 + $0x7e8] sm:$0xff]
    %v6547 = vld [vmem:[#allocation26 + $0x7f0] sm:$0xff]
    %v6548 = vld [vmem:[#allocation26 + $0x7f8] sm:$0xff]
    %6549 = vmatprep.subr.mxu0 0.0
    %6550 = vmatpush1.msra.mxu0 %v6039
    %6551 = vmatprep.subr.mxu0 0.0
    %6552 = vmatpush1.msra.mxu0 %v6042
    %6553 = vmatprep.subr.mxu0 0.0
    %6554 = vmatpush1.msra.mxu0 %v6047
    %6555 = vmatprep.subr.mxu0 0.0
    %6556 = vmatpush1.msra.mxu0 %v6050
    %6557 = vmatprep.subr.mxu0 0.0
    %6558 = vmatpush1.msra.mxu0 %v6055
    %6559 = vmatprep.subr.mxu0 0.0
    %6560 = vmatpush1.msra.mxu0 %v6058
    %6561 = vmatprep.subr.mxu0 0.0
    %6562 = vmatpush1.msra.mxu0 %v6063
    %6563 = vmatprep.subr.mxu0 0.0
    %6564 = vmatpush1.msra.mxu0 %v6066
    %6565 = vmatprep.subr.mxu0 0.0
    %6566 = vmatpush1.msra.mxu0 %v6071
    %6567 = vmatprep.subr.mxu0 0.0
    %6568 = vmatpush1.msra.mxu0 %v6074
    %6569 = vmatprep.subr.mxu0 0.0
    %6570 = vmatpush1.msra.mxu0 %v6079
    %6571 = vmatprep.subr.mxu0 0.0
    %6572 = vmatpush1.msra.mxu0 %v6082
    %6573 = vmatprep.subr.mxu0 0.0
    %6574 = vmatpush1.msra.mxu0 %v6087
    %6575 = vmatprep.subr.mxu0 0.0
    %6576 = vmatpush1.msra.mxu0 %v6090
    %6577 = vmatprep.subr.mxu0 0.0
    %6578 = vmatpush1.msra.mxu0 %v6095
    %6579 = vmatprep.subr.mxu0 0.0
    %6580 = vmatpush1.msra.mxu0 %v6098
    %6581 = vmatprep.subr.mxu0 0.0
    %6582 = vmatpush1.msra.mxu0 %v6103
    %6583 = vmatprep.subr.mxu0 0.0
    %6584 = vmatpush1.msra.mxu0 %v6106
    %6585 = vmatprep.subr.mxu0 0.0
    %6586 = vmatpush1.msra.mxu0 %v6111
    %6587 = vmatprep.subr.mxu0 0.0
    %6588 = vmatpush1.msra.mxu0 %v6114
    %6589 = vmatprep.subr.mxu0 0.0
    %6590 = vmatpush1.msra.mxu0 %v6119
    %6591 = vmatprep.subr.mxu0 0.0
    %6592 = vmatpush1.msra.mxu0 %v6122
    %6593 = vmatprep.subr.mxu0 0.0
    %6594 = vmatpush1.msra.mxu0 %v6127
    %6595 = vmatprep.subr.mxu0 0.0
    %6596 = vmatpush1.msra.mxu0 %v6130
    %6597 = vmatprep.subr.mxu0 0.0
    %6598 = vmatpush1.msra.mxu0 %v6135
    %6599 = vmatprep.subr.mxu0 0.0
    %6600 = vmatpush1.msra.mxu0 %v6138
    %6601 = vmatprep.subr.mxu0 0.0
    %6602 = vmatpush1.msra.mxu0 %v6143
    %6603 = vmatprep.subr.mxu0 0.0
    %6604 = vmatpush1.msra.mxu0 %v6146
    %6605 = vmatprep.subr.mxu0 0.0
    %6606 = vmatpush1.msra.mxu0 %v6151
    %6607 = vmatprep.subr.mxu0 0.0
    %6608 = vmatpush1.msra.mxu0 %v6154
    %6609 = vmatprep.subr.mxu0 0.0
    %6610 = vmatpush1.msra.mxu0 %v6159
    %6611 = vmatprep.subr.mxu0 0.0
    %6612 = vmatpush1.msra.mxu0 %v6162
    %6613 = vmatprep.mubr.f32.mxu0 %v6294
    %6614 = vmatmul.mubr.f32.gmra.mrb[0].mxu0 %v6293
    %v6615 = vpop.f32.mrb[0].mxu0
    %v6616 = vadd.f32 0.0, %v6615
    %v6617 = vpop.f32.mrb[0].mxu0
    %6618 = vmatprep.mubr.f32.mxu0 %v6296
    %6619 = vmatmul.mubr.f32.gmra.mrb[0].mxu0 %v6295
    %v6620 = vpop.f32.mrb[0].mxu0
    %v6621 = vadd.f32 0.0, %v6620
    %v6622 = vpop.f32.mrb[0].mxu0
    %6623 = vmatprep.mubr.f32.mxu0 %v6298
    %6624 = vmatmul.mubr.f32.gmra.mrb[0].mxu0 %v6297
    %v6625 = vpop.f32.mrb[0].mxu0
    %v6626 = vadd.f32 0.0, %v6625
    %v6627 = vpop.f32.mrb[0].mxu0
    %6628 = vmatprep.mubr.f32.mxu0 %v6300
    %6629 = vmatmul.mubr.f32.gmra.mrb[0].mxu0 %v6299
    %v6630 = vpop.f32.mrb[0].mxu0
    %v6631 = vadd.f32 0.0, %v6630
    %v6632 = vpop.f32.mrb[0].mxu0
    %6633 = vmatprep.mubr.f32.mxu0 %v6302
    %6634 = vmatmul.mubr.f32.gmra.mrb[0].mxu0 %v6301
    %v6635 = vpop.f32.mrb[0].mxu0
    %v6636 = vadd.f32 0.0, %v6635
    %v6637 = vpop.f32.mrb[0].mxu0
    %6638 = vmatprep.mubr.f32.mxu0 %v6304
    %6639 = vmatmul.mubr.f32.gmra.mrb[0].mxu0 %v6303
    %v6640 = vpop.f32.mrb[0].mxu0
    %v6641 = vadd.f32 0.0, %v6640
    %v6642 = vpop.f32.mrb[0].mxu0
    %6643 = vmatprep.mubr.f32.mxu0 %v6306
    %6644 = vmatmul.mubr.f32.gmra.mrb[0].mxu0 %v6305
    %v6645 = vpop.f32.mrb[0].mxu0
    %v6646 = vadd.f32 0.0, %v6645
    %v6647 = vpop.f32.mrb[0].mxu0
    %6648 = vmatprep.mubr.f32.mxu0 %v6308
    %6649 = vmatmul.mubr.f32.gmra.mrb[0].mxu0 %v6307
    %v6650 = vpop.f32.mrb[0].mxu0
    %v6651 = vadd.f32 0.0, %v6650
    %v6652 = vpop.f32.mrb[0].mxu0
    %6653 = vmatprep.mubr.f32.mxu0 %v6310
    %6654 = vmatmul.mubr.f32.gmra.mrb[0].mxu0 %v6309
    %v6655 = vpop.f32.mrb[0].mxu0
    %v6656 = vadd.f32 0.0, %v6655
    %v6657 = vpop.f32.mrb[0].mxu0
    %6658 = vmatprep.mubr.f32.mxu0 %v6312
    %6659 = vmatmul.mubr.f32.gmra.mrb[0].mxu0 %v6311
    %v6660 = vpop.f32.mrb[0].mxu0
    %v6661 = vadd.f32 0.0, %v6660
    %v6662 = vpop.f32.mrb[0].mxu0
    %6663 = vmatprep.mubr.f32.mxu0 %v6314
    %6664 = vmatmul.mubr.f32.gmra.mrb[0].mxu0 %v6313
    %v6665 = vpop.f32.mrb[0].mxu0
    %v6666 = vadd.f32 0.0, %v6665
    %v6667 = vpop.f32.mrb[0].mxu0
    %6668 = vmatprep.mubr.f32.mxu0 %v6316
    %6669 = vmatmul.mubr.f32.gmra.mrb[0].mxu0 %v6315
    %v6670 = vpop.f32.mrb[0].mxu0
    %v6671 = vadd.f32 0.0, %v6670
    %v6672 = vpop.f32.mrb[0].mxu0
    %6673 = vmatprep.mubr.f32.mxu0 %v6318
    %6674 = vmatmul.mubr.f32.gmra.mrb[0].mxu0 %v6317
    %v6675 = vpop.f32.mrb[0].mxu0
    %v6676 = vadd.f32 0.0, %v6675
    %v6677 = vpop.f32.mrb[0].mxu0
    %6678 = vmatprep.mubr.f32.mxu0 %v6320
    %6679 = vmatmul.mubr.f32.gmra.mrb[0].mxu0 %v6319
    %v6680 = vpop.f32.mrb[0].mxu0
    %v6681 = vadd.f32 0.0, %v6680
    %v6682 = vpop.f32.mrb[0].mxu0
    %6683 = vmatprep.mubr.f32.mxu0 %v6322
    %6684 = vmatmul.mubr.f32.gmra.mrb[0].mxu0 %v6321
    %v6685 = vpop.f32.mrb[0].mxu0
    %v6686 = vadd.f32 0.0, %v6685
    %v6687 = vpop.f32.mrb[0].mxu0
    %6688 = vmatprep.mubr.f32.mxu0 %v6324
    %6689 = vmatmul.mubr.f32.gmra.mrb[0].mxu0 %v6323
    %v6690 = vpop.f32.mrb[0].mxu0
    %v6691 = vadd.f32 0.0, %v6690
    %v6692 = vpop.f32.mrb[0].mxu0
    %6693 = vmatprep.mubr.f32.mxu0 %v6326
    %6694 = vmatmul.mubr.f32.gmra.mrb[0].mxu0 %v6325
    %v6695 = vpop.f32.mrb[0].mxu0
    %v6696 = vadd.f32 0.0, %v6695
    %v6697 = vpop.f32.mrb[0].mxu0
    %6698 = vmatprep.mubr.f32.mxu0 %v6328
    %6699 = vmatmul.mubr.f32.gmra.mrb[0].mxu0 %v6327
    %v6700 = vpop.f32.mrb[0].mxu0
    %v6701 = vadd.f32 0.0, %v6700
    %v6702 = vpop.f32.mrb[0].mxu0
    %6703 = vmatprep.mubr.f32.mxu0 %v6330
    %6704 = vmatmul.mubr.f32.gmra.mrb[0].mxu0 %v6329
    %v6705 = vpop.f32.mrb[0].mxu0
    %v6706 = vadd.f32 0.0, %v6705
    %v6707 = vpop.f32.mrb[0].mxu0
    %6708 = vmatprep.mubr.f32.mxu0 %v6332
    %6709 = vmatmul.mubr.f32.gmra.mrb[0].mxu0 %v6331
    %v6710 = vpop.f32.mrb[0].mxu0
    %v6711 = vadd.f32 0.0, %v6710
    %v6712 = vpop.f32.mrb[0].mxu0
    %6713 = vmatprep.mubr.f32.mxu0 %v6334
    %6714 = vmatmul.mubr.f32.gmra.mrb[0].mxu0 %v6333
    %v6715 = vpop.f32.mrb[0].mxu0
    %v6716 = vadd.f32 0.0, %v6715
    %v6717 = vpop.f32.mrb[0].mxu0
    %6718 = vmatprep.mubr.f32.mxu0 %v6336
    %6719 = vmatmul.mubr.f32.gmra.mrb[0].mxu0 %v6335
    %v6720 = vpop.f32.mrb[0].mxu0
    %v6721 = vadd.f32 0.0, %v6720
    %v6722 = vpop.f32.mrb[0].mxu0
    %6723 = vmatprep.mubr.f32.mxu0 %v6338
    %6724 = vmatmul.mubr.f32.gmra.mrb[0].mxu0 %v6337
    %v6725 = vpop.f32.mrb[0].mxu0
    %v6726 = vadd.f32 0.0, %v6725
    %v6727 = vpop.f32.mrb[0].mxu0
    %6728 = vmatprep.mubr.f32.mxu0 %v6340
    %6729 = vmatmul.mubr.f32.gmra.mrb[0].mxu0 %v6339
    %v6730 = vpop.f32.mrb[0].mxu0
    %v6731 = vadd.f32 0.0, %v6730
    %v6732 = vpop.f32.mrb[0].mxu0
    %6733 = vmatprep.mubr.f32.mxu0 %v6342
    %6734 = vmatmul.mubr.f32.gmra.mrb[0].mxu0 %v6341
    %v6735 = vpop.f32.mrb[0].mxu0
    %v6736 = vadd.f32 0.0, %v6735
    %v6737 = vpop.f32.mrb[0].mxu0
    %6738 = vmatprep.mubr.f32.mxu0 %v6344
    %6739 = vmatmul.mubr.f32.gmra.mrb[0].mxu0 %v6343
    %v6740 = vpop.f32.mrb[0].mxu0
    %v6741 = vadd.f32 0.0, %v6740
    %v6742 = vpop.f32.mrb[0].mxu0
    %6743 = vmatprep.mubr.f32.mxu0 %v6346
    %6744 = vmatmul.mubr.f32.gmra.mrb[0].mxu0 %v6345
    %v6745 = vpop.f32.mrb[0].mxu0
    %v6746 = vadd.f32 0.0, %v6745
    %v6747 = vpop.f32.mrb[0].mxu0
    %6748 = vmatprep.mubr.f32.mxu0 %v6348
    %6749 = vmatmul.mubr.f32.gmra.mrb[0].mxu0 %v6347
    %v6750 = vpop.f32.mrb[0].mxu0
    %v6751 = vadd.f32 0.0, %v6750
    %v6752 = vpop.f32.mrb[0].mxu0
    %6753 = vmatprep.mubr.f32.mxu0 %v6350
    %6754 = vmatmul.mubr.f32.gmra.mrb[0].mxu0 %v6349
    %v6755 = vpop.f32.mrb[0].mxu0
    %v6756 = vadd.f32 0.0, %v6755
    %v6757 = vpop.f32.mrb[0].mxu0
    %6758 = vmatprep.mubr.f32.mxu0 %v6352
    %6759 = vmatmul.mubr.f32.gmra.mrb[0].mxu0 %v6351
    %v6760 = vpop.f32.mrb[0].mxu0
    %v6761 = vadd.f32 0.0, %v6760
    %v6762 = vpop.f32.mrb[0].mxu0
    %6763 = vmatprep.mubr.f32.mxu0 %v6354
    %6764 = vmatmul.mubr.f32.gmra.mrb[0].mxu0 %v6353
    %v6765 = vpop.f32.mrb[0].mxu0
    %v6766 = vadd.f32 0.0, %v6765
    %v6767 = vpop.f32.mrb[0].mxu0
    %6768 = vmatprep.mubr.f32.mxu0 %v6356
    %6769 = vmatmul.mubr.f32.gmra.mrb[0].mxu0 %v6355
    %v6770 = vpop.f32.mrb[0].mxu0
    %v6771 = vadd.f32 0.0, %v6770
    %v6772 = vpop.f32.mrb[0].mxu0
    %6773 = vmatprep.mubr.f32.mxu0 %v6358
    %6774 = vmatmul.mubr.f32.gmra.mrb[0].mxu0 %v6357
    %v6775 = vpop.f32.mrb[0].mxu0
    %v6776 = vadd.f32 0.0, %v6775
    %v6777 = vpop.f32.mrb[0].mxu0
    %6778 = vmatprep.mubr.f32.mxu0 %v6360
    %6779 = vmatmul.mubr.f32.gmra.mrb[0].mxu0 %v6359
    %v6780 = vpop.f32.mrb[0].mxu0
    %v6781 = vadd.f32 0.0, %v6780
    %v6782 = vpop.f32.mrb[0].mxu0
    %6783 = vmatprep.mubr.f32.mxu0 %v6362
    %6784 = vmatmul.mubr.f32.gmra.mrb[0].mxu0 %v6361
    %v6785 = vpop.f32.mrb[0].mxu0
    %v6786 = vadd.f32 0.0, %v6785
    %v6787 = vpop.f32.mrb[0].mxu0
    %6788 = vmatprep.mubr.f32.mxu0 %v6364
    %6789 = vmatmul.mubr.f32.gmra.mrb[0].mxu0 %v6363
    %v6790 = vpop.f32.mrb[0].mxu0
    %v6791 = vadd.f32 0.0, %v6790
    %v6792 = vpop.f32.mrb[0].mxu0
    %6793 = vmatprep.mubr.f32.mxu0 %v6366
    %6794 = vmatmul.mubr.f32.gmra.mrb[0].mxu0 %v6365
    %v6795 = vpop.f32.mrb[0].mxu0
    %v6796 = vadd.f32 0.0, %v6795
    %v6797 = vpop.f32.mrb[0].mxu0
    %6798 = vmatprep.mubr.f32.mxu0 %v6368
    %6799 = vmatmul.mubr.f32.gmra.mrb[0].mxu0 %v6367
    %v6800 = vpop.f32.mrb[0].mxu0
    %v6801 = vadd.f32 0.0, %v6800
    %v6802 = vpop.f32.mrb[0].mxu0
    %6803 = vmatprep.mubr.f32.mxu0 %v6370
    %6804 = vmatmul.mubr.f32.gmra.mrb[0].mxu0 %v6369
    %v6805 = vpop.f32.mrb[0].mxu0
    %v6806 = vadd.f32 0.0, %v6805
    %v6807 = vpop.f32.mrb[0].mxu0
    %6808 = vmatprep.mubr.f32.mxu0 %v6372
    %6809 = vmatmul.mubr.f32.gmra.mrb[0].mxu0 %v6371
    %v6810 = vpop.f32.mrb[0].mxu0
    %v6811 = vadd.f32 0.0, %v6810
    %v6812 = vpop.f32.mrb[0].mxu0
    %6813 = vmatprep.mubr.f32.mxu0 %v6374
    %6814 = vmatmul.mubr.f32.gmra.mrb[0].mxu0 %v6373
    %v6815 = vpop.f32.mrb[0].mxu0
    %v6816 = vadd.f32 0.0, %v6815
    %v6817 = vpop.f32.mrb[0].mxu0
    %6818 = vmatprep.mubr.f32.mxu0 %v6376
    %6819 = vmatmul.mubr.f32.gmra.mrb[0].mxu0 %v6375
    %v6820 = vpop.f32.mrb[0].mxu0
    %v6821 = vadd.f32 0.0, %v6820
    %v6822 = vpop.f32.mrb[0].mxu0
    %6823 = vmatprep.mubr.f32.mxu0 %v6378
    %6824 = vmatmul.mubr.f32.gmra.mrb[0].mxu0 %v6377
    %v6825 = vpop.f32.mrb[0].mxu0
    %v6826 = vadd.f32 0.0, %v6825
    %v6827 = vpop.f32.mrb[0].mxu0
    %6828 = vmatprep.mubr.f32.mxu0 %v6380
    %6829 = vmatmul.mubr.f32.gmra.mrb[0].mxu0 %v6379
    %v6830 = vpop.f32.mrb[0].mxu0
    %v6831 = vadd.f32 0.0, %v6830
    %v6832 = vpop.f32.mrb[0].mxu0
    %6833 = vmatprep.mubr.f32.mxu0 %v6382
    %6834 = vmatmul.mubr.f32.gmra.mrb[0].mxu0 %v6381
    %v6835 = vpop.f32.mrb[0].mxu0
    %v6836 = vadd.f32 0.0, %v6835
    %v6837 = vpop.f32.mrb[0].mxu0
    %6838 = vmatprep.mubr.f32.mxu0 %v6384
    %6839 = vmatmul.mubr.f32.gmra.mrb[0].mxu0 %v6383
    %v6840 = vpop.f32.mrb[0].mxu0
    %v6841 = vadd.f32 0.0, %v6840
    %v6842 = vpop.f32.mrb[0].mxu0
    %6843 = vmatprep.mubr.f32.mxu0 %v6386
    %6844 = vmatmul.mubr.f32.gmra.mrb[0].mxu0 %v6385
    %v6845 = vpop.f32.mrb[0].mxu0
    %v6846 = vadd.f32 0.0, %v6845
    %v6847 = vpop.f32.mrb[0].mxu0
    %6848 = vmatprep.mubr.f32.mxu0 %v6388
    %6849 = vmatmul.mubr.f32.gmra.mrb[0].mxu0 %v6387
    %v6850 = vpop.f32.mrb[0].mxu0
    %v6851 = vadd.f32 0.0, %v6850
    %v6852 = vpop.f32.mrb[0].mxu0
    %6853 = vmatprep.mubr.f32.mxu0 %v6390
    %6854 = vmatmul.mubr.f32.gmra.mrb[0].mxu0 %v6389
    %v6855 = vpop.f32.mrb[0].mxu0
    %v6856 = vadd.f32 0.0, %v6855
    %v6857 = vpop.f32.mrb[0].mxu0
    %6858 = vmatprep.mubr.f32.mxu0 %v6392
    %6859 = vmatmul.mubr.f32.gmra.mrb[0].mxu0 %v6391
    %v6860 = vpop.f32.mrb[0].mxu0
    %v6861 = vadd.f32 0.0, %v6860
    %v6862 = vpop.f32.mrb[0].mxu0
    %6863 = vmatprep.mubr.f32.mxu0 %v6394
    %6864 = vmatmul.mubr.f32.gmra.mrb[0].mxu0 %v6393
    %v6865 = vpop.f32.mrb[0].mxu0
    %v6866 = vadd.f32 0.0, %v6865
    %v6867 = vpop.f32.mrb[0].mxu0
    %6868 = vmatprep.mubr.f32.mxu0 %v6396
    %6869 = vmatmul.mubr.f32.gmra.mrb[0].mxu0 %v6395
    %v6870 = vpop.f32.mrb[0].mxu0
    %v6871 = vadd.f32 0.0, %v6870
    %v6872 = vpop.f32.mrb[0].mxu0
    %6873 = vmatprep.mubr.f32.mxu0 %v6398
    %6874 = vmatmul.mubr.f32.gmra.mrb[0].mxu0 %v6397
    %v6875 = vpop.f32.mrb[0].mxu0
    %v6876 = vadd.f32 0.0, %v6875
    %v6877 = vpop.f32.mrb[0].mxu0
    %6878 = vmatprep.mubr.f32.mxu0 %v6400
    %6879 = vmatmul.mubr.f32.gmra.mrb[0].mxu0 %v6399
    %v6880 = vpop.f32.mrb[0].mxu0
    %v6881 = vadd.f32 0.0, %v6880
    %v6882 = vpop.f32.mrb[0].mxu0
    %6883 = vmatprep.mubr.f32.mxu0 %v6402
    %6884 = vmatmul.mubr.f32.gmra.mrb[0].mxu0 %v6401
    %v6885 = vpop.f32.mrb[0].mxu0
    %v6886 = vadd.f32 0.0, %v6885
    %v6887 = vpop.f32.mrb[0].mxu0
    %6888 = vmatprep.mubr.f32.mxu0 %v6404
    %6889 = vmatmul.mubr.f32.gmra.mrb[0].mxu0 %v6403
    %v6890 = vpop.f32.mrb[0].mxu0
    %v6891 = vadd.f32 0.0, %v6890
    %v6892 = vpop.f32.mrb[0].mxu0
    %6893 = vmatprep.mubr.f32.mxu0 %v6406
    %6894 = vmatmul.mubr.f32.gmra.mrb[0].mxu0 %v6405
    %v6895 = vpop.f32.mrb[0].mxu0
    %v6896 = vadd.f32 0.0, %v6895
    %v6897 = vpop.f32.mrb[0].mxu0
    %6898 = vmatprep.mubr.f32.mxu0 %v6408
    %6899 = vmatmul.mubr.f32.gmra.mrb[0].mxu0 %v6407
    %v6900 = vpop.f32.mrb[0].mxu0
    %v6901 = vadd.f32 0.0, %v6900
    %v6902 = vpop.f32.mrb[0].mxu0
    %6903 = vmatprep.mubr.f32.mxu0 %v6410
    %6904 = vmatmul.mubr.f32.gmra.mrb[0].mxu0 %v6409
    %v6905 = vpop.f32.mrb[0].mxu0
    %v6906 = vadd.f32 0.0, %v6905
    %v6907 = vpop.f32.mrb[0].mxu0
    %6908 = vmatprep.mubr.f32.mxu0 %v6412
    %6909 = vmatmul.mubr.f32.gmra.mrb[0].mxu0 %v6411
    %v6910 = vpop.f32.mrb[0].mxu0
    %v6911 = vadd.f32 0.0, %v6910
    %v6912 = vpop.f32.mrb[0].mxu0
    %6913 = vmatprep.mubr.f32.mxu0 %v6414
    %6914 = vmatmul.mubr.f32.gmra.mrb[0].mxu0 %v6413
    %v6915 = vpop.f32.mrb[0].mxu0
    %v6916 = vadd.f32 0.0, %v6915
    %v6917 = vpop.f32.mrb[0].mxu0
    %6918 = vmatprep.mubr.f32.mxu0 %v6416
    %6919 = vmatmul.mubr.f32.gmra.mrb[0].mxu0 %v6415
    %v6920 = vpop.f32.mrb[0].mxu0
    %v6921 = vadd.f32 0.0, %v6920
    %v6922 = vpop.f32.mrb[0].mxu0
    %6923 = vmatprep.mubr.f32.mxu0 %v6418
    %6924 = vmatmul.mubr.f32.gmra.mrb[0].mxu0 %v6417
    %v6925 = vpop.f32.mrb[0].mxu0
    %v6926 = vadd.f32 0.0, %v6925
    %v6927 = vpop.f32.mrb[0].mxu0
    %6928 = vmatprep.mubr.f32.mxu0 %v6420
    %6929 = vmatmul.mubr.f32.gmra.mrb[0].mxu0 %v6419
    %v6930 = vpop.f32.mrb[0].mxu0
    %v6931 = vadd.f32 0.0, %v6930
    %v6932 = vpop.f32.mrb[0].mxu0
    %6933 = vmatprep.mubr.f32.mxu0 %v6422
    %6934 = vmatmul.mubr.f32.gmra.mrb[0].mxu0 %v6421
    %v6935 = vpop.f32.mrb[0].mxu0
    %v6936 = vadd.f32 0.0, %v6935
    %v6937 = vpop.f32.mrb[0].mxu0
    %6938 = vmatprep.mubr.f32.mxu0 %v6424
    %6939 = vmatmul.mubr.f32.gmra.mrb[0].mxu0 %v6423
    %v6940 = vpop.f32.mrb[0].mxu0
    %v6941 = vadd.f32 0.0, %v6940
    %v6942 = vpop.f32.mrb[0].mxu0
    %6943 = vmatprep.mubr.f32.mxu0 %v6426
    %6944 = vmatmul.mubr.f32.gmra.mrb[0].mxu0 %v6425
    %v6945 = vpop.f32.mrb[0].mxu0
    %v6946 = vadd.f32 0.0, %v6945
    %v6947 = vpop.f32.mrb[0].mxu0
    %6948 = vmatprep.mubr.f32.mxu0 %v6428
    %6949 = vmatmul.mubr.f32.gmra.mrb[0].mxu0 %v6427
    %v6950 = vpop.f32.mrb[0].mxu0
    %v6951 = vadd.f32 0.0, %v6950
    %v6952 = vpop.f32.mrb[0].mxu0
    %6953 = vmatprep.mubr.f32.mxu0 %v6430
    %6954 = vmatmul.mubr.f32.gmra.mrb[0].mxu0 %v6429
    %v6955 = vpop.f32.mrb[0].mxu0
    %v6956 = vadd.f32 0.0, %v6955
    %v6957 = vpop.f32.mrb[0].mxu0
    %6958 = vmatprep.mubr.f32.mxu0 %v6432
    %6959 = vmatmul.mubr.f32.gmra.mrb[0].mxu0 %v6431
    %v6960 = vpop.f32.mrb[0].mxu0
    %v6961 = vadd.f32 0.0, %v6960
    %v6962 = vpop.f32.mrb[0].mxu0
    %6963 = vmatprep.mubr.f32.mxu0 %v6434
    %6964 = vmatmul.mubr.f32.gmra.mrb[0].mxu0 %v6433
    %v6965 = vpop.f32.mrb[0].mxu0
    %v6966 = vadd.f32 0.0, %v6965
    %v6967 = vpop.f32.mrb[0].mxu0
    %6968 = vmatprep.mubr.f32.mxu0 %v6436
    %6969 = vmatmul.mubr.f32.gmra.mrb[0].mxu0 %v6435
    %v6970 = vpop.f32.mrb[0].mxu0
    %v6971 = vadd.f32 0.0, %v6970
    %v6972 = vpop.f32.mrb[0].mxu0
    %6973 = vmatprep.mubr.f32.mxu0 %v6438
    %6974 = vmatmul.mubr.f32.gmra.mrb[0].mxu0 %v6437
    %v6975 = vpop.f32.mrb[0].mxu0
    %v6976 = vadd.f32 0.0, %v6975
    %v6977 = vpop.f32.mrb[0].mxu0
    %6978 = vmatprep.mubr.f32.mxu0 %v6440
    %6979 = vmatmul.mubr.f32.gmra.mrb[0].mxu0 %v6439
    %v6980 = vpop.f32.mrb[0].mxu0
    %v6981 = vadd.f32 0.0, %v6980
    %v6982 = vpop.f32.mrb[0].mxu0
    %6983 = vmatprep.mubr.f32.mxu0 %v6442
    %6984 = vmatmul.mubr.f32.gmra.mrb[0].mxu0 %v6441
    %v6985 = vpop.f32.mrb[0].mxu0
    %v6986 = vadd.f32 0.0, %v6985
    %v6987 = vpop.f32.mrb[0].mxu0
    %6988 = vmatprep.mubr.f32.mxu0 %v6444
    %6989 = vmatmul.mubr.f32.gmra.mrb[0].mxu0 %v6443
    %v6990 = vpop.f32.mrb[0].mxu0
    %v6991 = vadd.f32 0.0, %v6990
    %v6992 = vpop.f32.mrb[0].mxu0
    %6993 = vmatprep.mubr.f32.mxu0 %v6446
    %6994 = vmatmul.mubr.f32.gmra.mrb[0].mxu0 %v6445
    %v6995 = vpop.f32.mrb[0].mxu0
    %v6996 = vadd.f32 0.0, %v6995
    %v6997 = vpop.f32.mrb[0].mxu0
    %6998 = vmatprep.mubr.f32.mxu0 %v6448
    %6999 = vmatmul.mubr.f32.gmra.mrb[0].mxu0 %v6447
    %v7000 = vpop.f32.mrb[0].mxu0
    %v7001 = vadd.f32 0.0, %v7000
    %v7002 = vpop.f32.mrb[0].mxu0
    %7003 = vmatprep.mubr.f32.mxu0 %v6450
    %7004 = vmatmul.mubr.f32.gmra.mrb[0].mxu0 %v6449
    %v7005 = vpop.f32.mrb[0].mxu0
    %v7006 = vadd.f32 0.0, %v7005
    %v7007 = vpop.f32.mrb[0].mxu0
    %7008 = vmatprep.mubr.f32.mxu0 %v6452
    %7009 = vmatmul.mubr.f32.gmra.mrb[0].mxu0 %v6451
    %v7010 = vpop.f32.mrb[0].mxu0
    %v7011 = vadd.f32 0.0, %v7010
    %v7012 = vpop.f32.mrb[0].mxu0
    %7013 = vmatprep.mubr.f32.mxu0 %v6454
    %7014 = vmatmul.mubr.f32.gmra.mrb[0].mxu0 %v6453
    %v7015 = vpop.f32.mrb[0].mxu0
    %v7016 = vadd.f32 0.0, %v7015
    %v7017 = vpop.f32.mrb[0].mxu0
    %7018 = vmatprep.mubr.f32.mxu0 %v6456
    %7019 = vmatmul.mubr.f32.gmra.mrb[0].mxu0 %v6455
    %v7020 = vpop.f32.mrb[0].mxu0
    %v7021 = vadd.f32 0.0, %v7020
    %v7022 = vpop.f32.mrb[0].mxu0
    %7023 = vmatprep.mubr.f32.mxu0 %v6458
    %7024 = vmatmul.mubr.f32.gmra.mrb[0].mxu0 %v6457
    %v7025 = vpop.f32.mrb[0].mxu0
    %v7026 = vadd.f32 0.0, %v7025
    %v7027 = vpop.f32.mrb[0].mxu0
    %7028 = vmatprep.mubr.f32.mxu0 %v6460
    %7029 = vmatmul.mubr.f32.gmra.mrb[0].mxu0 %v6459
    %v7030 = vpop.f32.mrb[0].mxu0
    %v7031 = vadd.f32 0.0, %v7030
    %v7032 = vpop.f32.mrb[0].mxu0
    %7033 = vmatprep.mubr.f32.mxu0 %v6462
    %7034 = vmatmul.mubr.f32.gmra.mrb[0].mxu0 %v6461
    %v7035 = vpop.f32.mrb[0].mxu0
    %v7036 = vadd.f32 0.0, %v7035
    %v7037 = vpop.f32.mrb[0].mxu0
    %7038 = vmatprep.mubr.f32.mxu0 %v6464
    %7039 = vmatmul.mubr.f32.gmra.mrb[0].mxu0 %v6463
    %v7040 = vpop.f32.mrb[0].mxu0
    %v7041 = vadd.f32 0.0, %v7040
    %v7042 = vpop.f32.mrb[0].mxu0
    %7043 = vmatprep.mubr.f32.mxu0 %v6466
    %7044 = vmatmul.mubr.f32.gmra.mrb[0].mxu0 %v6465
    %v7045 = vpop.f32.mrb[0].mxu0
    %v7046 = vadd.f32 0.0, %v7045
    %v7047 = vpop.f32.mrb[0].mxu0
    %7048 = vmatprep.mubr.f32.mxu0 %v6468
    %7049 = vmatmul.mubr.f32.gmra.mrb[0].mxu0 %v6467
    %v7050 = vpop.f32.mrb[0].mxu0
    %v7051 = vadd.f32 0.0, %v7050
    %v7052 = vpop.f32.mrb[0].mxu0
    %7053 = vmatprep.mubr.f32.mxu0 %v6470
    %7054 = vmatmul.mubr.f32.gmra.mrb[0].mxu0 %v6469
    %v7055 = vpop.f32.mrb[0].mxu0
    %v7056 = vadd.f32 0.0, %v7055
    %v7057 = vpop.f32.mrb[0].mxu0
    %7058 = vmatprep.mubr.f32.mxu0 %v6472
    %7059 = vmatmul.mubr.f32.gmra.mrb[0].mxu0 %v6471
    %v7060 = vpop.f32.mrb[0].mxu0
    %v7061 = vadd.f32 0.0, %v7060
    %v7062 = vpop.f32.mrb[0].mxu0
    %7063 = vmatprep.mubr.f32.mxu0 %v6474
    %7064 = vmatmul.mubr.f32.gmra.mrb[0].mxu0 %v6473
    %v7065 = vpop.f32.mrb[0].mxu0
    %v7066 = vadd.f32 0.0, %v7065
    %v7067 = vpop.f32.mrb[0].mxu0
    %7068 = vmatprep.mubr.f32.mxu0 %v6476
    %7069 = vmatmul.mubr.f32.gmra.mrb[0].mxu0 %v6475
    %v7070 = vpop.f32.mrb[0].mxu0
    %v7071 = vadd.f32 0.0, %v7070
    %v7072 = vpop.f32.mrb[0].mxu0
    %7073 = vmatprep.mubr.f32.mxu0 %v6478
    %7074 = vmatmul.mubr.f32.gmra.mrb[0].mxu0 %v6477
    %v7075 = vpop.f32.mrb[0].mxu0
    %v7076 = vadd.f32 0.0, %v7075
    %v7077 = vpop.f32.mrb[0].mxu0
    %7078 = vmatprep.mubr.f32.mxu0 %v6480
    %7079 = vmatmul.mubr.f32.gmra.mrb[0].mxu0 %v6479
    %v7080 = vpop.f32.mrb[0].mxu0
    %v7081 = vadd.f32 0.0, %v7080
    %v7082 = vpop.f32.mrb[0].mxu0
    %7083 = vmatprep.mubr.f32.mxu0 %v6482
    %7084 = vmatmul.mubr.f32.gmra.mrb[0].mxu0 %v6481
    %v7085 = vpop.f32.mrb[0].mxu0
    %v7086 = vadd.f32 0.0, %v7085
    %v7087 = vpop.f32.mrb[0].mxu0
    %7088 = vmatprep.mubr.f32.mxu0 %v6484
    %7089 = vmatmul.mubr.f32.gmra.mrb[0].mxu0 %v6483
    %v7090 = vpop.f32.mrb[0].mxu0
    %v7091 = vadd.f32 0.0, %v7090
    %v7092 = vpop.f32.mrb[0].mxu0
    %7093 = vmatprep.mubr.f32.mxu0 %v6486
    %7094 = vmatmul.mubr.f32.gmra.mrb[0].mxu0 %v6485
    %v7095 = vpop.f32.mrb[0].mxu0
    %v7096 = vadd.f32 0.0, %v7095
    %v7097 = vpop.f32.mrb[0].mxu0
    %7098 = vmatprep.mubr.f32.mxu0 %v6488
    %7099 = vmatmul.mubr.f32.gmra.mrb[0].mxu0 %v6487
    %v7100 = vpop.f32.mrb[0].mxu0
    %v7101 = vadd.f32 0.0, %v7100
    %v7102 = vpop.f32.mrb[0].mxu0
    %7103 = vmatprep.mubr.f32.mxu0 %v6490
    %7104 = vmatmul.mubr.f32.gmra.mrb[0].mxu0 %v6489
    %v7105 = vpop.f32.mrb[0].mxu0
    %v7106 = vadd.f32 0.0, %v7105
    %v7107 = vpop.f32.mrb[0].mxu0
    %7108 = vmatprep.mubr.f32.mxu0 %v6492
    %7109 = vmatmul.mubr.f32.gmra.mrb[0].mxu0 %v6491
    %v7110 = vpop.f32.mrb[0].mxu0
    %v7111 = vadd.f32 0.0, %v7110
    %v7112 = vpop.f32.mrb[0].mxu0
    %7113 = vmatprep.mubr.f32.mxu0 %v6494
    %7114 = vmatmul.mubr.f32.gmra.mrb[0].mxu0 %v6493
    %v7115 = vpop.f32.mrb[0].mxu0
    %v7116 = vadd.f32 0.0, %v7115
    %v7117 = vpop.f32.mrb[0].mxu0
    %7118 = vmatprep.mubr.f32.mxu0 %v6496
    %7119 = vmatmul.mubr.f32.gmra.mrb[0].mxu0 %v6495
    %v7120 = vpop.f32.mrb[0].mxu0
    %v7121 = vadd.f32 0.0, %v7120
    %v7122 = vpop.f32.mrb[0].mxu0
    %7123 = vmatprep.mubr.f32.mxu0 %v6498
    %7124 = vmatmul.mubr.f32.gmra.mrb[0].mxu0 %v6497
    %v7125 = vpop.f32.mrb[0].mxu0
    %v7126 = vadd.f32 0.0, %v7125
    %v7127 = vpop.f32.mrb[0].mxu0
    %7128 = vmatprep.mubr.f32.mxu0 %v6500
    %7129 = vmatmul.mubr.f32.gmra.mrb[0].mxu0 %v6499
    %v7130 = vpop.f32.mrb[0].mxu0
    %v7131 = vadd.f32 0.0, %v7130
    %v7132 = vpop.f32.mrb[0].mxu0
    %7133 = vmatprep.mubr.f32.mxu0 %v6502
    %7134 = vmatmul.mubr.f32.gmra.mrb[0].mxu0 %v6501
    %v7135 = vpop.f32.mrb[0].mxu0
    %v7136 = vadd.f32 0.0, %v7135
    %v7137 = vpop.f32.mrb[0].mxu0
    %7138 = vmatprep.mubr.f32.mxu0 %v6504
    %7139 = vmatmul.mubr.f32.gmra.mrb[0].mxu0 %v6503
    %v7140 = vpop.f32.mrb[0].mxu0
    %v7141 = vadd.f32 0.0, %v7140
    %v7142 = vpop.f32.mrb[0].mxu0
    %7143 = vmatprep.mubr.f32.mxu0 %v6506
    %7144 = vmatmul.mubr.f32.gmra.mrb[0].mxu0 %v6505
    %v7145 = vpop.f32.mrb[0].mxu0
    %v7146 = vadd.f32 0.0, %v7145
    %v7147 = vpop.f32.mrb[0].mxu0
    %7148 = vmatprep.mubr.f32.mxu0 %v6508
    %7149 = vmatmul.mubr.f32.gmra.mrb[0].mxu0 %v6507
    %v7150 = vpop.f32.mrb[0].mxu0
    %v7151 = vadd.f32 0.0, %v7150
    %v7152 = vpop.f32.mrb[0].mxu0
    %7153 = vmatprep.mubr.f32.mxu0 %v6510
    %7154 = vmatmul.mubr.f32.gmra.mrb[0].mxu0 %v6509
    %v7155 = vpop.f32.mrb[0].mxu0
    %v7156 = vadd.f32 0.0, %v7155
    %v7157 = vpop.f32.mrb[0].mxu0
    %7158 = vmatprep.mubr.f32.mxu0 %v6512
    %7159 = vmatmul.mubr.f32.gmra.mrb[0].mxu0 %v6511
    %v7160 = vpop.f32.mrb[0].mxu0
    %v7161 = vadd.f32 0.0, %v7160
    %v7162 = vpop.f32.mrb[0].mxu0
    %7163 = vmatprep.mubr.f32.mxu0 %v6514
    %7164 = vmatmul.mubr.f32.gmra.mrb[0].mxu0 %v6513
    %v7165 = vpop.f32.mrb[0].mxu0
    %v7166 = vadd.f32 0.0, %v7165
    %v7167 = vpop.f32.mrb[0].mxu0
    %7168 = vmatprep.mubr.f32.mxu0 %v6516
    %7169 = vmatmul.mubr.f32.gmra.mrb[0].mxu0 %v6515
    %v7170 = vpop.f32.mrb[0].mxu0
    %v7171 = vadd.f32 0.0, %v7170
    %v7172 = vpop.f32.mrb[0].mxu0
    %7173 = vmatprep.mubr.f32.mxu0 %v6518
    %7174 = vmatmul.mubr.f32.gmra.mrb[0].mxu0 %v6517
    %v7175 = vpop.f32.mrb[0].mxu0
    %v7176 = vadd.f32 0.0, %v7175
    %v7177 = vpop.f32.mrb[0].mxu0
    %7178 = vmatprep.mubr.f32.mxu0 %v6520
    %7179 = vmatmul.mubr.f32.gmra.mrb[0].mxu0 %v6519
    %v7180 = vpop.f32.mrb[0].mxu0
    %v7181 = vadd.f32 0.0, %v7180
    %v7182 = vpop.f32.mrb[0].mxu0
    %7183 = vmatprep.mubr.f32.mxu0 %v6522
    %7184 = vmatmul.mubr.f32.gmra.mrb[0].mxu0 %v6521
    %v7185 = vpop.f32.mrb[0].mxu0
    %v7186 = vadd.f32 0.0, %v7185
    %v7187 = vpop.f32.mrb[0].mxu0
    %7188 = vmatprep.mubr.f32.mxu0 %v6524
    %7189 = vmatmul.mubr.f32.gmra.mrb[0].mxu0 %v6523
    %v7190 = vpop.f32.mrb[0].mxu0
    %v7191 = vadd.f32 0.0, %v7190
    %v7192 = vpop.f32.mrb[0].mxu0
    %7193 = vmatprep.mubr.f32.mxu0 %v6526
    %7194 = vmatmul.mubr.f32.gmra.mrb[0].mxu0 %v6525
    %v7195 = vpop.f32.mrb[0].mxu0
    %v7196 = vadd.f32 0.0, %v7195
    %v7197 = vpop.f32.mrb[0].mxu0
    %7198 = vmatprep.mubr.f32.mxu0 %v6528
    %7199 = vmatmul.mubr.f32.gmra.mrb[0].mxu0 %v6527
    %v7200 = vpop.f32.mrb[0].mxu0
    %v7201 = vadd.f32 0.0, %v7200
    %v7202 = vpop.f32.mrb[0].mxu0
    %7203 = vmatprep.mubr.f32.mxu0 %v6530
    %7204 = vmatmul.mubr.f32.gmra.mrb[0].mxu0 %v6529
    %v7205 = vpop.f32.mrb[0].mxu0
    %v7206 = vadd.f32 0.0, %v7205
    %v7207 = vpop.f32.mrb[0].mxu0
    %7208 = vmatprep.mubr.f32.mxu0 %v6532
    %7209 = vmatmul.mubr.f32.gmra.mrb[0].mxu0 %v6531
    %v7210 = vpop.f32.mrb[0].mxu0
    %v7211 = vadd.f32 0.0, %v7210
    %v7212 = vpop.f32.mrb[0].mxu0
    %7213 = vmatprep.mubr.f32.mxu0 %v6534
    %7214 = vmatmul.mubr.f32.gmra.mrb[0].mxu0 %v6533
    %v7215 = vpop.f32.mrb[0].mxu0
    %v7216 = vadd.f32 0.0, %v7215
    %v7217 = vpop.f32.mrb[0].mxu0
    %7218 = vmatprep.mubr.f32.mxu0 %v6536
    %7219 = vmatmul.mubr.f32.gmra.mrb[0].mxu0 %v6535
    %v7220 = vpop.f32.mrb[0].mxu0
    %v7221 = vadd.f32 0.0, %v7220
    %v7222 = vpop.f32.mrb[0].mxu0
    %7223 = vmatprep.mubr.f32.mxu0 %v6538
    %7224 = vmatmul.mubr.f32.gmra.mrb[0].mxu0 %v6537
    %v7225 = vpop.f32.mrb[0].mxu0
    %v7226 = vadd.f32 0.0, %v7225
    %v7227 = vpop.f32.mrb[0].mxu0
    %7228 = vmatprep.mubr.f32.mxu0 %v6540
    %7229 = vmatmul.mubr.f32.gmra.mrb[0].mxu0 %v6539
    %v7230 = vpop.f32.mrb[0].mxu0
    %v7231 = vadd.f32 0.0, %v7230
    %v7232 = vpop.f32.mrb[0].mxu0
    %7233 = vmatprep.mubr.f32.mxu0 %v6542
    %7234 = vmatmul.mubr.f32.gmra.mrb[0].mxu0 %v6541
    %v7235 = vpop.f32.mrb[0].mxu0
    %v7236 = vadd.f32 0.0, %v7235
    %v7237 = vpop.f32.mrb[0].mxu0
    %7238 = vmatprep.mubr.f32.mxu0 %v6544
    %7239 = vmatmul.mubr.f32.gmra.mrb[0].mxu0 %v6543
    %v7240 = vpop.f32.mrb[0].mxu0
    %v7241 = vadd.f32 0.0, %v7240
    %v7242 = vpop.f32.mrb[0].mxu0
    %7243 = vmatprep.mubr.f32.mxu0 %v6546
    %7244 = vmatmul.mubr.f32.gmra.mrb[0].mxu0 %v6545
    %v7245 = vpop.f32.mrb[0].mxu0
    %v7246 = vadd.f32 0.0, %v7245
    %v7247 = vpop.f32.mrb[0].mxu0
    %7248 = vmatprep.mubr.f32.mxu0 %v6548
    %7249 = vmatmul.mubr.f32.gmra.mrb[0].mxu0 %v6547
    %v7250 = vpop.f32.mrb[0].mxu0
    %v7251 = vadd.f32 0.0, %v7250
    %v7252 = vpop.f32.mrb[0].mxu0
    %7253 = vdwg.mxu0
    %7254 = vmatprep.subr.mxu0 0.0
    %7255 = vmatpush1.msra.mxu0 %v6167
    %7256 = vmatprep.subr.mxu0 0.0
    %7257 = vmatpush1.msra.mxu0 %v6170
    %7258 = vmatprep.subr.mxu0 0.0
    %7259 = vmatpush1.msra.mxu0 %v6175
    %7260 = vmatprep.subr.mxu0 0.0
    %7261 = vmatpush1.msra.mxu0 %v6178
    %7262 = vmatprep.subr.mxu0 0.0
    %7263 = vmatpush1.msra.mxu0 %v6183
    %7264 = vmatprep.subr.mxu0 0.0
    %7265 = vmatpush1.msra.mxu0 %v6186
    %7266 = vmatprep.subr.mxu0 0.0
    %7267 = vmatpush1.msra.mxu0 %v6191
    %7268 = vmatprep.subr.mxu0 0.0
    %7269 = vmatpush1.msra.mxu0 %v6194
    %7270 = vmatprep.subr.mxu0 0.0
    %7271 = vmatpush1.msra.mxu0 %v6199
    %7272 = vmatprep.subr.mxu0 0.0
    %7273 = vmatpush1.msra.mxu0 %v6202
    %7274 = vmatprep.subr.mxu0 0.0
    %7275 = vmatpush1.msra.mxu0 %v6207
    %7276 = vmatprep.subr.mxu0 0.0
    %7277 = vmatpush1.msra.mxu0 %v6210
    %7278 = vmatprep.subr.mxu0 0.0
    %7279 = vmatpush1.msra.mxu0 %v6215
    %7280 = vmatprep.subr.mxu0 0.0
    %7281 = vmatpush1.msra.mxu0 %v6218
    %7282 = vmatprep.subr.mxu0 0.0
    %7283 = vmatpush1.msra.mxu0 %v6223
    %7284 = vmatprep.subr.mxu0 0.0
    %7285 = vmatpush1.msra.mxu0 %v6226
    %7286 = vmatprep.subr.mxu0 0.0
    %7287 = vmatpush1.msra.mxu0 %v6231
    %7288 = vmatprep.subr.mxu0 0.0
    %7289 = vmatpush1.msra.mxu0 %v6234
    %7290 = vmatprep.subr.mxu0 0.0
    %7291 = vmatpush1.msra.mxu0 %v6239
    %7292 = vmatprep.subr.mxu0 0.0
    %7293 = vmatpush1.msra.mxu0 %v6242
    %7294 = vmatprep.subr.mxu0 0.0
    %7295 = vmatpush1.msra.mxu0 %v6247
    %7296 = vmatprep.subr.mxu0 0.0
    %7297 = vmatpush1.msra.mxu0 %v6250
    %7298 = vmatprep.subr.mxu0 0.0
    %7299 = vmatpush1.msra.mxu0 %v6255
    %7300 = vmatprep.subr.mxu0 0.0
    %7301 = vmatpush1.msra.mxu0 %v6258
    %7302 = vmatprep.subr.mxu0 0.0
    %7303 = vmatpush1.msra.mxu0 %v6263
    %7304 = vmatprep.subr.mxu0 0.0
    %7305 = vmatpush1.msra.mxu0 %v6266
    %7306 = vmatprep.subr.mxu0 0.0
    %7307 = vmatpush1.msra.mxu0 %v6271
    %7308 = vmatprep.subr.mxu0 0.0
    %7309 = vmatpush1.msra.mxu0 %v6274
    %7310 = vmatprep.subr.mxu0 0.0
    %7311 = vmatpush1.msra.mxu0 %v6279
    %7312 = vmatprep.subr.mxu0 0.0
    %7313 = vmatpush1.msra.mxu0 %v6282
    %7314 = vmatprep.subr.mxu0 0.0
    %7315 = vmatpush1.msra.mxu0 %v6287
    %7316 = vmatprep.subr.mxu0 0.0
    %7317 = vmatpush1.msra.mxu0 %v6290
    %7318 = vmatprep.mubr.f32.mxu0 %v6294
    %7319 = vmatmul.mubr.f32.gmra.mrb[0].mxu0 %v6293
    %v7320 = vpop.f32.mrb[0].mxu0
    %v7321 = vadd.f32 0.0, %v7320
    %v7322 = vpop.f32.mrb[0].mxu0
    %7323 = vmatprep.mubr.f32.mxu0 %v6296
    %7324 = vmatmul.mubr.f32.gmra.mrb[0].mxu0 %v6295
    %v7325 = vpop.f32.mrb[0].mxu0
    %v7326 = vadd.f32 0.0, %v7325
    %v7327 = vpop.f32.mrb[0].mxu0
    %7328 = vmatprep.mubr.f32.mxu0 %v6298
    %7329 = vmatmul.mubr.f32.gmra.mrb[0].mxu0 %v6297
    %v7330 = vpop.f32.mrb[0].mxu0
    %v7331 = vadd.f32 0.0, %v7330
    %v7332 = vpop.f32.mrb[0].mxu0
    %7333 = vmatprep.mubr.f32.mxu0 %v6300
    %7334 = vmatmul.mubr.f32.gmra.mrb[0].mxu0 %v6299
    %v7335 = vpop.f32.mrb[0].mxu0
    %v7336 = vadd.f32 0.0, %v7335
    %v7337 = vpop.f32.mrb[0].mxu0
    %7338 = vmatprep.mubr.f32.mxu0 %v6302
    %7339 = vmatmul.mubr.f32.gmra.mrb[0].mxu0 %v6301
    %v7340 = vpop.f32.mrb[0].mxu0
    %v7341 = vadd.f32 0.0, %v7340
    %v7342 = vpop.f32.mrb[0].mxu0
    %7343 = vmatprep.mubr.f32.mxu0 %v6304
    %7344 = vmatmul.mubr.f32.gmra.mrb[0].mxu0 %v6303
    %v7345 = vpop.f32.mrb[0].mxu0
    %v7346 = vadd.f32 0.0, %v7345
    %v7347 = vpop.f32.mrb[0].mxu0
    %7348 = vmatprep.mubr.f32.mxu0 %v6306
    %7349 = vmatmul.mubr.f32.gmra.mrb[0].mxu0 %v6305
    %v7350 = vpop.f32.mrb[0].mxu0
    %v7351 = vadd.f32 0.0, %v7350
    %v7352 = vpop.f32.mrb[0].mxu0
    %7353 = vmatprep.mubr.f32.mxu0 %v6308
    %7354 = vmatmul.mubr.f32.gmra.mrb[0].mxu0 %v6307
    %v7355 = vpop.f32.mrb[0].mxu0
    %v7356 = vadd.f32 0.0, %v7355
    %v7357 = vpop.f32.mrb[0].mxu0
    %7358 = vmatprep.mubr.f32.mxu0 %v6310
    %7359 = vmatmul.mubr.f32.gmra.mrb[0].mxu0 %v6309
    %v7360 = vpop.f32.mrb[0].mxu0
    %v7361 = vadd.f32 0.0, %v7360
    %v7362 = vpop.f32.mrb[0].mxu0
    %7363 = vmatprep.mubr.f32.mxu0 %v6312
    %7364 = vmatmul.mubr.f32.gmra.mrb[0].mxu0 %v6311
    %v7365 = vpop.f32.mrb[0].mxu0
    %v7366 = vadd.f32 0.0, %v7365
    %v7367 = vpop.f32.mrb[0].mxu0
    %7368 = vmatprep.mubr.f32.mxu0 %v6314
    %7369 = vmatmul.mubr.f32.gmra.mrb[0].mxu0 %v6313
    %v7370 = vpop.f32.mrb[0].mxu0
    %v7371 = vadd.f32 0.0, %v7370
    %v7372 = vpop.f32.mrb[0].mxu0
    %7373 = vmatprep.mubr.f32.mxu0 %v6316
    %7374 = vmatmul.mubr.f32.gmra.mrb[0].mxu0 %v6315
    %v7375 = vpop.f32.mrb[0].mxu0
    %v7376 = vadd.f32 0.0, %v7375
    %v7377 = vpop.f32.mrb[0].mxu0
    %7378 = vmatprep.mubr.f32.mxu0 %v6318
    %7379 = vmatmul.mubr.f32.gmra.mrb[0].mxu0 %v6317
    %v7380 = vpop.f32.mrb[0].mxu0
    %v7381 = vadd.f32 0.0, %v7380
    %v7382 = vpop.f32.mrb[0].mxu0
    %7383 = vmatprep.mubr.f32.mxu0 %v6320
    %7384 = vmatmul.mubr.f32.gmra.mrb[0].mxu0 %v6319
    %v7385 = vpop.f32.mrb[0].mxu0
    %v7386 = vadd.f32 0.0, %v7385
    %v7387 = vpop.f32.mrb[0].mxu0
    %7388 = vmatprep.mubr.f32.mxu0 %v6322
    %7389 = vmatmul.mubr.f32.gmra.mrb[0].mxu0 %v6321
    %v7390 = vpop.f32.mrb[0].mxu0
    %v7391 = vadd.f32 0.0, %v7390
    %v7392 = vpop.f32.mrb[0].mxu0
    %7393 = vmatprep.mubr.f32.mxu0 %v6324
    %7394 = vmatmul.mubr.f32.gmra.mrb[0].mxu0 %v6323
    %v7395 = vpop.f32.mrb[0].mxu0
    %v7396 = vadd.f32 0.0, %v7395
    %v7397 = vpop.f32.mrb[0].mxu0
    %7398 = vmatprep.mubr.f32.mxu0 %v6326
    %7399 = vmatmul.mubr.f32.gmra.mrb[0].mxu0 %v6325
    %v7400 = vpop.f32.mrb[0].mxu0
    %v7401 = vadd.f32 0.0, %v7400
    %v7402 = vpop.f32.mrb[0].mxu0
    %7403 = vmatprep.mubr.f32.mxu0 %v6328
    %7404 = vmatmul.mubr.f32.gmra.mrb[0].mxu0 %v6327
    %v7405 = vpop.f32.mrb[0].mxu0
    %v7406 = vadd.f32 0.0, %v7405
    %v7407 = vpop.f32.mrb[0].mxu0
    %7408 = vmatprep.mubr.f32.mxu0 %v6330
    %7409 = vmatmul.mubr.f32.gmra.mrb[0].mxu0 %v6329
    %v7410 = vpop.f32.mrb[0].mxu0
    %v7411 = vadd.f32 0.0, %v7410
    %v7412 = vpop.f32.mrb[0].mxu0
    %7413 = vmatprep.mubr.f32.mxu0 %v6332
    %7414 = vmatmul.mubr.f32.gmra.mrb[0].mxu0 %v6331
    %v7415 = vpop.f32.mrb[0].mxu0
    %v7416 = vadd.f32 0.0, %v7415
    %v7417 = vpop.f32.mrb[0].mxu0
    %7418 = vmatprep.mubr.f32.mxu0 %v6334
    %7419 = vmatmul.mubr.f32.gmra.mrb[0].mxu0 %v6333
    %v7420 = vpop.f32.mrb[0].mxu0
    %v7421 = vadd.f32 0.0, %v7420
    %v7422 = vpop.f32.mrb[0].mxu0
    %7423 = vmatprep.mubr.f32.mxu0 %v6336
    %7424 = vmatmul.mubr.f32.gmra.mrb[0].mxu0 %v6335
    %v7425 = vpop.f32.mrb[0].mxu0
    %v7426 = vadd.f32 0.0, %v7425
    %v7427 = vpop.f32.mrb[0].mxu0
    %7428 = vmatprep.mubr.f32.mxu0 %v6338
    %7429 = vmatmul.mubr.f32.gmra.mrb[0].mxu0 %v6337
    %v7430 = vpop.f32.mrb[0].mxu0
    %v7431 = vadd.f32 0.0, %v7430
    %v7432 = vpop.f32.mrb[0].mxu0
    %7433 = vmatprep.mubr.f32.mxu0 %v6340
    %7434 = vmatmul.mubr.f32.gmra.mrb[0].mxu0 %v6339
    %v7435 = vpop.f32.mrb[0].mxu0
    %v7436 = vadd.f32 0.0, %v7435
    %v7437 = vpop.f32.mrb[0].mxu0
    %7438 = vmatprep.mubr.f32.mxu0 %v6342
    %7439 = vmatmul.mubr.f32.gmra.mrb[0].mxu0 %v6341
    %v7440 = vpop.f32.mrb[0].mxu0
    %v7441 = vadd.f32 0.0, %v7440
    %v7442 = vpop.f32.mrb[0].mxu0
    %7443 = vmatprep.mubr.f32.mxu0 %v6344
    %7444 = vmatmul.mubr.f32.gmra.mrb[0].mxu0 %v6343
    %v7445 = vpop.f32.mrb[0].mxu0
    %v7446 = vadd.f32 0.0, %v7445
    %v7447 = vpop.f32.mrb[0].mxu0
    %7448 = vmatprep.mubr.f32.mxu0 %v6346
    %7449 = vmatmul.mubr.f32.gmra.mrb[0].mxu0 %v6345
    %v7450 = vpop.f32.mrb[0].mxu0
    %v7451 = vadd.f32 0.0, %v7450
    %v7452 = vpop.f32.mrb[0].mxu0
    %7453 = vmatprep.mubr.f32.mxu0 %v6348
    %7454 = vmatmul.mubr.f32.gmra.mrb[0].mxu0 %v6347
    %v7455 = vpop.f32.mrb[0].mxu0
    %v7456 = vadd.f32 0.0, %v7455
    %v7457 = vpop.f32.mrb[0].mxu0
    %7458 = vmatprep.mubr.f32.mxu0 %v6350
    %7459 = vmatmul.mubr.f32.gmra.mrb[0].mxu0 %v6349
    %v7460 = vpop.f32.mrb[0].mxu0
    %v7461 = vadd.f32 0.0, %v7460
    %v7462 = vpop.f32.mrb[0].mxu0
    %7463 = vmatprep.mubr.f32.mxu0 %v6352
    %7464 = vmatmul.mubr.f32.gmra.mrb[0].mxu0 %v6351
    %v7465 = vpop.f32.mrb[0].mxu0
    %v7466 = vadd.f32 0.0, %v7465
    %v7467 = vpop.f32.mrb[0].mxu0
    %7468 = vmatprep.mubr.f32.mxu0 %v6354
    %7469 = vmatmul.mubr.f32.gmra.mrb[0].mxu0 %v6353
    %v7470 = vpop.f32.mrb[0].mxu0
    %v7471 = vadd.f32 0.0, %v7470
    %v7472 = vpop.f32.mrb[0].mxu0
    %7473 = vmatprep.mubr.f32.mxu0 %v6356
    %7474 = vmatmul.mubr.f32.gmra.mrb[0].mxu0 %v6355
    %v7475 = vpop.f32.mrb[0].mxu0
    %v7476 = vadd.f32 0.0, %v7475
    %v7477 = vpop.f32.mrb[0].mxu0
    %7478 = vmatprep.mubr.f32.mxu0 %v6358
    %7479 = vmatmul.mubr.f32.gmra.mrb[0].mxu0 %v6357
    %v7480 = vpop.f32.mrb[0].mxu0
    %v7481 = vadd.f32 0.0, %v7480
    %v7482 = vpop.f32.mrb[0].mxu0
    %7483 = vmatprep.mubr.f32.mxu0 %v6360
    %7484 = vmatmul.mubr.f32.gmra.mrb[0].mxu0 %v6359
    %v7485 = vpop.f32.mrb[0].mxu0
    %v7486 = vadd.f32 0.0, %v7485
    %v7487 = vpop.f32.mrb[0].mxu0
    %7488 = vmatprep.mubr.f32.mxu0 %v6362
    %7489 = vmatmul.mubr.f32.gmra.mrb[0].mxu0 %v6361
    %v7490 = vpop.f32.mrb[0].mxu0
    %v7491 = vadd.f32 0.0, %v7490
    %v7492 = vpop.f32.mrb[0].mxu0
    %7493 = vmatprep.mubr.f32.mxu0 %v6364
    %7494 = vmatmul.mubr.f32.gmra.mrb[0].mxu0 %v6363
    %v7495 = vpop.f32.mrb[0].mxu0
    %v7496 = vadd.f32 0.0, %v7495
    %v7497 = vpop.f32.mrb[0].mxu0
    %7498 = vmatprep.mubr.f32.mxu0 %v6366
    %7499 = vmatmul.mubr.f32.gmra.mrb[0].mxu0 %v6365
    %v7500 = vpop.f32.mrb[0].mxu0
    %v7501 = vadd.f32 0.0, %v7500
    %v7502 = vpop.f32.mrb[0].mxu0
    %7503 = vmatprep.mubr.f32.mxu0 %v6368
    %7504 = vmatmul.mubr.f32.gmra.mrb[0].mxu0 %v6367
    %v7505 = vpop.f32.mrb[0].mxu0
    %v7506 = vadd.f32 0.0, %v7505
    %v7507 = vpop.f32.mrb[0].mxu0
    %7508 = vmatprep.mubr.f32.mxu0 %v6370
    %7509 = vmatmul.mubr.f32.gmra.mrb[0].mxu0 %v6369
    %v7510 = vpop.f32.mrb[0].mxu0
    %v7511 = vadd.f32 0.0, %v7510
    %v7512 = vpop.f32.mrb[0].mxu0
    %7513 = vmatprep.mubr.f32.mxu0 %v6372
    %7514 = vmatmul.mubr.f32.gmra.mrb[0].mxu0 %v6371
    %v7515 = vpop.f32.mrb[0].mxu0
    %v7516 = vadd.f32 0.0, %v7515
    %v7517 = vpop.f32.mrb[0].mxu0
    %7518 = vmatprep.mubr.f32.mxu0 %v6374
    %7519 = vmatmul.mubr.f32.gmra.mrb[0].mxu0 %v6373
    %v7520 = vpop.f32.mrb[0].mxu0
    %v7521 = vadd.f32 0.0, %v7520
    %v7522 = vpop.f32.mrb[0].mxu0
    %7523 = vmatprep.mubr.f32.mxu0 %v6376
    %7524 = vmatmul.mubr.f32.gmra.mrb[0].mxu0 %v6375
    %v7525 = vpop.f32.mrb[0].mxu0
    %v7526 = vadd.f32 0.0, %v7525
    %v7527 = vpop.f32.mrb[0].mxu0
    %7528 = vmatprep.mubr.f32.mxu0 %v6378
    %7529 = vmatmul.mubr.f32.gmra.mrb[0].mxu0 %v6377
    %v7530 = vpop.f32.mrb[0].mxu0
    %v7531 = vadd.f32 0.0, %v7530
    %v7532 = vpop.f32.mrb[0].mxu0
    %7533 = vmatprep.mubr.f32.mxu0 %v6380
    %7534 = vmatmul.mubr.f32.gmra.mrb[0].mxu0 %v6379
    %v7535 = vpop.f32.mrb[0].mxu0
    %v7536 = vadd.f32 0.0, %v7535
    %v7537 = vpop.f32.mrb[0].mxu0
    %7538 = vmatprep.mubr.f32.mxu0 %v6382
    %7539 = vmatmul.mubr.f32.gmra.mrb[0].mxu0 %v6381
    %v7540 = vpop.f32.mrb[0].mxu0
    %v7541 = vadd.f32 0.0, %v7540
    %v7542 = vpop.f32.mrb[0].mxu0
    %7543 = vmatprep.mubr.f32.mxu0 %v6384
    %7544 = vmatmul.mubr.f32.gmra.mrb[0].mxu0 %v6383
    %v7545 = vpop.f32.mrb[0].mxu0
    %v7546 = vadd.f32 0.0, %v7545
    %v7547 = vpop.f32.mrb[0].mxu0
    %7548 = vmatprep.mubr.f32.mxu0 %v6386
    %7549 = vmatmul.mubr.f32.gmra.mrb[0].mxu0 %v6385
    %v7550 = vpop.f32.mrb[0].mxu0
    %v7551 = vadd.f32 0.0, %v7550
    %v7552 = vpop.f32.mrb[0].mxu0
    %7553 = vmatprep.mubr.f32.mxu0 %v6388
    %7554 = vmatmul.mubr.f32.gmra.mrb[0].mxu0 %v6387
    %v7555 = vpop.f32.mrb[0].mxu0
    %v7556 = vadd.f32 0.0, %v7555
    %v7557 = vpop.f32.mrb[0].mxu0
    %7558 = vmatprep.mubr.f32.mxu0 %v6390
    %7559 = vmatmul.mubr.f32.gmra.mrb[0].mxu0 %v6389
    %v7560 = vpop.f32.mrb[0].mxu0
    %v7561 = vadd.f32 0.0, %v7560
    %v7562 = vpop.f32.mrb[0].mxu0
    %7563 = vmatprep.mubr.f32.mxu0 %v6392
    %7564 = vmatmul.mubr.f32.gmra.mrb[0].mxu0 %v6391
    %v7565 = vpop.f32.mrb[0].mxu0
    %v7566 = vadd.f32 0.0, %v7565
    %v7567 = vpop.f32.mrb[0].mxu0
    %7568 = vmatprep.mubr.f32.mxu0 %v6394
    %7569 = vmatmul.mubr.f32.gmra.mrb[0].mxu0 %v6393
    %v7570 = vpop.f32.mrb[0].mxu0
    %v7571 = vadd.f32 0.0, %v7570
    %v7572 = vpop.f32.mrb[0].mxu0
    %7573 = vmatprep.mubr.f32.mxu0 %v6396
    %7574 = vmatmul.mubr.f32.gmra.mrb[0].mxu0 %v6395
    %v7575 = vpop.f32.mrb[0].mxu0
    %v7576 = vadd.f32 0.0, %v7575
    %v7577 = vpop.f32.mrb[0].mxu0
    %7578 = vmatprep.mubr.f32.mxu0 %v6398
    %7579 = vmatmul.mubr.f32.gmra.mrb[0].mxu0 %v6397
    %v7580 = vpop.f32.mrb[0].mxu0
    %v7581 = vadd.f32 0.0, %v7580
    %v7582 = vpop.f32.mrb[0].mxu0
    %7583 = vmatprep.mubr.f32.mxu0 %v6400
    %7584 = vmatmul.mubr.f32.gmra.mrb[0].mxu0 %v6399
    %v7585 = vpop.f32.mrb[0].mxu0
    %v7586 = vadd.f32 0.0, %v7585
    %v7587 = vpop.f32.mrb[0].mxu0
    %7588 = vmatprep.mubr.f32.mxu0 %v6402
    %7589 = vmatmul.mubr.f32.gmra.mrb[0].mxu0 %v6401
    %v7590 = vpop.f32.mrb[0].mxu0
    %v7591 = vadd.f32 0.0, %v7590
    %v7592 = vpop.f32.mrb[0].mxu0
    %7593 = vmatprep.mubr.f32.mxu0 %v6404
    %7594 = vmatmul.mubr.f32.gmra.mrb[0].mxu0 %v6403
    %v7595 = vpop.f32.mrb[0].mxu0
    %v7596 = vadd.f32 0.0, %v7595
    %v7597 = vpop.f32.mrb[0].mxu0
    %7598 = vmatprep.mubr.f32.mxu0 %v6406
    %7599 = vmatmul.mubr.f32.gmra.mrb[0].mxu0 %v6405
    %v7600 = vpop.f32.mrb[0].mxu0
    %v7601 = vadd.f32 0.0, %v7600
    %v7602 = vpop.f32.mrb[0].mxu0
    %7603 = vmatprep.mubr.f32.mxu0 %v6408
    %7604 = vmatmul.mubr.f32.gmra.mrb[0].mxu0 %v6407
    %v7605 = vpop.f32.mrb[0].mxu0
    %v7606 = vadd.f32 0.0, %v7605
    %v7607 = vpop.f32.mrb[0].mxu0
    %7608 = vmatprep.mubr.f32.mxu0 %v6410
    %7609 = vmatmul.mubr.f32.gmra.mrb[0].mxu0 %v6409
    %v7610 = vpop.f32.mrb[0].mxu0
    %v7611 = vadd.f32 0.0, %v7610
    %v7612 = vpop.f32.mrb[0].mxu0
    %7613 = vmatprep.mubr.f32.mxu0 %v6412
    %7614 = vmatmul.mubr.f32.gmra.mrb[0].mxu0 %v6411
    %v7615 = vpop.f32.mrb[0].mxu0
    %v7616 = vadd.f32 0.0, %v7615
    %v7617 = vpop.f32.mrb[0].mxu0
    %7618 = vmatprep.mubr.f32.mxu0 %v6414
    %7619 = vmatmul.mubr.f32.gmra.mrb[0].mxu0 %v6413
    %v7620 = vpop.f32.mrb[0].mxu0
    %v7621 = vadd.f32 0.0, %v7620
    %v7622 = vpop.f32.mrb[0].mxu0
    %7623 = vmatprep.mubr.f32.mxu0 %v6416
    %7624 = vmatmul.mubr.f32.gmra.mrb[0].mxu0 %v6415
    %v7625 = vpop.f32.mrb[0].mxu0
    %v7626 = vadd.f32 0.0, %v7625
    %v7627 = vpop.f32.mrb[0].mxu0
    %7628 = vmatprep.mubr.f32.mxu0 %v6418
    %7629 = vmatmul.mubr.f32.gmra.mrb[0].mxu0 %v6417
    %v7630 = vpop.f32.mrb[0].mxu0
    %v7631 = vadd.f32 0.0, %v7630
    %v7632 = vpop.f32.mrb[0].mxu0
    %7633 = vmatprep.mubr.f32.mxu0 %v6420
    %7634 = vmatmul.mubr.f32.gmra.mrb[0].mxu0 %v6419
    %v7635 = vpop.f32.mrb[0].mxu0
    %v7636 = vadd.f32 0.0, %v7635
    %v7637 = vpop.f32.mrb[0].mxu0
    %7638 = vmatprep.mubr.f32.mxu0 %v6422
    %7639 = vmatmul.mubr.f32.gmra.mrb[0].mxu0 %v6421
    %v7640 = vpop.f32.mrb[0].mxu0
    %v7641 = vadd.f32 0.0, %v7640
    %v7642 = vpop.f32.mrb[0].mxu0
    %7643 = vmatprep.mubr.f32.mxu0 %v6424
    %7644 = vmatmul.mubr.f32.gmra.mrb[0].mxu0 %v6423
    %v7645 = vpop.f32.mrb[0].mxu0
    %v7646 = vadd.f32 0.0, %v7645
    %v7647 = vpop.f32.mrb[0].mxu0
    %7648 = vmatprep.mubr.f32.mxu0 %v6426
    %7649 = vmatmul.mubr.f32.gmra.mrb[0].mxu0 %v6425
    %v7650 = vpop.f32.mrb[0].mxu0
    %v7651 = vadd.f32 0.0, %v7650
    %v7652 = vpop.f32.mrb[0].mxu0
    %7653 = vmatprep.mubr.f32.mxu0 %v6428
    %7654 = vmatmul.mubr.f32.gmra.mrb[0].mxu0 %v6427
    %v7655 = vpop.f32.mrb[0].mxu0
    %v7656 = vadd.f32 0.0, %v7655
    %v7657 = vpop.f32.mrb[0].mxu0
    %7658 = vmatprep.mubr.f32.mxu0 %v6430
    %7659 = vmatmul.mubr.f32.gmra.mrb[0].mxu0 %v6429
    %v7660 = vpop.f32.mrb[0].mxu0
    %v7661 = vadd.f32 0.0, %v7660
    %v7662 = vpop.f32.mrb[0].mxu0
    %7663 = vmatprep.mubr.f32.mxu0 %v6432
    %7664 = vmatmul.mubr.f32.gmra.mrb[0].mxu0 %v6431
    %v7665 = vpop.f32.mrb[0].mxu0
    %v7666 = vadd.f32 0.0, %v7665
    %v7667 = vpop.f32.mrb[0].mxu0
    %7668 = vmatprep.mubr.f32.mxu0 %v6434
    %7669 = vmatmul.mubr.f32.gmra.mrb[0].mxu0 %v6433
    %v7670 = vpop.f32.mrb[0].mxu0
    %v7671 = vadd.f32 0.0, %v7670
    %v7672 = vpop.f32.mrb[0].mxu0
    %7673 = vmatprep.mubr.f32.mxu0 %v6436
    %7674 = vmatmul.mubr.f32.gmra.mrb[0].mxu0 %v6435
    %v7675 = vpop.f32.mrb[0].mxu0
    %v7676 = vadd.f32 0.0, %v7675
    %v7677 = vpop.f32.mrb[0].mxu0
    %7678 = vmatprep.mubr.f32.mxu0 %v6438
    %7679 = vmatmul.mubr.f32.gmra.mrb[0].mxu0 %v6437
    %v7680 = vpop.f32.mrb[0].mxu0
    %v7681 = vadd.f32 0.0, %v7680
    %v7682 = vpop.f32.mrb[0].mxu0
    %7683 = vmatprep.mubr.f32.mxu0 %v6440
    %7684 = vmatmul.mubr.f32.gmra.mrb[0].mxu0 %v6439
    %v7685 = vpop.f32.mrb[0].mxu0
    %v7686 = vadd.f32 0.0, %v7685
    %v7687 = vpop.f32.mrb[0].mxu0
    %7688 = vmatprep.mubr.f32.mxu0 %v6442
    %7689 = vmatmul.mubr.f32.gmra.mrb[0].mxu0 %v6441
    %v7690 = vpop.f32.mrb[0].mxu0
    %v7691 = vadd.f32 0.0, %v7690
    %v7692 = vpop.f32.mrb[0].mxu0
    %7693 = vmatprep.mubr.f32.mxu0 %v6444
    %7694 = vmatmul.mubr.f32.gmra.mrb[0].mxu0 %v6443
    %v7695 = vpop.f32.mrb[0].mxu0
    %v7696 = vadd.f32 0.0, %v7695
    %v7697 = vpop.f32.mrb[0].mxu0
    %7698 = vmatprep.mubr.f32.mxu0 %v6446
    %7699 = vmatmul.mubr.f32.gmra.mrb[0].mxu0 %v6445
    %v7700 = vpop.f32.mrb[0].mxu0
    %v7701 = vadd.f32 0.0, %v7700
    %v7702 = vpop.f32.mrb[0].mxu0
    %7703 = vmatprep.mubr.f32.mxu0 %v6448
    %7704 = vmatmul.mubr.f32.gmra.mrb[0].mxu0 %v6447
    %v7705 = vpop.f32.mrb[0].mxu0
    %v7706 = vadd.f32 0.0, %v7705
    %v7707 = vpop.f32.mrb[0].mxu0
    %7708 = vmatprep.mubr.f32.mxu0 %v6450
    %7709 = vmatmul.mubr.f32.gmra.mrb[0].mxu0 %v6449
    %v7710 = vpop.f32.mrb[0].mxu0
    %v7711 = vadd.f32 0.0, %v7710
    %v7712 = vpop.f32.mrb[0].mxu0
    %7713 = vmatprep.mubr.f32.mxu0 %v6452
    %7714 = vmatmul.mubr.f32.gmra.mrb[0].mxu0 %v6451
    %v7715 = vpop.f32.mrb[0].mxu0
    %v7716 = vadd.f32 0.0, %v7715
    %v7717 = vpop.f32.mrb[0].mxu0
    %7718 = vmatprep.mubr.f32.mxu0 %v6454
    %7719 = vmatmul.mubr.f32.gmra.mrb[0].mxu0 %v6453
    %v7720 = vpop.f32.mrb[0].mxu0
    %v7721 = vadd.f32 0.0, %v7720
    %v7722 = vpop.f32.mrb[0].mxu0
    %7723 = vmatprep.mubr.f32.mxu0 %v6456
    %7724 = vmatmul.mubr.f32.gmra.mrb[0].mxu0 %v6455
    %v7725 = vpop.f32.mrb[0].mxu0
    %v7726 = vadd.f32 0.0, %v7725
    %v7727 = vpop.f32.mrb[0].mxu0
    %7728 = vmatprep.mubr.f32.mxu0 %v6458
    %7729 = vmatmul.mubr.f32.gmra.mrb[0].mxu0 %v6457
    %v7730 = vpop.f32.mrb[0].mxu0
    %v7731 = vadd.f32 0.0, %v7730
    %v7732 = vpop.f32.mrb[0].mxu0
    %7733 = vmatprep.mubr.f32.mxu0 %v6460
    %7734 = vmatmul.mubr.f32.gmra.mrb[0].mxu0 %v6459
    %v7735 = vpop.f32.mrb[0].mxu0
    %v7736 = vadd.f32 0.0, %v7735
    %v7737 = vpop.f32.mrb[0].mxu0
    %7738 = vmatprep.mubr.f32.mxu0 %v6462
    %7739 = vmatmul.mubr.f32.gmra.mrb[0].mxu0 %v6461
    %v7740 = vpop.f32.mrb[0].mxu0
    %v7741 = vadd.f32 0.0, %v7740
    %v7742 = vpop.f32.mrb[0].mxu0
    %7743 = vmatprep.mubr.f32.mxu0 %v6464
    %7744 = vmatmul.mubr.f32.gmra.mrb[0].mxu0 %v6463
    %v7745 = vpop.f32.mrb[0].mxu0
    %v7746 = vadd.f32 0.0, %v7745
    %v7747 = vpop.f32.mrb[0].mxu0
    %7748 = vmatprep.mubr.f32.mxu0 %v6466
    %7749 = vmatmul.mubr.f32.gmra.mrb[0].mxu0 %v6465
    %v7750 = vpop.f32.mrb[0].mxu0
    %v7751 = vadd.f32 0.0, %v7750
    %v7752 = vpop.f32.mrb[0].mxu0
    %7753 = vmatprep.mubr.f32.mxu0 %v6468
    %7754 = vmatmul.mubr.f32.gmra.mrb[0].mxu0 %v6467
    %v7755 = vpop.f32.mrb[0].mxu0
    %v7756 = vadd.f32 0.0, %v7755
    %v7757 = vpop.f32.mrb[0].mxu0
    %7758 = vmatprep.mubr.f32.mxu0 %v6470
    %7759 = vmatmul.mubr.f32.gmra.mrb[0].mxu0 %v6469
    %v7760 = vpop.f32.mrb[0].mxu0
    %v7761 = vadd.f32 0.0, %v7760
    %v7762 = vpop.f32.mrb[0].mxu0
    %7763 = vmatprep.mubr.f32.mxu0 %v6472
    %7764 = vmatmul.mubr.f32.gmra.mrb[0].mxu0 %v6471
    %v7765 = vpop.f32.mrb[0].mxu0
    %v7766 = vadd.f32 0.0, %v7765
    %v7767 = vpop.f32.mrb[0].mxu0
    %7768 = vmatprep.mubr.f32.mxu0 %v6474
    %7769 = vmatmul.mubr.f32.gmra.mrb[0].mxu0 %v6473
    %v7770 = vpop.f32.mrb[0].mxu0
    %v7771 = vadd.f32 0.0, %v7770
    %v7772 = vpop.f32.mrb[0].mxu0
    %7773 = vmatprep.mubr.f32.mxu0 %v6476
    %7774 = vmatmul.mubr.f32.gmra.mrb[0].mxu0 %v6475
    %v7775 = vpop.f32.mrb[0].mxu0
    %v7776 = vadd.f32 0.0, %v7775
    %v7777 = vpop.f32.mrb[0].mxu0
    %7778 = vmatprep.mubr.f32.mxu0 %v6478
    %7779 = vmatmul.mubr.f32.gmra.mrb[0].mxu0 %v6477
    %v7780 = vpop.f32.mrb[0].mxu0
    %v7781 = vadd.f32 0.0, %v7780
    %v7782 = vpop.f32.mrb[0].mxu0
    %7783 = vmatprep.mubr.f32.mxu0 %v6480
    %7784 = vmatmul.mubr.f32.gmra.mrb[0].mxu0 %v6479
    %v7785 = vpop.f32.mrb[0].mxu0
    %v7786 = vadd.f32 0.0, %v7785
    %v7787 = vpop.f32.mrb[0].mxu0
    %7788 = vmatprep.mubr.f32.mxu0 %v6482
    %7789 = vmatmul.mubr.f32.gmra.mrb[0].mxu0 %v6481
    %v7790 = vpop.f32.mrb[0].mxu0
    %v7791 = vadd.f32 0.0, %v7790
    %v7792 = vpop.f32.mrb[0].mxu0
    %7793 = vmatprep.mubr.f32.mxu0 %v6484
    %7794 = vmatmul.mubr.f32.gmra.mrb[0].mxu0 %v6483
    %v7795 = vpop.f32.mrb[0].mxu0
    %v7796 = vadd.f32 0.0, %v7795
    %v7797 = vpop.f32.mrb[0].mxu0
    %7798 = vmatprep.mubr.f32.mxu0 %v6486
    %7799 = vmatmul.mubr.f32.gmra.mrb[0].mxu0 %v6485
    %v7800 = vpop.f32.mrb[0].mxu0
    %v7801 = vadd.f32 0.0, %v7800
    %v7802 = vpop.f32.mrb[0].mxu0
    %7803 = vmatprep.mubr.f32.mxu0 %v6488
    %7804 = vmatmul.mubr.f32.gmra.mrb[0].mxu0 %v6487
    %v7805 = vpop.f32.mrb[0].mxu0
    %v7806 = vadd.f32 0.0, %v7805
    %v7807 = vpop.f32.mrb[0].mxu0
    %7808 = vmatprep.mubr.f32.mxu0 %v6490
    %7809 = vmatmul.mubr.f32.gmra.mrb[0].mxu0 %v6489
    %v7810 = vpop.f32.mrb[0].mxu0
    %v7811 = vadd.f32 0.0, %v7810
    %v7812 = vpop.f32.mrb[0].mxu0
    %7813 = vmatprep.mubr.f32.mxu0 %v6492
    %7814 = vmatmul.mubr.f32.gmra.mrb[0].mxu0 %v6491
    %v7815 = vpop.f32.mrb[0].mxu0
    %v7816 = vadd.f32 0.0, %v7815
    %v7817 = vpop.f32.mrb[0].mxu0
    %7818 = vmatprep.mubr.f32.mxu0 %v6494
    %7819 = vmatmul.mubr.f32.gmra.mrb[0].mxu0 %v6493
    %v7820 = vpop.f32.mrb[0].mxu0
    %v7821 = vadd.f32 0.0, %v7820
    %v7822 = vpop.f32.mrb[0].mxu0
    %7823 = vmatprep.mubr.f32.mxu0 %v6496
    %7824 = vmatmul.mubr.f32.gmra.mrb[0].mxu0 %v6495
    %v7825 = vpop.f32.mrb[0].mxu0
    %v7826 = vadd.f32 0.0, %v7825
    %v7827 = vpop.f32.mrb[0].mxu0
    %7828 = vmatprep.mubr.f32.mxu0 %v6498
    %7829 = vmatmul.mubr.f32.gmra.mrb[0].mxu0 %v6497
    %v7830 = vpop.f32.mrb[0].mxu0
    %v7831 = vadd.f32 0.0, %v7830
    %v7832 = vpop.f32.mrb[0].mxu0
    %7833 = vmatprep.mubr.f32.mxu0 %v6500
    %7834 = vmatmul.mubr.f32.gmra.mrb[0].mxu0 %v6499
    %v7835 = vpop.f32.mrb[0].mxu0
    %v7836 = vadd.f32 0.0, %v7835
    %v7837 = vpop.f32.mrb[0].mxu0
    %7838 = vmatprep.mubr.f32.mxu0 %v6502
    %7839 = vmatmul.mubr.f32.gmra.mrb[0].mxu0 %v6501
    %v7840 = vpop.f32.mrb[0].mxu0
    %v7841 = vadd.f32 0.0, %v7840
    %v7842 = vpop.f32.mrb[0].mxu0
    %7843 = vmatprep.mubr.f32.mxu0 %v6504
    %7844 = vmatmul.mubr.f32.gmra.mrb[0].mxu0 %v6503
    %v7845 = vpop.f32.mrb[0].mxu0
    %v7846 = vadd.f32 0.0, %v7845
    %v7847 = vpop.f32.mrb[0].mxu0
    %7848 = vmatprep.mubr.f32.mxu0 %v6506
    %7849 = vmatmul.mubr.f32.gmra.mrb[0].mxu0 %v6505
    %v7850 = vpop.f32.mrb[0].mxu0
    %v7851 = vadd.f32 0.0, %v7850
    %v7852 = vpop.f32.mrb[0].mxu0
    %7853 = vmatprep.mubr.f32.mxu0 %v6508
    %7854 = vmatmul.mubr.f32.gmra.mrb[0].mxu0 %v6507
    %v7855 = vpop.f32.mrb[0].mxu0
    %v7856 = vadd.f32 0.0, %v7855
    %v7857 = vpop.f32.mrb[0].mxu0
    %7858 = vmatprep.mubr.f32.mxu0 %v6510
    %7859 = vmatmul.mubr.f32.gmra.mrb[0].mxu0 %v6509
    %v7860 = vpop.f32.mrb[0].mxu0
    %v7861 = vadd.f32 0.0, %v7860
    %v7862 = vpop.f32.mrb[0].mxu0
    %7863 = vmatprep.mubr.f32.mxu0 %v6512
    %7864 = vmatmul.mubr.f32.gmra.mrb[0].mxu0 %v6511
    %v7865 = vpop.f32.mrb[0].mxu0
    %v7866 = vadd.f32 0.0, %v7865
    %v7867 = vpop.f32.mrb[0].mxu0
    %7868 = vmatprep.mubr.f32.mxu0 %v6514
    %7869 = vmatmul.mubr.f32.gmra.mrb[0].mxu0 %v6513
    %v7870 = vpop.f32.mrb[0].mxu0
    %v7871 = vadd.f32 0.0, %v7870
    %v7872 = vpop.f32.mrb[0].mxu0
    %7873 = vmatprep.mubr.f32.mxu0 %v6516
    %7874 = vmatmul.mubr.f32.gmra.mrb[0].mxu0 %v6515
    %v7875 = vpop.f32.mrb[0].mxu0
    %v7876 = vadd.f32 0.0, %v7875
    %v7877 = vpop.f32.mrb[0].mxu0
    %7878 = vmatprep.mubr.f32.mxu0 %v6518
    %7879 = vmatmul.mubr.f32.gmra.mrb[0].mxu0 %v6517
    %v7880 = vpop.f32.mrb[0].mxu0
    %v7881 = vadd.f32 0.0, %v7880
    %v7882 = vpop.f32.mrb[0].mxu0
    %7883 = vmatprep.mubr.f32.mxu0 %v6520
    %7884 = vmatmul.mubr.f32.gmra.mrb[0].mxu0 %v6519
    %v7885 = vpop.f32.mrb[0].mxu0
    %v7886 = vadd.f32 0.0, %v7885
    %v7887 = vpop.f32.mrb[0].mxu0
    %7888 = vmatprep.mubr.f32.mxu0 %v6522
    %7889 = vmatmul.mubr.f32.gmra.mrb[0].mxu0 %v6521
    %v7890 = vpop.f32.mrb[0].mxu0
    %v7891 = vadd.f32 0.0, %v7890
    %v7892 = vpop.f32.mrb[0].mxu0
    %7893 = vmatprep.mubr.f32.mxu0 %v6524
    %7894 = vmatmul.mubr.f32.gmra.mrb[0].mxu0 %v6523
    %v7895 = vpop.f32.mrb[0].mxu0
    %v7896 = vadd.f32 0.0, %v7895
    %v7897 = vpop.f32.mrb[0].mxu0
    %7898 = vmatprep.mubr.f32.mxu0 %v6526
    %7899 = vmatmul.mubr.f32.gmra.mrb[0].mxu0 %v6525
    %v7900 = vpop.f32.mrb[0].mxu0
    %v7901 = vadd.f32 0.0, %v7900
    %v7902 = vpop.f32.mrb[0].mxu0
    %7903 = vmatprep.mubr.f32.mxu0 %v6528
    %7904 = vmatmul.mubr.f32.gmra.mrb[0].mxu0 %v6527
    %v7905 = vpop.f32.mrb[0].mxu0
    %v7906 = vadd.f32 0.0, %v7905
    %v7907 = vpop.f32.mrb[0].mxu0
    %7908 = vmatprep.mubr.f32.mxu0 %v6530
    %7909 = vmatmul.mubr.f32.gmra.mrb[0].mxu0 %v6529
    %v7910 = vpop.f32.mrb[0].mxu0
    %v7911 = vadd.f32 0.0, %v7910
    %v7912 = vpop.f32.mrb[0].mxu0
    %7913 = vmatprep.mubr.f32.mxu0 %v6532
    %7914 = vmatmul.mubr.f32.gmra.mrb[0].mxu0 %v6531
    %v7915 = vpop.f32.mrb[0].mxu0
    %v7916 = vadd.f32 0.0, %v7915
    %v7917 = vpop.f32.mrb[0].mxu0
    %7918 = vmatprep.mubr.f32.mxu0 %v6534
    %7919 = vmatmul.mubr.f32.gmra.mrb[0].mxu0 %v6533
    %v7920 = vpop.f32.mrb[0].mxu0
    %v7921 = vadd.f32 0.0, %v7920
    %v7922 = vpop.f32.mrb[0].mxu0
    %7923 = vmatprep.mubr.f32.mxu0 %v6536
    %7924 = vmatmul.mubr.f32.gmra.mrb[0].mxu0 %v6535
    %v7925 = vpop.f32.mrb[0].mxu0
    %v7926 = vadd.f32 0.0, %v7925
    %v7927 = vpop.f32.mrb[0].mxu0
    %7928 = vmatprep.mubr.f32.mxu0 %v6538
    %7929 = vmatmul.mubr.f32.gmra.mrb[0].mxu0 %v6537
    %v7930 = vpop.f32.mrb[0].mxu0
    %v7931 = vadd.f32 0.0, %v7930
    %v7932 = vpop.f32.mrb[0].mxu0
    %7933 = vmatprep.mubr.f32.mxu0 %v6540
    %7934 = vmatmul.mubr.f32.gmra.mrb[0].mxu0 %v6539
    %v7935 = vpop.f32.mrb[0].mxu0
    %v7936 = vadd.f32 0.0, %v7935
    %v7937 = vpop.f32.mrb[0].mxu0
    %7938 = vmatprep.mubr.f32.mxu0 %v6542
    %7939 = vmatmul.mubr.f32.gmra.mrb[0].mxu0 %v6541
    %v7940 = vpop.f32.mrb[0].mxu0
    %v7941 = vadd.f32 0.0, %v7940
    %v7942 = vpop.f32.mrb[0].mxu0
    %7943 = vmatprep.mubr.f32.mxu0 %v6544
    %7944 = vmatmul.mubr.f32.gmra.mrb[0].mxu0 %v6543
    %v7945 = vpop.f32.mrb[0].mxu0
    %v7946 = vadd.f32 0.0, %v7945
    %v7947 = vpop.f32.mrb[0].mxu0
    %7948 = vmatprep.mubr.f32.mxu0 %v6546
    %7949 = vmatmul.mubr.f32.gmra.mrb[0].mxu0 %v6545
    %v7950 = vpop.f32.mrb[0].mxu0
    %v7951 = vadd.f32 0.0, %v7950
    %v7952 = vpop.f32.mrb[0].mxu0
    %7953 = vmatprep.mubr.f32.mxu0 %v6548
    %7954 = vmatmul.mubr.f32.gmra.mrb[0].mxu0 %v6547
    %v7955 = vpop.f32.mrb[0].mxu0
    %v7956 = vadd.f32 0.0, %v7955
    %v7957 = vpop.f32.mrb[0].mxu0
    %7958 = vdwg.mxu0
    %v7959 = vld [vmem:[#allocation5] sm:$0xff]
    %v7960 = vld [vmem:[#allocation5 + $0x8] sm:$0xff]
    %v7961 = vld [vmem:[#allocation5 + $0x10] sm:$0xff]
    %v7962 = vld [vmem:[#allocation5 + $0x18] sm:$0xff]
    %v7963 = vld [vmem:[#allocation5 + $0x20] sm:$0xff]
    %v7964 = vld [vmem:[#allocation5 + $0x28] sm:$0xff]
    %v7965 = vld [vmem:[#allocation5 + $0x30] sm:$0xff]
    %v7966 = vld [vmem:[#allocation5 + $0x38] sm:$0xff]
    %v7967 = vld [vmem:[#allocation5 + $0x40] sm:$0xff]
    %v7968 = vld [vmem:[#allocation5 + $0x48] sm:$0xff]
    %v7969 = vld [vmem:[#allocation5 + $0x50] sm:$0xff]
    %v7970 = vld [vmem:[#allocation5 + $0x58] sm:$0xff]
    %v7971 = vld [vmem:[#allocation5 + $0x60] sm:$0xff]
    %v7972 = vld [vmem:[#allocation5 + $0x68] sm:$0xff]
    %v7973 = vld [vmem:[#allocation5 + $0x70] sm:$0xff]
    %v7974 = vld [vmem:[#allocation5 + $0x78] sm:$0xff]
    %v7975 = vld [vmem:[#allocation5 + $0x80] sm:$0xff]
    %v7976 = vld [vmem:[#allocation5 + $0x88] sm:$0xff]
    %v7977 = vld [vmem:[#allocation5 + $0x90] sm:$0xff]
    %v7978 = vld [vmem:[#allocation5 + $0x98] sm:$0xff]
    %v7979 = vld [vmem:[#allocation5 + $0xa0] sm:$0xff]
    %v7980 = vld [vmem:[#allocation5 + $0xa8] sm:$0xff]
    %v7981 = vld [vmem:[#allocation5 + $0xb0] sm:$0xff]
    %v7982 = vld [vmem:[#allocation5 + $0xb8] sm:$0xff]
    %v7983 = vld [vmem:[#allocation5 + $0xc0] sm:$0xff]
    %v7984 = vld [vmem:[#allocation5 + $0xc8] sm:$0xff]
    %v7985 = vld [vmem:[#allocation5 + $0xd0] sm:$0xff]
    %v7986 = vld [vmem:[#allocation5 + $0xd8] sm:$0xff]
    %v7987 = vld [vmem:[#allocation5 + $0xe0] sm:$0xff]
    %v7988 = vld [vmem:[#allocation5 + $0xe8] sm:$0xff]
    %v7989 = vld [vmem:[#allocation5 + $0xf0] sm:$0xff]
    %v7990 = vld [vmem:[#allocation5 + $0xf8] sm:$0xff]
    %v7991 = vld [vmem:[#allocation5 + $0x100] sm:$0xff]
    %v7992 = vld [vmem:[#allocation5 + $0x108] sm:$0xff]
    %v7993 = vld [vmem:[#allocation5 + $0x110] sm:$0xff]
    %v7994 = vld [vmem:[#allocation5 + $0x118] sm:$0xff]
    %v7995 = vld [vmem:[#allocation5 + $0x120] sm:$0xff]
    %v7996 = vld [vmem:[#allocation5 + $0x128] sm:$0xff]
    %v7997 = vld [vmem:[#allocation5 + $0x130] sm:$0xff]
    %v7998 = vld [vmem:[#allocation5 + $0x138] sm:$0xff]
    %v7999 = vld [vmem:[#allocation5 + $0x140] sm:$0xff]
    %v8000 = vld [vmem:[#allocation5 + $0x148] sm:$0xff]
    %v8001 = vld [vmem:[#allocation5 + $0x150] sm:$0xff]
    %v8002 = vld [vmem:[#allocation5 + $0x158] sm:$0xff]
    %v8003 = vld [vmem:[#allocation5 + $0x160] sm:$0xff]
    %v8004 = vld [vmem:[#allocation5 + $0x168] sm:$0xff]
    %v8005 = vld [vmem:[#allocation5 + $0x170] sm:$0xff]
    %v8006 = vld [vmem:[#allocation5 + $0x178] sm:$0xff]
    %v8007 = vld [vmem:[#allocation5 + $0x180] sm:$0xff]
    %v8008 = vld [vmem:[#allocation5 + $0x188] sm:$0xff]
    %v8009 = vld [vmem:[#allocation5 + $0x190] sm:$0xff]
    %v8010 = vld [vmem:[#allocation5 + $0x198] sm:$0xff]
    %v8011 = vld [vmem:[#allocation5 + $0x1a0] sm:$0xff]
    %v8012 = vld [vmem:[#allocation5 + $0x1a8] sm:$0xff]
    %v8013 = vld [vmem:[#allocation5 + $0x1b0] sm:$0xff]
    %v8014 = vld [vmem:[#allocation5 + $0x1b8] sm:$0xff]
    %v8015 = vld [vmem:[#allocation5 + $0x1c0] sm:$0xff]
    %v8016 = vld [vmem:[#allocation5 + $0x1c8] sm:$0xff]
    %v8017 = vld [vmem:[#allocation5 + $0x1d0] sm:$0xff]
    %v8018 = vld [vmem:[#allocation5 + $0x1d8] sm:$0xff]
    %v8019 = vld [vmem:[#allocation5 + $0x1e0] sm:$0xff]
    %v8020 = vld [vmem:[#allocation5 + $0x1e8] sm:$0xff]
    %v8021 = vld [vmem:[#allocation5 + $0x1f0] sm:$0xff]
    %v8022 = vld [vmem:[#allocation5 + $0x1f8] sm:$0xff]
    %v8023 = vld [vmem:[#allocation5 + $0x200] sm:$0xff]
    %v8024 = vld [vmem:[#allocation5 + $0x208] sm:$0xff]
    %v8025 = vld [vmem:[#allocation5 + $0x210] sm:$0xff]
    %v8026 = vld [vmem:[#allocation5 + $0x218] sm:$0xff]
    %v8027 = vld [vmem:[#allocation5 + $0x220] sm:$0xff]
    %v8028 = vld [vmem:[#allocation5 + $0x228] sm:$0xff]
    %v8029 = vld [vmem:[#allocation5 + $0x230] sm:$0xff]
    %v8030 = vld [vmem:[#allocation5 + $0x238] sm:$0xff]
    %v8031 = vld [vmem:[#allocation5 + $0x240] sm:$0xff]
    %v8032 = vld [vmem:[#allocation5 + $0x248] sm:$0xff]
    %v8033 = vld [vmem:[#allocation5 + $0x250] sm:$0xff]
    %v8034 = vld [vmem:[#allocation5 + $0x258] sm:$0xff]
    %v8035 = vld [vmem:[#allocation5 + $0x260] sm:$0xff]
    %v8036 = vld [vmem:[#allocation5 + $0x268] sm:$0xff]
    %v8037 = vld [vmem:[#allocation5 + $0x270] sm:$0xff]
    %v8038 = vld [vmem:[#allocation5 + $0x278] sm:$0xff]
    %v8039 = vld [vmem:[#allocation5 + $0x280] sm:$0xff]
    %v8040 = vld [vmem:[#allocation5 + $0x288] sm:$0xff]
    %v8041 = vld [vmem:[#allocation5 + $0x290] sm:$0xff]
    %v8042 = vld [vmem:[#allocation5 + $0x298] sm:$0xff]
    %v8043 = vld [vmem:[#allocation5 + $0x2a0] sm:$0xff]
    %v8044 = vld [vmem:[#allocation5 + $0x2a8] sm:$0xff]
    %v8045 = vld [vmem:[#allocation5 + $0x2b0] sm:$0xff]
    %v8046 = vld [vmem:[#allocation5 + $0x2b8] sm:$0xff]
    %v8047 = vld [vmem:[#allocation5 + $0x2c0] sm:$0xff]
    %v8048 = vld [vmem:[#allocation5 + $0x2c8] sm:$0xff]
    %v8049 = vld [vmem:[#allocation5 + $0x2d0] sm:$0xff]
    %v8050 = vld [vmem:[#allocation5 + $0x2d8] sm:$0xff]
    %v8051 = vld [vmem:[#allocation5 + $0x2e0] sm:$0xff]
    %v8052 = vld [vmem:[#allocation5 + $0x2e8] sm:$0xff]
    %v8053 = vld [vmem:[#allocation5 + $0x2f0] sm:$0xff]
    %v8054 = vld [vmem:[#allocation5 + $0x2f8] sm:$0xff]
    %v8055 = vld [vmem:[#allocation5 + $0x300] sm:$0xff]
    %v8056 = vld [vmem:[#allocation5 + $0x308] sm:$0xff]
    %v8057 = vld [vmem:[#allocation5 + $0x310] sm:$0xff]
    %v8058 = vld [vmem:[#allocation5 + $0x318] sm:$0xff]
    %v8059 = vld [vmem:[#allocation5 + $0x320] sm:$0xff]
    %v8060 = vld [vmem:[#allocation5 + $0x328] sm:$0xff]
    %v8061 = vld [vmem:[#allocation5 + $0x330] sm:$0xff]
    %v8062 = vld [vmem:[#allocation5 + $0x338] sm:$0xff]
    %v8063 = vld [vmem:[#allocation5 + $0x340] sm:$0xff]
    %v8064 = vld [vmem:[#allocation5 + $0x348] sm:$0xff]
    %v8065 = vld [vmem:[#allocation5 + $0x350] sm:$0xff]
    %v8066 = vld [vmem:[#allocation5 + $0x358] sm:$0xff]
    %v8067 = vld [vmem:[#allocation5 + $0x360] sm:$0xff]
    %v8068 = vld [vmem:[#allocation5 + $0x368] sm:$0xff]
    %v8069 = vld [vmem:[#allocation5 + $0x370] sm:$0xff]
    %v8070 = vld [vmem:[#allocation5 + $0x378] sm:$0xff]
    %v8071 = vld [vmem:[#allocation5 + $0x380] sm:$0xff]
    %v8072 = vld [vmem:[#allocation5 + $0x388] sm:$0xff]
    %v8073 = vld [vmem:[#allocation5 + $0x390] sm:$0xff]
    %v8074 = vld [vmem:[#allocation5 + $0x398] sm:$0xff]
    %v8075 = vld [vmem:[#allocation5 + $0x3a0] sm:$0xff]
    %v8076 = vld [vmem:[#allocation5 + $0x3a8] sm:$0xff]
    %v8077 = vld [vmem:[#allocation5 + $0x3b0] sm:$0xff]
    %v8078 = vld [vmem:[#allocation5 + $0x3b8] sm:$0xff]
    %v8079 = vld [vmem:[#allocation5 + $0x3c0] sm:$0xff]
    %v8080 = vld [vmem:[#allocation5 + $0x3c8] sm:$0xff]
    %v8081 = vld [vmem:[#allocation5 + $0x3d0] sm:$0xff]
    %v8082 = vld [vmem:[#allocation5 + $0x3d8] sm:$0xff]
    %v8083 = vld [vmem:[#allocation5 + $0x3e0] sm:$0xff]
    %v8084 = vld [vmem:[#allocation5 + $0x3e8] sm:$0xff]
    %v8085 = vld [vmem:[#allocation5 + $0x3f0] sm:$0xff]
    %v8086 = vld [vmem:[#allocation5 + $0x3f8] sm:$0xff]
    %v8087 = vld [vmem:[#allocation5 + $0x400] sm:$0xff]
    %v8088 = vld [vmem:[#allocation5 + $0x408] sm:$0xff]
    %v8089 = vld [vmem:[#allocation5 + $0x410] sm:$0xff]
    %v8090 = vld [vmem:[#allocation5 + $0x418] sm:$0xff]
    %v8091 = vld [vmem:[#allocation5 + $0x420] sm:$0xff]
    %v8092 = vld [vmem:[#allocation5 + $0x428] sm:$0xff]
    %v8093 = vld [vmem:[#allocation5 + $0x430] sm:$0xff]
    %v8094 = vld [vmem:[#allocation5 + $0x438] sm:$0xff]
    %v8095 = vld [vmem:[#allocation5 + $0x440] sm:$0xff]
    %v8096 = vld [vmem:[#allocation5 + $0x448] sm:$0xff]
    %v8097 = vld [vmem:[#allocation5 + $0x450] sm:$0xff]
    %v8098 = vld [vmem:[#allocation5 + $0x458] sm:$0xff]
    %v8099 = vld [vmem:[#allocation5 + $0x460] sm:$0xff]
    %v8100 = vld [vmem:[#allocation5 + $0x468] sm:$0xff]
    %v8101 = vld [vmem:[#allocation5 + $0x470] sm:$0xff]
    %v8102 = vld [vmem:[#allocation5 + $0x478] sm:$0xff]
    %v8103 = vld [vmem:[#allocation5 + $0x480] sm:$0xff]
    %v8104 = vld [vmem:[#allocation5 + $0x488] sm:$0xff]
    %v8105 = vld [vmem:[#allocation5 + $0x490] sm:$0xff]
    %v8106 = vld [vmem:[#allocation5 + $0x498] sm:$0xff]
    %v8107 = vld [vmem:[#allocation5 + $0x4a0] sm:$0xff]
    %v8108 = vld [vmem:[#allocation5 + $0x4a8] sm:$0xff]
    %v8109 = vld [vmem:[#allocation5 + $0x4b0] sm:$0xff]
    %v8110 = vld [vmem:[#allocation5 + $0x4b8] sm:$0xff]
    %v8111 = vld [vmem:[#allocation5 + $0x4c0] sm:$0xff]
    %v8112 = vld [vmem:[#allocation5 + $0x4c8] sm:$0xff]
    %v8113 = vld [vmem:[#allocation5 + $0x4d0] sm:$0xff]
    %v8114 = vld [vmem:[#allocation5 + $0x4d8] sm:$0xff]
    %v8115 = vld [vmem:[#allocation5 + $0x4e0] sm:$0xff]
    %v8116 = vld [vmem:[#allocation5 + $0x4e8] sm:$0xff]
    %v8117 = vld [vmem:[#allocation5 + $0x4f0] sm:$0xff]
    %v8118 = vld [vmem:[#allocation5 + $0x4f8] sm:$0xff]
    %v8119 = vld [vmem:[#allocation5 + $0x500] sm:$0xff]
    %v8120 = vld [vmem:[#allocation5 + $0x508] sm:$0xff]
    %v8121 = vld [vmem:[#allocation5 + $0x510] sm:$0xff]
    %v8122 = vld [vmem:[#allocation5 + $0x518] sm:$0xff]
    %v8123 = vld [vmem:[#allocation5 + $0x520] sm:$0xff]
    %v8124 = vld [vmem:[#allocation5 + $0x528] sm:$0xff]
    %v8125 = vld [vmem:[#allocation5 + $0x530] sm:$0xff]
    %v8126 = vld [vmem:[#allocation5 + $0x538] sm:$0xff]
    %v8127 = vld [vmem:[#allocation5 + $0x540] sm:$0xff]
    %v8128 = vld [vmem:[#allocation5 + $0x548] sm:$0xff]
    %v8129 = vld [vmem:[#allocation5 + $0x550] sm:$0xff]
    %v8130 = vld [vmem:[#allocation5 + $0x558] sm:$0xff]
    %v8131 = vld [vmem:[#allocation5 + $0x560] sm:$0xff]
    %v8132 = vld [vmem:[#allocation5 + $0x568] sm:$0xff]
    %v8133 = vld [vmem:[#allocation5 + $0x570] sm:$0xff]
    %v8134 = vld [vmem:[#allocation5 + $0x578] sm:$0xff]
    %v8135 = vld [vmem:[#allocation5 + $0x580] sm:$0xff]
    %v8136 = vld [vmem:[#allocation5 + $0x588] sm:$0xff]
    %v8137 = vld [vmem:[#allocation5 + $0x590] sm:$0xff]
    %v8138 = vld [vmem:[#allocation5 + $0x598] sm:$0xff]
    %v8139 = vld [vmem:[#allocation5 + $0x5a0] sm:$0xff]
    %v8140 = vld [vmem:[#allocation5 + $0x5a8] sm:$0xff]
    %v8141 = vld [vmem:[#allocation5 + $0x5b0] sm:$0xff]
    %v8142 = vld [vmem:[#allocation5 + $0x5b8] sm:$0xff]
    %v8143 = vld [vmem:[#allocation5 + $0x5c0] sm:$0xff]
    %v8144 = vld [vmem:[#allocation5 + $0x5c8] sm:$0xff]
    %v8145 = vld [vmem:[#allocation5 + $0x5d0] sm:$0xff]
    %v8146 = vld [vmem:[#allocation5 + $0x5d8] sm:$0xff]
    %v8147 = vld [vmem:[#allocation5 + $0x5e0] sm:$0xff]
    %v8148 = vld [vmem:[#allocation5 + $0x5e8] sm:$0xff]
    %v8149 = vld [vmem:[#allocation5 + $0x5f0] sm:$0xff]
    %v8150 = vld [vmem:[#allocation5 + $0x5f8] sm:$0xff]
    %v8151 = vld [vmem:[#allocation5 + $0x600] sm:$0xff]
    %v8152 = vld [vmem:[#allocation5 + $0x608] sm:$0xff]
    %v8153 = vld [vmem:[#allocation5 + $0x610] sm:$0xff]
    %v8154 = vld [vmem:[#allocation5 + $0x618] sm:$0xff]
    %v8155 = vld [vmem:[#allocation5 + $0x620] sm:$0xff]
    %v8156 = vld [vmem:[#allocation5 + $0x628] sm:$0xff]
    %v8157 = vld [vmem:[#allocation5 + $0x630] sm:$0xff]
    %v8158 = vld [vmem:[#allocation5 + $0x638] sm:$0xff]
    %v8159 = vld [vmem:[#allocation5 + $0x640] sm:$0xff]
    %v8160 = vld [vmem:[#allocation5 + $0x648] sm:$0xff]
    %v8161 = vld [vmem:[#allocation5 + $0x650] sm:$0xff]
    %v8162 = vld [vmem:[#allocation5 + $0x658] sm:$0xff]
    %v8163 = vld [vmem:[#allocation5 + $0x660] sm:$0xff]
    %v8164 = vld [vmem:[#allocation5 + $0x668] sm:$0xff]
    %v8165 = vld [vmem:[#allocation5 + $0x670] sm:$0xff]
    %v8166 = vld [vmem:[#allocation5 + $0x678] sm:$0xff]
    %v8167 = vld [vmem:[#allocation5 + $0x680] sm:$0xff]
    %v8168 = vld [vmem:[#allocation5 + $0x688] sm:$0xff]
    %v8169 = vld [vmem:[#allocation5 + $0x690] sm:$0xff]
    %v8170 = vld [vmem:[#allocation5 + $0x698] sm:$0xff]
    %v8171 = vld [vmem:[#allocation5 + $0x6a0] sm:$0xff]
    %v8172 = vld [vmem:[#allocation5 + $0x6a8] sm:$0xff]
    %v8173 = vld [vmem:[#allocation5 + $0x6b0] sm:$0xff]
    %v8174 = vld [vmem:[#allocation5 + $0x6b8] sm:$0xff]
    %v8175 = vld [vmem:[#allocation5 + $0x6c0] sm:$0xff]
    %v8176 = vld [vmem:[#allocation5 + $0x6c8] sm:$0xff]
    %v8177 = vld [vmem:[#allocation5 + $0x6d0] sm:$0xff]
    %v8178 = vld [vmem:[#allocation5 + $0x6d8] sm:$0xff]
    %v8179 = vld [vmem:[#allocation5 + $0x6e0] sm:$0xff]
    %v8180 = vld [vmem:[#allocation5 + $0x6e8] sm:$0xff]
    %v8181 = vld [vmem:[#allocation5 + $0x6f0] sm:$0xff]
    %v8182 = vld [vmem:[#allocation5 + $0x6f8] sm:$0xff]
    %v8183 = vld [vmem:[#allocation5 + $0x700] sm:$0xff]
    %v8184 = vld [vmem:[#allocation5 + $0x708] sm:$0xff]
    %v8185 = vld [vmem:[#allocation5 + $0x710] sm:$0xff]
    %v8186 = vld [vmem:[#allocation5 + $0x718] sm:$0xff]
    %v8187 = vld [vmem:[#allocation5 + $0x720] sm:$0xff]
    %v8188 = vld [vmem:[#allocation5 + $0x728] sm:$0xff]
    %v8189 = vld [vmem:[#allocation5 + $0x730] sm:$0xff]
    %v8190 = vld [vmem:[#allocation5 + $0x738] sm:$0xff]
    %v8191 = vld [vmem:[#allocation5 + $0x740] sm:$0xff]
    %v8192 = vld [vmem:[#allocation5 + $0x748] sm:$0xff]
    %v8193 = vld [vmem:[#allocation5 + $0x750] sm:$0xff]
    %v8194 = vld [vmem:[#allocation5 + $0x758] sm:$0xff]
    %v8195 = vld [vmem:[#allocation5 + $0x760] sm:$0xff]
    %v8196 = vld [vmem:[#allocation5 + $0x768] sm:$0xff]
    %v8197 = vld [vmem:[#allocation5 + $0x770] sm:$0xff]
    %v8198 = vld [vmem:[#allocation5 + $0x778] sm:$0xff]
    %v8199 = vld [vmem:[#allocation5 + $0x780] sm:$0xff]
    %v8200 = vld [vmem:[#allocation5 + $0x788] sm:$0xff]
    %v8201 = vld [vmem:[#allocation5 + $0x790] sm:$0xff]
    %v8202 = vld [vmem:[#allocation5 + $0x798] sm:$0xff]
    %v8203 = vld [vmem:[#allocation5 + $0x7a0] sm:$0xff]
    %v8204 = vld [vmem:[#allocation5 + $0x7a8] sm:$0xff]
    %v8205 = vld [vmem:[#allocation5 + $0x7b0] sm:$0xff]
    %v8206 = vld [vmem:[#allocation5 + $0x7b8] sm:$0xff]
    %v8207 = vld [vmem:[#allocation5 + $0x7c0] sm:$0xff]
    %v8208 = vld [vmem:[#allocation5 + $0x7c8] sm:$0xff]
    %v8209 = vld [vmem:[#allocation5 + $0x7d0] sm:$0xff]
    %v8210 = vld [vmem:[#allocation5 + $0x7d8] sm:$0xff]
    %v8211 = vld [vmem:[#allocation5 + $0x7e0] sm:$0xff]
    %v8212 = vld [vmem:[#allocation5 + $0x7e8] sm:$0xff]
    %v8213 = vld [vmem:[#allocation5 + $0x7f0] sm:$0xff]
    %v8214 = vld [vmem:[#allocation5 + $0x7f8] sm:$0xff]
    %v8215 = vpack.c.bf16 %v7960, %v7959
    %v8216 = vpack.c.bf16 %v7962, %v7961
    %v8217 = vpack.c.bf16 %v7964, %v7963
    %v8218 = vpack.c.bf16 %v7966, %v7965
    %v8219 = vpack.c.bf16 %v7968, %v7967
    %v8220 = vpack.c.bf16 %v7970, %v7969
    %v8221 = vpack.c.bf16 %v7972, %v7971
    %v8222 = vpack.c.bf16 %v7974, %v7973
    %v8223 = vpack.c.bf16 %v7976, %v7975
    %v8224 = vpack.c.bf16 %v7978, %v7977
    %v8225 = vpack.c.bf16 %v7980, %v7979
    %v8226 = vpack.c.bf16 %v7982, %v7981
    %v8227 = vpack.c.bf16 %v7984, %v7983
    %v8228 = vpack.c.bf16 %v7986, %v7985
    %v8229 = vpack.c.bf16 %v7988, %v7987
    %v8230 = vpack.c.bf16 %v7990, %v7989
    %v8231 = vpack.c.bf16 %v7992, %v7991
    %v8232 = vpack.c.bf16 %v7994, %v7993
    %v8233 = vpack.c.bf16 %v7996, %v7995
    %v8234 = vpack.c.bf16 %v7998, %v7997
    %v8235 = vpack.c.bf16 %v8000, %v7999
    %v8236 = vpack.c.bf16 %v8002, %v8001
    %v8237 = vpack.c.bf16 %v8004, %v8003
    %v8238 = vpack.c.bf16 %v8006, %v8005
    %v8239 = vpack.c.bf16 %v8008, %v8007
    %v8240 = vpack.c.bf16 %v8010, %v8009
    %v8241 = vpack.c.bf16 %v8012, %v8011
    %v8242 = vpack.c.bf16 %v8014, %v8013
    %v8243 = vpack.c.bf16 %v8016, %v8015
    %v8244 = vpack.c.bf16 %v8018, %v8017
    %v8245 = vpack.c.bf16 %v8020, %v8019
    %v8246 = vpack.c.bf16 %v8022, %v8021
    %v8247 = vpack.c.bf16 %v8024, %v8023
    %v8248 = vpack.c.bf16 %v8026, %v8025
    %v8249 = vpack.c.bf16 %v8028, %v8027
    %v8250 = vpack.c.bf16 %v8030, %v8029
    %v8251 = vpack.c.bf16 %v8032, %v8031
    %v8252 = vpack.c.bf16 %v8034, %v8033
    %v8253 = vpack.c.bf16 %v8036, %v8035
    %v8254 = vpack.c.bf16 %v8038, %v8037
    %v8255 = vpack.c.bf16 %v8040, %v8039
    %v8256 = vpack.c.bf16 %v8042, %v8041
    %v8257 = vpack.c.bf16 %v8044, %v8043
    %v8258 = vpack.c.bf16 %v8046, %v8045
    %v8259 = vpack.c.bf16 %v8048, %v8047
    %v8260 = vpack.c.bf16 %v8050, %v8049
    %v8261 = vpack.c.bf16 %v8052, %v8051
    %v8262 = vpack.c.bf16 %v8054, %v8053
    %v8263 = vpack.c.bf16 %v8056, %v8055
    %v8264 = vpack.c.bf16 %v8058, %v8057
    %v8265 = vpack.c.bf16 %v8060, %v8059
    %v8266 = vpack.c.bf16 %v8062, %v8061
    %v8267 = vpack.c.bf16 %v8064, %v8063
    %v8268 = vpack.c.bf16 %v8066, %v8065
    %v8269 = vpack.c.bf16 %v8068, %v8067
    %v8270 = vpack.c.bf16 %v8070, %v8069
    %v8271 = vpack.c.bf16 %v8072, %v8071
    %v8272 = vpack.c.bf16 %v8074, %v8073
    %v8273 = vpack.c.bf16 %v8076, %v8075
    %v8274 = vpack.c.bf16 %v8078, %v8077
    %v8275 = vpack.c.bf16 %v8080, %v8079
    %v8276 = vpack.c.bf16 %v8082, %v8081
    %v8277 = vpack.c.bf16 %v8084, %v8083
    %v8278 = vpack.c.bf16 %v8086, %v8085
    %v8279 = vpack.c.bf16 %v8088, %v8087
    %v8280 = vpack.c.bf16 %v8090, %v8089
    %v8281 = vpack.c.bf16 %v8092, %v8091
    %v8282 = vpack.c.bf16 %v8094, %v8093
    %v8283 = vpack.c.bf16 %v8096, %v8095
    %v8284 = vpack.c.bf16 %v8098, %v8097
    %v8285 = vpack.c.bf16 %v8100, %v8099
    %v8286 = vpack.c.bf16 %v8102, %v8101
    %v8287 = vpack.c.bf16 %v8104, %v8103
    %v8288 = vpack.c.bf16 %v8106, %v8105
    %v8289 = vpack.c.bf16 %v8108, %v8107
    %v8290 = vpack.c.bf16 %v8110, %v8109
    %v8291 = vpack.c.bf16 %v8112, %v8111
    %v8292 = vpack.c.bf16 %v8114, %v8113
    %v8293 = vpack.c.bf16 %v8116, %v8115
    %v8294 = vpack.c.bf16 %v8118, %v8117
    %v8295 = vpack.c.bf16 %v8120, %v8119
    %v8296 = vpack.c.bf16 %v8122, %v8121
    %v8297 = vpack.c.bf16 %v8124, %v8123
    %v8298 = vpack.c.bf16 %v8126, %v8125
    %v8299 = vpack.c.bf16 %v8128, %v8127
    %v8300 = vpack.c.bf16 %v8130, %v8129
    %v8301 = vpack.c.bf16 %v8132, %v8131
    %v8302 = vpack.c.bf16 %v8134, %v8133
    %v8303 = vpack.c.bf16 %v8136, %v8135
    %v8304 = vpack.c.bf16 %v8138, %v8137
    %v8305 = vpack.c.bf16 %v8140, %v8139
    %v8306 = vpack.c.bf16 %v8142, %v8141
    %v8307 = vpack.c.bf16 %v8144, %v8143
    %v8308 = vpack.c.bf16 %v8146, %v8145
    %v8309 = vpack.c.bf16 %v8148, %v8147
    %v8310 = vpack.c.bf16 %v8150, %v8149
    %v8311 = vpack.c.bf16 %v8152, %v8151
    %v8312 = vpack.c.bf16 %v8154, %v8153
    %v8313 = vpack.c.bf16 %v8156, %v8155
    %v8314 = vpack.c.bf16 %v8158, %v8157
    %v8315 = vpack.c.bf16 %v8160, %v8159
    %v8316 = vpack.c.bf16 %v8162, %v8161
    %v8317 = vpack.c.bf16 %v8164, %v8163
    %v8318 = vpack.c.bf16 %v8166, %v8165
    %v8319 = vpack.c.bf16 %v8168, %v8167
    %v8320 = vpack.c.bf16 %v8170, %v8169
    %v8321 = vpack.c.bf16 %v8172, %v8171
    %v8322 = vpack.c.bf16 %v8174, %v8173
    %v8323 = vpack.c.bf16 %v8176, %v8175
    %v8324 = vpack.c.bf16 %v8178, %v8177
    %v8325 = vpack.c.bf16 %v8180, %v8179
    %v8326 = vpack.c.bf16 %v8182, %v8181
    %v8327 = vpack.c.bf16 %v8184, %v8183
    %v8328 = vpack.c.bf16 %v8186, %v8185
    %v8329 = vpack.c.bf16 %v8188, %v8187
    %v8330 = vpack.c.bf16 %v8190, %v8189
    %v8331 = vpack.c.bf16 %v8192, %v8191
    %v8332 = vpack.c.bf16 %v8194, %v8193
    %v8333 = vpack.c.bf16 %v8196, %v8195
    %v8334 = vpack.c.bf16 %v8198, %v8197
    %v8335 = vpack.c.bf16 %v8200, %v8199
    %v8336 = vpack.c.bf16 %v8202, %v8201
    %v8337 = vpack.c.bf16 %v8204, %v8203
    %v8338 = vpack.c.bf16 %v8206, %v8205
    %v8339 = vpack.c.bf16 %v8208, %v8207
    %v8340 = vpack.c.bf16 %v8210, %v8209
    %v8341 = vpack.c.bf16 %v8212, %v8211
    %v8342 = vpack.c.bf16 %v8214, %v8213
    %v8343 = vld [vmem:[#allocation20] sm:$0xf]
    %v8344 = vld [vmem:[#allocation20 + $0x4] sm:$0xf]
    %v8345 = vld [vmem:[#allocation20 + $0x8] sm:$0xf]
    %v8346 = vld [vmem:[#allocation20 + $0xc] sm:$0xf]
    %v8347 = vld [vmem:[#allocation20 + $0x10] sm:$0xf]
    %v8348 = vld [vmem:[#allocation20 + $0x14] sm:$0xf]
    %v8349 = vld [vmem:[#allocation20 + $0x18] sm:$0xf]
    %v8350 = vld [vmem:[#allocation20 + $0x1c] sm:$0xf]
    %v8359 = vunpack.c.l.b16 %v8343
    %v8360 = vunpack.c.l.b16 %v8344
    %v8361 = vunpack.c.l.b16 %v8345
    %v8362 = vunpack.c.l.b16 %v8346
    %v8363 = vunpack.c.l.b16 %v8347
    %v8364 = vunpack.c.l.b16 %v8348
    %v8365 = vunpack.c.l.b16 %v8349
    %v8366 = vunpack.c.l.b16 %v8350
    %v8367 = vpack.c.b16 %v8360, %v8359
    %v8368 = vpack.c.b16 %v8362, %v8361
    %v8369 = vpack.c.b16 %v8364, %v8363
    %v8370 = vpack.c.b16 %v8366, %v8365
    %v8376 = vsel %vm4161, %v8215, 0
    %v8379 = vsel %vm4161, %v8216, 0
    %v8382 = vsel %vm4161, %v8217, 0
    %v8385 = vsel %vm4161, %v8218, 0
    %v8388 = vsel %vm4161, %v8219, 0
    %v8391 = vsel %vm4161, %v8220, 0
    %v8394 = vsel %vm4161, %v8221, 0
    %v8397 = vsel %vm4161, %v8222, 0
    %v8400 = vsel %vm4161, %v8223, 0
    %v8403 = vsel %vm4161, %v8224, 0
    %v8406 = vsel %vm4161, %v8225, 0
    %v8409 = vsel %vm4161, %v8226, 0
    %v8412 = vsel %vm4161, %v8227, 0
    %v8415 = vsel %vm4161, %v8228, 0
    %v8418 = vsel %vm4161, %v8229, 0
    %v8421 = vsel %vm4161, %v8230, 0
    %v8424 = vsel %vm4161, %v8231, 0
    %v8427 = vsel %vm4161, %v8232, 0
    %v8430 = vsel %vm4161, %v8233, 0
    %v8433 = vsel %vm4161, %v8234, 0
    %v8436 = vsel %vm4161, %v8235, 0
    %v8439 = vsel %vm4161, %v8236, 0
    %v8442 = vsel %vm4161, %v8237, 0
    %v8445 = vsel %vm4161, %v8238, 0
    %v8448 = vsel %vm4161, %v8239, 0
    %v8451 = vsel %vm4161, %v8240, 0
    %v8454 = vsel %vm4161, %v8241, 0
    %v8457 = vsel %vm4161, %v8242, 0
    %v8460 = vsel %vm4161, %v8243, 0
    %v8463 = vsel %vm4161, %v8244, 0
    %v8466 = vsel %vm4161, %v8245, 0
    %v8469 = vsel %vm4161, %v8246, 0
    %v8472 = vsel %vm4161, %v8247, 0
    %v8475 = vsel %vm4161, %v8248, 0
    %v8478 = vsel %vm4161, %v8249, 0
    %v8481 = vsel %vm4161, %v8250, 0
    %v8484 = vsel %vm4161, %v8251, 0
    %v8487 = vsel %vm4161, %v8252, 0
    %v8490 = vsel %vm4161, %v8253, 0
    %v8493 = vsel %vm4161, %v8254, 0
    %v8496 = vsel %vm4161, %v8255, 0
    %v8499 = vsel %vm4161, %v8256, 0
    %v8502 = vsel %vm4161, %v8257, 0
    %v8505 = vsel %vm4161, %v8258, 0
    %v8508 = vsel %vm4161, %v8259, 0
    %v8511 = vsel %vm4161, %v8260, 0
    %v8514 = vsel %vm4161, %v8261, 0
    %v8517 = vsel %vm4161, %v8262, 0
    %v8520 = vsel %vm4161, %v8263, 0
    %v8523 = vsel %vm4161, %v8264, 0
    %v8526 = vsel %vm4161, %v8265, 0
    %v8529 = vsel %vm4161, %v8266, 0
    %v8532 = vsel %vm4161, %v8267, 0
    %v8535 = vsel %vm4161, %v8268, 0
    %v8538 = vsel %vm4161, %v8269, 0
    %v8541 = vsel %vm4161, %v8270, 0
    %v8544 = vsel %vm4161, %v8271, 0
    %v8547 = vsel %vm4161, %v8272, 0
    %v8550 = vsel %vm4161, %v8273, 0
    %v8553 = vsel %vm4161, %v8274, 0
    %v8556 = vsel %vm4161, %v8275, 0
    %v8559 = vsel %vm4161, %v8276, 0
    %v8562 = vsel %vm4161, %v8277, 0
    %v8565 = vsel %vm4161, %v8278, 0
    %v8568 = vsel %vm4161, %v8279, 0
    %v8571 = vsel %vm4161, %v8280, 0
    %v8574 = vsel %vm4161, %v8281, 0
    %v8577 = vsel %vm4161, %v8282, 0
    %v8580 = vsel %vm4161, %v8283, 0
    %v8583 = vsel %vm4161, %v8284, 0
    %v8586 = vsel %vm4161, %v8285, 0
    %v8589 = vsel %vm4161, %v8286, 0
    %v8592 = vsel %vm4161, %v8287, 0
    %v8595 = vsel %vm4161, %v8288, 0
    %v8598 = vsel %vm4161, %v8289, 0
    %v8601 = vsel %vm4161, %v8290, 0
    %v8604 = vsel %vm4161, %v8291, 0
    %v8607 = vsel %vm4161, %v8292, 0
    %v8610 = vsel %vm4161, %v8293, 0
    %v8613 = vsel %vm4161, %v8294, 0
    %v8616 = vsel %vm4161, %v8295, 0
    %v8619 = vsel %vm4161, %v8296, 0
    %v8622 = vsel %vm4161, %v8297, 0
    %v8625 = vsel %vm4161, %v8298, 0
    %v8628 = vsel %vm4161, %v8299, 0
    %v8631 = vsel %vm4161, %v8300, 0
    %v8634 = vsel %vm4161, %v8301, 0
    %v8637 = vsel %vm4161, %v8302, 0
    %v8640 = vsel %vm4161, %v8303, 0
    %v8643 = vsel %vm4161, %v8304, 0
    %v8646 = vsel %vm4161, %v8305, 0
    %v8649 = vsel %vm4161, %v8306, 0
    %v8652 = vsel %vm4161, %v8307, 0
    %v8655 = vsel %vm4161, %v8308, 0
    %v8658 = vsel %vm4161, %v8309, 0
    %v8661 = vsel %vm4161, %v8310, 0
    %v8664 = vsel %vm4161, %v8311, 0
    %v8667 = vsel %vm4161, %v8312, 0
    %v8670 = vsel %vm4161, %v8313, 0
    %v8673 = vsel %vm4161, %v8314, 0
    %v8676 = vsel %vm4161, %v8315, 0
    %v8679 = vsel %vm4161, %v8316, 0
    %v8682 = vsel %vm4161, %v8317, 0
    %v8685 = vsel %vm4161, %v8318, 0
    %v8688 = vsel %vm4161, %v8319, 0
    %v8691 = vsel %vm4161, %v8320, 0
    %v8694 = vsel %vm4161, %v8321, 0
    %v8697 = vsel %vm4161, %v8322, 0
    %v8700 = vsel %vm4161, %v8323, 0
    %v8703 = vsel %vm4161, %v8324, 0
    %v8706 = vsel %vm4161, %v8325, 0
    %v8709 = vsel %vm4161, %v8326, 0
    %v8712 = vsel %vm4161, %v8327, 0
    %v8715 = vsel %vm4161, %v8328, 0
    %v8718 = vsel %vm4161, %v8329, 0
    %v8721 = vsel %vm4161, %v8330, 0
    %v8724 = vsel %vm4161, %v8331, 0
    %v8727 = vsel %vm4161, %v8332, 0
    %v8730 = vsel %vm4161, %v8333, 0
    %v8733 = vsel %vm4161, %v8334, 0
    %v8736 = vsel %vm4161, %v8335, 0
    %v8739 = vsel %vm4161, %v8336, 0
    %v8742 = vsel %vm4161, %v8337, 0
    %v8745 = vsel %vm4161, %v8338, 0
    %v8748 = vsel %vm4161, %v8339, 0
    %v8751 = vsel %vm4161, %v8340, 0
    %v8754 = vsel %vm4161, %v8341, 0
    %v8757 = vsel %vm4161, %v8342, 0
    %8759 = vmatprep.subr.bf16.mxu0 0
    %8760 = vmatpush1.bf16.msra.mxu0 %v8367
    %8761 = vmatprep.subr.bf16.mxu0 0
    %8762 = vmatpush1.bf16.msra.mxu0 %v8368
    %8763 = vmatprep.subr.bf16.mxu0 0
    %8764 = vmatpush1.bf16.msra.mxu0 %v8369
    %8765 = vmatprep.subr.bf16.mxu0 0
    %8766 = vmatpush1.bf16.msra.mxu0 %v8370
    %8767 = vmatprep.subr.bf16.mxu0 0
    %8768 = vmatpush1.bf16.msra.mxu0 0
    %8769 = vmatprep.subr.bf16.mxu0 0
    %8770 = vmatpush1.bf16.msra.mxu0 0
    %8771 = vmatprep.subr.bf16.mxu0 0
    %8772 = vmatpush1.bf16.msra.mxu0 0
    %8773 = vmatprep.subr.bf16.mxu0 0
    %8774 = vmatpush1.bf16.msra.mxu0 0
    %8775 = vmatprep.subr.bf16.mxu0 0
    %8776 = vmatpush1.bf16.msra.mxu0 0
    %8777 = vmatprep.subr.bf16.mxu0 0
    %8778 = vmatpush1.bf16.msra.mxu0 0
    %8779 = vmatprep.subr.bf16.mxu0 0
    %8780 = vmatpush1.bf16.msra.mxu0 0
    %8781 = vmatprep.subr.bf16.mxu0 0
    %8782 = vmatpush1.bf16.msra.mxu0 0
    %8783 = vmatprep.subr.bf16.mxu0 0
    %8784 = vmatpush1.bf16.msra.mxu0 0
    %8785 = vmatprep.subr.bf16.mxu0 0
    %8786 = vmatpush1.bf16.msra.mxu0 0
    %8787 = vmatprep.subr.bf16.mxu0 0
    %8788 = vmatpush1.bf16.msra.mxu0 0
    %8789 = vmatprep.subr.bf16.mxu0 0
    %8790 = vmatpush1.bf16.msra.mxu0 0
    %8791 = vmatprep.mubr.bf16.mxu0 0
    %8792 = vmatmul.mubr.bf16.gmra.mrb[0].mxu0 %v8376
    %v8793 = vpop.f32.mrb[0].mxu0
    %v8794 = vadd.f32 %v6616, %v8793
    %v8795 = vpop.f32.mrb[0].mxu0
    %v8796 = vpop.f32.mrb[0].mxu0
    %v8797 = vadd.f32 %v6621, %v8796
    %v8798 = vpop.f32.mrb[0].mxu0
    %8799 = vmatprep.mubr.bf16.mxu0 0
    %8800 = vmatmul.mubr.bf16.gmra.mrb[0].mxu0 %v8379
    %v8801 = vpop.f32.mrb[0].mxu0
    %v8802 = vadd.f32 %v6626, %v8801
    %v8803 = vpop.f32.mrb[0].mxu0
    %v8804 = vpop.f32.mrb[0].mxu0
    %v8805 = vadd.f32 %v6631, %v8804
    %v8806 = vpop.f32.mrb[0].mxu0
    %8807 = vmatprep.mubr.bf16.mxu0 0
    %8808 = vmatmul.mubr.bf16.gmra.mrb[0].mxu0 %v8382
    %v8809 = vpop.f32.mrb[0].mxu0
    %v8810 = vadd.f32 %v6636, %v8809
    %v8811 = vpop.f32.mrb[0].mxu0
    %v8812 = vpop.f32.mrb[0].mxu0
    %v8813 = vadd.f32 %v6641, %v8812
    %v8814 = vpop.f32.mrb[0].mxu0
    %8815 = vmatprep.mubr.bf16.mxu0 0
    %8816 = vmatmul.mubr.bf16.gmra.mrb[0].mxu0 %v8385
    %v8817 = vpop.f32.mrb[0].mxu0
    %v8818 = vadd.f32 %v6646, %v8817
    %v8819 = vpop.f32.mrb[0].mxu0
    %v8820 = vpop.f32.mrb[0].mxu0
    %v8821 = vadd.f32 %v6651, %v8820
    %v8822 = vpop.f32.mrb[0].mxu0
    %8823 = vmatprep.mubr.bf16.mxu0 0
    %8824 = vmatmul.mubr.bf16.gmra.mrb[0].mxu0 %v8388
    %v8825 = vpop.f32.mrb[0].mxu0
    %v8826 = vadd.f32 %v6656, %v8825
    %v8827 = vpop.f32.mrb[0].mxu0
    %v8828 = vpop.f32.mrb[0].mxu0
    %v8829 = vadd.f32 %v6661, %v8828
    %v8830 = vpop.f32.mrb[0].mxu0
    %8831 = vmatprep.mubr.bf16.mxu0 0
    %8832 = vmatmul.mubr.bf16.gmra.mrb[0].mxu0 %v8391
    %v8833 = vpop.f32.mrb[0].mxu0
    %v8834 = vadd.f32 %v6666, %v8833
    %v8835 = vpop.f32.mrb[0].mxu0
    %v8836 = vpop.f32.mrb[0].mxu0
    %v8837 = vadd.f32 %v6671, %v8836
    %v8838 = vpop.f32.mrb[0].mxu0
    %8839 = vmatprep.mubr.bf16.mxu0 0
    %8840 = vmatmul.mubr.bf16.gmra.mrb[0].mxu0 %v8394
    %v8841 = vpop.f32.mrb[0].mxu0
    %v8842 = vadd.f32 %v6676, %v8841
    %v8843 = vpop.f32.mrb[0].mxu0
    %v8844 = vpop.f32.mrb[0].mxu0
    %v8845 = vadd.f32 %v6681, %v8844
    %v8846 = vpop.f32.mrb[0].mxu0
    %8847 = vmatprep.mubr.bf16.mxu0 0
    %8848 = vmatmul.mubr.bf16.gmra.mrb[0].mxu0 %v8397
    %v8849 = vpop.f32.mrb[0].mxu0
    %v8850 = vadd.f32 %v6686, %v8849
    %v8851 = vpop.f32.mrb[0].mxu0
    %v8852 = vpop.f32.mrb[0].mxu0
    %v8853 = vadd.f32 %v6691, %v8852
    %v8854 = vpop.f32.mrb[0].mxu0
    %8855 = vmatprep.mubr.bf16.mxu0 0
    %8856 = vmatmul.mubr.bf16.gmra.mrb[0].mxu0 %v8400
    %v8857 = vpop.f32.mrb[0].mxu0
    %v8858 = vadd.f32 %v6696, %v8857
    %v8859 = vpop.f32.mrb[0].mxu0
    %v8860 = vpop.f32.mrb[0].mxu0
    %v8861 = vadd.f32 %v6701, %v8860
    %v8862 = vpop.f32.mrb[0].mxu0
    %8863 = vmatprep.mubr.bf16.mxu0 0
    %8864 = vmatmul.mubr.bf16.gmra.mrb[0].mxu0 %v8403
    %v8865 = vpop.f32.mrb[0].mxu0
    %v8866 = vadd.f32 %v6706, %v8865
    %v8867 = vpop.f32.mrb[0].mxu0
    %v8868 = vpop.f32.mrb[0].mxu0
    %v8869 = vadd.f32 %v6711, %v8868
    %v8870 = vpop.f32.mrb[0].mxu0
    %8871 = vmatprep.mubr.bf16.mxu0 0
    %8872 = vmatmul.mubr.bf16.gmra.mrb[0].mxu0 %v8406
    %v8873 = vpop.f32.mrb[0].mxu0
    %v8874 = vadd.f32 %v6716, %v8873
    %v8875 = vpop.f32.mrb[0].mxu0
    %v8876 = vpop.f32.mrb[0].mxu0
    %v8877 = vadd.f32 %v6721, %v8876
    %v8878 = vpop.f32.mrb[0].mxu0
    %8879 = vmatprep.mubr.bf16.mxu0 0
    %8880 = vmatmul.mubr.bf16.gmra.mrb[0].mxu0 %v8409
    %v8881 = vpop.f32.mrb[0].mxu0
    %v8882 = vadd.f32 %v6726, %v8881
    %v8883 = vpop.f32.mrb[0].mxu0
    %v8884 = vpop.f32.mrb[0].mxu0
    %v8885 = vadd.f32 %v6731, %v8884
    %v8886 = vpop.f32.mrb[0].mxu0
    %8887 = vmatprep.mubr.bf16.mxu0 0
    %8888 = vmatmul.mubr.bf16.gmra.mrb[0].mxu0 %v8412
    %v8889 = vpop.f32.mrb[0].mxu0
    %v8890 = vadd.f32 %v6736, %v8889
    %v8891 = vpop.f32.mrb[0].mxu0
    %v8892 = vpop.f32.mrb[0].mxu0
    %v8893 = vadd.f32 %v6741, %v8892
    %v8894 = vpop.f32.mrb[0].mxu0
    %8895 = vmatprep.mubr.bf16.mxu0 0
    %8896 = vmatmul.mubr.bf16.gmra.mrb[0].mxu0 %v8415
    %v8897 = vpop.f32.mrb[0].mxu0
    %v8898 = vadd.f32 %v6746, %v8897
    %v8899 = vpop.f32.mrb[0].mxu0
    %v8900 = vpop.f32.mrb[0].mxu0
    %v8901 = vadd.f32 %v6751, %v8900
    %v8902 = vpop.f32.mrb[0].mxu0
    %8903 = vmatprep.mubr.bf16.mxu0 0
    %8904 = vmatmul.mubr.bf16.gmra.mrb[0].mxu0 %v8418
    %v8905 = vpop.f32.mrb[0].mxu0
    %v8906 = vadd.f32 %v6756, %v8905
    %v8907 = vpop.f32.mrb[0].mxu0
    %v8908 = vpop.f32.mrb[0].mxu0
    %v8909 = vadd.f32 %v6761, %v8908
    %v8910 = vpop.f32.mrb[0].mxu0
    %8911 = vmatprep.mubr.bf16.mxu0 0
    %8912 = vmatmul.mubr.bf16.gmra.mrb[0].mxu0 %v8421
    %v8913 = vpop.f32.mrb[0].mxu0
    %v8914 = vadd.f32 %v6766, %v8913
    %v8915 = vpop.f32.mrb[0].mxu0
    %v8916 = vpop.f32.mrb[0].mxu0
    %v8917 = vadd.f32 %v6771, %v8916
    %v8918 = vpop.f32.mrb[0].mxu0
    %8919 = vmatprep.mubr.bf16.mxu0 0
    %8920 = vmatmul.mubr.bf16.gmra.mrb[0].mxu0 %v8424
    %v8921 = vpop.f32.mrb[0].mxu0
    %v8922 = vadd.f32 %v6776, %v8921
    %v8923 = vpop.f32.mrb[0].mxu0
    %v8924 = vpop.f32.mrb[0].mxu0
    %v8925 = vadd.f32 %v6781, %v8924
    %v8926 = vpop.f32.mrb[0].mxu0
    %8927 = vmatprep.mubr.bf16.mxu0 0
    %8928 = vmatmul.mubr.bf16.gmra.mrb[0].mxu0 %v8427
    %v8929 = vpop.f32.mrb[0].mxu0
    %v8930 = vadd.f32 %v6786, %v8929
    %v8931 = vpop.f32.mrb[0].mxu0
    %v8932 = vpop.f32.mrb[0].mxu0
    %v8933 = vadd.f32 %v6791, %v8932
    %v8934 = vpop.f32.mrb[0].mxu0
    %8935 = vmatprep.mubr.bf16.mxu0 0
    %8936 = vmatmul.mubr.bf16.gmra.mrb[0].mxu0 %v8430
    %v8937 = vpop.f32.mrb[0].mxu0
    %v8938 = vadd.f32 %v6796, %v8937
    %v8939 = vpop.f32.mrb[0].mxu0
    %v8940 = vpop.f32.mrb[0].mxu0
    %v8941 = vadd.f32 %v6801, %v8940
    %v8942 = vpop.f32.mrb[0].mxu0
    %8943 = vmatprep.mubr.bf16.mxu0 0
    %8944 = vmatmul.mubr.bf16.gmra.mrb[0].mxu0 %v8433
    %v8945 = vpop.f32.mrb[0].mxu0
    %v8946 = vadd.f32 %v6806, %v8945
    %v8947 = vpop.f32.mrb[0].mxu0
    %v8948 = vpop.f32.mrb[0].mxu0
    %v8949 = vadd.f32 %v6811, %v8948
    %v8950 = vpop.f32.mrb[0].mxu0
    %8951 = vmatprep.mubr.bf16.mxu0 0
    %8952 = vmatmul.mubr.bf16.gmra.mrb[0].mxu0 %v8436
    %v8953 = vpop.f32.mrb[0].mxu0
    %v8954 = vadd.f32 %v6816, %v8953
    %v8955 = vpop.f32.mrb[0].mxu0
    %v8956 = vpop.f32.mrb[0].mxu0
    %v8957 = vadd.f32 %v6821, %v8956
    %v8958 = vpop.f32.mrb[0].mxu0
    %8959 = vmatprep.mubr.bf16.mxu0 0
    %8960 = vmatmul.mubr.bf16.gmra.mrb[0].mxu0 %v8439
    %v8961 = vpop.f32.mrb[0].mxu0
    %v8962 = vadd.f32 %v6826, %v8961
    %v8963 = vpop.f32.mrb[0].mxu0
    %v8964 = vpop.f32.mrb[0].mxu0
    %v8965 = vadd.f32 %v6831, %v8964
    %v8966 = vpop.f32.mrb[0].mxu0
    %8967 = vmatprep.mubr.bf16.mxu0 0
    %8968 = vmatmul.mubr.bf16.gmra.mrb[0].mxu0 %v8442
    %v8969 = vpop.f32.mrb[0].mxu0
    %v8970 = vadd.f32 %v6836, %v8969
    %v8971 = vpop.f32.mrb[0].mxu0
    %v8972 = vpop.f32.mrb[0].mxu0
    %v8973 = vadd.f32 %v6841, %v8972
    %v8974 = vpop.f32.mrb[0].mxu0
    %8975 = vmatprep.mubr.bf16.mxu0 0
    %8976 = vmatmul.mubr.bf16.gmra.mrb[0].mxu0 %v8445
    %v8977 = vpop.f32.mrb[0].mxu0
    %v8978 = vadd.f32 %v6846, %v8977
    %v8979 = vpop.f32.mrb[0].mxu0
    %v8980 = vpop.f32.mrb[0].mxu0
    %v8981 = vadd.f32 %v6851, %v8980
    %v8982 = vpop.f32.mrb[0].mxu0
    %8983 = vmatprep.mubr.bf16.mxu0 0
    %8984 = vmatmul.mubr.bf16.gmra.mrb[0].mxu0 %v8448
    %v8985 = vpop.f32.mrb[0].mxu0
    %v8986 = vadd.f32 %v6856, %v8985
    %v8987 = vpop.f32.mrb[0].mxu0
    %v8988 = vpop.f32.mrb[0].mxu0
    %v8989 = vadd.f32 %v6861, %v8988
    %v8990 = vpop.f32.mrb[0].mxu0
    %8991 = vmatprep.mubr.bf16.mxu0 0
    %8992 = vmatmul.mubr.bf16.gmra.mrb[0].mxu0 %v8451
    %v8993 = vpop.f32.mrb[0].mxu0
    %v8994 = vadd.f32 %v6866, %v8993
    %v8995 = vpop.f32.mrb[0].mxu0
    %v8996 = vpop.f32.mrb[0].mxu0
    %v8997 = vadd.f32 %v6871, %v8996
    %v8998 = vpop.f32.mrb[0].mxu0
    %8999 = vmatprep.mubr.bf16.mxu0 0
    %9000 = vmatmul.mubr.bf16.gmra.mrb[0].mxu0 %v8454
    %v9001 = vpop.f32.mrb[0].mxu0
    %v9002 = vadd.f32 %v6876, %v9001
    %v9003 = vpop.f32.mrb[0].mxu0
    %v9004 = vpop.f32.mrb[0].mxu0
    %v9005 = vadd.f32 %v6881, %v9004
    %v9006 = vpop.f32.mrb[0].mxu0
    %9007 = vmatprep.mubr.bf16.mxu0 0
    %9008 = vmatmul.mubr.bf16.gmra.mrb[0].mxu0 %v8457
    %v9009 = vpop.f32.mrb[0].mxu0
    %v9010 = vadd.f32 %v6886, %v9009
    %v9011 = vpop.f32.mrb[0].mxu0
    %v9012 = vpop.f32.mrb[0].mxu0
    %v9013 = vadd.f32 %v6891, %v9012
    %v9014 = vpop.f32.mrb[0].mxu0
    %9015 = vmatprep.mubr.bf16.mxu0 0
    %9016 = vmatmul.mubr.bf16.gmra.mrb[0].mxu0 %v8460
    %v9017 = vpop.f32.mrb[0].mxu0
    %v9018 = vadd.f32 %v6896, %v9017
    %v9019 = vpop.f32.mrb[0].mxu0
    %v9020 = vpop.f32.mrb[0].mxu0
    %v9021 = vadd.f32 %v6901, %v9020
    %v9022 = vpop.f32.mrb[0].mxu0
    %9023 = vmatprep.mubr.bf16.mxu0 0
    %9024 = vmatmul.mubr.bf16.gmra.mrb[0].mxu0 %v8463
    %v9025 = vpop.f32.mrb[0].mxu0
    %v9026 = vadd.f32 %v6906, %v9025
    %v9027 = vpop.f32.mrb[0].mxu0
    %v9028 = vpop.f32.mrb[0].mxu0
    %v9029 = vadd.f32 %v6911, %v9028
    %v9030 = vpop.f32.mrb[0].mxu0
    %9031 = vmatprep.mubr.bf16.mxu0 0
    %9032 = vmatmul.mubr.bf16.gmra.mrb[0].mxu0 %v8466
    %v9033 = vpop.f32.mrb[0].mxu0
    %v9034 = vadd.f32 %v6916, %v9033
    %v9035 = vpop.f32.mrb[0].mxu0
    %v9036 = vpop.f32.mrb[0].mxu0
    %v9037 = vadd.f32 %v6921, %v9036
    %v9038 = vpop.f32.mrb[0].mxu0
    %9039 = vmatprep.mubr.bf16.mxu0 0
    %9040 = vmatmul.mubr.bf16.gmra.mrb[0].mxu0 %v8469
    %v9041 = vpop.f32.mrb[0].mxu0
    %v9042 = vadd.f32 %v6926, %v9041
    %v9043 = vpop.f32.mrb[0].mxu0
    %v9044 = vpop.f32.mrb[0].mxu0
    %v9045 = vadd.f32 %v6931, %v9044
    %v9046 = vpop.f32.mrb[0].mxu0
    %9047 = vmatprep.mubr.bf16.mxu0 0
    %9048 = vmatmul.mubr.bf16.gmra.mrb[0].mxu0 %v8472
    %v9049 = vpop.f32.mrb[0].mxu0
    %v9050 = vadd.f32 %v6936, %v9049
    %v9051 = vpop.f32.mrb[0].mxu0
    %v9052 = vpop.f32.mrb[0].mxu0
    %v9053 = vadd.f32 %v6941, %v9052
    %v9054 = vpop.f32.mrb[0].mxu0
    %9055 = vmatprep.mubr.bf16.mxu0 0
    %9056 = vmatmul.mubr.bf16.gmra.mrb[0].mxu0 %v8475
    %v9057 = vpop.f32.mrb[0].mxu0
    %v9058 = vadd.f32 %v6946, %v9057
    %v9059 = vpop.f32.mrb[0].mxu0
    %v9060 = vpop.f32.mrb[0].mxu0
    %v9061 = vadd.f32 %v6951, %v9060
    %v9062 = vpop.f32.mrb[0].mxu0
    %9063 = vmatprep.mubr.bf16.mxu0 0
    %9064 = vmatmul.mubr.bf16.gmra.mrb[0].mxu0 %v8478
    %v9065 = vpop.f32.mrb[0].mxu0
    %v9066 = vadd.f32 %v6956, %v9065
    %v9067 = vpop.f32.mrb[0].mxu0
    %v9068 = vpop.f32.mrb[0].mxu0
    %v9069 = vadd.f32 %v6961, %v9068
    %v9070 = vpop.f32.mrb[0].mxu0
    %9071 = vmatprep.mubr.bf16.mxu0 0
    %9072 = vmatmul.mubr.bf16.gmra.mrb[0].mxu0 %v8481
    %v9073 = vpop.f32.mrb[0].mxu0
    %v9074 = vadd.f32 %v6966, %v9073
    %v9075 = vpop.f32.mrb[0].mxu0
    %v9076 = vpop.f32.mrb[0].mxu0
    %v9077 = vadd.f32 %v6971, %v9076
    %v9078 = vpop.f32.mrb[0].mxu0
    %9079 = vmatprep.mubr.bf16.mxu0 0
    %9080 = vmatmul.mubr.bf16.gmra.mrb[0].mxu0 %v8484
    %v9081 = vpop.f32.mrb[0].mxu0
    %v9082 = vadd.f32 %v6976, %v9081
    %v9083 = vpop.f32.mrb[0].mxu0
    %v9084 = vpop.f32.mrb[0].mxu0
    %v9085 = vadd.f32 %v6981, %v9084
    %v9086 = vpop.f32.mrb[0].mxu0
    %9087 = vmatprep.mubr.bf16.mxu0 0
    %9088 = vmatmul.mubr.bf16.gmra.mrb[0].mxu0 %v8487
    %v9089 = vpop.f32.mrb[0].mxu0
    %v9090 = vadd.f32 %v6986, %v9089
    %v9091 = vpop.f32.mrb[0].mxu0
    %v9092 = vpop.f32.mrb[0].mxu0
    %v9093 = vadd.f32 %v6991, %v9092
    %v9094 = vpop.f32.mrb[0].mxu0
    %9095 = vmatprep.mubr.bf16.mxu0 0
    %9096 = vmatmul.mubr.bf16.gmra.mrb[0].mxu0 %v8490
    %v9097 = vpop.f32.mrb[0].mxu0
    %v9098 = vadd.f32 %v6996, %v9097
    %v9099 = vpop.f32.mrb[0].mxu0
    %v9100 = vpop.f32.mrb[0].mxu0
    %v9101 = vadd.f32 %v7001, %v9100
    %v9102 = vpop.f32.mrb[0].mxu0
    %9103 = vmatprep.mubr.bf16.mxu0 0
    %9104 = vmatmul.mubr.bf16.gmra.mrb[0].mxu0 %v8493
    %v9105 = vpop.f32.mrb[0].mxu0
    %v9106 = vadd.f32 %v7006, %v9105
    %v9107 = vpop.f32.mrb[0].mxu0
    %v9108 = vpop.f32.mrb[0].mxu0
    %v9109 = vadd.f32 %v7011, %v9108
    %v9110 = vpop.f32.mrb[0].mxu0
    %9111 = vmatprep.mubr.bf16.mxu0 0
    %9112 = vmatmul.mubr.bf16.gmra.mrb[0].mxu0 %v8496
    %v9113 = vpop.f32.mrb[0].mxu0
    %v9114 = vadd.f32 %v7016, %v9113
    %v9115 = vpop.f32.mrb[0].mxu0
    %v9116 = vpop.f32.mrb[0].mxu0
    %v9117 = vadd.f32 %v7021, %v9116
    %v9118 = vpop.f32.mrb[0].mxu0
    %9119 = vmatprep.mubr.bf16.mxu0 0
    %9120 = vmatmul.mubr.bf16.gmra.mrb[0].mxu0 %v8499
    %v9121 = vpop.f32.mrb[0].mxu0
    %v9122 = vadd.f32 %v7026, %v9121
    %v9123 = vpop.f32.mrb[0].mxu0
    %v9124 = vpop.f32.mrb[0].mxu0
    %v9125 = vadd.f32 %v7031, %v9124
    %v9126 = vpop.f32.mrb[0].mxu0
    %9127 = vmatprep.mubr.bf16.mxu0 0
    %9128 = vmatmul.mubr.bf16.gmra.mrb[0].mxu0 %v8502
    %v9129 = vpop.f32.mrb[0].mxu0
    %v9130 = vadd.f32 %v7036, %v9129
    %v9131 = vpop.f32.mrb[0].mxu0
    %v9132 = vpop.f32.mrb[0].mxu0
    %v9133 = vadd.f32 %v7041, %v9132
    %v9134 = vpop.f32.mrb[0].mxu0
    %9135 = vmatprep.mubr.bf16.mxu0 0
    %9136 = vmatmul.mubr.bf16.gmra.mrb[0].mxu0 %v8505
    %v9137 = vpop.f32.mrb[0].mxu0
    %v9138 = vadd.f32 %v7046, %v9137
    %v9139 = vpop.f32.mrb[0].mxu0
    %v9140 = vpop.f32.mrb[0].mxu0
    %v9141 = vadd.f32 %v7051, %v9140
    %v9142 = vpop.f32.mrb[0].mxu0
    %9143 = vmatprep.mubr.bf16.mxu0 0
    %9144 = vmatmul.mubr.bf16.gmra.mrb[0].mxu0 %v8508
    %v9145 = vpop.f32.mrb[0].mxu0
    %v9146 = vadd.f32 %v7056, %v9145
    %v9147 = vpop.f32.mrb[0].mxu0
    %v9148 = vpop.f32.mrb[0].mxu0
    %v9149 = vadd.f32 %v7061, %v9148
    %v9150 = vpop.f32.mrb[0].mxu0
    %9151 = vmatprep.mubr.bf16.mxu0 0
    %9152 = vmatmul.mubr.bf16.gmra.mrb[0].mxu0 %v8511
    %v9153 = vpop.f32.mrb[0].mxu0
    %v9154 = vadd.f32 %v7066, %v9153
    %v9155 = vpop.f32.mrb[0].mxu0
    %v9156 = vpop.f32.mrb[0].mxu0
    %v9157 = vadd.f32 %v7071, %v9156
    %v9158 = vpop.f32.mrb[0].mxu0
    %9159 = vmatprep.mubr.bf16.mxu0 0
    %9160 = vmatmul.mubr.bf16.gmra.mrb[0].mxu0 %v8514
    %v9161 = vpop.f32.mrb[0].mxu0
    %v9162 = vadd.f32 %v7076, %v9161
    %v9163 = vpop.f32.mrb[0].mxu0
    %v9164 = vpop.f32.mrb[0].mxu0
    %v9165 = vadd.f32 %v7081, %v9164
    %v9166 = vpop.f32.mrb[0].mxu0
    %9167 = vmatprep.mubr.bf16.mxu0 0
    %9168 = vmatmul.mubr.bf16.gmra.mrb[0].mxu0 %v8517
    %v9169 = vpop.f32.mrb[0].mxu0
    %v9170 = vadd.f32 %v7086, %v9169
    %v9171 = vpop.f32.mrb[0].mxu0
    %v9172 = vpop.f32.mrb[0].mxu0
    %v9173 = vadd.f32 %v7091, %v9172
    %v9174 = vpop.f32.mrb[0].mxu0
    %9175 = vmatprep.mubr.bf16.mxu0 0
    %9176 = vmatmul.mubr.bf16.gmra.mrb[0].mxu0 %v8520
    %v9177 = vpop.f32.mrb[0].mxu0
    %v9178 = vadd.f32 %v7096, %v9177
    %v9179 = vpop.f32.mrb[0].mxu0
    %v9180 = vpop.f32.mrb[0].mxu0
    %v9181 = vadd.f32 %v7101, %v9180
    %v9182 = vpop.f32.mrb[0].mxu0
    %9183 = vmatprep.mubr.bf16.mxu0 0
    %9184 = vmatmul.mubr.bf16.gmra.mrb[0].mxu0 %v8523
    %v9185 = vpop.f32.mrb[0].mxu0
    %v9186 = vadd.f32 %v7106, %v9185
    %v9187 = vpop.f32.mrb[0].mxu0
    %v9188 = vpop.f32.mrb[0].mxu0
    %v9189 = vadd.f32 %v7111, %v9188
    %v9190 = vpop.f32.mrb[0].mxu0
    %9191 = vmatprep.mubr.bf16.mxu0 0
    %9192 = vmatmul.mubr.bf16.gmra.mrb[0].mxu0 %v8526
    %v9193 = vpop.f32.mrb[0].mxu0
    %v9194 = vadd.f32 %v7116, %v9193
    %v9195 = vpop.f32.mrb[0].mxu0
    %v9196 = vpop.f32.mrb[0].mxu0
    %v9197 = vadd.f32 %v7121, %v9196
    %v9198 = vpop.f32.mrb[0].mxu0
    %9199 = vmatprep.mubr.bf16.mxu0 0
    %9200 = vmatmul.mubr.bf16.gmra.mrb[0].mxu0 %v8529
    %v9201 = vpop.f32.mrb[0].mxu0
    %v9202 = vadd.f32 %v7126, %v9201
    %v9203 = vpop.f32.mrb[0].mxu0
    %v9204 = vpop.f32.mrb[0].mxu0
    %v9205 = vadd.f32 %v7131, %v9204
    %v9206 = vpop.f32.mrb[0].mxu0
    %9207 = vmatprep.mubr.bf16.mxu0 0
    %9208 = vmatmul.mubr.bf16.gmra.mrb[0].mxu0 %v8532
    %v9209 = vpop.f32.mrb[0].mxu0
    %v9210 = vadd.f32 %v7136, %v9209
    %v9211 = vpop.f32.mrb[0].mxu0
    %v9212 = vpop.f32.mrb[0].mxu0
    %v9213 = vadd.f32 %v7141, %v9212
    %v9214 = vpop.f32.mrb[0].mxu0
    %9215 = vmatprep.mubr.bf16.mxu0 0
    %9216 = vmatmul.mubr.bf16.gmra.mrb[0].mxu0 %v8535
    %v9217 = vpop.f32.mrb[0].mxu0
    %v9218 = vadd.f32 %v7146, %v9217
    %v9219 = vpop.f32.mrb[0].mxu0
    %v9220 = vpop.f32.mrb[0].mxu0
    %v9221 = vadd.f32 %v7151, %v9220
    %v9222 = vpop.f32.mrb[0].mxu0
    %9223 = vmatprep.mubr.bf16.mxu0 0
    %9224 = vmatmul.mubr.bf16.gmra.mrb[0].mxu0 %v8538
    %v9225 = vpop.f32.mrb[0].mxu0
    %v9226 = vadd.f32 %v7156, %v9225
    %v9227 = vpop.f32.mrb[0].mxu0
    %v9228 = vpop.f32.mrb[0].mxu0
    %v9229 = vadd.f32 %v7161, %v9228
    %v9230 = vpop.f32.mrb[0].mxu0
    %9231 = vmatprep.mubr.bf16.mxu0 0
    %9232 = vmatmul.mubr.bf16.gmra.mrb[0].mxu0 %v8541
    %v9233 = vpop.f32.mrb[0].mxu0
    %v9234 = vadd.f32 %v7166, %v9233
    %v9235 = vpop.f32.mrb[0].mxu0
    %v9236 = vpop.f32.mrb[0].mxu0
    %v9237 = vadd.f32 %v7171, %v9236
    %v9238 = vpop.f32.mrb[0].mxu0
    %9239 = vmatprep.mubr.bf16.mxu0 0
    %9240 = vmatmul.mubr.bf16.gmra.mrb[0].mxu0 %v8544
    %v9241 = vpop.f32.mrb[0].mxu0
    %v9242 = vadd.f32 %v7176, %v9241
    %v9243 = vpop.f32.mrb[0].mxu0
    %v9244 = vpop.f32.mrb[0].mxu0
    %v9245 = vadd.f32 %v7181, %v9244
    %v9246 = vpop.f32.mrb[0].mxu0
    %9247 = vmatprep.mubr.bf16.mxu0 0
    %9248 = vmatmul.mubr.bf16.gmra.mrb[0].mxu0 %v8547
    %v9249 = vpop.f32.mrb[0].mxu0
    %v9250 = vadd.f32 %v7186, %v9249
    %v9251 = vpop.f32.mrb[0].mxu0
    %v9252 = vpop.f32.mrb[0].mxu0
    %v9253 = vadd.f32 %v7191, %v9252
    %v9254 = vpop.f32.mrb[0].mxu0
    %9255 = vmatprep.mubr.bf16.mxu0 0
    %9256 = vmatmul.mubr.bf16.gmra.mrb[0].mxu0 %v8550
    %v9257 = vpop.f32.mrb[0].mxu0
    %v9258 = vadd.f32 %v7196, %v9257
    %v9259 = vpop.f32.mrb[0].mxu0
    %v9260 = vpop.f32.mrb[0].mxu0
    %v9261 = vadd.f32 %v7201, %v9260
    %v9262 = vpop.f32.mrb[0].mxu0
    %9263 = vmatprep.mubr.bf16.mxu0 0
    %9264 = vmatmul.mubr.bf16.gmra.mrb[0].mxu0 %v8553
    %v9265 = vpop.f32.mrb[0].mxu0
    %v9266 = vadd.f32 %v7206, %v9265
    %v9267 = vpop.f32.mrb[0].mxu0
    %v9268 = vpop.f32.mrb[0].mxu0
    %v9269 = vadd.f32 %v7211, %v9268
    %v9270 = vpop.f32.mrb[0].mxu0
    %9271 = vmatprep.mubr.bf16.mxu0 0
    %9272 = vmatmul.mubr.bf16.gmra.mrb[0].mxu0 %v8556
    %v9273 = vpop.f32.mrb[0].mxu0
    %v9274 = vadd.f32 %v7216, %v9273
    %v9275 = vpop.f32.mrb[0].mxu0
    %v9276 = vpop.f32.mrb[0].mxu0
    %v9277 = vadd.f32 %v7221, %v9276
    %v9278 = vpop.f32.mrb[0].mxu0
    %9279 = vmatprep.mubr.bf16.mxu0 0
    %9280 = vmatmul.mubr.bf16.gmra.mrb[0].mxu0 %v8559
    %v9281 = vpop.f32.mrb[0].mxu0
    %v9282 = vadd.f32 %v7226, %v9281
    %v9283 = vpop.f32.mrb[0].mxu0
    %v9284 = vpop.f32.mrb[0].mxu0
    %v9285 = vadd.f32 %v7231, %v9284
    %v9286 = vpop.f32.mrb[0].mxu0
    %9287 = vmatprep.mubr.bf16.mxu0 0
    %9288 = vmatmul.mubr.bf16.gmra.mrb[0].mxu0 %v8562
    %v9289 = vpop.f32.mrb[0].mxu0
    %v9290 = vadd.f32 %v7236, %v9289
    %v9291 = vpop.f32.mrb[0].mxu0
    %v9292 = vpop.f32.mrb[0].mxu0
    %v9293 = vadd.f32 %v7241, %v9292
    %v9294 = vpop.f32.mrb[0].mxu0
    %9295 = vmatprep.mubr.bf16.mxu0 0
    %9296 = vmatmul.mubr.bf16.gmra.mrb[0].mxu0 %v8565
    %v9297 = vpop.f32.mrb[0].mxu0
    %v9298 = vadd.f32 %v7246, %v9297
    %v9299 = vpop.f32.mrb[0].mxu0
    %v9300 = vpop.f32.mrb[0].mxu0
    %v9301 = vadd.f32 %v7251, %v9300
    %v9302 = vpop.f32.mrb[0].mxu0
    %9303 = vmatprep.mubr.bf16.mxu0 0
    %9304 = vmatmul.mubr.bf16.gmra.mrb[0].mxu0 %v8568
    %v9305 = vpop.f32.mrb[0].mxu0
    %v9306 = vadd.f32 %v7321, %v9305
    %v9307 = vpop.f32.mrb[0].mxu0
    %v9308 = vpop.f32.mrb[0].mxu0
    %v9309 = vadd.f32 %v7326, %v9308
    %v9310 = vpop.f32.mrb[0].mxu0
    %9311 = vmatprep.mubr.bf16.mxu0 0
    %9312 = vmatmul.mubr.bf16.gmra.mrb[0].mxu0 %v8571
    %v9313 = vpop.f32.mrb[0].mxu0
    %v9314 = vadd.f32 %v7331, %v9313
    %v9315 = vpop.f32.mrb[0].mxu0
    %v9316 = vpop.f32.mrb[0].mxu0
    %v9317 = vadd.f32 %v7336, %v9316
    %v9318 = vpop.f32.mrb[0].mxu0
    %9319 = vmatprep.mubr.bf16.mxu0 0
    %9320 = vmatmul.mubr.bf16.gmra.mrb[0].mxu0 %v8574
    %v9321 = vpop.f32.mrb[0].mxu0
    %v9322 = vadd.f32 %v7341, %v9321
    %v9323 = vpop.f32.mrb[0].mxu0
    %v9324 = vpop.f32.mrb[0].mxu0
    %v9325 = vadd.f32 %v7346, %v9324
    %v9326 = vpop.f32.mrb[0].mxu0
    %9327 = vmatprep.mubr.bf16.mxu0 0
    %9328 = vmatmul.mubr.bf16.gmra.mrb[0].mxu0 %v8577
    %v9329 = vpop.f32.mrb[0].mxu0
    %v9330 = vadd.f32 %v7351, %v9329
    %v9331 = vpop.f32.mrb[0].mxu0
    %v9332 = vpop.f32.mrb[0].mxu0
    %v9333 = vadd.f32 %v7356, %v9332
    %v9334 = vpop.f32.mrb[0].mxu0
    %9335 = vmatprep.mubr.bf16.mxu0 0
    %9336 = vmatmul.mubr.bf16.gmra.mrb[0].mxu0 %v8580
    %v9337 = vpop.f32.mrb[0].mxu0
    %v9338 = vadd.f32 %v7361, %v9337
    %v9339 = vpop.f32.mrb[0].mxu0
    %v9340 = vpop.f32.mrb[0].mxu0
    %v9341 = vadd.f32 %v7366, %v9340
    %v9342 = vpop.f32.mrb[0].mxu0
    %9343 = vmatprep.mubr.bf16.mxu0 0
    %9344 = vmatmul.mubr.bf16.gmra.mrb[0].mxu0 %v8583
    %v9345 = vpop.f32.mrb[0].mxu0
    %v9346 = vadd.f32 %v7371, %v9345
    %v9347 = vpop.f32.mrb[0].mxu0
    %v9348 = vpop.f32.mrb[0].mxu0
    %v9349 = vadd.f32 %v7376, %v9348
    %v9350 = vpop.f32.mrb[0].mxu0
    %9351 = vmatprep.mubr.bf16.mxu0 0
    %9352 = vmatmul.mubr.bf16.gmra.mrb[0].mxu0 %v8586
    %v9353 = vpop.f32.mrb[0].mxu0
    %v9354 = vadd.f32 %v7381, %v9353
    %v9355 = vpop.f32.mrb[0].mxu0
    %v9356 = vpop.f32.mrb[0].mxu0
    %v9357 = vadd.f32 %v7386, %v9356
    %v9358 = vpop.f32.mrb[0].mxu0
    %9359 = vmatprep.mubr.bf16.mxu0 0
    %9360 = vmatmul.mubr.bf16.gmra.mrb[0].mxu0 %v8589
    %v9361 = vpop.f32.mrb[0].mxu0
    %v9362 = vadd.f32 %v7391, %v9361
    %v9363 = vpop.f32.mrb[0].mxu0
    %v9364 = vpop.f32.mrb[0].mxu0
    %v9365 = vadd.f32 %v7396, %v9364
    %v9366 = vpop.f32.mrb[0].mxu0
    %9367 = vmatprep.mubr.bf16.mxu0 0
    %9368 = vmatmul.mubr.bf16.gmra.mrb[0].mxu0 %v8592
    %v9369 = vpop.f32.mrb[0].mxu0
    %v9370 = vadd.f32 %v7401, %v9369
    %v9371 = vpop.f32.mrb[0].mxu0
    %v9372 = vpop.f32.mrb[0].mxu0
    %v9373 = vadd.f32 %v7406, %v9372
    %v9374 = vpop.f32.mrb[0].mxu0
    %9375 = vmatprep.mubr.bf16.mxu0 0
    %9376 = vmatmul.mubr.bf16.gmra.mrb[0].mxu0 %v8595
    %v9377 = vpop.f32.mrb[0].mxu0
    %v9378 = vadd.f32 %v7411, %v9377
    %v9379 = vpop.f32.mrb[0].mxu0
    %v9380 = vpop.f32.mrb[0].mxu0
    %v9381 = vadd.f32 %v7416, %v9380
    %v9382 = vpop.f32.mrb[0].mxu0
    %9383 = vmatprep.mubr.bf16.mxu0 0
    %9384 = vmatmul.mubr.bf16.gmra.mrb[0].mxu0 %v8598
    %v9385 = vpop.f32.mrb[0].mxu0
    %v9386 = vadd.f32 %v7421, %v9385
    %v9387 = vpop.f32.mrb[0].mxu0
    %v9388 = vpop.f32.mrb[0].mxu0
    %v9389 = vadd.f32 %v7426, %v9388
    %v9390 = vpop.f32.mrb[0].mxu0
    %9391 = vmatprep.mubr.bf16.mxu0 0
    %9392 = vmatmul.mubr.bf16.gmra.mrb[0].mxu0 %v8601
    %v9393 = vpop.f32.mrb[0].mxu0
    %v9394 = vadd.f32 %v7431, %v9393
    %v9395 = vpop.f32.mrb[0].mxu0
    %v9396 = vpop.f32.mrb[0].mxu0
    %v9397 = vadd.f32 %v7436, %v9396
    %v9398 = vpop.f32.mrb[0].mxu0
    %9399 = vmatprep.mubr.bf16.mxu0 0
    %9400 = vmatmul.mubr.bf16.gmra.mrb[0].mxu0 %v8604
    %v9401 = vpop.f32.mrb[0].mxu0
    %v9402 = vadd.f32 %v7441, %v9401
    %v9403 = vpop.f32.mrb[0].mxu0
    %v9404 = vpop.f32.mrb[0].mxu0
    %v9405 = vadd.f32 %v7446, %v9404
    %v9406 = vpop.f32.mrb[0].mxu0
    %9407 = vmatprep.mubr.bf16.mxu0 0
    %9408 = vmatmul.mubr.bf16.gmra.mrb[0].mxu0 %v8607
    %v9409 = vpop.f32.mrb[0].mxu0
    %v9410 = vadd.f32 %v7451, %v9409
    %v9411 = vpop.f32.mrb[0].mxu0
    %v9412 = vpop.f32.mrb[0].mxu0
    %v9413 = vadd.f32 %v7456, %v9412
    %v9414 = vpop.f32.mrb[0].mxu0
    %9415 = vmatprep.mubr.bf16.mxu0 0
    %9416 = vmatmul.mubr.bf16.gmra.mrb[0].mxu0 %v8610
    %v9417 = vpop.f32.mrb[0].mxu0
    %v9418 = vadd.f32 %v7461, %v9417
    %v9419 = vpop.f32.mrb[0].mxu0
    %v9420 = vpop.f32.mrb[0].mxu0
    %v9421 = vadd.f32 %v7466, %v9420
    %v9422 = vpop.f32.mrb[0].mxu0
    %9423 = vmatprep.mubr.bf16.mxu0 0
    %9424 = vmatmul.mubr.bf16.gmra.mrb[0].mxu0 %v8613
    %v9425 = vpop.f32.mrb[0].mxu0
    %v9426 = vadd.f32 %v7471, %v9425
    %v9427 = vpop.f32.mrb[0].mxu0
    %v9428 = vpop.f32.mrb[0].mxu0
    %v9429 = vadd.f32 %v7476, %v9428
    %v9430 = vpop.f32.mrb[0].mxu0
    %9431 = vmatprep.mubr.bf16.mxu0 0
    %9432 = vmatmul.mubr.bf16.gmra.mrb[0].mxu0 %v8616
    %v9433 = vpop.f32.mrb[0].mxu0
    %v9434 = vadd.f32 %v7481, %v9433
    %v9435 = vpop.f32.mrb[0].mxu0
    %v9436 = vpop.f32.mrb[0].mxu0
    %v9437 = vadd.f32 %v7486, %v9436
    %v9438 = vpop.f32.mrb[0].mxu0
    %9439 = vmatprep.mubr.bf16.mxu0 0
    %9440 = vmatmul.mubr.bf16.gmra.mrb[0].mxu0 %v8619
    %v9441 = vpop.f32.mrb[0].mxu0
    %v9442 = vadd.f32 %v7491, %v9441
    %v9443 = vpop.f32.mrb[0].mxu0
    %v9444 = vpop.f32.mrb[0].mxu0
    %v9445 = vadd.f32 %v7496, %v9444
    %v9446 = vpop.f32.mrb[0].mxu0
    %9447 = vmatprep.mubr.bf16.mxu0 0
    %9448 = vmatmul.mubr.bf16.gmra.mrb[0].mxu0 %v8622
    %v9449 = vpop.f32.mrb[0].mxu0
    %v9450 = vadd.f32 %v7501, %v9449
    %v9451 = vpop.f32.mrb[0].mxu0
    %v9452 = vpop.f32.mrb[0].mxu0
    %v9453 = vadd.f32 %v7506, %v9452
    %v9454 = vpop.f32.mrb[0].mxu0
    %9455 = vmatprep.mubr.bf16.mxu0 0
    %9456 = vmatmul.mubr.bf16.gmra.mrb[0].mxu0 %v8625
    %v9457 = vpop.f32.mrb[0].mxu0
    %v9458 = vadd.f32 %v7511, %v9457
    %v9459 = vpop.f32.mrb[0].mxu0
    %v9460 = vpop.f32.mrb[0].mxu0
    %v9461 = vadd.f32 %v7516, %v9460
    %v9462 = vpop.f32.mrb[0].mxu0
    %9463 = vmatprep.mubr.bf16.mxu0 0
    %9464 = vmatmul.mubr.bf16.gmra.mrb[0].mxu0 %v8628
    %v9465 = vpop.f32.mrb[0].mxu0
    %v9466 = vadd.f32 %v7521, %v9465
    %v9467 = vpop.f32.mrb[0].mxu0
    %v9468 = vpop.f32.mrb[0].mxu0
    %v9469 = vadd.f32 %v7526, %v9468
    %v9470 = vpop.f32.mrb[0].mxu0
    %9471 = vmatprep.mubr.bf16.mxu0 0
    %9472 = vmatmul.mubr.bf16.gmra.mrb[0].mxu0 %v8631
    %v9473 = vpop.f32.mrb[0].mxu0
    %v9474 = vadd.f32 %v7531, %v9473
    %v9475 = vpop.f32.mrb[0].mxu0
    %v9476 = vpop.f32.mrb[0].mxu0
    %v9477 = vadd.f32 %v7536, %v9476
    %v9478 = vpop.f32.mrb[0].mxu0
    %9479 = vmatprep.mubr.bf16.mxu0 0
    %9480 = vmatmul.mubr.bf16.gmra.mrb[0].mxu0 %v8634
    %v9481 = vpop.f32.mrb[0].mxu0
    %v9482 = vadd.f32 %v7541, %v9481
    %v9483 = vpop.f32.mrb[0].mxu0
    %v9484 = vpop.f32.mrb[0].mxu0
    %v9485 = vadd.f32 %v7546, %v9484
    %v9486 = vpop.f32.mrb[0].mxu0
    %9487 = vmatprep.mubr.bf16.mxu0 0
    %9488 = vmatmul.mubr.bf16.gmra.mrb[0].mxu0 %v8637
    %v9489 = vpop.f32.mrb[0].mxu0
    %v9490 = vadd.f32 %v7551, %v9489
    %v9491 = vpop.f32.mrb[0].mxu0
    %v9492 = vpop.f32.mrb[0].mxu0
    %v9493 = vadd.f32 %v7556, %v9492
    %v9494 = vpop.f32.mrb[0].mxu0
    %9495 = vmatprep.mubr.bf16.mxu0 0
    %9496 = vmatmul.mubr.bf16.gmra.mrb[0].mxu0 %v8640
    %v9497 = vpop.f32.mrb[0].mxu0
    %v9498 = vadd.f32 %v7561, %v9497
    %v9499 = vpop.f32.mrb[0].mxu0
    %v9500 = vpop.f32.mrb[0].mxu0
    %v9501 = vadd.f32 %v7566, %v9500
    %v9502 = vpop.f32.mrb[0].mxu0
    %9503 = vmatprep.mubr.bf16.mxu0 0
    %9504 = vmatmul.mubr.bf16.gmra.mrb[0].mxu0 %v8643
    %v9505 = vpop.f32.mrb[0].mxu0
    %v9506 = vadd.f32 %v7571, %v9505
    %v9507 = vpop.f32.mrb[0].mxu0
    %v9508 = vpop.f32.mrb[0].mxu0
    %v9509 = vadd.f32 %v7576, %v9508
    %v9510 = vpop.f32.mrb[0].mxu0
    %9511 = vmatprep.mubr.bf16.mxu0 0
    %9512 = vmatmul.mubr.bf16.gmra.mrb[0].mxu0 %v8646
    %v9513 = vpop.f32.mrb[0].mxu0
    %v9514 = vadd.f32 %v7581, %v9513
    %v9515 = vpop.f32.mrb[0].mxu0
    %v9516 = vpop.f32.mrb[0].mxu0
    %v9517 = vadd.f32 %v7586, %v9516
    %v9518 = vpop.f32.mrb[0].mxu0
    %9519 = vmatprep.mubr.bf16.mxu0 0
    %9520 = vmatmul.mubr.bf16.gmra.mrb[0].mxu0 %v8649
    %v9521 = vpop.f32.mrb[0].mxu0
    %v9522 = vadd.f32 %v7591, %v9521
    %v9523 = vpop.f32.mrb[0].mxu0
    %v9524 = vpop.f32.mrb[0].mxu0
    %v9525 = vadd.f32 %v7596, %v9524
    %v9526 = vpop.f32.mrb[0].mxu0
    %9527 = vmatprep.mubr.bf16.mxu0 0
    %9528 = vmatmul.mubr.bf16.gmra.mrb[0].mxu0 %v8652
    %v9529 = vpop.f32.mrb[0].mxu0
    %v9530 = vadd.f32 %v7601, %v9529
    %v9531 = vpop.f32.mrb[0].mxu0
    %v9532 = vpop.f32.mrb[0].mxu0
    %v9533 = vadd.f32 %v7606, %v9532
    %v9534 = vpop.f32.mrb[0].mxu0
    %9535 = vmatprep.mubr.bf16.mxu0 0
    %9536 = vmatmul.mubr.bf16.gmra.mrb[0].mxu0 %v8655
    %v9537 = vpop.f32.mrb[0].mxu0
    %v9538 = vadd.f32 %v7611, %v9537
    %v9539 = vpop.f32.mrb[0].mxu0
    %v9540 = vpop.f32.mrb[0].mxu0
    %v9541 = vadd.f32 %v7616, %v9540
    %v9542 = vpop.f32.mrb[0].mxu0
    %9543 = vmatprep.mubr.bf16.mxu0 0
    %9544 = vmatmul.mubr.bf16.gmra.mrb[0].mxu0 %v8658
    %v9545 = vpop.f32.mrb[0].mxu0
    %v9546 = vadd.f32 %v7621, %v9545
    %v9547 = vpop.f32.mrb[0].mxu0
    %v9548 = vpop.f32.mrb[0].mxu0
    %v9549 = vadd.f32 %v7626, %v9548
    %v9550 = vpop.f32.mrb[0].mxu0
    %9551 = vmatprep.mubr.bf16.mxu0 0
    %9552 = vmatmul.mubr.bf16.gmra.mrb[0].mxu0 %v8661
    %v9553 = vpop.f32.mrb[0].mxu0
    %v9554 = vadd.f32 %v7631, %v9553
    %v9555 = vpop.f32.mrb[0].mxu0
    %v9556 = vpop.f32.mrb[0].mxu0
    %v9557 = vadd.f32 %v7636, %v9556
    %v9558 = vpop.f32.mrb[0].mxu0
    %9559 = vmatprep.mubr.bf16.mxu0 0
    %9560 = vmatmul.mubr.bf16.gmra.mrb[0].mxu0 %v8664
    %v9561 = vpop.f32.mrb[0].mxu0
    %v9562 = vadd.f32 %v7641, %v9561
    %v9563 = vpop.f32.mrb[0].mxu0
    %v9564 = vpop.f32.mrb[0].mxu0
    %v9565 = vadd.f32 %v7646, %v9564
    %v9566 = vpop.f32.mrb[0].mxu0
    %9567 = vmatprep.mubr.bf16.mxu0 0
    %9568 = vmatmul.mubr.bf16.gmra.mrb[0].mxu0 %v8667
    %v9569 = vpop.f32.mrb[0].mxu0
    %v9570 = vadd.f32 %v7651, %v9569
    %v9571 = vpop.f32.mrb[0].mxu0
    %v9572 = vpop.f32.mrb[0].mxu0
    %v9573 = vadd.f32 %v7656, %v9572
    %v9574 = vpop.f32.mrb[0].mxu0
    %9575 = vmatprep.mubr.bf16.mxu0 0
    %9576 = vmatmul.mubr.bf16.gmra.mrb[0].mxu0 %v8670
    %v9577 = vpop.f32.mrb[0].mxu0
    %v9578 = vadd.f32 %v7661, %v9577
    %v9579 = vpop.f32.mrb[0].mxu0
    %v9580 = vpop.f32.mrb[0].mxu0
    %v9581 = vadd.f32 %v7666, %v9580
    %v9582 = vpop.f32.mrb[0].mxu0
    %9583 = vmatprep.mubr.bf16.mxu0 0
    %9584 = vmatmul.mubr.bf16.gmra.mrb[0].mxu0 %v8673
    %v9585 = vpop.f32.mrb[0].mxu0
    %v9586 = vadd.f32 %v7671, %v9585
    %v9587 = vpop.f32.mrb[0].mxu0
    %v9588 = vpop.f32.mrb[0].mxu0
    %v9589 = vadd.f32 %v7676, %v9588
    %v9590 = vpop.f32.mrb[0].mxu0
    %9591 = vmatprep.mubr.bf16.mxu0 0
    %9592 = vmatmul.mubr.bf16.gmra.mrb[0].mxu0 %v8676
    %v9593 = vpop.f32.mrb[0].mxu0
    %v9594 = vadd.f32 %v7681, %v9593
    %v9595 = vpop.f32.mrb[0].mxu0
    %v9596 = vpop.f32.mrb[0].mxu0
    %v9597 = vadd.f32 %v7686, %v9596
    %v9598 = vpop.f32.mrb[0].mxu0
    %9599 = vmatprep.mubr.bf16.mxu0 0
    %9600 = vmatmul.mubr.bf16.gmra.mrb[0].mxu0 %v8679
    %v9601 = vpop.f32.mrb[0].mxu0
    %v9602 = vadd.f32 %v7691, %v9601
    %v9603 = vpop.f32.mrb[0].mxu0
    %v9604 = vpop.f32.mrb[0].mxu0
    %v9605 = vadd.f32 %v7696, %v9604
    %v9606 = vpop.f32.mrb[0].mxu0
    %9607 = vmatprep.mubr.bf16.mxu0 0
    %9608 = vmatmul.mubr.bf16.gmra.mrb[0].mxu0 %v8682
    %v9609 = vpop.f32.mrb[0].mxu0
    %v9610 = vadd.f32 %v7701, %v9609
    %v9611 = vpop.f32.mrb[0].mxu0
    %v9612 = vpop.f32.mrb[0].mxu0
    %v9613 = vadd.f32 %v7706, %v9612
    %v9614 = vpop.f32.mrb[0].mxu0
    %9615 = vmatprep.mubr.bf16.mxu0 0
    %9616 = vmatmul.mubr.bf16.gmra.mrb[0].mxu0 %v8685
    %v9617 = vpop.f32.mrb[0].mxu0
    %v9618 = vadd.f32 %v7711, %v9617
    %v9619 = vpop.f32.mrb[0].mxu0
    %v9620 = vpop.f32.mrb[0].mxu0
    %v9621 = vadd.f32 %v7716, %v9620
    %v9622 = vpop.f32.mrb[0].mxu0
    %9623 = vmatprep.mubr.bf16.mxu0 0
    %9624 = vmatmul.mubr.bf16.gmra.mrb[0].mxu0 %v8688
    %v9625 = vpop.f32.mrb[0].mxu0
    %v9626 = vadd.f32 %v7721, %v9625
    %v9627 = vpop.f32.mrb[0].mxu0
    %v9628 = vpop.f32.mrb[0].mxu0
    %v9629 = vadd.f32 %v7726, %v9628
    %v9630 = vpop.f32.mrb[0].mxu0
    %9631 = vmatprep.mubr.bf16.mxu0 0
    %9632 = vmatmul.mubr.bf16.gmra.mrb[0].mxu0 %v8691
    %v9633 = vpop.f32.mrb[0].mxu0
    %v9634 = vadd.f32 %v7731, %v9633
    %v9635 = vpop.f32.mrb[0].mxu0
    %v9636 = vpop.f32.mrb[0].mxu0
    %v9637 = vadd.f32 %v7736, %v9636
    %v9638 = vpop.f32.mrb[0].mxu0
    %9639 = vmatprep.mubr.bf16.mxu0 0
    %9640 = vmatmul.mubr.bf16.gmra.mrb[0].mxu0 %v8694
    %v9641 = vpop.f32.mrb[0].mxu0
    %v9642 = vadd.f32 %v7741, %v9641
    %v9643 = vpop.f32.mrb[0].mxu0
    %v9644 = vpop.f32.mrb[0].mxu0
    %v9645 = vadd.f32 %v7746, %v9644
    %v9646 = vpop.f32.mrb[0].mxu0
    %9647 = vmatprep.mubr.bf16.mxu0 0
    %9648 = vmatmul.mubr.bf16.gmra.mrb[0].mxu0 %v8697
    %v9649 = vpop.f32.mrb[0].mxu0
    %v9650 = vadd.f32 %v7751, %v9649
    %v9651 = vpop.f32.mrb[0].mxu0
    %v9652 = vpop.f32.mrb[0].mxu0
    %v9653 = vadd.f32 %v7756, %v9652
    %v9654 = vpop.f32.mrb[0].mxu0
    %9655 = vmatprep.mubr.bf16.mxu0 0
    %9656 = vmatmul.mubr.bf16.gmra.mrb[0].mxu0 %v8700
    %v9657 = vpop.f32.mrb[0].mxu0
    %v9658 = vadd.f32 %v7761, %v9657
    %v9659 = vpop.f32.mrb[0].mxu0
    %v9660 = vpop.f32.mrb[0].mxu0
    %v9661 = vadd.f32 %v7766, %v9660
    %v9662 = vpop.f32.mrb[0].mxu0
    %9663 = vmatprep.mubr.bf16.mxu0 0
    %9664 = vmatmul.mubr.bf16.gmra.mrb[0].mxu0 %v8703
    %v9665 = vpop.f32.mrb[0].mxu0
    %v9666 = vadd.f32 %v7771, %v9665
    %v9667 = vpop.f32.mrb[0].mxu0
    %v9668 = vpop.f32.mrb[0].mxu0
    %v9669 = vadd.f32 %v7776, %v9668
    %v9670 = vpop.f32.mrb[0].mxu0
    %9671 = vmatprep.mubr.bf16.mxu0 0
    %9672 = vmatmul.mubr.bf16.gmra.mrb[0].mxu0 %v8706
    %v9673 = vpop.f32.mrb[0].mxu0
    %v9674 = vadd.f32 %v7781, %v9673
    %v9675 = vpop.f32.mrb[0].mxu0
    %v9676 = vpop.f32.mrb[0].mxu0
    %v9677 = vadd.f32 %v7786, %v9676
    %v9678 = vpop.f32.mrb[0].mxu0
    %9679 = vmatprep.mubr.bf16.mxu0 0
    %9680 = vmatmul.mubr.bf16.gmra.mrb[0].mxu0 %v8709
    %v9681 = vpop.f32.mrb[0].mxu0
    %v9682 = vadd.f32 %v7791, %v9681
    %v9683 = vpop.f32.mrb[0].mxu0
    %v9684 = vpop.f32.mrb[0].mxu0
    %v9685 = vadd.f32 %v7796, %v9684
    %v9686 = vpop.f32.mrb[0].mxu0
    %9687 = vmatprep.mubr.bf16.mxu0 0
    %9688 = vmatmul.mubr.bf16.gmra.mrb[0].mxu0 %v8712
    %v9689 = vpop.f32.mrb[0].mxu0
    %v9690 = vadd.f32 %v7801, %v9689
    %v9691 = vpop.f32.mrb[0].mxu0
    %v9692 = vpop.f32.mrb[0].mxu0
    %v9693 = vadd.f32 %v7806, %v9692
    %v9694 = vpop.f32.mrb[0].mxu0
    %9695 = vmatprep.mubr.bf16.mxu0 0
    %9696 = vmatmul.mubr.bf16.gmra.mrb[0].mxu0 %v8715
    %v9697 = vpop.f32.mrb[0].mxu0
    %v9698 = vadd.f32 %v7811, %v9697
    %v9699 = vpop.f32.mrb[0].mxu0
    %v9700 = vpop.f32.mrb[0].mxu0
    %v9701 = vadd.f32 %v7816, %v9700
    %v9702 = vpop.f32.mrb[0].mxu0
    %9703 = vmatprep.mubr.bf16.mxu0 0
    %9704 = vmatmul.mubr.bf16.gmra.mrb[0].mxu0 %v8718
    %v9705 = vpop.f32.mrb[0].mxu0
    %v9706 = vadd.f32 %v7821, %v9705
    %v9707 = vpop.f32.mrb[0].mxu0
    %v9708 = vpop.f32.mrb[0].mxu0
    %v9709 = vadd.f32 %v7826, %v9708
    %v9710 = vpop.f32.mrb[0].mxu0
    %9711 = vmatprep.mubr.bf16.mxu0 0
    %9712 = vmatmul.mubr.bf16.gmra.mrb[0].mxu0 %v8721
    %v9713 = vpop.f32.mrb[0].mxu0
    %v9714 = vadd.f32 %v7831, %v9713
    %v9715 = vpop.f32.mrb[0].mxu0
    %v9716 = vpop.f32.mrb[0].mxu0
    %v9717 = vadd.f32 %v7836, %v9716
    %v9718 = vpop.f32.mrb[0].mxu0
    %9719 = vmatprep.mubr.bf16.mxu0 0
    %9720 = vmatmul.mubr.bf16.gmra.mrb[0].mxu0 %v8724
    %v9721 = vpop.f32.mrb[0].mxu0
    %v9722 = vadd.f32 %v7841, %v9721
    %v9723 = vpop.f32.mrb[0].mxu0
    %v9724 = vpop.f32.mrb[0].mxu0
    %v9725 = vadd.f32 %v7846, %v9724
    %v9726 = vpop.f32.mrb[0].mxu0
    %9727 = vmatprep.mubr.bf16.mxu0 0
    %9728 = vmatmul.mubr.bf16.gmra.mrb[0].mxu0 %v8727
    %v9729 = vpop.f32.mrb[0].mxu0
    %v9730 = vadd.f32 %v7851, %v9729
    %v9731 = vpop.f32.mrb[0].mxu0
    %v9732 = vpop.f32.mrb[0].mxu0
    %v9733 = vadd.f32 %v7856, %v9732
    %v9734 = vpop.f32.mrb[0].mxu0
    %9735 = vmatprep.mubr.bf16.mxu0 0
    %9736 = vmatmul.mubr.bf16.gmra.mrb[0].mxu0 %v8730
    %v9737 = vpop.f32.mrb[0].mxu0
    %v9738 = vadd.f32 %v7861, %v9737
    %v9739 = vpop.f32.mrb[0].mxu0
    %v9740 = vpop.f32.mrb[0].mxu0
    %v9741 = vadd.f32 %v7866, %v9740
    %v9742 = vpop.f32.mrb[0].mxu0
    %9743 = vmatprep.mubr.bf16.mxu0 0
    %9744 = vmatmul.mubr.bf16.gmra.mrb[0].mxu0 %v8733
    %v9745 = vpop.f32.mrb[0].mxu0
    %v9746 = vadd.f32 %v7871, %v9745
    %v9747 = vpop.f32.mrb[0].mxu0
    %v9748 = vpop.f32.mrb[0].mxu0
    %v9749 = vadd.f32 %v7876, %v9748
    %v9750 = vpop.f32.mrb[0].mxu0
    %9751 = vmatprep.mubr.bf16.mxu0 0
    %9752 = vmatmul.mubr.bf16.gmra.mrb[0].mxu0 %v8736
    %v9753 = vpop.f32.mrb[0].mxu0
    %v9754 = vadd.f32 %v7881, %v9753
    %v9755 = vpop.f32.mrb[0].mxu0
    %v9756 = vpop.f32.mrb[0].mxu0
    %v9757 = vadd.f32 %v7886, %v9756
    %v9758 = vpop.f32.mrb[0].mxu0
    %9759 = vmatprep.mubr.bf16.mxu0 0
    %9760 = vmatmul.mubr.bf16.gmra.mrb[0].mxu0 %v8739
    %v9761 = vpop.f32.mrb[0].mxu0
    %v9762 = vadd.f32 %v7891, %v9761
    %v9763 = vpop.f32.mrb[0].mxu0
    %v9764 = vpop.f32.mrb[0].mxu0
    %v9765 = vadd.f32 %v7896, %v9764
    %v9766 = vpop.f32.mrb[0].mxu0
    %9767 = vmatprep.mubr.bf16.mxu0 0
    %9768 = vmatmul.mubr.bf16.gmra.mrb[0].mxu0 %v8742
    %v9769 = vpop.f32.mrb[0].mxu0
    %v9770 = vadd.f32 %v7901, %v9769
    %v9771 = vpop.f32.mrb[0].mxu0
    %v9772 = vpop.f32.mrb[0].mxu0
    %v9773 = vadd.f32 %v7906, %v9772
    %v9774 = vpop.f32.mrb[0].mxu0
    %9775 = vmatprep.mubr.bf16.mxu0 0
    %9776 = vmatmul.mubr.bf16.gmra.mrb[0].mxu0 %v8745
    %v9777 = vpop.f32.mrb[0].mxu0
    %v9778 = vadd.f32 %v7911, %v9777
    %v9779 = vpop.f32.mrb[0].mxu0
    %v9780 = vpop.f32.mrb[0].mxu0
    %v9781 = vadd.f32 %v7916, %v9780
    %v9782 = vpop.f32.mrb[0].mxu0
    %9783 = vmatprep.mubr.bf16.mxu0 0
    %9784 = vmatmul.mubr.bf16.gmra.mrb[0].mxu0 %v8748
    %v9785 = vpop.f32.mrb[0].mxu0
    %v9786 = vadd.f32 %v7921, %v9785
    %v9787 = vpop.f32.mrb[0].mxu0
    %v9788 = vpop.f32.mrb[0].mxu0
    %v9789 = vadd.f32 %v7926, %v9788
    %v9790 = vpop.f32.mrb[0].mxu0
    %9791 = vmatprep.mubr.bf16.mxu0 0
    %9792 = vmatmul.mubr.bf16.gmra.mrb[0].mxu0 %v8751
    %v9793 = vpop.f32.mrb[0].mxu0
    %v9794 = vadd.f32 %v7931, %v9793
    %v9795 = vpop.f32.mrb[0].mxu0
    %v9796 = vpop.f32.mrb[0].mxu0
    %v9797 = vadd.f32 %v7936, %v9796
    %v9798 = vpop.f32.mrb[0].mxu0
    %9799 = vmatprep.mubr.bf16.mxu0 0
    %9800 = vmatmul.mubr.bf16.gmra.mrb[0].mxu0 %v8754
    %v9801 = vpop.f32.mrb[0].mxu0
    %v9802 = vadd.f32 %v7941, %v9801
    %v9803 = vpop.f32.mrb[0].mxu0
    %v9804 = vpop.f32.mrb[0].mxu0
    %v9805 = vadd.f32 %v7946, %v9804
    %v9806 = vpop.f32.mrb[0].mxu0
    %9807 = vmatprep.mubr.bf16.mxu0 0
    %9808 = vmatmul.mubr.bf16.gmra.mrb[0].mxu0 %v8757
    %v9809 = vpop.f32.mrb[0].mxu0
    %v9810 = vadd.f32 %v7951, %v9809
    %v9811 = vpop.f32.mrb[0].mxu0
    %v9812 = vpop.f32.mrb[0].mxu0
    %v9813 = vadd.f32 %v7956, %v9812
    %v9814 = vpop.f32.mrb[0].mxu0
    %9815 = vdwg.mxu0
    %v9816 = vld [vmem:[#allocation22] sm:$0x1]
    %v9818 = vlaneseq
    %v9819 = vshrl.u32 %v9818, 7
    %v9820 = vsub.s32 0, %v9819
    %v9821 = vrot.slane %v9816, %v9820
    %v9823 = vadd.f32 %v8794, %v9821
    %v9824 = vadd.f32 %v8797, %v9821
    %v9825 = vadd.f32 %v8802, %v9821
    %v9826 = vadd.f32 %v8805, %v9821
    %v9827 = vadd.f32 %v8810, %v9821
    %v9828 = vadd.f32 %v8813, %v9821
    %v9829 = vadd.f32 %v8818, %v9821
    %v9830 = vadd.f32 %v8821, %v9821
    %v9831 = vadd.f32 %v8826, %v9821
    %v9832 = vadd.f32 %v8829, %v9821
    %v9833 = vadd.f32 %v8834, %v9821
    %v9834 = vadd.f32 %v8837, %v9821
    %v9835 = vadd.f32 %v8842, %v9821
    %v9836 = vadd.f32 %v8845, %v9821
    %v9837 = vadd.f32 %v8850, %v9821
    %v9838 = vadd.f32 %v8853, %v9821
    %v9839 = vadd.f32 %v8858, %v9821
    %v9840 = vadd.f32 %v8861, %v9821
    %v9841 = vadd.f32 %v8866, %v9821
    %v9842 = vadd.f32 %v8869, %v9821
    %v9843 = vadd.f32 %v8874, %v9821
    %v9844 = vadd.f32 %v8877, %v9821
    %v9845 = vadd.f32 %v8882, %v9821
    %v9846 = vadd.f32 %v8885, %v9821
    %v9847 = vadd.f32 %v8890, %v9821
    %v9848 = vadd.f32 %v8893, %v9821
    %v9849 = vadd.f32 %v8898, %v9821
    %v9850 = vadd.f32 %v8901, %v9821
    %v9851 = vadd.f32 %v8906, %v9821
    %v9852 = vadd.f32 %v8909, %v9821
    %v9853 = vadd.f32 %v8914, %v9821
    %v9854 = vadd.f32 %v8917, %v9821
    %v9855 = vadd.f32 %v8922, %v9821
    %v9856 = vadd.f32 %v8925, %v9821
    %v9857 = vadd.f32 %v8930, %v9821
    %v9858 = vadd.f32 %v8933, %v9821
    %v9859 = vadd.f32 %v8938, %v9821
    %v9860 = vadd.f32 %v8941, %v9821
    %v9861 = vadd.f32 %v8946, %v9821
    %v9862 = vadd.f32 %v8949, %v9821
    %v9863 = vadd.f32 %v8954, %v9821
    %v9864 = vadd.f32 %v8957, %v9821
    %v9865 = vadd.f32 %v8962, %v9821
    %v9866 = vadd.f32 %v8965, %v9821
    %v9867 = vadd.f32 %v8970, %v9821
    %v9868 = vadd.f32 %v8973, %v9821
    %v9869 = vadd.f32 %v8978, %v9821
    %v9870 = vadd.f32 %v8981, %v9821
    %v9871 = vadd.f32 %v8986, %v9821
    %v9872 = vadd.f32 %v8989, %v9821
    %v9873 = vadd.f32 %v8994, %v9821
    %v9874 = vadd.f32 %v8997, %v9821
    %v9875 = vadd.f32 %v9002, %v9821
    %v9876 = vadd.f32 %v9005, %v9821
    %v9877 = vadd.f32 %v9010, %v9821
    %v9878 = vadd.f32 %v9013, %v9821
    %v9879 = vadd.f32 %v9018, %v9821
    %v9880 = vadd.f32 %v9021, %v9821
    %v9881 = vadd.f32 %v9026, %v9821
    %v9882 = vadd.f32 %v9029, %v9821
    %v9883 = vadd.f32 %v9034, %v9821
    %v9884 = vadd.f32 %v9037, %v9821
    %v9885 = vadd.f32 %v9042, %v9821
    %v9886 = vadd.f32 %v9045, %v9821
    %v9887 = vadd.f32 %v9050, %v9821
    %v9888 = vadd.f32 %v9053, %v9821
    %v9889 = vadd.f32 %v9058, %v9821
    %v9890 = vadd.f32 %v9061, %v9821
    %v9891 = vadd.f32 %v9066, %v9821
    %v9892 = vadd.f32 %v9069, %v9821
    %v9893 = vadd.f32 %v9074, %v9821
    %v9894 = vadd.f32 %v9077, %v9821
    %v9895 = vadd.f32 %v9082, %v9821
    %v9896 = vadd.f32 %v9085, %v9821
    %v9897 = vadd.f32 %v9090, %v9821
    %v9898 = vadd.f32 %v9093, %v9821
    %v9899 = vadd.f32 %v9098, %v9821
    %v9900 = vadd.f32 %v9101, %v9821
    %v9901 = vadd.f32 %v9106, %v9821
    %v9902 = vadd.f32 %v9109, %v9821
    %v9903 = vadd.f32 %v9114, %v9821
    %v9904 = vadd.f32 %v9117, %v9821
    %v9905 = vadd.f32 %v9122, %v9821
    %v9906 = vadd.f32 %v9125, %v9821
    %v9907 = vadd.f32 %v9130, %v9821
    %v9908 = vadd.f32 %v9133, %v9821
    %v9909 = vadd.f32 %v9138, %v9821
    %v9910 = vadd.f32 %v9141, %v9821
    %v9911 = vadd.f32 %v9146, %v9821
    %v9912 = vadd.f32 %v9149, %v9821
    %v9913 = vadd.f32 %v9154, %v9821
    %v9914 = vadd.f32 %v9157, %v9821
    %v9915 = vadd.f32 %v9162, %v9821
    %v9916 = vadd.f32 %v9165, %v9821
    %v9917 = vadd.f32 %v9170, %v9821
    %v9918 = vadd.f32 %v9173, %v9821
    %v9919 = vadd.f32 %v9178, %v9821
    %v9920 = vadd.f32 %v9181, %v9821
    %v9921 = vadd.f32 %v9186, %v9821
    %v9922 = vadd.f32 %v9189, %v9821
    %v9923 = vadd.f32 %v9194, %v9821
    %v9924 = vadd.f32 %v9197, %v9821
    %v9925 = vadd.f32 %v9202, %v9821
    %v9926 = vadd.f32 %v9205, %v9821
    %v9927 = vadd.f32 %v9210, %v9821
    %v9928 = vadd.f32 %v9213, %v9821
    %v9929 = vadd.f32 %v9218, %v9821
    %v9930 = vadd.f32 %v9221, %v9821
    %v9931 = vadd.f32 %v9226, %v9821
    %v9932 = vadd.f32 %v9229, %v9821
    %v9933 = vadd.f32 %v9234, %v9821
    %v9934 = vadd.f32 %v9237, %v9821
    %v9935 = vadd.f32 %v9242, %v9821
    %v9936 = vadd.f32 %v9245, %v9821
    %v9937 = vadd.f32 %v9250, %v9821
    %v9938 = vadd.f32 %v9253, %v9821
    %v9939 = vadd.f32 %v9258, %v9821
    %v9940 = vadd.f32 %v9261, %v9821
    %v9941 = vadd.f32 %v9266, %v9821
    %v9942 = vadd.f32 %v9269, %v9821
    %v9943 = vadd.f32 %v9274, %v9821
    %v9944 = vadd.f32 %v9277, %v9821
    %v9945 = vadd.f32 %v9282, %v9821
    %v9946 = vadd.f32 %v9285, %v9821
    %v9947 = vadd.f32 %v9290, %v9821
    %v9948 = vadd.f32 %v9293, %v9821
    %v9949 = vadd.f32 %v9298, %v9821
    %v9950 = vadd.f32 %v9301, %v9821
    %v9951 = vadd.f32 %v9306, %v9821
    %v9952 = vadd.f32 %v9309, %v9821
    %v9953 = vadd.f32 %v9314, %v9821
    %v9954 = vadd.f32 %v9317, %v9821
    %v9955 = vadd.f32 %v9322, %v9821
    %v9956 = vadd.f32 %v9325, %v9821
    %v9957 = vadd.f32 %v9330, %v9821
    %v9958 = vadd.f32 %v9333, %v9821
    %v9959 = vadd.f32 %v9338, %v9821
    %v9960 = vadd.f32 %v9341, %v9821
    %v9961 = vadd.f32 %v9346, %v9821
    %v9962 = vadd.f32 %v9349, %v9821
    %v9963 = vadd.f32 %v9354, %v9821
    %v9964 = vadd.f32 %v9357, %v9821
    %v9965 = vadd.f32 %v9362, %v9821
    %v9966 = vadd.f32 %v9365, %v9821
    %v9967 = vadd.f32 %v9370, %v9821
    %v9968 = vadd.f32 %v9373, %v9821
    %v9969 = vadd.f32 %v9378, %v9821
    %v9970 = vadd.f32 %v9381, %v9821
    %v9971 = vadd.f32 %v9386, %v9821
    %v9972 = vadd.f32 %v9389, %v9821
    %v9973 = vadd.f32 %v9394, %v9821
    %v9974 = vadd.f32 %v9397, %v9821
    %v9975 = vadd.f32 %v9402, %v9821
    %v9976 = vadd.f32 %v9405, %v9821
    %v9977 = vadd.f32 %v9410, %v9821
    %v9978 = vadd.f32 %v9413, %v9821
    %v9979 = vadd.f32 %v9418, %v9821
    %v9980 = vadd.f32 %v9421, %v9821
    %v9981 = vadd.f32 %v9426, %v9821
    %v9982 = vadd.f32 %v9429, %v9821
    %v9983 = vadd.f32 %v9434, %v9821
    %v9984 = vadd.f32 %v9437, %v9821
    %v9985 = vadd.f32 %v9442, %v9821
    %v9986 = vadd.f32 %v9445, %v9821
    %v9987 = vadd.f32 %v9450, %v9821
    %v9988 = vadd.f32 %v9453, %v9821
    %v9989 = vadd.f32 %v9458, %v9821
    %v9990 = vadd.f32 %v9461, %v9821
    %v9991 = vadd.f32 %v9466, %v9821
    %v9992 = vadd.f32 %v9469, %v9821
    %v9993 = vadd.f32 %v9474, %v9821
    %v9994 = vadd.f32 %v9477, %v9821
    %v9995 = vadd.f32 %v9482, %v9821
    %v9996 = vadd.f32 %v9485, %v9821
    %v9997 = vadd.f32 %v9490, %v9821
    %v9998 = vadd.f32 %v9493, %v9821
    %v9999 = vadd.f32 %v9498, %v9821
    %v10000 = vadd.f32 %v9501, %v9821
    %v10001 = vadd.f32 %v9506, %v9821
    %v10002 = vadd.f32 %v9509, %v9821
    %v10003 = vadd.f32 %v9514, %v9821
    %v10004 = vadd.f32 %v9517, %v9821
    %v10005 = vadd.f32 %v9522, %v9821
    %v10006 = vadd.f32 %v9525, %v9821
    %v10007 = vadd.f32 %v9530, %v9821
    %v10008 = vadd.f32 %v9533, %v9821
    %v10009 = vadd.f32 %v9538, %v9821
    %v10010 = vadd.f32 %v9541, %v9821
    %v10011 = vadd.f32 %v9546, %v9821
    %v10012 = vadd.f32 %v9549, %v9821
    %v10013 = vadd.f32 %v9554, %v9821
    %v10014 = vadd.f32 %v9557, %v9821
    %v10015 = vadd.f32 %v9562, %v9821
    %v10016 = vadd.f32 %v9565, %v9821
    %v10017 = vadd.f32 %v9570, %v9821
    %v10018 = vadd.f32 %v9573, %v9821
    %v10019 = vadd.f32 %v9578, %v9821
    %v10020 = vadd.f32 %v9581, %v9821
    %v10021 = vadd.f32 %v9586, %v9821
    %v10022 = vadd.f32 %v9589, %v9821
    %v10023 = vadd.f32 %v9594, %v9821
    %v10024 = vadd.f32 %v9597, %v9821
    %v10025 = vadd.f32 %v9602, %v9821
    %v10026 = vadd.f32 %v9605, %v9821
    %v10027 = vadd.f32 %v9610, %v9821
    %v10028 = vadd.f32 %v9613, %v9821
    %v10029 = vadd.f32 %v9618, %v9821
    %v10030 = vadd.f32 %v9621, %v9821
    %v10031 = vadd.f32 %v9626, %v9821
    %v10032 = vadd.f32 %v9629, %v9821
    %v10033 = vadd.f32 %v9634, %v9821
    %v10034 = vadd.f32 %v9637, %v9821
    %v10035 = vadd.f32 %v9642, %v9821
    %v10036 = vadd.f32 %v9645, %v9821
    %v10037 = vadd.f32 %v9650, %v9821
    %v10038 = vadd.f32 %v9653, %v9821
    %v10039 = vadd.f32 %v9658, %v9821
    %v10040 = vadd.f32 %v9661, %v9821
    %v10041 = vadd.f32 %v9666, %v9821
    %v10042 = vadd.f32 %v9669, %v9821
    %v10043 = vadd.f32 %v9674, %v9821
    %v10044 = vadd.f32 %v9677, %v9821
    %v10045 = vadd.f32 %v9682, %v9821
    %v10046 = vadd.f32 %v9685, %v9821
    %v10047 = vadd.f32 %v9690, %v9821
    %v10048 = vadd.f32 %v9693, %v9821
    %v10049 = vadd.f32 %v9698, %v9821
    %v10050 = vadd.f32 %v9701, %v9821
    %v10051 = vadd.f32 %v9706, %v9821
    %v10052 = vadd.f32 %v9709, %v9821
    %v10053 = vadd.f32 %v9714, %v9821
    %v10054 = vadd.f32 %v9717, %v9821
    %v10055 = vadd.f32 %v9722, %v9821
    %v10056 = vadd.f32 %v9725, %v9821
    %v10057 = vadd.f32 %v9730, %v9821
    %v10058 = vadd.f32 %v9733, %v9821
    %v10059 = vadd.f32 %v9738, %v9821
    %v10060 = vadd.f32 %v9741, %v9821
    %v10061 = vadd.f32 %v9746, %v9821
    %v10062 = vadd.f32 %v9749, %v9821
    %v10063 = vadd.f32 %v9754, %v9821
    %v10064 = vadd.f32 %v9757, %v9821
    %v10065 = vadd.f32 %v9762, %v9821
    %v10066 = vadd.f32 %v9765, %v9821
    %v10067 = vadd.f32 %v9770, %v9821
    %v10068 = vadd.f32 %v9773, %v9821
    %v10069 = vadd.f32 %v9778, %v9821
    %v10070 = vadd.f32 %v9781, %v9821
    %v10071 = vadd.f32 %v9786, %v9821
    %v10072 = vadd.f32 %v9789, %v9821
    %v10073 = vadd.f32 %v9794, %v9821
    %v10074 = vadd.f32 %v9797, %v9821
    %v10075 = vadd.f32 %v9802, %v9821
    %v10076 = vadd.f32 %v9805, %v9821
    %v10077 = vadd.f32 %v9810, %v9821
    %v10078 = vadd.f32 %v9813, %v9821
    %v10079 = vmax.f32 %v9823, 0.0
    %v10080 = vmax.f32 %v9824, 0.0
    %v10081 = vmax.f32 %v9825, 0.0
    %v10082 = vmax.f32 %v9826, 0.0
    %v10083 = vmax.f32 %v9827, 0.0
    %v10084 = vmax.f32 %v9828, 0.0
    %v10085 = vmax.f32 %v9829, 0.0
    %v10086 = vmax.f32 %v9830, 0.0
    %v10087 = vmax.f32 %v9831, 0.0
    %v10088 = vmax.f32 %v9832, 0.0
    %v10089 = vmax.f32 %v9833, 0.0
    %v10090 = vmax.f32 %v9834, 0.0
    %v10091 = vmax.f32 %v9835, 0.0
    %v10092 = vmax.f32 %v9836, 0.0
    %v10093 = vmax.f32 %v9837, 0.0
    %v10094 = vmax.f32 %v9838, 0.0
    %v10095 = vmax.f32 %v9839, 0.0
    %v10096 = vmax.f32 %v9840, 0.0
    %v10097 = vmax.f32 %v9841, 0.0
    %v10098 = vmax.f32 %v9842, 0.0
    %v10099 = vmax.f32 %v9843, 0.0
    %v10100 = vmax.f32 %v9844, 0.0
    %v10101 = vmax.f32 %v9845, 0.0
    %v10102 = vmax.f32 %v9846, 0.0
    %v10103 = vmax.f32 %v9847, 0.0
    %v10104 = vmax.f32 %v9848, 0.0
    %v10105 = vmax.f32 %v9849, 0.0
    %v10106 = vmax.f32 %v9850, 0.0
    %v10107 = vmax.f32 %v9851, 0.0
    %v10108 = vmax.f32 %v9852, 0.0
    %v10109 = vmax.f32 %v9853, 0.0
    %v10110 = vmax.f32 %v9854, 0.0
    %v10111 = vmax.f32 %v9855, 0.0
    %v10112 = vmax.f32 %v9856, 0.0
    %v10113 = vmax.f32 %v9857, 0.0
    %v10114 = vmax.f32 %v9858, 0.0
    %v10115 = vmax.f32 %v9859, 0.0
    %v10116 = vmax.f32 %v9860, 0.0
    %v10117 = vmax.f32 %v9861, 0.0
    %v10118 = vmax.f32 %v9862, 0.0
    %v10119 = vmax.f32 %v9863, 0.0
    %v10120 = vmax.f32 %v9864, 0.0
    %v10121 = vmax.f32 %v9865, 0.0
    %v10122 = vmax.f32 %v9866, 0.0
    %v10123 = vmax.f32 %v9867, 0.0
    %v10124 = vmax.f32 %v9868, 0.0
    %v10125 = vmax.f32 %v9869, 0.0
    %v10126 = vmax.f32 %v9870, 0.0
    %v10127 = vmax.f32 %v9871, 0.0
    %v10128 = vmax.f32 %v9872, 0.0
    %v10129 = vmax.f32 %v9873, 0.0
    %v10130 = vmax.f32 %v9874, 0.0
    %v10131 = vmax.f32 %v9875, 0.0
    %v10132 = vmax.f32 %v9876, 0.0
    %v10133 = vmax.f32 %v9877, 0.0
    %v10134 = vmax.f32 %v9878, 0.0
    %v10135 = vmax.f32 %v9879, 0.0
    %v10136 = vmax.f32 %v9880, 0.0
    %v10137 = vmax.f32 %v9881, 0.0
    %v10138 = vmax.f32 %v9882, 0.0
    %v10139 = vmax.f32 %v9883, 0.0
    %v10140 = vmax.f32 %v9884, 0.0
    %v10141 = vmax.f32 %v9885, 0.0
    %v10142 = vmax.f32 %v9886, 0.0
    %v10143 = vmax.f32 %v9887, 0.0
    %v10144 = vmax.f32 %v9888, 0.0
    %v10145 = vmax.f32 %v9889, 0.0
    %v10146 = vmax.f32 %v9890, 0.0
    %v10147 = vmax.f32 %v9891, 0.0
    %v10148 = vmax.f32 %v9892, 0.0
    %v10149 = vmax.f32 %v9893, 0.0
    %v10150 = vmax.f32 %v9894, 0.0
    %v10151 = vmax.f32 %v9895, 0.0
    %v10152 = vmax.f32 %v9896, 0.0
    %v10153 = vmax.f32 %v9897, 0.0
    %v10154 = vmax.f32 %v9898, 0.0
    %v10155 = vmax.f32 %v9899, 0.0
    %v10156 = vmax.f32 %v9900, 0.0
    %v10157 = vmax.f32 %v9901, 0.0
    %v10158 = vmax.f32 %v9902, 0.0
    %v10159 = vmax.f32 %v9903, 0.0
    %v10160 = vmax.f32 %v9904, 0.0
    %v10161 = vmax.f32 %v9905, 0.0
    %v10162 = vmax.f32 %v9906, 0.0
    %v10163 = vmax.f32 %v9907, 0.0
    %v10164 = vmax.f32 %v9908, 0.0
    %v10165 = vmax.f32 %v9909, 0.0
    %v10166 = vmax.f32 %v9910, 0.0
    %v10167 = vmax.f32 %v9911, 0.0
    %v10168 = vmax.f32 %v9912, 0.0
    %v10169 = vmax.f32 %v9913, 0.0
    %v10170 = vmax.f32 %v9914, 0.0
    %v10171 = vmax.f32 %v9915, 0.0
    %v10172 = vmax.f32 %v9916, 0.0
    %v10173 = vmax.f32 %v9917, 0.0
    %v10174 = vmax.f32 %v9918, 0.0
    %v10175 = vmax.f32 %v9919, 0.0
    %v10176 = vmax.f32 %v9920, 0.0
    %v10177 = vmax.f32 %v9921, 0.0
    %v10178 = vmax.f32 %v9922, 0.0
    %v10179 = vmax.f32 %v9923, 0.0
    %v10180 = vmax.f32 %v9924, 0.0
    %v10181 = vmax.f32 %v9925, 0.0
    %v10182 = vmax.f32 %v9926, 0.0
    %v10183 = vmax.f32 %v9927, 0.0
    %v10184 = vmax.f32 %v9928, 0.0
    %v10185 = vmax.f32 %v9929, 0.0
    %v10186 = vmax.f32 %v9930, 0.0
    %v10187 = vmax.f32 %v9931, 0.0
    %v10188 = vmax.f32 %v9932, 0.0
    %v10189 = vmax.f32 %v9933, 0.0
    %v10190 = vmax.f32 %v9934, 0.0
    %v10191 = vmax.f32 %v9935, 0.0
    %v10192 = vmax.f32 %v9936, 0.0
    %v10193 = vmax.f32 %v9937, 0.0
    %v10194 = vmax.f32 %v9938, 0.0
    %v10195 = vmax.f32 %v9939, 0.0
    %v10196 = vmax.f32 %v9940, 0.0
    %v10197 = vmax.f32 %v9941, 0.0
    %v10198 = vmax.f32 %v9942, 0.0
    %v10199 = vmax.f32 %v9943, 0.0
    %v10200 = vmax.f32 %v9944, 0.0
    %v10201 = vmax.f32 %v9945, 0.0
    %v10202 = vmax.f32 %v9946, 0.0
    %v10203 = vmax.f32 %v9947, 0.0
    %v10204 = vmax.f32 %v9948, 0.0
    %v10205 = vmax.f32 %v9949, 0.0
    %v10206 = vmax.f32 %v9950, 0.0
    %v10207 = vmax.f32 %v9951, 0.0
    %v10208 = vmax.f32 %v9952, 0.0
    %v10209 = vmax.f32 %v9953, 0.0
    %v10210 = vmax.f32 %v9954, 0.0
    %v10211 = vmax.f32 %v9955, 0.0
    %v10212 = vmax.f32 %v9956, 0.0
    %v10213 = vmax.f32 %v9957, 0.0
    %v10214 = vmax.f32 %v9958, 0.0
    %v10215 = vmax.f32 %v9959, 0.0
    %v10216 = vmax.f32 %v9960, 0.0
    %v10217 = vmax.f32 %v9961, 0.0
    %v10218 = vmax.f32 %v9962, 0.0
    %v10219 = vmax.f32 %v9963, 0.0
    %v10220 = vmax.f32 %v9964, 0.0
    %v10221 = vmax.f32 %v9965, 0.0
    %v10222 = vmax.f32 %v9966, 0.0
    %v10223 = vmax.f32 %v9967, 0.0
    %v10224 = vmax.f32 %v9968, 0.0
    %v10225 = vmax.f32 %v9969, 0.0
    %v10226 = vmax.f32 %v9970, 0.0
    %v10227 = vmax.f32 %v9971, 0.0
    %v10228 = vmax.f32 %v9972, 0.0
    %v10229 = vmax.f32 %v9973, 0.0
    %v10230 = vmax.f32 %v9974, 0.0
    %v10231 = vmax.f32 %v9975, 0.0
    %v10232 = vmax.f32 %v9976, 0.0
    %v10233 = vmax.f32 %v9977, 0.0
    %v10234 = vmax.f32 %v9978, 0.0
    %v10235 = vmax.f32 %v9979, 0.0
    %v10236 = vmax.f32 %v9980, 0.0
    %v10237 = vmax.f32 %v9981, 0.0
    %v10238 = vmax.f32 %v9982, 0.0
    %v10239 = vmax.f32 %v9983, 0.0
    %v10240 = vmax.f32 %v9984, 0.0
    %v10241 = vmax.f32 %v9985, 0.0
    %v10242 = vmax.f32 %v9986, 0.0
    %v10243 = vmax.f32 %v9987, 0.0
    %v10244 = vmax.f32 %v9988, 0.0
    %v10245 = vmax.f32 %v9989, 0.0
    %v10246 = vmax.f32 %v9990, 0.0
    %v10247 = vmax.f32 %v9991, 0.0
    %v10248 = vmax.f32 %v9992, 0.0
    %v10249 = vmax.f32 %v9993, 0.0
    %v10250 = vmax.f32 %v9994, 0.0
    %v10251 = vmax.f32 %v9995, 0.0
    %v10252 = vmax.f32 %v9996, 0.0
    %v10253 = vmax.f32 %v9997, 0.0
    %v10254 = vmax.f32 %v9998, 0.0
    %v10255 = vmax.f32 %v9999, 0.0
    %v10256 = vmax.f32 %v10000, 0.0
    %v10257 = vmax.f32 %v10001, 0.0
    %v10258 = vmax.f32 %v10002, 0.0
    %v10259 = vmax.f32 %v10003, 0.0
    %v10260 = vmax.f32 %v10004, 0.0
    %v10261 = vmax.f32 %v10005, 0.0
    %v10262 = vmax.f32 %v10006, 0.0
    %v10263 = vmax.f32 %v10007, 0.0
    %v10264 = vmax.f32 %v10008, 0.0
    %v10265 = vmax.f32 %v10009, 0.0
    %v10266 = vmax.f32 %v10010, 0.0
    %v10267 = vmax.f32 %v10011, 0.0
    %v10268 = vmax.f32 %v10012, 0.0
    %v10269 = vmax.f32 %v10013, 0.0
    %v10270 = vmax.f32 %v10014, 0.0
    %v10271 = vmax.f32 %v10015, 0.0
    %v10272 = vmax.f32 %v10016, 0.0
    %v10273 = vmax.f32 %v10017, 0.0
    %v10274 = vmax.f32 %v10018, 0.0
    %v10275 = vmax.f32 %v10019, 0.0
    %v10276 = vmax.f32 %v10020, 0.0
    %v10277 = vmax.f32 %v10021, 0.0
    %v10278 = vmax.f32 %v10022, 0.0
    %v10279 = vmax.f32 %v10023, 0.0
    %v10280 = vmax.f32 %v10024, 0.0
    %v10281 = vmax.f32 %v10025, 0.0
    %v10282 = vmax.f32 %v10026, 0.0
    %v10283 = vmax.f32 %v10027, 0.0
    %v10284 = vmax.f32 %v10028, 0.0
    %v10285 = vmax.f32 %v10029, 0.0
    %v10286 = vmax.f32 %v10030, 0.0
    %v10287 = vmax.f32 %v10031, 0.0
    %v10288 = vmax.f32 %v10032, 0.0
    %v10289 = vmax.f32 %v10033, 0.0
    %v10290 = vmax.f32 %v10034, 0.0
    %v10291 = vmax.f32 %v10035, 0.0
    %v10292 = vmax.f32 %v10036, 0.0
    %v10293 = vmax.f32 %v10037, 0.0
    %v10294 = vmax.f32 %v10038, 0.0
    %v10295 = vmax.f32 %v10039, 0.0
    %v10296 = vmax.f32 %v10040, 0.0
    %v10297 = vmax.f32 %v10041, 0.0
    %v10298 = vmax.f32 %v10042, 0.0
    %v10299 = vmax.f32 %v10043, 0.0
    %v10300 = vmax.f32 %v10044, 0.0
    %v10301 = vmax.f32 %v10045, 0.0
    %v10302 = vmax.f32 %v10046, 0.0
    %v10303 = vmax.f32 %v10047, 0.0
    %v10304 = vmax.f32 %v10048, 0.0
    %v10305 = vmax.f32 %v10049, 0.0
    %v10306 = vmax.f32 %v10050, 0.0
    %v10307 = vmax.f32 %v10051, 0.0
    %v10308 = vmax.f32 %v10052, 0.0
    %v10309 = vmax.f32 %v10053, 0.0
    %v10310 = vmax.f32 %v10054, 0.0
    %v10311 = vmax.f32 %v10055, 0.0
    %v10312 = vmax.f32 %v10056, 0.0
    %v10313 = vmax.f32 %v10057, 0.0
    %v10314 = vmax.f32 %v10058, 0.0
    %v10315 = vmax.f32 %v10059, 0.0
    %v10316 = vmax.f32 %v10060, 0.0
    %v10317 = vmax.f32 %v10061, 0.0
    %v10318 = vmax.f32 %v10062, 0.0
    %v10319 = vmax.f32 %v10063, 0.0
    %v10320 = vmax.f32 %v10064, 0.0
    %v10321 = vmax.f32 %v10065, 0.0
    %v10322 = vmax.f32 %v10066, 0.0
    %v10323 = vmax.f32 %v10067, 0.0
    %v10324 = vmax.f32 %v10068, 0.0
    %v10325 = vmax.f32 %v10069, 0.0
    %v10326 = vmax.f32 %v10070, 0.0
    %v10327 = vmax.f32 %v10071, 0.0
    %v10328 = vmax.f32 %v10072, 0.0
    %v10329 = vmax.f32 %v10073, 0.0
    %v10330 = vmax.f32 %v10074, 0.0
    %v10331 = vmax.f32 %v10075, 0.0
    %v10332 = vmax.f32 %v10076, 0.0
    %v10333 = vmax.f32 %v10077, 0.0
    %v10334 = vmax.f32 %v10078, 0.0
    %10335 = vst.msk [vmem:[#allocation28] sm:$0xff] %vm4161, %v10079
    %10336 = vst.msk [vmem:[#allocation28 + $0x8] sm:$0xff] %vm4161, %v10080
    %10337 = vst.msk [vmem:[#allocation28 + $0x10] sm:$0xff] %vm4161, %v10081
    %10338 = vst.msk [vmem:[#allocation28 + $0x18] sm:$0xff] %vm4161, %v10082
    %10339 = vst.msk [vmem:[#allocation28 + $0x20] sm:$0xff] %vm4161, %v10083
    %10340 = vst.msk [vmem:[#allocation28 + $0x28] sm:$0xff] %vm4161, %v10084
    %10341 = vst.msk [vmem:[#allocation28 + $0x30] sm:$0xff] %vm4161, %v10085
    %10342 = vst.msk [vmem:[#allocation28 + $0x38] sm:$0xff] %vm4161, %v10086
    %10343 = vst.msk [vmem:[#allocation28 + $0x40] sm:$0xff] %vm4161, %v10087
    %10344 = vst.msk [vmem:[#allocation28 + $0x48] sm:$0xff] %vm4161, %v10088
    %10345 = vst.msk [vmem:[#allocation28 + $0x50] sm:$0xff] %vm4161, %v10089
    %10346 = vst.msk [vmem:[#allocation28 + $0x58] sm:$0xff] %vm4161, %v10090
    %10347 = vst.msk [vmem:[#allocation28 + $0x60] sm:$0xff] %vm4161, %v10091
    %10348 = vst.msk [vmem:[#allocation28 + $0x68] sm:$0xff] %vm4161, %v10092
    %10349 = vst.msk [vmem:[#allocation28 + $0x70] sm:$0xff] %vm4161, %v10093
    %10350 = vst.msk [vmem:[#allocation28 + $0x78] sm:$0xff] %vm4161, %v10094
    %10351 = vst.msk [vmem:[#allocation28 + $0x80] sm:$0xff] %vm4161, %v10095
    %10352 = vst.msk [vmem:[#allocation28 + $0x88] sm:$0xff] %vm4161, %v10096
    %10353 = vst.msk [vmem:[#allocation28 + $0x90] sm:$0xff] %vm4161, %v10097
    %10354 = vst.msk [vmem:[#allocation28 + $0x98] sm:$0xff] %vm4161, %v10098
    %10355 = vst.msk [vmem:[#allocation28 + $0xa0] sm:$0xff] %vm4161, %v10099
    %10356 = vst.msk [vmem:[#allocation28 + $0xa8] sm:$0xff] %vm4161, %v10100
    %10357 = vst.msk [vmem:[#allocation28 + $0xb0] sm:$0xff] %vm4161, %v10101
    %10358 = vst.msk [vmem:[#allocation28 + $0xb8] sm:$0xff] %vm4161, %v10102
    %10359 = vst.msk [vmem:[#allocation28 + $0xc0] sm:$0xff] %vm4161, %v10103
    %10360 = vst.msk [vmem:[#allocation28 + $0xc8] sm:$0xff] %vm4161, %v10104
    %10361 = vst.msk [vmem:[#allocation28 + $0xd0] sm:$0xff] %vm4161, %v10105
    %10362 = vst.msk [vmem:[#allocation28 + $0xd8] sm:$0xff] %vm4161, %v10106
    %10363 = vst.msk [vmem:[#allocation28 + $0xe0] sm:$0xff] %vm4161, %v10107
    %10364 = vst.msk [vmem:[#allocation28 + $0xe8] sm:$0xff] %vm4161, %v10108
    %10365 = vst.msk [vmem:[#allocation28 + $0xf0] sm:$0xff] %vm4161, %v10109
    %10366 = vst.msk [vmem:[#allocation28 + $0xf8] sm:$0xff] %vm4161, %v10110
    %10367 = vst.msk [vmem:[#allocation28 + $0x100] sm:$0xff] %vm4161, %v10111
    %10368 = vst.msk [vmem:[#allocation28 + $0x108] sm:$0xff] %vm4161, %v10112
    %10369 = vst.msk [vmem:[#allocation28 + $0x110] sm:$0xff] %vm4161, %v10113
    %10370 = vst.msk [vmem:[#allocation28 + $0x118] sm:$0xff] %vm4161, %v10114
    %10371 = vst.msk [vmem:[#allocation28 + $0x120] sm:$0xff] %vm4161, %v10115
    %10372 = vst.msk [vmem:[#allocation28 + $0x128] sm:$0xff] %vm4161, %v10116
    %10373 = vst.msk [vmem:[#allocation28 + $0x130] sm:$0xff] %vm4161, %v10117
    %10374 = vst.msk [vmem:[#allocation28 + $0x138] sm:$0xff] %vm4161, %v10118
    %10375 = vst.msk [vmem:[#allocation28 + $0x140] sm:$0xff] %vm4161, %v10119
    %10376 = vst.msk [vmem:[#allocation28 + $0x148] sm:$0xff] %vm4161, %v10120
    %10377 = vst.msk [vmem:[#allocation28 + $0x150] sm:$0xff] %vm4161, %v10121
    %10378 = vst.msk [vmem:[#allocation28 + $0x158] sm:$0xff] %vm4161, %v10122
    %10379 = vst.msk [vmem:[#allocation28 + $0x160] sm:$0xff] %vm4161, %v10123
    %10380 = vst.msk [vmem:[#allocation28 + $0x168] sm:$0xff] %vm4161, %v10124
    %10381 = vst.msk [vmem:[#allocation28 + $0x170] sm:$0xff] %vm4161, %v10125
    %10382 = vst.msk [vmem:[#allocation28 + $0x178] sm:$0xff] %vm4161, %v10126
    %10383 = vst.msk [vmem:[#allocation28 + $0x180] sm:$0xff] %vm4161, %v10127
    %10384 = vst.msk [vmem:[#allocation28 + $0x188] sm:$0xff] %vm4161, %v10128
    %10385 = vst.msk [vmem:[#allocation28 + $0x190] sm:$0xff] %vm4161, %v10129
    %10386 = vst.msk [vmem:[#allocation28 + $0x198] sm:$0xff] %vm4161, %v10130
    %10387 = vst.msk [vmem:[#allocation28 + $0x1a0] sm:$0xff] %vm4161, %v10131
    %10388 = vst.msk [vmem:[#allocation28 + $0x1a8] sm:$0xff] %vm4161, %v10132
    %10389 = vst.msk [vmem:[#allocation28 + $0x1b0] sm:$0xff] %vm4161, %v10133
    %10390 = vst.msk [vmem:[#allocation28 + $0x1b8] sm:$0xff] %vm4161, %v10134
    %10391 = vst.msk [vmem:[#allocation28 + $0x1c0] sm:$0xff] %vm4161, %v10135
    %10392 = vst.msk [vmem:[#allocation28 + $0x1c8] sm:$0xff] %vm4161, %v10136
    %10393 = vst.msk [vmem:[#allocation28 + $0x1d0] sm:$0xff] %vm4161, %v10137
    %10394 = vst.msk [vmem:[#allocation28 + $0x1d8] sm:$0xff] %vm4161, %v10138
    %10395 = vst.msk [vmem:[#allocation28 + $0x1e0] sm:$0xff] %vm4161, %v10139
    %10396 = vst.msk [vmem:[#allocation28 + $0x1e8] sm:$0xff] %vm4161, %v10140
    %10397 = vst.msk [vmem:[#allocation28 + $0x1f0] sm:$0xff] %vm4161, %v10141
    %10398 = vst.msk [vmem:[#allocation28 + $0x1f8] sm:$0xff] %vm4161, %v10142
    %10399 = vst.msk [vmem:[#allocation28 + $0x200] sm:$0xff] %vm4161, %v10143
    %10400 = vst.msk [vmem:[#allocation28 + $0x208] sm:$0xff] %vm4161, %v10144
    %10401 = vst.msk [vmem:[#allocation28 + $0x210] sm:$0xff] %vm4161, %v10145
    %10402 = vst.msk [vmem:[#allocation28 + $0x218] sm:$0xff] %vm4161, %v10146
    %10403 = vst.msk [vmem:[#allocation28 + $0x220] sm:$0xff] %vm4161, %v10147
    %10404 = vst.msk [vmem:[#allocation28 + $0x228] sm:$0xff] %vm4161, %v10148
    %10405 = vst.msk [vmem:[#allocation28 + $0x230] sm:$0xff] %vm4161, %v10149
    %10406 = vst.msk [vmem:[#allocation28 + $0x238] sm:$0xff] %vm4161, %v10150
    %10407 = vst.msk [vmem:[#allocation28 + $0x240] sm:$0xff] %vm4161, %v10151
    %10408 = vst.msk [vmem:[#allocation28 + $0x248] sm:$0xff] %vm4161, %v10152
    %10409 = vst.msk [vmem:[#allocation28 + $0x250] sm:$0xff] %vm4161, %v10153
    %10410 = vst.msk [vmem:[#allocation28 + $0x258] sm:$0xff] %vm4161, %v10154
    %10411 = vst.msk [vmem:[#allocation28 + $0x260] sm:$0xff] %vm4161, %v10155
    %10412 = vst.msk [vmem:[#allocation28 + $0x268] sm:$0xff] %vm4161, %v10156
    %10413 = vst.msk [vmem:[#allocation28 + $0x270] sm:$0xff] %vm4161, %v10157
    %10414 = vst.msk [vmem:[#allocation28 + $0x278] sm:$0xff] %vm4161, %v10158
    %10415 = vst.msk [vmem:[#allocation28 + $0x280] sm:$0xff] %vm4161, %v10159
    %10416 = vst.msk [vmem:[#allocation28 + $0x288] sm:$0xff] %vm4161, %v10160
    %10417 = vst.msk [vmem:[#allocation28 + $0x290] sm:$0xff] %vm4161, %v10161
    %10418 = vst.msk [vmem:[#allocation28 + $0x298] sm:$0xff] %vm4161, %v10162
    %10419 = vst.msk [vmem:[#allocation28 + $0x2a0] sm:$0xff] %vm4161, %v10163
    %10420 = vst.msk [vmem:[#allocation28 + $0x2a8] sm:$0xff] %vm4161, %v10164
    %10421 = vst.msk [vmem:[#allocation28 + $0x2b0] sm:$0xff] %vm4161, %v10165
    %10422 = vst.msk [vmem:[#allocation28 + $0x2b8] sm:$0xff] %vm4161, %v10166
    %10423 = vst.msk [vmem:[#allocation28 + $0x2c0] sm:$0xff] %vm4161, %v10167
    %10424 = vst.msk [vmem:[#allocation28 + $0x2c8] sm:$0xff] %vm4161, %v10168
    %10425 = vst.msk [vmem:[#allocation28 + $0x2d0] sm:$0xff] %vm4161, %v10169
    %10426 = vst.msk [vmem:[#allocation28 + $0x2d8] sm:$0xff] %vm4161, %v10170
    %10427 = vst.msk [vmem:[#allocation28 + $0x2e0] sm:$0xff] %vm4161, %v10171
    %10428 = vst.msk [vmem:[#allocation28 + $0x2e8] sm:$0xff] %vm4161, %v10172
    %10429 = vst.msk [vmem:[#allocation28 + $0x2f0] sm:$0xff] %vm4161, %v10173
    %10430 = vst.msk [vmem:[#allocation28 + $0x2f8] sm:$0xff] %vm4161, %v10174
    %10431 = vst.msk [vmem:[#allocation28 + $0x300] sm:$0xff] %vm4161, %v10175
    %10432 = vst.msk [vmem:[#allocation28 + $0x308] sm:$0xff] %vm4161, %v10176
    %10433 = vst.msk [vmem:[#allocation28 + $0x310] sm:$0xff] %vm4161, %v10177
    %10434 = vst.msk [vmem:[#allocation28 + $0x318] sm:$0xff] %vm4161, %v10178
    %10435 = vst.msk [vmem:[#allocation28 + $0x320] sm:$0xff] %vm4161, %v10179
    %10436 = vst.msk [vmem:[#allocation28 + $0x328] sm:$0xff] %vm4161, %v10180
    %10437 = vst.msk [vmem:[#allocation28 + $0x330] sm:$0xff] %vm4161, %v10181
    %10438 = vst.msk [vmem:[#allocation28 + $0x338] sm:$0xff] %vm4161, %v10182
    %10439 = vst.msk [vmem:[#allocation28 + $0x340] sm:$0xff] %vm4161, %v10183
    %10440 = vst.msk [vmem:[#allocation28 + $0x348] sm:$0xff] %vm4161, %v10184
    %10441 = vst.msk [vmem:[#allocation28 + $0x350] sm:$0xff] %vm4161, %v10185
    %10442 = vst.msk [vmem:[#allocation28 + $0x358] sm:$0xff] %vm4161, %v10186
    %10443 = vst.msk [vmem:[#allocation28 + $0x360] sm:$0xff] %vm4161, %v10187
    %10444 = vst.msk [vmem:[#allocation28 + $0x368] sm:$0xff] %vm4161, %v10188
    %10445 = vst.msk [vmem:[#allocation28 + $0x370] sm:$0xff] %vm4161, %v10189
    %10446 = vst.msk [vmem:[#allocation28 + $0x378] sm:$0xff] %vm4161, %v10190
    %10447 = vst.msk [vmem:[#allocation28 + $0x380] sm:$0xff] %vm4161, %v10191
    %10448 = vst.msk [vmem:[#allocation28 + $0x388] sm:$0xff] %vm4161, %v10192
    %10449 = vst.msk [vmem:[#allocation28 + $0x390] sm:$0xff] %vm4161, %v10193
    %10450 = vst.msk [vmem:[#allocation28 + $0x398] sm:$0xff] %vm4161, %v10194
    %10451 = vst.msk [vmem:[#allocation28 + $0x3a0] sm:$0xff] %vm4161, %v10195
    %10452 = vst.msk [vmem:[#allocation28 + $0x3a8] sm:$0xff] %vm4161, %v10196
    %10453 = vst.msk [vmem:[#allocation28 + $0x3b0] sm:$0xff] %vm4161, %v10197
    %10454 = vst.msk [vmem:[#allocation28 + $0x3b8] sm:$0xff] %vm4161, %v10198
    %10455 = vst.msk [vmem:[#allocation28 + $0x3c0] sm:$0xff] %vm4161, %v10199
    %10456 = vst.msk [vmem:[#allocation28 + $0x3c8] sm:$0xff] %vm4161, %v10200
    %10457 = vst.msk [vmem:[#allocation28 + $0x3d0] sm:$0xff] %vm4161, %v10201
    %10458 = vst.msk [vmem:[#allocation28 + $0x3d8] sm:$0xff] %vm4161, %v10202
    %10459 = vst.msk [vmem:[#allocation28 + $0x3e0] sm:$0xff] %vm4161, %v10203
    %10460 = vst.msk [vmem:[#allocation28 + $0x3e8] sm:$0xff] %vm4161, %v10204
    %10461 = vst.msk [vmem:[#allocation28 + $0x3f0] sm:$0xff] %vm4161, %v10205
    %10462 = vst.msk [vmem:[#allocation28 + $0x3f8] sm:$0xff] %vm4161, %v10206
    %10463 = vst.msk [vmem:[#allocation28 + $0x400] sm:$0xff] %vm4161, %v10207
    %10464 = vst.msk [vmem:[#allocation28 + $0x408] sm:$0xff] %vm4161, %v10208
    %10465 = vst.msk [vmem:[#allocation28 + $0x410] sm:$0xff] %vm4161, %v10209
    %10466 = vst.msk [vmem:[#allocation28 + $0x418] sm:$0xff] %vm4161, %v10210
    %10467 = vst.msk [vmem:[#allocation28 + $0x420] sm:$0xff] %vm4161, %v10211
    %10468 = vst.msk [vmem:[#allocation28 + $0x428] sm:$0xff] %vm4161, %v10212
    %10469 = vst.msk [vmem:[#allocation28 + $0x430] sm:$0xff] %vm4161, %v10213
    %10470 = vst.msk [vmem:[#allocation28 + $0x438] sm:$0xff] %vm4161, %v10214
    %10471 = vst.msk [vmem:[#allocation28 + $0x440] sm:$0xff] %vm4161, %v10215
    %10472 = vst.msk [vmem:[#allocation28 + $0x448] sm:$0xff] %vm4161, %v10216
    %10473 = vst.msk [vmem:[#allocation28 + $0x450] sm:$0xff] %vm4161, %v10217
    %10474 = vst.msk [vmem:[#allocation28 + $0x458] sm:$0xff] %vm4161, %v10218
    %10475 = vst.msk [vmem:[#allocation28 + $0x460] sm:$0xff] %vm4161, %v10219
    %10476 = vst.msk [vmem:[#allocation28 + $0x468] sm:$0xff] %vm4161, %v10220
    %10477 = vst.msk [vmem:[#allocation28 + $0x470] sm:$0xff] %vm4161, %v10221
    %10478 = vst.msk [vmem:[#allocation28 + $0x478] sm:$0xff] %vm4161, %v10222
    %10479 = vst.msk [vmem:[#allocation28 + $0x480] sm:$0xff] %vm4161, %v10223
    %10480 = vst.msk [vmem:[#allocation28 + $0x488] sm:$0xff] %vm4161, %v10224
    %10481 = vst.msk [vmem:[#allocation28 + $0x490] sm:$0xff] %vm4161, %v10225
    %10482 = vst.msk [vmem:[#allocation28 + $0x498] sm:$0xff] %vm4161, %v10226
    %10483 = vst.msk [vmem:[#allocation28 + $0x4a0] sm:$0xff] %vm4161, %v10227
    %10484 = vst.msk [vmem:[#allocation28 + $0x4a8] sm:$0xff] %vm4161, %v10228
    %10485 = vst.msk [vmem:[#allocation28 + $0x4b0] sm:$0xff] %vm4161, %v10229
    %10486 = vst.msk [vmem:[#allocation28 + $0x4b8] sm:$0xff] %vm4161, %v10230
    %10487 = vst.msk [vmem:[#allocation28 + $0x4c0] sm:$0xff] %vm4161, %v10231
    %10488 = vst.msk [vmem:[#allocation28 + $0x4c8] sm:$0xff] %vm4161, %v10232
    %10489 = vst.msk [vmem:[#allocation28 + $0x4d0] sm:$0xff] %vm4161, %v10233
    %10490 = vst.msk [vmem:[#allocation28 + $0x4d8] sm:$0xff] %vm4161, %v10234
    %10491 = vst.msk [vmem:[#allocation28 + $0x4e0] sm:$0xff] %vm4161, %v10235
    %10492 = vst.msk [vmem:[#allocation28 + $0x4e8] sm:$0xff] %vm4161, %v10236
    %10493 = vst.msk [vmem:[#allocation28 + $0x4f0] sm:$0xff] %vm4161, %v10237
    %10494 = vst.msk [vmem:[#allocation28 + $0x4f8] sm:$0xff] %vm4161, %v10238
    %10495 = vst.msk [vmem:[#allocation28 + $0x500] sm:$0xff] %vm4161, %v10239
    %10496 = vst.msk [vmem:[#allocation28 + $0x508] sm:$0xff] %vm4161, %v10240
    %10497 = vst.msk [vmem:[#allocation28 + $0x510] sm:$0xff] %vm4161, %v10241
    %10498 = vst.msk [vmem:[#allocation28 + $0x518] sm:$0xff] %vm4161, %v10242
    %10499 = vst.msk [vmem:[#allocation28 + $0x520] sm:$0xff] %vm4161, %v10243
    %10500 = vst.msk [vmem:[#allocation28 + $0x528] sm:$0xff] %vm4161, %v10244
    %10501 = vst.msk [vmem:[#allocation28 + $0x530] sm:$0xff] %vm4161, %v10245
    %10502 = vst.msk [vmem:[#allocation28 + $0x538] sm:$0xff] %vm4161, %v10246
    %10503 = vst.msk [vmem:[#allocation28 + $0x540] sm:$0xff] %vm4161, %v10247
    %10504 = vst.msk [vmem:[#allocation28 + $0x548] sm:$0xff] %vm4161, %v10248
    %10505 = vst.msk [vmem:[#allocation28 + $0x550] sm:$0xff] %vm4161, %v10249
    %10506 = vst.msk [vmem:[#allocation28 + $0x558] sm:$0xff] %vm4161, %v10250
    %10507 = vst.msk [vmem:[#allocation28 + $0x560] sm:$0xff] %vm4161, %v10251
    %10508 = vst.msk [vmem:[#allocation28 + $0x568] sm:$0xff] %vm4161, %v10252
    %10509 = vst.msk [vmem:[#allocation28 + $0x570] sm:$0xff] %vm4161, %v10253
    %10510 = vst.msk [vmem:[#allocation28 + $0x578] sm:$0xff] %vm4161, %v10254
    %10511 = vst.msk [vmem:[#allocation28 + $0x580] sm:$0xff] %vm4161, %v10255
    %10512 = vst.msk [vmem:[#allocation28 + $0x588] sm:$0xff] %vm4161, %v10256
    %10513 = vst.msk [vmem:[#allocation28 + $0x590] sm:$0xff] %vm4161, %v10257
    %10514 = vst.msk [vmem:[#allocation28 + $0x598] sm:$0xff] %vm4161, %v10258
    %10515 = vst.msk [vmem:[#allocation28 + $0x5a0] sm:$0xff] %vm4161, %v10259
    %10516 = vst.msk [vmem:[#allocation28 + $0x5a8] sm:$0xff] %vm4161, %v10260
    %10517 = vst.msk [vmem:[#allocation28 + $0x5b0] sm:$0xff] %vm4161, %v10261
    %10518 = vst.msk [vmem:[#allocation28 + $0x5b8] sm:$0xff] %vm4161, %v10262
    %10519 = vst.msk [vmem:[#allocation28 + $0x5c0] sm:$0xff] %vm4161, %v10263
    %10520 = vst.msk [vmem:[#allocation28 + $0x5c8] sm:$0xff] %vm4161, %v10264
    %10521 = vst.msk [vmem:[#allocation28 + $0x5d0] sm:$0xff] %vm4161, %v10265
    %10522 = vst.msk [vmem:[#allocation28 + $0x5d8] sm:$0xff] %vm4161, %v10266
    %10523 = vst.msk [vmem:[#allocation28 + $0x5e0] sm:$0xff] %vm4161, %v10267
    %10524 = vst.msk [vmem:[#allocation28 + $0x5e8] sm:$0xff] %vm4161, %v10268
    %10525 = vst.msk [vmem:[#allocation28 + $0x5f0] sm:$0xff] %vm4161, %v10269
    %10526 = vst.msk [vmem:[#allocation28 + $0x5f8] sm:$0xff] %vm4161, %v10270
    %10527 = vst.msk [vmem:[#allocation28 + $0x600] sm:$0xff] %vm4161, %v10271
    %10528 = vst.msk [vmem:[#allocation28 + $0x608] sm:$0xff] %vm4161, %v10272
    %10529 = vst.msk [vmem:[#allocation28 + $0x610] sm:$0xff] %vm4161, %v10273
    %10530 = vst.msk [vmem:[#allocation28 + $0x618] sm:$0xff] %vm4161, %v10274
    %10531 = vst.msk [vmem:[#allocation28 + $0x620] sm:$0xff] %vm4161, %v10275
    %10532 = vst.msk [vmem:[#allocation28 + $0x628] sm:$0xff] %vm4161, %v10276
    %10533 = vst.msk [vmem:[#allocation28 + $0x630] sm:$0xff] %vm4161, %v10277
    %10534 = vst.msk [vmem:[#allocation28 + $0x638] sm:$0xff] %vm4161, %v10278
    %10535 = vst.msk [vmem:[#allocation28 + $0x640] sm:$0xff] %vm4161, %v10279
    %10536 = vst.msk [vmem:[#allocation28 + $0x648] sm:$0xff] %vm4161, %v10280
    %10537 = vst.msk [vmem:[#allocation28 + $0x650] sm:$0xff] %vm4161, %v10281
    %10538 = vst.msk [vmem:[#allocation28 + $0x658] sm:$0xff] %vm4161, %v10282
    %10539 = vst.msk [vmem:[#allocation28 + $0x660] sm:$0xff] %vm4161, %v10283
    %10540 = vst.msk [vmem:[#allocation28 + $0x668] sm:$0xff] %vm4161, %v10284
    %10541 = vst.msk [vmem:[#allocation28 + $0x670] sm:$0xff] %vm4161, %v10285
    %10542 = vst.msk [vmem:[#allocation28 + $0x678] sm:$0xff] %vm4161, %v10286
    %10543 = vst.msk [vmem:[#allocation28 + $0x680] sm:$0xff] %vm4161, %v10287
    %10544 = vst.msk [vmem:[#allocation28 + $0x688] sm:$0xff] %vm4161, %v10288
    %10545 = vst.msk [vmem:[#allocation28 + $0x690] sm:$0xff] %vm4161, %v10289
    %10546 = vst.msk [vmem:[#allocation28 + $0x698] sm:$0xff] %vm4161, %v10290
    %10547 = vst.msk [vmem:[#allocation28 + $0x6a0] sm:$0xff] %vm4161, %v10291
    %10548 = vst.msk [vmem:[#allocation28 + $0x6a8] sm:$0xff] %vm4161, %v10292
    %10549 = vst.msk [vmem:[#allocation28 + $0x6b0] sm:$0xff] %vm4161, %v10293
    %10550 = vst.msk [vmem:[#allocation28 + $0x6b8] sm:$0xff] %vm4161, %v10294
    %10551 = vst.msk [vmem:[#allocation28 + $0x6c0] sm:$0xff] %vm4161, %v10295
    %10552 = vst.msk [vmem:[#allocation28 + $0x6c8] sm:$0xff] %vm4161, %v10296
    %10553 = vst.msk [vmem:[#allocation28 + $0x6d0] sm:$0xff] %vm4161, %v10297
    %10554 = vst.msk [vmem:[#allocation28 + $0x6d8] sm:$0xff] %vm4161, %v10298
    %10555 = vst.msk [vmem:[#allocation28 + $0x6e0] sm:$0xff] %vm4161, %v10299
    %10556 = vst.msk [vmem:[#allocation28 + $0x6e8] sm:$0xff] %vm4161, %v10300
    %10557 = vst.msk [vmem:[#allocation28 + $0x6f0] sm:$0xff] %vm4161, %v10301
    %10558 = vst.msk [vmem:[#allocation28 + $0x6f8] sm:$0xff] %vm4161, %v10302
    %10559 = vst.msk [vmem:[#allocation28 + $0x700] sm:$0xff] %vm4161, %v10303
    %10560 = vst.msk [vmem:[#allocation28 + $0x708] sm:$0xff] %vm4161, %v10304
    %10561 = vst.msk [vmem:[#allocation28 + $0x710] sm:$0xff] %vm4161, %v10305
    %10562 = vst.msk [vmem:[#allocation28 + $0x718] sm:$0xff] %vm4161, %v10306
    %10563 = vst.msk [vmem:[#allocation28 + $0x720] sm:$0xff] %vm4161, %v10307
    %10564 = vst.msk [vmem:[#allocation28 + $0x728] sm:$0xff] %vm4161, %v10308
    %10565 = vst.msk [vmem:[#allocation28 + $0x730] sm:$0xff] %vm4161, %v10309
    %10566 = vst.msk [vmem:[#allocation28 + $0x738] sm:$0xff] %vm4161, %v10310
    %10567 = vst.msk [vmem:[#allocation28 + $0x740] sm:$0xff] %vm4161, %v10311
    %10568 = vst.msk [vmem:[#allocation28 + $0x748] sm:$0xff] %vm4161, %v10312
    %10569 = vst.msk [vmem:[#allocation28 + $0x750] sm:$0xff] %vm4161, %v10313
    %10570 = vst.msk [vmem:[#allocation28 + $0x758] sm:$0xff] %vm4161, %v10314
    %10571 = vst.msk [vmem:[#allocation28 + $0x760] sm:$0xff] %vm4161, %v10315
    %10572 = vst.msk [vmem:[#allocation28 + $0x768] sm:$0xff] %vm4161, %v10316
    %10573 = vst.msk [vmem:[#allocation28 + $0x770] sm:$0xff] %vm4161, %v10317
    %10574 = vst.msk [vmem:[#allocation28 + $0x778] sm:$0xff] %vm4161, %v10318
    %10575 = vst.msk [vmem:[#allocation28 + $0x780] sm:$0xff] %vm4161, %v10319
    %10576 = vst.msk [vmem:[#allocation28 + $0x788] sm:$0xff] %vm4161, %v10320
    %10577 = vst.msk [vmem:[#allocation28 + $0x790] sm:$0xff] %vm4161, %v10321
    %10578 = vst.msk [vmem:[#allocation28 + $0x798] sm:$0xff] %vm4161, %v10322
    %10579 = vst.msk [vmem:[#allocation28 + $0x7a0] sm:$0xff] %vm4161, %v10323
    %10580 = vst.msk [vmem:[#allocation28 + $0x7a8] sm:$0xff] %vm4161, %v10324
    %10581 = vst.msk [vmem:[#allocation28 + $0x7b0] sm:$0xff] %vm4161, %v10325
    %10582 = vst.msk [vmem:[#allocation28 + $0x7b8] sm:$0xff] %vm4161, %v10326
    %10583 = vst.msk [vmem:[#allocation28 + $0x7c0] sm:$0xff] %vm4161, %v10327
    %10584 = vst.msk [vmem:[#allocation28 + $0x7c8] sm:$0xff] %vm4161, %v10328
    %10585 = vst.msk [vmem:[#allocation28 + $0x7d0] sm:$0xff] %vm4161, %v10329
    %10586 = vst.msk [vmem:[#allocation28 + $0x7d8] sm:$0xff] %vm4161, %v10330
    %10587 = vst.msk [vmem:[#allocation28 + $0x7e0] sm:$0xff] %vm4161, %v10331
    %10588 = vst.msk [vmem:[#allocation28 + $0x7e8] sm:$0xff] %vm4161, %v10332
    %10589 = vst.msk [vmem:[#allocation28 + $0x7f0] sm:$0xff] %vm4161, %v10333
    %10590 = vst.msk [vmem:[#allocation28 + $0x7f8] sm:$0xff] %vm4161, %v10334
    // Predicated region
    $region182: #{decoder0_forward.1} parent=1 // pred_check
      _
    $region183: #{decoder0_forward.1} parent=1 // pred_check_branch
      %10592 = sbr.rel (0) target = $region185
    $region184: #{decoder0_forward.1} parent=1 // pred_region
      %s10594 = ssub.s32 32768, 32768
      %10595 = vsyncadd [#allocation4], %s10594
      %s10596 = sshll.u32 [#allocation28], 4
      %s10597 = int_to_ptr.vmem [resolvable:$true] %s10596
      %10602 = dma.vmem_to_hbm [thread:$0]  %s10597, 32768, %s59, [#allocation4], 128, 128, 8
    $region185: #{decoder0_forward.1} parent=1 // pred_fallthru
      _
    // Predicated region
    $region186: #{decoder0_forward.1} parent=1 // pred_check
      _
    $region187: #{decoder0_forward.1} parent=1 // pred_check_branch
      %10604 = sbr.rel (0) target = $region189
    $region188: #{decoder0_forward.1} parent=1 // pred_region
      %10605 = dma.done [#allocation4], 32768
    $region189: #{decoder0_forward.1} parent=1 // pred_fallthru
      _
    %10606 = vsyncpa [#allocation3], 1
    %10607 = vsyncpa [#allocation6], 1
    %10608 = vsyncpa [#allocation9], 1
    %10609 = vsyncpa [#allocation12], 1
    %10610 = vsyncpa [#allocation15], 1
    %10611 = vsyncpa [#allocation18], 1
    %10612 = vsyncpa [#allocation21], 1
    %10613 = vsyncpa [#allocation24], 1
    %10614 = vsyncpa [#allocation27], 1
    %10615 = vsyncpa [#allocation4], 1

</llo_original>
